<compile_context>
chip_gen: v7x
topology: tpu7x:2x2x1
jax: 0.10.0
libtpu: 0.0.40
codegen_flags: <defaults>
</compile_context>

<pallas_src>
import functools

import numpy as np
import jax
import jax.numpy as jnp
from jax.experimental import pallas as pl
from jax.experimental.pallas import tpu as pltpu

PATCH = 14
MXU_DTYPE = jnp.bfloat16      # matmul operand / activation dtype (f32 accumulation)
LN_EPS = 1e-6                 # DINOv2 LayerNorm eps
VMEM_LIMIT = 32 * 1024 * 1024  # safe for v7x (64 MiB); could go higher on v5e/v6e


def _apply_act(y, act):
    if act == "relu":
        return jnp.maximum(y, 0.0)
    if act == "gelu":
        # TODO(synk): PyTorch nn.GELU is exact (erf); tanh approximation used here (EUP).
        return jax.nn.gelu(y, approximate=True)
    return y


def _pick_tile(dim, pref, floor=128):
    """Largest power-of-two tile in [floor, pref] that divides `dim`, else the full dim.
    TODO(synk): at production shapes use pl.cdiv grids + padding for large non-multiple
    dims (full-dim fallback is a VMEM blow-up risk on v7x)."""
    t = pref
    while t >= floor:
        if dim >= t and dim % t == 0:
            return t
        t //= 2
    return dim


# --------------------- tiled matmul (+bias/act/residual epilogue) ---------------------


def _matmul_kernel(*refs, act, has_res, multi_k, use_scratch):
    refs = list(refs)
    acc_ref = refs.pop() if use_scratch else None
    if has_res:
        x_ref, w_ref, b_ref, res_ref, o_ref = refs
    else:
        x_ref, w_ref, b_ref, o_ref = refs
        res_ref = None

    def epilogue(acc):
        y = _apply_act(acc + b_ref[...], act)
        if res_ref is not None:                  # fused residual add
            y = y + res_ref[...].astype(jnp.float32)
        o_ref[...] = y.astype(o_ref.dtype)

    part = jnp.dot(x_ref[...], w_ref[...], preferred_element_type=jnp.float32)

    if not multi_k:                              # single K step: no accumulator at all
        epilogue(part)
        return

    # K is tiled: f32 outputs accumulate in the resident o_ref (block index constant over
    # k); bf16 outputs need the f32 VMEM scratch.
    acc = acc_ref if use_scratch else o_ref
    k = pl.program_id(2)

    @pl.when(k == 0)
    def _():
        acc[...] = jnp.zeros_like(acc)

    acc[...] += part

    @pl.when(k == pl.num_programs(2) - 1)
    def _():
        epilogue(acc[...])


def linear_pallas(x, w, b, act="none", residual=None, out_dtype=MXU_DTYPE,
                  tm=256, tn=256, tk=512):
    """y = act(x @ w + b) [+ residual].  x:(M,K) bf16, w:(K,N) bf16, b:(N,) f32."""
    M, K = x.shape
    N = w.shape[1]
    x = x.astype(MXU_DTYPE)                      # no-op when the stream is already bf16
    tm = _pick_tile(M, tm)
    tn = _pick_tile(N, tn)
    tk = _pick_tile(K, tk)
    nk = K // tk
    multi_k = nk > 1
    use_scratch = multi_k and out_dtype != jnp.float32
    grid = (M // tm, N // tn, nk)
    in_specs = [
        pl.BlockSpec((tm, tk), lambda i, j, k: (i, k)),
        pl.BlockSpec((tk, tn), lambda i, j, k: (k, j)),
        pl.BlockSpec((1, tn), lambda i, j, k: (0, j)),
    ]
    args = [x, w, b.reshape(1, N)]
    if residual is not None:
        in_specs.append(pl.BlockSpec((tm, tn), lambda i, j, k: (i, j)))
        args.append(residual)
    scratch = [pltpu.VMEM((tm, tn), jnp.float32)] if use_scratch else []
    return pl.pallas_call(
        functools.partial(_matmul_kernel, act=act, has_res=residual is not None,
                          multi_k=multi_k, use_scratch=use_scratch),
        out_shape=jax.ShapeDtypeStruct((M, N), out_dtype),
        grid=grid,
        in_specs=in_specs,
        out_specs=pl.BlockSpec((tm, tn), lambda i, j, k: (i, j)),
        scratch_shapes=scratch,
        compiler_params=pltpu.CompilerParams(
            dimension_semantics=("parallel", "parallel", "arbitrary"),
            vmem_limit_bytes=VMEM_LIMIT,
        ),
    )(*args)


# --------------------------- fused LayerNorm + matmul ---------------------------------


def _ln_matmul_kernel(x_ref, g_ref, beta_ref, w_ref, b_ref, o_ref, *, act):
    x = x_ref[...].astype(jnp.float32)           # bf16 stream -> f32 LN statistics
    mu = jnp.mean(x, axis=-1, keepdims=True)
    var = jnp.mean(jnp.square(x - mu), axis=-1, keepdims=True)
    h = (x - mu) * jax.lax.rsqrt(var + LN_EPS) * g_ref[...] + beta_ref[...]
    y = jnp.dot(h.astype(MXU_DTYPE), w_ref[...], preferred_element_type=jnp.float32)
    o_ref[...] = _apply_act(y + b_ref[...], act).astype(o_ref.dtype)


def ln_matmul_pallas(x, g, beta, w, b, act="none", out_dtype=MXU_DTYPE, tm=256, tn=256):
    """y = act(LayerNorm(x) @ w + b).  K kept un-tiled so LN stats stay in-kernel."""
    M, K = x.shape
    N = w.shape[1]
    x = x.astype(MXU_DTYPE)
    tm = _pick_tile(M, tm)
    tn = _pick_tile(N, tn)
    return pl.pallas_call(
        functools.partial(_ln_matmul_kernel, act=act),
        out_shape=jax.ShapeDtypeStruct((M, N), out_dtype),
        grid=(M // tm, N // tn),
        in_specs=[
            pl.BlockSpec((tm, K), lambda i, j: (i, 0)),
            pl.BlockSpec((1, K), lambda i, j: (0, 0)),
            pl.BlockSpec((1, K), lambda i, j: (0, 0)),
            pl.BlockSpec((K, tn), lambda i, j: (0, j)),
            pl.BlockSpec((1, tn), lambda i, j: (0, j)),
        ],
        out_specs=pl.BlockSpec((tm, tn), lambda i, j: (i, j)),
        compiler_params=pltpu.CompilerParams(
            dimension_semantics=("parallel", "parallel"),
            vmem_limit_bytes=VMEM_LIMIT,
        ),
    )(x, g.reshape(1, K), beta.reshape(1, K), w, b.reshape(1, N))


# ------------------------ flash-style multi-head attention ----------------------------


def _flash_attn_kernel(q_ref, kv_ref, o_ref, m_sc, l_sc, acc_sc, *, scale, heads, D):
    kv_i = pl.program_id(1)

    @pl.when(kv_i == 0)
    def _():
        m_sc[...] = jnp.full_like(m_sc, -jnp.inf)
        l_sc[...] = jnp.zeros_like(l_sc)
        acc_sc[...] = jnp.zeros_like(acc_sc)

    Dh = D // heads
    for h in range(heads):                       # static head split (no layout transposes)
        lo = h * Dh
        qh = q_ref[0, :, lo:lo + Dh]             # (S, Dh)  bf16  (q columns of qkv)
        kh = kv_ref[0, :, D + lo:D + lo + Dh]    # (tk, Dh) bf16  (k columns of qkv)
        vh = kv_ref[0, :, 2 * D + lo:2 * D + lo + Dh]
        s = jax.lax.dot_general(qh, kh, (((1,), (1,)), ((), ())),
                                preferred_element_type=jnp.float32) * scale
        m_prev = m_sc[h]
        m_new = jnp.maximum(m_prev, jnp.max(s, axis=-1, keepdims=True))
        alpha = jnp.exp(m_prev - m_new)
        p = jnp.exp(s - m_new)
        l_sc[h] = alpha * l_sc[h] + jnp.sum(p, axis=-1, keepdims=True)
        acc_sc[h] = alpha * acc_sc[h] + jnp.dot(
            p.astype(MXU_DTYPE), vh, preferred_element_type=jnp.float32)
        m_sc[h] = m_new

    @pl.when(kv_i == pl.num_programs(1) - 1)
    def _():
        for h in range(heads):
            lo = h * Dh
            o_ref[0, :, lo:lo + Dh] = (
                acc_sc[h] * pl.reciprocal(l_sc[h], approx=True)
            ).astype(o_ref.dtype)


def attention_pallas(qkv, heads, scale):
    """Softmax attention.  qkv: (NB, S, 3D) bf16 packed [q|k|v]; the same array is passed
    twice (full-S view for q, kv-tiled view for k/v) so no XLA slice materialization."""
    NB, S, D3 = qkv.shape
    D = D3 // 3
    tk = 128 if (S > 128 and S % 128 == 0) else S
    # TODO(synk): at production S also tile the q axis so q/acc scratch stays bounded (v7x).
    grid = (NB, S // tk)
    return pl.pallas_call(
        functools.partial(_flash_attn_kernel, scale=scale, heads=heads, D=D),
        out_shape=jax.ShapeDtypeStruct((NB, S, D), MXU_DTYPE),
        grid=grid,
        in_specs=[pl.BlockSpec((1, S, D3), lambda b, kv: (b, 0, 0)),
                  pl.BlockSpec((1, tk, D3), lambda b, kv: (b, kv, 0))],
        out_specs=pl.BlockSpec((1, S, D), lambda b, kv: (b, 0, 0)),
        scratch_shapes=[
            pltpu.VMEM((heads, S, 1), jnp.float32),          # running max m
            pltpu.VMEM((heads, S, 1), jnp.float32),          # running denom l
            pltpu.VMEM((heads, S, D // heads), jnp.float32),  # running numerator acc
        ],
        compiler_params=pltpu.CompilerParams(
            dimension_semantics=("parallel", "arbitrary"),
            vmem_limit_bytes=VMEM_LIMIT,
        ),
    )(qkv, qkv)


# ------------------- temporal attention (transpose folded into BlockSpec) -------------


def _temporal_attn_kernel(qkv_ref, o_ref, *, F_, scale):
    qkv = qkv_ref[0]                             # (T, tp, 3F) bf16
    q = qkv[:, :, :F_]
    k = qkv[:, :, F_:2 * F_]
    v = qkv[:, :, 2 * F_:]
    # Attention over the frame axis T, batched over the patch axis (tp): s (tp, Tq, Tk).
    s = jax.lax.dot_general(q, k, (((2,), (2,)), ((1,), (1,))),
                            preferred_element_type=jnp.float32) * scale
    s = s - jnp.max(s, axis=-1, keepdims=True)
    p = jnp.exp(s)
    p = p * pl.reciprocal(jnp.sum(p, axis=-1, keepdims=True), approx=True)
    o = jax.lax.dot_general(p.astype(MXU_DTYPE), v, (((2,), (0,)), ((0,), (1,))),
                            preferred_element_type=jnp.float32)   # (tp, Tq, F)
    o_ref[0] = jnp.transpose(o, (1, 0, 2)).astype(o_ref.dtype)    # back to (T, tp, F)


def temporal_attention_pallas(qkv, F_):
    """qkv: (B, T, P, 3F) -> (B, T, P, F); attention across T for each (b, p).  The
    (B,T,P)->(B,P,T) permutation is folded into the BlockSpec (grid over (B, P-tiles))."""
    B, T, P, _ = qkv.shape
    tp = _pick_tile(P, 128, floor=8)
    scale = float(F_) ** -0.5
    return pl.pallas_call(
        functools.partial(_temporal_attn_kernel, F_=F_, scale=scale),
        out_shape=jax.ShapeDtypeStruct((B, T, P, F_), MXU_DTYPE),
        grid=(B, P // tp),
        in_specs=[pl.BlockSpec((1, T, tp, 3 * F_), lambda b, pi: (b, 0, pi, 0))],
        out_specs=pl.BlockSpec((1, T, tp, F_), lambda b, pi: (b, 0, pi, 0)),
        compiler_params=pltpu.CompilerParams(
            dimension_semantics=("parallel", "parallel"),
            vmem_limit_bytes=VMEM_LIMIT,
        ),
    )(qkv)


# ---- fused head tail: out1 -> relu -> out2(N=1) -> relu -> bilinear(AC=True) -> relu ---


def _head_tail_kernel(f_ref, w1_ref, b1_ref, w2_ref, b2_ref, ag_ref, c_ref, o_ref):
    z1 = jnp.dot(f_ref[0], w1_ref[...], preferred_element_type=jnp.float32)
    z1 = jnp.maximum(z1 + b1_ref[...], 0.0)                       # (P, F/2)
    z2 = jnp.dot(z1.astype(MXU_DTYPE), w2_ref[...], preferred_element_type=jnp.float32)
    z2 = jnp.maximum(z2 + b2_ref[...], 0.0)                       # (P, 1) -- in VMEM only
    d = z2 * c_ref[...]                                           # (P, W) broadcast
    y = jnp.dot(ag_ref[...], d.astype(MXU_DTYPE),
                preferred_element_type=jnp.float32)               # (H, W) = Lh @ Z @ Lw^T
    o_ref[0] = jnp.maximum(y, 0.0)


def bilinear_matrix(dst, src):
    """Row-interpolation matrix for F.interpolate(mode='bilinear', align_corners=True)."""
    m = np.zeros((dst, src), np.float32)
    if src == 1 or dst == 1:
        m[:, 0] = 1.0
        return m
    for i in range(dst):
        pos = i * (src - 1) / (dst - 1)
        lo = int(np.floor(pos))
        hi = min(lo + 1, src - 1)
        frac = pos - lo
        m[i, lo] += 1.0 - frac
        m[i, hi] += frac
    return m


def head_tail_bilinear_relu(fused, hp, ph, pw, H, W):
    """fused: (NB, P, F) bf16 -> (NB, H, W) f32, one fused kernel per image.
    Bilinear (Lh @ Z @ Lw^T) is rewritten as AG @ (z2 * C) with AG[h, i*pw+j] = Lh[h, i]
    and C[i*pw+j, w] = Lw[w, j], so the (P,1) column never needs an in-kernel reshape."""
    NB, P, F_ = fused.shape
    Fh = hp["out1_w"].shape[1]
    Lh = bilinear_matrix(H, ph)                                    # (H, ph)
    LwT = bilinear_matrix(W, pw).T                                 # (pw, W)
    AG = jnp.asarray(np.repeat(Lh, pw, axis=1), MXU_DTYPE)         # (H, P)
    C = jnp.asarray(np.tile(LwT, (ph, 1)), jnp.float32)            # (P, W)
    return pl.pallas_call(
        _head_tail_kernel,
        out_shape=jax.ShapeDtypeStruct((NB, H, W), jnp.float32),
        grid=(NB,),
        in_specs=[
            pl.BlockSpec((1, P, F_), lambda i: (i, 0, 0)),
            pl.BlockSpec((F_, Fh), lambda i: (0, 0)),
            pl.BlockSpec((1, Fh), lambda i: (0, 0)),
            pl.BlockSpec((Fh, 1), lambda i: (0, 0)),
            pl.BlockSpec((1, 1), lambda i: (0, 0)),
            pl.BlockSpec((H, P), lambda i: (0, 0)),
            pl.BlockSpec((P, W), lambda i: (0, 0)),
        ],
        out_specs=pl.BlockSpec((1, H, W), lambda i: (i, 0, 0)),
        compiler_params=pltpu.CompilerParams(
            dimension_semantics=("parallel",), vmem_limit_bytes=VMEM_LIMIT),
    )(fused, hp["out1_w"], hp["out1_b"].reshape(1, Fh),
      hp["out2_w"], hp["out2_b"].reshape(1, 1), AG, C)


# ------------------------------ configuration -----------------------------------------


class Cfg:
    # Scaled-down, lane-dense analogue of encoder='vitl' (embed_dim 1024, 24 blocks);
    # all feature dims are multiples of 128 so stores stay unmasked / MXU tiles are full.
    embed_dim = 128
    depth = 4
    heads = 2                      # head dim 64 (same as vitl)
    mlp_ratio = 4
    features = 128
    out_channels = (128, 256, 256, 256)
    intermediate_layer_idx = (0, 1, 2, 3)   # analogue of vitl [4, 11, 17, 23]


# ------------------------------ parameter init ----------------------------------------


def init_params(key, cfg, num_patches):
    keys = iter(jax.random.split(key, 128))

    def nrm_f32(shape, scale=0.02):
        return scale * jax.random.normal(next(keys), shape, jnp.float32)

    def nrm(shape, scale=0.02):
        return nrm_f32(shape, scale).astype(MXU_DTYPE)   # weights pre-cast to bf16 once

    def zeros(shape):
        return jnp.zeros(shape, jnp.float32)

    def ones(shape):
        return jnp.ones(shape, jnp.float32)

    D = cfg.embed_dim
    F_ = cfg.features
    p = {}
    # DINOv2 patch embedding (Conv2d 14x14 stride 14 == matmul over flattened patches).
    p["patch_w"] = nrm((3 * PATCH * PATCH, D))
    p["patch_b"] = zeros((D,))
    p["cls"] = nrm((1, 1, D))
    p["pos"] = nrm((1, 1 + num_patches, D))
    blocks = []
    for _ in range(cfg.depth):
        blocks.append(dict(
            ln1_g=ones((D,)), ln1_b=zeros((D,)),
            qkv_w=nrm((D, 3 * D)), qkv_b=zeros((3 * D,)),
            proj_w=nrm((D, D)), proj_b=zeros((D,)),
            ln2_g=ones((D,)), ln2_b=zeros((D,)),
            fc1_w=nrm((D, cfg.mlp_ratio * D)), fc1_b=zeros((cfg.mlp_ratio * D,)),
            fc2_w=nrm((cfg.mlp_ratio * D, D)), fc2_b=zeros((D,)),
        ))
    p["blocks"] = blocks
    p["norm_g"] = ones((D,))
    p["norm_b"] = zeros((D,))

    head = dict(fold_w=[], fold_b=[])
    for oc in cfg.out_channels:
        # DPT per-level projection (D->oc) and resize conv (oc->F) have no nonlinearity
        # in between: fold to a single (D, F) matmul once at init (f32), store bf16.
        proj_w, rn_w = nrm_f32((D, oc)), nrm_f32((oc, F_))
        proj_b, rn_b = zeros((oc,)), zeros((F_,))
        head["fold_w"].append((proj_w @ rn_w).astype(MXU_DTYPE))
        head["fold_b"].append(proj_b @ rn_w + rn_b)
    # Temporal-attention q/k/v projections concatenated once at init (single fused matmul).
    t_q_w, t_k_w, t_v_w = nrm_f32((F_, F_)), nrm_f32((F_, F_)), nrm_f32((F_, F_))
    head.update(
        t_ln_g=ones((F_,)), t_ln_b=zeros((F_,)),
        t_qkv_w=jnp.concatenate([t_q_w, t_k_w, t_v_w], axis=1).astype(MXU_DTYPE),
        t_qkv_b=zeros((3 * F_,)),
        t_o_w=nrm((F_, F_)), t_o_b=zeros((F_,)),
        out1_w=nrm((F_, F_ // 2)), out1_b=zeros((F_ // 2,)),
        out2_w=nrm((F_ // 2, 1)), out2_b=zeros((1,)),
    )
    p["head"] = head
    return p


# ------------------------------- ViT encoder -------------------------------------------


def vit_block(blk, x_flat, NB, S, heads):
    """x_flat: (NB*S, D) bf16 residual stream.  LN fused into qkv/fc1, residual fused into
    proj/fc2 epilogues, heads and q/k/v split inside the attention kernel."""
    D = x_flat.shape[-1]
    Dh = D // heads
    qkv = ln_matmul_pallas(x_flat, blk["ln1_g"], blk["ln1_b"],
                           blk["qkv_w"], blk["qkv_b"])              # (NB*S, 3D) bf16
    o = attention_pallas(qkv.reshape(NB, S, 3 * D), heads=heads,
                         scale=float(Dh) ** -0.5)                   # (NB, S, D) bf16
    x_flat = linear_pallas(o.reshape(NB * S, D), blk["proj_w"], blk["proj_b"],
                           residual=x_flat)                         # x + proj(attn)
    h = ln_matmul_pallas(x_flat, blk["ln2_g"], blk["ln2_b"],
                         blk["fc1_w"], blk["fc1_b"], act="gelu")    # (NB*S, 4D)
    x_flat = linear_pallas(h, blk["fc2_w"], blk["fc2_b"], residual=x_flat)  # x + mlp
    return x_flat


def dinov2_get_intermediate_layers(p, x_imgs, cfg, layer_idx):
    """x_imgs: (N, C, H, W) f32 -> list of raw intermediate token tensors (N, S, D) bf16.
    (The final encoder LayerNorm is fused into the head's folded projection matmul.)"""
    NB, C, H, W = x_imgs.shape
    ph, pw = H // PATCH, W // PATCH
    D = cfg.embed_dim
    patches = x_imgs.reshape(NB, C, ph, PATCH, pw, PATCH)
    patches = patches.transpose(0, 2, 4, 1, 3, 5).reshape(NB * ph * pw, C * PATCH * PATCH)
    patches = patches.astype(MXU_DTYPE)          # activations enter the bf16 stream here
    tok = linear_pallas(patches, p["patch_w"], p["patch_b"]).reshape(NB, ph * pw, D)
    cls = jnp.broadcast_to(p["cls"], (NB, 1, D))
    x = jnp.concatenate([cls, tok], axis=1) + p["pos"]              # (NB, S, D) bf16
    S = 1 + ph * pw
    x = x.reshape(NB * S, D)
    collected = []
    for li, blk in enumerate(p["blocks"]):
        x = vit_block(blk, x, NB, S, cfg.heads)
        if li in layer_idx:
            collected.append(x.reshape(NB, S, D))
    return collected


# --------------------------- DPTHeadTemporal (small) ------------------------------------


def dpt_head_temporal(p, hp, feats, ph, pw, T, cfg):
    NB = feats[0].shape[0]
    B = NB // T
    P = ph * pw
    D = cfg.embed_dim
    F_ = cfg.features

    layers = []
    for i in range(4):
        pt = feats[i][:, 1:, :].reshape(NB * P, D)   # drop class token (use_clstoken=False)
        # Encoder final LayerNorm fused into the (folded) projection matmul.
        y = ln_matmul_pallas(pt, p["norm_g"], p["norm_b"],
                             hp["fold_w"][i], hp["fold_b"][i])
        layers.append(y.reshape(NB, P, F_))
    # TODO(synk): real DPTHeadTemporal resizes each level to a different spatial scale
    # (ConvTranspose2d/Conv2d) before fusion; levels are kept at (patch_h, patch_w) here.

    # Temporal (cross-frame) self-attention on the deepest level, residual; the
    # (B,T,P)<->(B,P,T) permutations are folded into the attention kernel's BlockSpec.
    l4 = layers[3]
    qkv = ln_matmul_pallas(l4.reshape(NB * P, F_), hp["t_ln_g"], hp["t_ln_b"],
                           hp["t_qkv_w"], hp["t_qkv_b"])             # (NB*P, 3F) bf16
    attn = temporal_attention_pallas(qkv.reshape(B, T, P, 3 * F_), F_)  # (B, T, P, F)
    layers[3] = linear_pallas(attn.reshape(NB * P, F_), hp["t_o_w"], hp["t_o_b"],
                              residual=l4.reshape(NB * P, F_)).reshape(NB, P, F_)

    # TODO(synk): FeatureFusionBlocks with progressive 2x upsampling replaced by a sum fusion.
    fused = layers[0] + layers[1] + layers[2] + layers[3]
    return fused                                   # (NB, P, F) bf16 -> fused tail kernel


# ------------------------------- full forward -------------------------------------------


def video_depth_anything_forward(params, x, cfg):
    B, T, C, H, W = x.shape
    ph, pw = H // PATCH, W // PATCH
    feats = dinov2_get_intermediate_layers(
        params, x.reshape(B * T, C, H, W), cfg, cfg.intermediate_layer_idx
    )
    fused = dpt_head_temporal(params, params["head"], feats, ph, pw, T, cfg)  # (B*T, P, F)
    depth = head_tail_bilinear_relu(fused, params["head"], ph, pw, H, W)      # (B*T, H, W)
    return depth.reshape(B, T, H, W)     # == depth.squeeze(1).unflatten(0, (B, T))


# ----------------------------------- main ------------------------------------------------


if __name__ == "__main__":
    cfg = Cfg()
    B, T, C, H, W = 2, 2, 3, 28, 28           # small shapes; H, W multiples of 14
    ph, pw = H // PATCH, W // PATCH

    key = jax.random.PRNGKey(0)
    pkey, xkey = jax.random.split(key)
    params = init_params(pkey, cfg, ph * pw)
    x = jax.random.normal(xkey, (B, T, C, H, W), jnp.float32)

    fwd = jax.jit(lambda p, xx: video_depth_anything_forward(p, xx, cfg))
    depth = jax.block_until_ready(fwd(params, x))

    assert depth.shape == (B, T, H, W), depth.shape
    assert depth.dtype == jnp.float32
    assert bool(jnp.all(jnp.isfinite(depth)))
    assert bool(jnp.all(depth >= 0.0))        # F.relu applied
    print("KERNEL_OK")
</pallas_src>

<mosaic_0001>
module attributes {stable_mosaic.version = 11 : i64} {
  func.func @_matmul_kernel(%arg0: i32, %arg1: i32, %arg2: i32, %arg3: memref<16x588xbf16, #tpu.memory_space<vmem>>, %arg4: memref<588x128xbf16, #tpu.memory_space<vmem>>, %arg5: memref<1x128xf32, #tpu.memory_space<vmem>>, %arg6: memref<16x128xbf16, #tpu.memory_space<vmem>>) attributes {dimension_semantics = [#tpu.dimension_semantics<parallel>, #tpu.dimension_semantics<parallel>, #tpu.dimension_semantics<arbitrary>], iteration_bounds = array<i64: 1, 1, 1>, scalar_prefetch = 0 : i64, scratch_operands = 0 : i64, tpu.core_type = #tpu.core_type<tc>, window_params = [{transform_indices = @transform_0, window_bounds = array<i64: 16, 588>}, {transform_indices = @transform_1, window_bounds = array<i64: 588, 128>}, {transform_indices = @transform_2, window_bounds = array<i64: 1, 128>}, {transform_indices = @transform_3, window_bounds = array<i64: 16, 128>}]} {
    %c0 = arith.constant 0 : index
    %c0_0 = arith.constant 0 : index
    %0 = vector.load %arg3[%c0, %c0_0] : memref<16x588xbf16, #tpu.memory_space<vmem>>, vector<16x588xbf16>
    %c0_1 = arith.constant 0 : index
    %c0_2 = arith.constant 0 : index
    %1 = vector.load %arg4[%c0_1, %c0_2] : memref<588x128xbf16, #tpu.memory_space<vmem>>, vector<588x128xbf16>
    %cst = arith.constant dense<0.000000e+00> : vector<16x128xf32>
    %2 = tpu.matmul %0, %1, %cst {dimension_numbers = #tpu.dot_dimension_numbers<[1], [0], [0], [1], [0, 0, 1, 1], [], []>} : vector<16x588xbf16>, vector<588x128xbf16>, vector<16x128xf32> -> vector<16x128xf32>
    %c0_3 = arith.constant 0 : index
    %c0_4 = arith.constant 0 : index
    %3 = vector.load %arg5[%c0_3, %c0_4] : memref<1x128xf32, #tpu.memory_space<vmem>>, vector<1x128xf32>
    %4 = vector.broadcast %3 : vector<1x128xf32> to vector<16x128xf32>
    %5 = arith.addf %2, %4 : vector<16x128xf32>
    %6 = arith.truncf %5 : vector<16x128xf32> to vector<16x128xbf16>
    %c0_5 = arith.constant 0 : index
    %c0_6 = arith.constant 0 : index
    %7 = vector.load %arg6[%c0_5, %c0_6] : memref<16x128xbf16, #tpu.memory_space<vmem>>, vector<16x128xbf16>
    tpu.vector_store %arg6[%c0_5, %c0_6], %6 {strides = array<i32>} : memref<16x128xbf16, #tpu.memory_space<vmem>>, vector<16x128xbf16>,
    return
  }
  func.func @transform_0(%arg0: i32, %arg1: i32, %arg2: i32) -> (i32, i32) {
    %c0_i32 = arith.constant 0 : i32
    return %arg0, %arg2 : i32, i32
  }
  func.func @transform_1(%arg0: i32, %arg1: i32, %arg2: i32) -> (i32, i32) {
    %c0_i32 = arith.constant 0 : i32
    return %arg2, %arg1 : i32, i32
  }
  func.func @transform_2(%arg0: i32, %arg1: i32, %arg2: i32) -> (i32, i32) {
    %c0_i32 = arith.constant 0 : i32
    %c0_i32_0 = arith.constant 0 : i32
    return %c0_i32, %arg1 : i32, i32
  }
  func.func @transform_3(%arg0: i32, %arg1: i32, %arg2: i32) -> (i32, i32) {
    %c0_i32 = arith.constant 0 : i32
    return %arg0, %arg1 : i32, i32
  }
}

module attributes {stable_mosaic.version = 11 : i64} {
  func.func @_ln_matmul_kernel(%arg0: i32, %arg1: i32, %arg2: memref<20x128xbf16, #tpu.memory_space<vmem>>, %arg3: memref<1x128xf32, #tpu.memory_space<vmem>>, %arg4: memref<1x128xf32, #tpu.memory_space<vmem>>, %arg5: memref<128x128xbf16, #tpu.memory_space<vmem>>, %arg6: memref<1x128xf32, #tpu.memory_space<vmem>>, %arg7: memref<20x128xbf16, #tpu.memory_space<vmem>>) attributes {dimension_semantics = [#tpu.dimension_semantics<parallel>, #tpu.dimension_semantics<parallel>], iteration_bounds = array<i64: 1, 3>, scalar_prefetch = 0 : i64, scratch_operands = 0 : i64, tpu.core_type = #tpu.core_type<tc>, window_params = [{transform_indices = @transform_0, window_bounds = array<i64: 20, 128>}, {pipeline_mode = #tpu.pipeline_mode<synchronous>, transform_indices = @transform_1, window_bounds = array<i64: 1, 128>}, {pipeline_mode = #tpu.pipeline_mode<synchronous>, transform_indices = @transform_2, window_bounds = array<i64: 1, 128>}, {transform_indices = @transform_3, window_bounds = array<i64: 128, 128>}, {transform_indices = @transform_4, window_bounds = array<i64: 1, 128>}, {transform_indices = @transform_5, window_bounds = array<i64: 20, 128>}]} {
    %c0 = arith.constant 0 : index
    %c0_0 = arith.constant 0 : index
    %0 = vector.load %arg2[%c0, %c0_0] : memref<20x128xbf16, #tpu.memory_space<vmem>>, vector<20x128xbf16>
    %1 = arith.extf %0 : vector<20x128xbf16> to vector<20x128xf32>
    %cst = arith.constant dense<0.000000e+00> : vector<20xf32>
    %2 = vector.multi_reduction <add>, %1, %cst [1] : vector<20x128xf32> to vector<20xf32>
    %3 = vector.shape_cast %2 : vector<20xf32> to vector<20x1xf32>
    %cst_1 = arith.constant 1.280000e+02 : f32
    %4 = vector.broadcast %cst_1 : f32 to vector<20x1xf32>
    %5 = arith.divf %3, %4 : vector<20x1xf32>
    %6 = vector.broadcast %5 : vector<20x1xf32> to vector<20x128xf32>
    %7 = arith.subf %1, %6 : vector<20x128xf32>
    %8 = arith.mulf %7, %7 : vector<20x128xf32>
    %cst_2 = arith.constant dense<0.000000e+00> : vector<20xf32>
    %9 = vector.multi_reduction <add>, %8, %cst_2 [1] : vector<20x128xf32> to vector<20xf32>
    %10 = vector.shape_cast %9 : vector<20xf32> to vector<20x1xf32>
    %cst_3 = arith.constant 1.280000e+02 : f32
    %11 = vector.broadcast %cst_3 : f32 to vector<20x1xf32>
    %12 = arith.divf %10, %11 : vector<20x1xf32>
    %13 = vector.broadcast %5 : vector<20x1xf32> to vector<20x128xf32>
    %14 = arith.subf %1, %13 : vector<20x128xf32>
    %cst_4 = arith.constant 9.99999997E-7 : f32
    %15 = vector.broadcast %cst_4 : f32 to vector<20x1xf32>
    %16 = arith.addf %12, %15 : vector<20x1xf32>
    %17 = math.rsqrt %16 : vector<20x1xf32>
    %18 = vector.broadcast %17 : vector<20x1xf32> to vector<20x128xf32>
    %19 = arith.mulf %14, %18 : vector<20x128xf32>
    %c0_5 = arith.constant 0 : index
    %c0_6 = arith.constant 0 : index
    %20 = vector.load %arg3[%c0_5, %c0_6] : memref<1x128xf32, #tpu.memory_space<vmem>>, vector<1x128xf32>
    %21 = vector.broadcast %20 : vector<1x128xf32> to vector<20x128xf32>
    %22 = arith.mulf %19, %21 : vector<20x128xf32>
    %c0_7 = arith.constant 0 : index
    %c0_8 = arith.constant 0 : index
    %23 = vector.load %arg4[%c0_7, %c0_8] : memref<1x128xf32, #tpu.memory_space<vmem>>, vector<1x128xf32>
    %24 = vector.broadcast %23 : vector<1x128xf32> to vector<20x128xf32>
    %25 = arith.addf %22, %24 : vector<20x128xf32>
    %26 = arith.truncf %25 : vector<20x128xf32> to vector<20x128xbf16>
    %c0_9 = arith.constant 0 : index
    %c0_10 = arith.constant 0 : index
    %27 = vector.load %arg5[%c0_9, %c0_10] : memref<128x128xbf16, #tpu.memory_space<vmem>>, vector<128x128xbf16>
    %cst_11 = arith.constant dense<0.000000e+00> : vector<20x128xf32>
    %28 = tpu.matmul %26, %27, %cst_11 {dimension_numbers = #tpu.dot_dimension_numbers<[1], [0], [0], [1], [0, 0, 1, 1], [], []>} : vector<20x128xbf16>, vector<128x128xbf16>, vector<20x128xf32> -> vector<20x128xf32>
    %c0_12 = arith.constant 0 : index
    %c0_13 = arith.constant 0 : index
    %29 = vector.load %arg6[%c0_12, %c0_13] : memref<1x128xf32, #tpu.memory_space<vmem>>, vector<1x128xf32>
    %30 = vector.broadcast %29 : vector<1x128xf32> to vector<20x128xf32>
    %31 = arith.addf %28, %30 : vector<20x128xf32>
    %32 = arith.truncf %31 : vector<20x128xf32> to vector<20x128xbf16>
    %c0_14 = arith.constant 0 : index
    %c0_15 = arith.constant 0 : index
    %33 = vector.load %arg7[%c0_14, %c0_15] : memref<20x128xbf16, #tpu.memory_space<vmem>>, vector<20x128xbf16>
    tpu.vector_store %arg7[%c0_14, %c0_15], %32 {strides = array<i32>} : memref<20x128xbf16, #tpu.memory_space<vmem>>, vector<20x128xbf16>,
    return
  }
  func.func @transform_0(%arg0: i32, %arg1: i32) -> (i32, i32) {
    %c0_i32 = arith.constant 0 : i32
    %c0_i32_0 = arith.constant 0 : i32
    return %arg0, %c0_i32 : i32, i32
  }
  func.func @transform_1(%arg0: i32, %arg1: i32) -> (i32, i32) {
    %c0_i32 = arith.constant 0 : i32
    %c0_i32_0 = arith.constant 0 : i32
    %c0_i32_1 = arith.constant 0 : i32
    return %c0_i32, %c0_i32_0 : i32, i32
  }
  func.func @transform_2(%arg0: i32, %arg1: i32) -> (i32, i32) {
    %c0_i32 = arith.constant 0 : i32
    %c0_i32_0 = arith.constant 0 : i32
    %c0_i32_1 = arith.constant 0 : i32
    return %c0_i32, %c0_i32_0 : i32, i32
  }
  func.func @transform_3(%arg0: i32, %arg1: i32) -> (i32, i32) {
    %c0_i32 = arith.constant 0 : i32
    %c0_i32_0 = arith.constant 0 : i32
    return %c0_i32, %arg1 : i32, i32
  }
  func.func @transform_4(%arg0: i32, %arg1: i32) -> (i32, i32) {
    %c0_i32 = arith.constant 0 : i32
    %c0_i32_0 = arith.constant 0 : i32
    return %c0_i32, %arg1 : i32, i32
  }
  func.func @transform_5(%arg0: i32, %arg1: i32) -> (i32, i32) {
    %c0_i32 = arith.constant 0 : i32
    return %arg0, %arg1 : i32, i32
  }
}

module attributes {stable_mosaic.version = 11 : i64} {
  func.func @_flash_attn_kernel(%arg0: i32, %arg1: i32, %arg2: memref<1x5x384xbf16, #tpu.memory_space<vmem>>, %arg3: memref<1x5x384xbf16, #tpu.memory_space<vmem>>, %arg4: memref<1x5x128xbf16, #tpu.memory_space<vmem>>, %arg5: memref<2x5x1xf32, #tpu.memory_space<vmem>>, %arg6: memref<2x5x1xf32, #tpu.memory_space<vmem>>, %arg7: memref<2x5x64xf32, #tpu.memory_space<vmem>>) attributes {dimension_semantics = [#tpu.dimension_semantics<parallel>, #tpu.dimension_semantics<arbitrary>], iteration_bounds = array<i64: 4, 1>, scalar_prefetch = 0 : i64, scratch_operands = 3 : i64, tpu.core_type = #tpu.core_type<tc>, window_params = [{transform_indices = @transform_0, window_bounds = array<i64: 1, 5, 384>}, {transform_indices = @transform_1, window_bounds = array<i64: 1, 5, 384>}, {transform_indices = @transform_2, window_bounds = array<i64: 1, 5, 128>}]} {
    %c0_i32 = arith.constant 0 : i32
    %0 = arith.cmpi eq, %arg1, %c0_i32 : i32
    %1 = arith.extui %0 : i1 to i32
    %c0_i32_0 = arith.constant 0 : i32
    %2 = arith.cmpi ne, %1, %c0_i32_0 : i32
    scf.if %2 {
      %cst_59 = arith.constant 0xFF800000 : f32
      %88 = vector.broadcast %cst_59 : f32 to vector<2x5x1xf32>
      %c0_60 = arith.constant 0 : index
      %c0_61 = arith.constant 0 : index
      %c0_62 = arith.constant 0 : index
      %89 = vector.load %arg5[%c0_60, %c0_61, %c0_62] : memref<2x5x1xf32, #tpu.memory_space<vmem>>, vector<2x5x1xf32>
      tpu.vector_store %arg5[%c0_60, %c0_61, %c0_62], %88 {strides = array<i32>} : memref<2x5x1xf32, #tpu.memory_space<vmem>>, vector<2x5x1xf32>,
      %cst_63 = arith.constant 0.000000e+00 : f32
      %90 = vector.broadcast %cst_63 : f32 to vector<2x5x1xf32>
      %c0_64 = arith.constant 0 : index
      %c0_65 = arith.constant 0 : index
      %c0_66 = arith.constant 0 : index
      %91 = vector.load %arg6[%c0_64, %c0_65, %c0_66] : memref<2x5x1xf32, #tpu.memory_space<vmem>>, vector<2x5x1xf32>
      tpu.vector_store %arg6[%c0_64, %c0_65, %c0_66], %90 {strides = array<i32>} : memref<2x5x1xf32, #tpu.memory_space<vmem>>, vector<2x5x1xf32>,
      %cst_67 = arith.constant 0.000000e+00 : f32
      %92 = vector.broadcast %cst_67 : f32 to vector<2x5x64xf32>
      %c0_68 = arith.constant 0 : index
      %c0_69 = arith.constant 0 : index
      %c0_70 = arith.constant 0 : index
      %93 = vector.load %arg7[%c0_68, %c0_69, %c0_70] : memref<2x5x64xf32, #tpu.memory_space<vmem>>, vector<2x5x64xf32>
      tpu.vector_store %arg7[%c0_68, %c0_69, %c0_70], %92 {strides = array<i32>} : memref<2x5x64xf32, #tpu.memory_space<vmem>>, vector<2x5x64xf32>,
    } else {
    }
    %c0 = arith.constant 0 : index
    %c0_1 = arith.constant 0 : index
    %c0_2 = arith.constant 0 : index
    %3 = vector.load %arg2[%c0, %c0_1, %c0_2] : memref<1x5x384xbf16, #tpu.memory_space<vmem>>, vector<1x5x64xbf16>
    %4 = vector.shape_cast %3 : vector<1x5x64xbf16> to vector<5x64xbf16>
    %c0_3 = arith.constant 0 : index
    %c0_4 = arith.constant 0 : index
    %c128 = arith.constant 128 : index
    %5 = vector.load %arg3[%c0_3, %c0_4, %c128] : memref<1x5x384xbf16, #tpu.memory_space<vmem>>, vector<1x5x64xbf16>
    %6 = vector.shape_cast %5 : vector<1x5x64xbf16> to vector<5x64xbf16>
    %c0_5 = arith.constant 0 : index
    %c0_6 = arith.constant 0 : index
    %c256 = arith.constant 256 : index
    %7 = vector.load %arg3[%c0_5, %c0_6, %c256] : memref<1x5x384xbf16, #tpu.memory_space<vmem>>, vector<1x5x64xbf16>
    %8 = vector.shape_cast %7 : vector<1x5x64xbf16> to vector<5x64xbf16>
    %cst = arith.constant dense<0.000000e+00> : vector<5x5xf32>
    %9 = tpu.matmul %4, %6, %cst {dimension_numbers = #tpu.dot_dimension_numbers<[1], [1], [0], [0], [0, 0, 1, 0], [], []>} : vector<5x64xbf16>, vector<5x64xbf16>, vector<5x5xf32> -> vector<5x5xf32>
    %cst_7 = arith.constant 1.250000e-01 : f32
    %10 = vector.broadcast %cst_7 : f32 to vector<5x5xf32>
    %11 = arith.mulf %9, %10 : vector<5x5xf32>
    %c0_8 = arith.constant 0 : index
    %c0_9 = arith.constant 0 : index
    %c0_10 = arith.constant 0 : index
    %12 = vector.load %arg5[%c0_8, %c0_9, %c0_10] : memref<2x5x1xf32, #tpu.memory_space<vmem>>, vector<1x5x1xf32>
    %13 = vector.shape_cast %12 : vector<1x5x1xf32> to vector<5x1xf32>
    %cst_11 = arith.constant dense<0xFF800000> : vector<5xf32>
    %14 = vector.multi_reduction <maximumf>, %11, %cst_11 [1] : vector<5x5xf32> to vector<5xf32>
    %15 = vector.shape_cast %14 : vector<5xf32> to vector<5x1xf32>
    %16 = arith.maximumf %13, %15 : vector<5x1xf32>
    %17 = arith.subf %13, %16 : vector<5x1xf32>
    %18 = math.exp %17 : vector<5x1xf32>
    %19 = vector.broadcast %16 : vector<5x1xf32> to vector<5x5xf32>
    %20 = arith.subf %11, %19 : vector<5x5xf32>
    %21 = math.exp %20 : vector<5x5xf32>
    %c0_12 = arith.constant 0 : index
    %c0_13 = arith.constant 0 : index
    %c0_14 = arith.constant 0 : index
    %22 = vector.load %arg6[%c0_12, %c0_13, %c0_14] : memref<2x5x1xf32, #tpu.memory_space<vmem>>, vector<1x5x1xf32>
    %23 = vector.shape_cast %22 : vector<1x5x1xf32> to vector<5x1xf32>
    %24 = arith.mulf %18, %23 : vector<5x1xf32>
    %cst_15 = arith.constant dense<0.000000e+00> : vector<5xf32>
    %25 = vector.multi_reduction <add>, %21, %cst_15 [1] : vector<5x5xf32> to vector<5xf32>
    %26 = vector.shape_cast %25 : vector<5xf32> to vector<5x1xf32>
    %27 = arith.addf %24, %26 : vector<5x1xf32>
    %c0_16 = arith.constant 0 : index
    %c0_17 = arith.constant 0 : index
    %c0_18 = arith.constant 0 : index
    %28 = vector.load %arg6[%c0_16, %c0_17, %c0_18] : memref<2x5x1xf32, #tpu.memory_space<vmem>>, vector<1x5x1xf32>
    %29 = vector.shape_cast %28 : vector<1x5x1xf32> to vector<5x1xf32>
    %30 = vector.shape_cast %27 : vector<5x1xf32> to vector<1x5x1xf32>
    tpu.vector_store %arg6[%c0_16, %c0_17, %c0_18], %30 {strides = array<i32>} : memref<2x5x1xf32, #tpu.memory_space<vmem>>, vector<1x5x1xf32>,
    %c0_19 = arith.constant 0 : index
    %c0_20 = arith.constant 0 : index
    %c0_21 = arith.constant 0 : index
    %31 = vector.load %arg7[%c0_19, %c0_20, %c0_21] : memref<2x5x64xf32, #tpu.memory_space<vmem>>, vector<1x5x64xf32>
    %32 = vector.shape_cast %31 : vector<1x5x64xf32> to vector<5x64xf32>
    %33 = vector.broadcast %18 : vector<5x1xf32> to vector<5x64xf32>
    %34 = arith.mulf %33, %32 : vector<5x64xf32>
    %35 = arith.truncf %21 : vector<5x5xf32> to vector<5x5xbf16>
    %cst_22 = arith.constant dense<0.000000e+00> : vector<5x64xf32>
    %36 = tpu.matmul %35, %8, %cst_22 {dimension_numbers = #tpu.dot_dimension_numbers<[1], [0], [0], [1], [0, 0, 1, 1], [], []>} : vector<5x5xbf16>, vector<5x64xbf16>, vector<5x64xf32> -> vector<5x64xf32>
    %37 = arith.addf %34, %36 : vector<5x64xf32>
    %c0_23 = arith.constant 0 : index
    %c0_24 = arith.constant 0 : index
    %c0_25 = arith.constant 0 : index
    %38 = vector.load %arg7[%c0_23, %c0_24, %c0_25] : memref<2x5x64xf32, #tpu.memory_space<vmem>>, vector<1x5x64xf32>
    %39 = vector.shape_cast %38 : vector<1x5x64xf32> to vector<5x64xf32>
    %40 = vector.shape_cast %37 : vector<5x64xf32> to vector<1x5x64xf32>
    tpu.vector_store %arg7[%c0_23, %c0_24, %c0_25], %40 {strides = array<i32>} : memref<2x5x64xf32, #tpu.memory_space<vmem>>, vector<1x5x64xf32>,
    %c0_26 = arith.constant 0 : index
    %c0_27 = arith.constant 0 : index
    %c0_28 = arith.constant 0 : index
    %41 = vector.load %arg5[%c0_26, %c0_27, %c0_28] : memref<2x5x1xf32, #tpu.memory_space<vmem>>, vector<1x5x1xf32>
    %42 = vector.shape_cast %41 : vector<1x5x1xf32> to vector<5x1xf32>
    %43 = vector.shape_cast %16 : vector<5x1xf32> to vector<1x5x1xf32>
    tpu.vector_store %arg5[%c0_26, %c0_27, %c0_28], %43 {strides = array<i32>} : memref<2x5x1xf32, #tpu.memory_space<vmem>>, vector<1x5x1xf32>,
    %c0_29 = arith.constant 0 : index
    %c0_30 = arith.constant 0 : index
    %c64 = arith.constant 64 : index
    %44 = vector.load %arg2[%c0_29, %c0_30, %c64] : memref<1x5x384xbf16, #tpu.memory_space<vmem>>, vector<1x5x64xbf16>
    %45 = vector.shape_cast %44 : vector<1x5x64xbf16> to vector<5x64xbf16>
    %c0_31 = arith.constant 0 : index
    %c0_32 = arith.constant 0 : index
    %c192 = arith.constant 192 : index
    %46 = vector.load %arg3[%c0_31, %c0_32, %c192] : memref<1x5x384xbf16, #tpu.memory_space<vmem>>, vector<1x5x64xbf16>
    %47 = vector.shape_cast %46 : vector<1x5x64xbf16> to vector<5x64xbf16>
    %c0_33 = arith.constant 0 : index
    %c0_34 = arith.constant 0 : index
    %c320 = arith.constant 320 : index
    %48 = vector.load %arg3[%c0_33, %c0_34, %c320] : memref<1x5x384xbf16, #tpu.memory_space<vmem>>, vector<1x5x64xbf16>
    %49 = vector.shape_cast %48 : vector<1x5x64xbf16> to vector<5x64xbf16>
    %cst_35 = arith.constant dense<0.000000e+00> : vector<5x5xf32>
    %50 = tpu.matmul %45, %47, %cst_35 {dimension_numbers = #tpu.dot_dimension_numbers<[1], [1], [0], [0], [0, 0, 1, 0], [], []>} : vector<5x64xbf16>, vector<5x64xbf16>, vector<5x5xf32> -> vector<5x5xf32>
    %cst_36 = arith.constant 1.250000e-01 : f32
    %51 = vector.broadcast %cst_36 : f32 to vector<5x5xf32>
    %52 = arith.mulf %50, %51 : vector<5x5xf32>
    %c1 = arith.constant 1 : index
    %c0_37 = arith.constant 0 : index
    %c0_38 = arith.constant 0 : index
    %53 = vector.load %arg5[%c1, %c0_37, %c0_38] : memref<2x5x1xf32, #tpu.memory_space<vmem>>, vector<1x5x1xf32>
    %54 = vector.shape_cast %53 : vector<1x5x1xf32> to vector<5x1xf32>
    %cst_39 = arith.constant dense<0xFF800000> : vector<5xf32>
    %55 = vector.multi_reduction <maximumf>, %52, %cst_39 [1] : vector<5x5xf32> to vector<5xf32>
    %56 = vector.shape_cast %55 : vector<5xf32> to vector<5x1xf32>
    %57 = arith.maximumf %54, %56 : vector<5x1xf32>
    %58 = arith.subf %54, %57 : vector<5x1xf32>
    %59 = math.exp %58 : vector<5x1xf32>
    %60 = vector.broadcast %57 : vector<5x1xf32> to vector<5x5xf32>
    %61 = arith.subf %52, %60 : vector<5x5xf32>
    %62 = math.exp %61 : vector<5x5xf32>
    %c1_40 = arith.constant 1 : index
    %c0_41 = arith.constant 0 : index
    %c0_42 = arith.constant 0 : index
    %63 = vector.load %arg6[%c1_40, %c0_41, %c0_42] : memref<2x5x1xf32, #tpu.memory_space<vmem>>, vector<1x5x1xf32>
    %64 = vector.shape_cast %63 : vector<1x5x1xf32> to vector<5x1xf32>
    %65 = arith.mulf %59, %64 : vector<5x1xf32>
    %cst_43 = arith.constant dense<0.000000e+00> : vector<5xf32>
    %66 = vector.multi_reduction <add>, %62, %cst_43 [1] : vector<5x5xf32> to vector<5xf32>
    %67 = vector.shape_cast %66 : vector<5xf32> to vector<5x1xf32>
    %68 = arith.addf %65, %67 : vector<5x1xf32>
    %c1_44 = arith.constant 1 : index
    %c0_45 = arith.constant 0 : index
    %c0_46 = arith.constant 0 : index
    %69 = vector.load %arg6[%c1_44, %c0_45, %c0_46] : memref<2x5x1xf32, #tpu.memory_space<vmem>>, vector<1x5x1xf32>
    %70 = vector.shape_cast %69 : vector<1x5x1xf32> to vector<5x1xf32>
    %71 = vector.shape_cast %68 : vector<5x1xf32> to vector<1x5x1xf32>
    tpu.vector_store %arg6[%c1_44, %c0_45, %c0_46], %71 {strides = array<i32>} : memref<2x5x1xf32, #tpu.memory_space<vmem>>, vector<1x5x1xf32>,
    %c1_47 = arith.constant 1 : index
    %c0_48 = arith.constant 0 : index
    %c0_49 = arith.constant 0 : index
    %72 = vector.load %arg7[%c1_47, %c0_48, %c0_49] : memref<2x5x64xf32, #tpu.memory_space<vmem>>, vector<1x5x64xf32>
    %73 = vector.shape_cast %72 : vector<1x5x64xf32> to vector<5x64xf32>
    %74 = vector.broadcast %59 : vector<5x1xf32> to vector<5x64xf32>
    %75 = arith.mulf %74, %73 : vector<5x64xf32>
    %76 = arith.truncf %62 : vector<5x5xf32> to vector<5x5xbf16>
    %cst_50 = arith.constant dense<0.000000e+00> : vector<5x64xf32>
    %77 = tpu.matmul %76, %49, %cst_50 {dimension_numbers = #tpu.dot_dimension_numbers<[1], [0], [0], [1], [0, 0, 1, 1], [], []>} : vector<5x5xbf16>, vector<5x64xbf16>, vector<5x64xf32> -> vector<5x64xf32>
    %78 = arith.addf %75, %77 : vector<5x64xf32>
    %c1_51 = arith.constant 1 : index
    %c0_52 = arith.constant 0 : index
    %c0_53 = arith.constant 0 : index
    %79 = vector.load %arg7[%c1_51, %c0_52, %c0_53] : memref<2x5x64xf32, #tpu.memory_space<vmem>>, vector<1x5x64xf32>
    %80 = vector.shape_cast %79 : vector<1x5x64xf32> to vector<5x64xf32>
    %81 = vector.shape_cast %78 : vector<5x64xf32> to vector<1x5x64xf32>
    tpu.vector_store %arg7[%c1_51, %c0_52, %c0_53], %81 {strides = array<i32>} : memref<2x5x64xf32, #tpu.memory_space<vmem>>, vector<1x5x64xf32>,
    %c1_54 = arith.constant 1 : index
    %c0_55 = arith.constant 0 : index
    %c0_56 = arith.constant 0 : index
    %82 = vector.load %arg5[%c1_54, %c0_55, %c0_56] : memref<2x5x1xf32, #tpu.memory_space<vmem>>, vector<1x5x1xf32>
    %83 = vector.shape_cast %82 : vector<1x5x1xf32> to vector<5x1xf32>
    %84 = vector.shape_cast %57 : vector<5x1xf32> to vector<1x5x1xf32>
    tpu.vector_store %arg5[%c1_54, %c0_55, %c0_56], %84 {strides = array<i32>} : memref<2x5x1xf32, #tpu.memory_space<vmem>>, vector<1x5x1xf32>,
    %c0_i32_57 = arith.constant 0 : i32
    %85 = arith.cmpi eq, %arg1, %c0_i32_57 : i32
    %86 = arith.extui %85 : i1 to i32
    %c0_i32_58 = arith.constant 0 : i32
    %87 = arith.cmpi ne, %86, %c0_i32_58 : i32
    scf.if %87 {
      %c0_59 = arith.constant 0 : index
      %c0_60 = arith.constant 0 : index
      %c0_61 = arith.constant 0 : index
      %88 = vector.load %arg7[%c0_59, %c0_60, %c0_61] : memref<2x5x64xf32, #tpu.memory_space<vmem>>, vector<1x5x64xf32>
      %89 = vector.shape_cast %88 : vector<1x5x64xf32> to vector<5x64xf32>
      %c0_62 = arith.constant 0 : index
      %c0_63 = arith.constant 0 : index
      %c0_64 = arith.constant 0 : index
      %90 = vector.load %arg6[%c0_62, %c0_63, %c0_64] : memref<2x5x1xf32, #tpu.memory_space<vmem>>, vector<1x5x1xf32>
      %91 = vector.shape_cast %90 : vector<1x5x1xf32> to vector<5x1xf32>
      %92 = tpu.reciprocal %91 {approx = true} : vector<5x1xf32> -> vector<5x1xf32>
      %93 = vector.broadcast %92 : vector<5x1xf32> to vector<5x64xf32>
      %94 = arith.mulf %89, %93 : vector<5x64xf32>
      %95 = arith.truncf %94 : vector<5x64xf32> to vector<5x64xbf16>
      %c0_65 = arith.constant 0 : index
      %c0_66 = arith.constant 0 : index
      %c0_67 = arith.constant 0 : index
      %96 = vector.load %arg4[%c0_65, %c0_66, %c0_67] : memref<1x5x128xbf16, #tpu.memory_space<vmem>>, vector<1x5x64xbf16>
      %97 = vector.shape_cast %96 : vector<1x5x64xbf16> to vector<5x64xbf16>
      %98 = vector.shape_cast %95 : vector<5x64xbf16> to vector<1x5x64xbf16>
      tpu.vector_store %arg4[%c0_65, %c0_66, %c0_67], %98 {strides = array<i32>} : memref<1x5x128xbf16, #tpu.memory_space<vmem>>, vector<1x5x64xbf16>,
      %c1_68 = arith.constant 1 : index
      %c0_69 = arith.constant 0 : index
      %c0_70 = arith.constant 0 : index
      %99 = vector.load %arg7[%c1_68, %c0_69, %c0_70] : memref<2x5x64xf32, #tpu.memory_space<vmem>>, vector<1x5x64xf32>
      %100 = vector.shape_cast %99 : vector<1x5x64xf32> to vector<5x64xf32>
      %c1_71 = arith.constant 1 : index
      %c0_72 = arith.constant 0 : index
      %c0_73 = arith.constant 0 : index
      %101 = vector.load %arg6[%c1_71, %c0_72, %c0_73] : memref<2x5x1xf32, #tpu.memory_space<vmem>>, vector<1x5x1xf32>
      %102 = vector.shape_cast %101 : vector<1x5x1xf32> to vector<5x1xf32>
      %103 = tpu.reciprocal %102 {approx = true} : vector<5x1xf32> -> vector<5x1xf32>
      %104 = vector.broadcast %103 : vector<5x1xf32> to vector<5x64xf32>
      %105 = arith.mulf %100, %104 : vector<5x64xf32>
      %106 = arith.truncf %105 : vector<5x64xf32> to vector<5x64xbf16>
      %c0_74 = arith.constant 0 : index
      %c0_75 = arith.constant 0 : index
      %c64_76 = arith.constant 64 : index
      %107 = vector.load %arg4[%c0_74, %c0_75, %c64_76] : memref<1x5x128xbf16, #tpu.memory_space<vmem>>, vector<1x5x64xbf16>
      %108 = vector.shape_cast %107 : vector<1x5x64xbf16> to vector<5x64xbf16>
      %109 = vector.shape_cast %106 : vector<5x64xbf16> to vector<1x5x64xbf16>
      tpu.vector_store %arg4[%c0_74, %c0_75, %c64_76], %109 {strides = array<i32>} : memref<1x5x128xbf16, #tpu.memory_space<vmem>>, vector<1x5x64xbf16>,
    } else {
    }
    return
  }
  func.func @transform_0(%arg0: i32, %arg1: i32) -> (i32, i32, i32) {
    %c0_i32 = arith.constant 0 : i32
    %c0_i32_0 = arith.constant 0 : i32
    %c0_i32_1 = arith.constant 0 : i32
    return %arg0, %c0_i32, %c0_i32_0 : i32, i32, i32
  }
  func.func @transform_1(%arg0: i32, %arg1: i32) -> (i32, i32, i32) {
    %c0_i32 = arith.constant 0 : i32
    %c0_i32_0 = arith.constant 0 : i32
    return %arg0, %arg1, %c0_i32 : i32, i32, i32
  }
  func.func @transform_2(%arg0: i32, %arg1: i32) -> (i32, i32, i32) {
    %c0_i32 = arith.constant 0 : i32
    %c0_i32_0 = arith.constant 0 : i32
    %c0_i32_1 = arith.constant 0 : i32
    return %arg0, %c0_i32, %c0_i32_0 : i32, i32, i32
  }
}

module attributes {stable_mosaic.version = 11 : i64} {
  func.func @_matmul_kernel(%arg0: i32, %arg1: i32, %arg2: i32, %arg3: memref<20x128xbf16, #tpu.memory_space<vmem>>, %arg4: memref<128x128xbf16, #tpu.memory_space<vmem>>, %arg5: memref<1x128xf32, #tpu.memory_space<vmem>>, %arg6: memref<20x128xbf16, #tpu.memory_space<vmem>>, %arg7: memref<20x128xbf16, #tpu.memory_space<vmem>>) attributes {dimension_semantics = [#tpu.dimension_semantics<parallel>, #tpu.dimension_semantics<parallel>, #tpu.dimension_semantics<arbitrary>], iteration_bounds = array<i64: 1, 1, 1>, scalar_prefetch = 0 : i64, scratch_operands = 0 : i64, tpu.core_type = #tpu.core_type<tc>, window_params = [{transform_indices = @transform_0, window_bounds = array<i64: 20, 128>}, {transform_indices = @transform_1, window_bounds = array<i64: 128, 128>}, {transform_indices = @transform_2, window_bounds = array<i64: 1, 128>}, {transform_indices = @transform_3, window_bounds = array<i64: 20, 128>}, {transform_indices = @transform_4, window_bounds = array<i64: 20, 128>}]} {
    %c0 = arith.constant 0 : index
    %c0_0 = arith.constant 0 : index
    %0 = vector.load %arg3[%c0, %c0_0] : memref<20x128xbf16, #tpu.memory_space<vmem>>, vector<20x128xbf16>
    %c0_1 = arith.constant 0 : index
    %c0_2 = arith.constant 0 : index
    %1 = vector.load %arg4[%c0_1, %c0_2] : memref<128x128xbf16, #tpu.memory_space<vmem>>, vector<128x128xbf16>
    %cst = arith.constant dense<0.000000e+00> : vector<20x128xf32>
    %2 = tpu.matmul %0, %1, %cst {dimension_numbers = #tpu.dot_dimension_numbers<[1], [0], [0], [1], [0, 0, 1, 1], [], []>} : vector<20x128xbf16>, vector<128x128xbf16>, vector<20x128xf32> -> vector<20x128xf32>
    %c0_3 = arith.constant 0 : index
    %c0_4 = arith.constant 0 : index
    %3 = vector.load %arg5[%c0_3, %c0_4] : memref<1x128xf32, #tpu.memory_space<vmem>>, vector<1x128xf32>
    %4 = vector.broadcast %3 : vector<1x128xf32> to vector<20x128xf32>
    %5 = arith.addf %2, %4 : vector<20x128xf32>
    %c0_5 = arith.constant 0 : index
    %c0_6 = arith.constant 0 : index
    %6 = vector.load %arg6[%c0_5, %c0_6] : memref<20x128xbf16, #tpu.memory_space<vmem>>, vector<20x128xbf16>
    %7 = arith.extf %6 : vector<20x128xbf16> to vector<20x128xf32>
    %8 = arith.addf %5, %7 : vector<20x128xf32>
    %9 = arith.truncf %8 : vector<20x128xf32> to vector<20x128xbf16>
    %c0_7 = arith.constant 0 : index
    %c0_8 = arith.constant 0 : index
    %10 = vector.load %arg7[%c0_7, %c0_8] : memref<20x128xbf16, #tpu.memory_space<vmem>>, vector<20x128xbf16>
    tpu.vector_store %arg7[%c0_7, %c0_8], %9 {strides = array<i32>} : memref<20x128xbf16, #tpu.memory_space<vmem>>, vector<20x128xbf16>,
    return
  }
  func.func @transform_0(%arg0: i32, %arg1: i32, %arg2: i32) -> (i32, i32) {
    %c0_i32 = arith.constant 0 : i32
    return %arg0, %arg2 : i32, i32
  }
  func.func @transform_1(%arg0: i32, %arg1: i32, %arg2: i32) -> (i32, i32) {
    %c0_i32 = arith.constant 0 : i32
    return %arg2, %arg1 : i32, i32
  }
  func.func @transform_2(%arg0: i32, %arg1: i32, %arg2: i32) -> (i32, i32) {
    %c0_i32 = arith.constant 0 : i32
    %c0_i32_0 = arith.constant 0 : i32
    return %c0_i32, %arg1 : i32, i32
  }
  func.func @transform_3(%arg0: i32, %arg1: i32, %arg2: i32) -> (i32, i32) {
    %c0_i32 = arith.constant 0 : i32
    return %arg0, %arg1 : i32, i32
  }
  func.func @transform_4(%arg0: i32, %arg1: i32, %arg2: i32) -> (i32, i32) {
    %c0_i32 = arith.constant 0 : i32
    return %arg0, %arg1 : i32, i32
  }
}

module attributes {stable_mosaic.version = 11 : i64} {
  func.func @_ln_matmul_kernel(%arg0: i32, %arg1: i32, %arg2: memref<20x128xbf16, #tpu.memory_space<vmem>>, %arg3: memref<1x128xf32, #tpu.memory_space<vmem>>, %arg4: memref<1x128xf32, #tpu.memory_space<vmem>>, %arg5: memref<128x256xbf16, #tpu.memory_space<vmem>>, %arg6: memref<1x256xf32, #tpu.memory_space<vmem>>, %arg7: memref<20x256xbf16, #tpu.memory_space<vmem>>) attributes {dimension_semantics = [#tpu.dimension_semantics<parallel>, #tpu.dimension_semantics<parallel>], iteration_bounds = array<i64: 1, 2>, scalar_prefetch = 0 : i64, scratch_operands = 0 : i64, tpu.core_type = #tpu.core_type<tc>, window_params = [{transform_indices = @transform_0, window_bounds = array<i64: 20, 128>}, {pipeline_mode = #tpu.pipeline_mode<synchronous>, transform_indices = @transform_1, window_bounds = array<i64: 1, 128>}, {pipeline_mode = #tpu.pipeline_mode<synchronous>, transform_indices = @transform_2, window_bounds = array<i64: 1, 128>}, {transform_indices = @transform_3, window_bounds = array<i64: 128, 256>}, {transform_indices = @transform_4, window_bounds = array<i64: 1, 256>}, {transform_indices = @transform_5, window_bounds = array<i64: 20, 256>}]} {
    %c0 = arith.constant 0 : index
    %c0_0 = arith.constant 0 : index
    %0 = vector.load %arg2[%c0, %c0_0] : memref<20x128xbf16, #tpu.memory_space<vmem>>, vector<20x128xbf16>
    %1 = arith.extf %0 : vector<20x128xbf16> to vector<20x128xf32>
    %cst = arith.constant dense<0.000000e+00> : vector<20xf32>
    %2 = vector.multi_reduction <add>, %1, %cst [1] : vector<20x128xf32> to vector<20xf32>
    %3 = vector.shape_cast %2 : vector<20xf32> to vector<20x1xf32>
    %cst_1 = arith.constant 1.280000e+02 : f32
    %4 = vector.broadcast %cst_1 : f32 to vector<20x1xf32>
    %5 = arith.divf %3, %4 : vector<20x1xf32>
    %6 = vector.broadcast %5 : vector<20x1xf32> to vector<20x128xf32>
    %7 = arith.subf %1, %6 : vector<20x128xf32>
    %8 = arith.mulf %7, %7 : vector<20x128xf32>
    %cst_2 = arith.constant dense<0.000000e+00> : vector<20xf32>
    %9 = vector.multi_reduction <add>, %8, %cst_2 [1] : vector<20x128xf32> to vector<20xf32>
    %10 = vector.shape_cast %9 : vector<20xf32> to vector<20x1xf32>
    %cst_3 = arith.constant 1.280000e+02 : f32
    %11 = vector.broadcast %cst_3 : f32 to vector<20x1xf32>
    %12 = arith.divf %10, %11 : vector<20x1xf32>
    %13 = vector.broadcast %5 : vector<20x1xf32> to vector<20x128xf32>
    %14 = arith.subf %1, %13 : vector<20x128xf32>
    %cst_4 = arith.constant 9.99999997E-7 : f32
    %15 = vector.broadcast %cst_4 : f32 to vector<20x1xf32>
    %16 = arith.addf %12, %15 : vector<20x1xf32>
    %17 = math.rsqrt %16 : vector<20x1xf32>
    %18 = vector.broadcast %17 : vector<20x1xf32> to vector<20x128xf32>
    %19 = arith.mulf %14, %18 : vector<20x128xf32>
    %c0_5 = arith.constant 0 : index
    %c0_6 = arith.constant 0 : index
    %20 = vector.load %arg3[%c0_5, %c0_6] : memref<1x128xf32, #tpu.memory_space<vmem>>, vector<1x128xf32>
    %21 = vector.broadcast %20 : vector<1x128xf32> to vector<20x128xf32>
    %22 = arith.mulf %19, %21 : vector<20x128xf32>
    %c0_7 = arith.constant 0 : index
    %c0_8 = arith.constant 0 : index
    %23 = vector.load %arg4[%c0_7, %c0_8] : memref<1x128xf32, #tpu.memory_space<vmem>>, vector<1x128xf32>
    %24 = vector.broadcast %23 : vector<1x128xf32> to vector<20x128xf32>
    %25 = arith.addf %22, %24 : vector<20x128xf32>
    %26 = arith.truncf %25 : vector<20x128xf32> to vector<20x128xbf16>
    %c0_9 = arith.constant 0 : index
    %c0_10 = arith.constant 0 : index
    %27 = vector.load %arg5[%c0_9, %c0_10] : memref<128x256xbf16, #tpu.memory_space<vmem>>, vector<128x256xbf16>
    %cst_11 = arith.constant dense<0.000000e+00> : vector<20x256xf32>
    %28 = tpu.matmul %26, %27, %cst_11 {dimension_numbers = #tpu.dot_dimension_numbers<[1], [0], [0], [1], [0, 0, 1, 1], [], []>} : vector<20x128xbf16>, vector<128x256xbf16>, vector<20x256xf32> -> vector<20x256xf32>
    %c0_12 = arith.constant 0 : index
    %c0_13 = arith.constant 0 : index
    %29 = vector.load %arg6[%c0_12, %c0_13] : memref<1x256xf32, #tpu.memory_space<vmem>>, vector<1x256xf32>
    %30 = vector.broadcast %29 : vector<1x256xf32> to vector<20x256xf32>
    %31 = arith.addf %28, %30 : vector<20x256xf32>
    %32 = arith.mulf %31, %31 : vector<20x256xf32>
    %33 = arith.mulf %31, %32 : vector<20x256xf32>
    %cst_14 = arith.constant 4.471500e-02 : f32
    %34 = vector.broadcast %cst_14 : f32 to vector<20x256xf32>
    %35 = arith.mulf %34, %33 : vector<20x256xf32>
    %36 = arith.addf %31, %35 : vector<20x256xf32>
    %cst_15 = arith.constant 0.797884583 : f32
    %37 = vector.broadcast %cst_15 : f32 to vector<20x256xf32>
    %38 = arith.mulf %37, %36 : vector<20x256xf32>
    %39 = math.tanh %38 : vector<20x256xf32>
    %cst_16 = arith.constant 1.000000e+00 : f32
    %40 = vector.broadcast %cst_16 : f32 to vector<20x256xf32>
    %41 = arith.addf %40, %39 : vector<20x256xf32>
    %cst_17 = arith.constant 5.000000e-01 : f32
    %42 = vector.broadcast %cst_17 : f32 to vector<20x256xf32>
    %43 = arith.mulf %42, %41 : vector<20x256xf32>
    %44 = arith.mulf %31, %43 : vector<20x256xf32>
    %45 = arith.truncf %44 : vector<20x256xf32> to vector<20x256xbf16>
    %c0_18 = arith.constant 0 : index
    %c0_19 = arith.constant 0 : index
    %46 = vector.load %arg7[%c0_18, %c0_19] : memref<20x256xbf16, #tpu.memory_space<vmem>>, vector<20x256xbf16>
    tpu.vector_store %arg7[%c0_18, %c0_19], %45 {strides = array<i32>} : memref<20x256xbf16, #tpu.memory_space<vmem>>, vector<20x256xbf16>,
    return
  }
  func.func @transform_0(%arg0: i32, %arg1: i32) -> (i32, i32) {
    %c0_i32 = arith.constant 0 : i32
    %c0_i32_0 = arith.constant 0 : i32
    return %arg0, %c0_i32 : i32, i32
  }
  func.func @transform_1(%arg0: i32, %arg1: i32) -> (i32, i32) {
    %c0_i32 = arith.constant 0 : i32
    %c0_i32_0 = arith.constant 0 : i32
    %c0_i32_1 = arith.constant 0 : i32
    return %c0_i32, %c0_i32_0 : i32, i32
  }
  func.func @transform_2(%arg0: i32, %arg1: i32) -> (i32, i32) {
    %c0_i32 = arith.constant 0 : i32
    %c0_i32_0 = arith.constant 0 : i32
    %c0_i32_1 = arith.constant 0 : i32
    return %c0_i32, %c0_i32_0 : i32, i32
  }
  func.func @transform_3(%arg0: i32, %arg1: i32) -> (i32, i32) {
    %c0_i32 = arith.constant 0 : i32
    %c0_i32_0 = arith.constant 0 : i32
    return %c0_i32, %arg1 : i32, i32
  }
  func.func @transform_4(%arg0: i32, %arg1: i32) -> (i32, i32) {
    %c0_i32 = arith.constant 0 : i32
    %c0_i32_0 = arith.constant 0 : i32
    return %c0_i32, %arg1 : i32, i32
  }
  func.func @transform_5(%arg0: i32, %arg1: i32) -> (i32, i32) {
    %c0_i32 = arith.constant 0 : i32
    return %arg0, %arg1 : i32, i32
  }
}

module attributes {stable_mosaic.version = 11 : i64} {
  func.func @_matmul_kernel(%arg0: i32, %arg1: i32, %arg2: i32, %arg3: memref<20x512xbf16, #tpu.memory_space<vmem>>, %arg4: memref<512x128xbf16, #tpu.memory_space<vmem>>, %arg5: memref<1x128xf32, #tpu.memory_space<vmem>>, %arg6: memref<20x128xbf16, #tpu.memory_space<vmem>>, %arg7: memref<20x128xbf16, #tpu.memory_space<vmem>>) attributes {dimension_semantics = [#tpu.dimension_semantics<parallel>, #tpu.dimension_semantics<parallel>, #tpu.dimension_semantics<arbitrary>], iteration_bounds = array<i64: 1, 1, 1>, scalar_prefetch = 0 : i64, scratch_operands = 0 : i64, tpu.core_type = #tpu.core_type<tc>, window_params = [{transform_indices = @transform_0, window_bounds = array<i64: 20, 512>}, {transform_indices = @transform_1, window_bounds = array<i64: 512, 128>}, {transform_indices = @transform_2, window_bounds = array<i64: 1, 128>}, {transform_indices = @transform_3, window_bounds = array<i64: 20, 128>}, {transform_indices = @transform_4, window_bounds = array<i64: 20, 128>}]} {
    %c0 = arith.constant 0 : index
    %c0_0 = arith.constant 0 : index
    %0 = vector.load %arg3[%c0, %c0_0] : memref<20x512xbf16, #tpu.memory_space<vmem>>, vector<20x512xbf16>
    %c0_1 = arith.constant 0 : index
    %c0_2 = arith.constant 0 : index
    %1 = vector.load %arg4[%c0_1, %c0_2] : memref<512x128xbf16, #tpu.memory_space<vmem>>, vector<512x128xbf16>
    %cst = arith.constant dense<0.000000e+00> : vector<20x128xf32>
    %2 = tpu.matmul %0, %1, %cst {dimension_numbers = #tpu.dot_dimension_numbers<[1], [0], [0], [1], [0, 0, 1, 1], [], []>} : vector<20x512xbf16>, vector<512x128xbf16>, vector<20x128xf32> -> vector<20x128xf32>
    %c0_3 = arith.constant 0 : index
    %c0_4 = arith.constant 0 : index
    %3 = vector.load %arg5[%c0_3, %c0_4] : memref<1x128xf32, #tpu.memory_space<vmem>>, vector<1x128xf32>
    %4 = vector.broadcast %3 : vector<1x128xf32> to vector<20x128xf32>
    %5 = arith.addf %2, %4 : vector<20x128xf32>
    %c0_5 = arith.constant 0 : index
    %c0_6 = arith.constant 0 : index
    %6 = vector.load %arg6[%c0_5, %c0_6] : memref<20x128xbf16, #tpu.memory_space<vmem>>, vector<20x128xbf16>
    %7 = arith.extf %6 : vector<20x128xbf16> to vector<20x128xf32>
    %8 = arith.addf %5, %7 : vector<20x128xf32>
    %9 = arith.truncf %8 : vector<20x128xf32> to vector<20x128xbf16>
    %c0_7 = arith.constant 0 : index
    %c0_8 = arith.constant 0 : index
    %10 = vector.load %arg7[%c0_7, %c0_8] : memref<20x128xbf16, #tpu.memory_space<vmem>>, vector<20x128xbf16>
    tpu.vector_store %arg7[%c0_7, %c0_8], %9 {strides = array<i32>} : memref<20x128xbf16, #tpu.memory_space<vmem>>, vector<20x128xbf16>,
    return
  }
  func.func @transform_0(%arg0: i32, %arg1: i32, %arg2: i32) -> (i32, i32) {
    %c0_i32 = arith.constant 0 : i32
    return %arg0, %arg2 : i32, i32
  }
  func.func @transform_1(%arg0: i32, %arg1: i32, %arg2: i32) -> (i32, i32) {
    %c0_i32 = arith.constant 0 : i32
    return %arg2, %arg1 : i32, i32
  }
  func.func @transform_2(%arg0: i32, %arg1: i32, %arg2: i32) -> (i32, i32) {
    %c0_i32 = arith.constant 0 : i32
    %c0_i32_0 = arith.constant 0 : i32
    return %c0_i32, %arg1 : i32, i32
  }
  func.func @transform_3(%arg0: i32, %arg1: i32, %arg2: i32) -> (i32, i32) {
    %c0_i32 = arith.constant 0 : i32
    return %arg0, %arg1 : i32, i32
  }
  func.func @transform_4(%arg0: i32, %arg1: i32, %arg2: i32) -> (i32, i32) {
    %c0_i32 = arith.constant 0 : i32
    return %arg0, %arg1 : i32, i32
  }
}

module attributes {stable_mosaic.version = 11 : i64} {
  func.func @_ln_matmul_kernel(%arg0: i32, %arg1: i32, %arg2: memref<16x128xbf16, #tpu.memory_space<vmem>>, %arg3: memref<1x128xf32, #tpu.memory_space<vmem>>, %arg4: memref<1x128xf32, #tpu.memory_space<vmem>>, %arg5: memref<128x128xbf16, #tpu.memory_space<vmem>>, %arg6: memref<1x128xf32, #tpu.memory_space<vmem>>, %arg7: memref<16x128xbf16, #tpu.memory_space<vmem>>) attributes {dimension_semantics = [#tpu.dimension_semantics<parallel>, #tpu.dimension_semantics<parallel>], iteration_bounds = array<i64: 1, 1>, scalar_prefetch = 0 : i64, scratch_operands = 0 : i64, tpu.core_type = #tpu.core_type<tc>, window_params = [{transform_indices = @transform_0, window_bounds = array<i64: 16, 128>}, {pipeline_mode = #tpu.pipeline_mode<synchronous>, transform_indices = @transform_1, window_bounds = array<i64: 1, 128>}, {pipeline_mode = #tpu.pipeline_mode<synchronous>, transform_indices = @transform_2, window_bounds = array<i64: 1, 128>}, {transform_indices = @transform_3, window_bounds = array<i64: 128, 128>}, {transform_indices = @transform_4, window_bounds = array<i64: 1, 128>}, {transform_indices = @transform_5, window_bounds = array<i64: 16, 128>}]} {
    %c0 = arith.constant 0 : index
    %c0_0 = arith.constant 0 : index
    %0 = vector.load %arg2[%c0, %c0_0] : memref<16x128xbf16, #tpu.memory_space<vmem>>, vector<16x128xbf16>
    %1 = arith.extf %0 : vector<16x128xbf16> to vector<16x128xf32>
    %cst = arith.constant dense<0.000000e+00> : vector<16xf32>
    %2 = vector.multi_reduction <add>, %1, %cst [1] : vector<16x128xf32> to vector<16xf32>
    %3 = vector.shape_cast %2 : vector<16xf32> to vector<16x1xf32>
    %cst_1 = arith.constant 1.280000e+02 : f32
    %4 = vector.broadcast %cst_1 : f32 to vector<16x1xf32>
    %5 = arith.divf %3, %4 : vector<16x1xf32>
    %6 = vector.broadcast %5 : vector<16x1xf32> to vector<16x128xf32>
    %7 = arith.subf %1, %6 : vector<16x128xf32>
    %8 = arith.mulf %7, %7 : vector<16x128xf32>
    %cst_2 = arith.constant dense<0.000000e+00> : vector<16xf32>
    %9 = vector.multi_reduction <add>, %8, %cst_2 [1] : vector<16x128xf32> to vector<16xf32>
    %10 = vector.shape_cast %9 : vector<16xf32> to vector<16x1xf32>
    %cst_3 = arith.constant 1.280000e+02 : f32
    %11 = vector.broadcast %cst_3 : f32 to vector<16x1xf32>
    %12 = arith.divf %10, %11 : vector<16x1xf32>
    %13 = vector.broadcast %5 : vector<16x1xf32> to vector<16x128xf32>
    %14 = arith.subf %1, %13 : vector<16x128xf32>
    %cst_4 = arith.constant 9.99999997E-7 : f32
    %15 = vector.broadcast %cst_4 : f32 to vector<16x1xf32>
    %16 = arith.addf %12, %15 : vector<16x1xf32>
    %17 = math.rsqrt %16 : vector<16x1xf32>
    %18 = vector.broadcast %17 : vector<16x1xf32> to vector<16x128xf32>
    %19 = arith.mulf %14, %18 : vector<16x128xf32>
    %c0_5 = arith.constant 0 : index
    %c0_6 = arith.constant 0 : index
    %20 = vector.load %arg3[%c0_5, %c0_6] : memref<1x128xf32, #tpu.memory_space<vmem>>, vector<1x128xf32>
    %21 = vector.broadcast %20 : vector<1x128xf32> to vector<16x128xf32>
    %22 = arith.mulf %19, %21 : vector<16x128xf32>
    %c0_7 = arith.constant 0 : index
    %c0_8 = arith.constant 0 : index
    %23 = vector.load %arg4[%c0_7, %c0_8] : memref<1x128xf32, #tpu.memory_space<vmem>>, vector<1x128xf32>
    %24 = vector.broadcast %23 : vector<1x128xf32> to vector<16x128xf32>
    %25 = arith.addf %22, %24 : vector<16x128xf32>
    %26 = arith.truncf %25 : vector<16x128xf32> to vector<16x128xbf16>
    %c0_9 = arith.constant 0 : index
    %c0_10 = arith.constant 0 : index
    %27 = vector.load %arg5[%c0_9, %c0_10] : memref<128x128xbf16, #tpu.memory_space<vmem>>, vector<128x128xbf16>
    %cst_11 = arith.constant dense<0.000000e+00> : vector<16x128xf32>
    %28 = tpu.matmul %26, %27, %cst_11 {dimension_numbers = #tpu.dot_dimension_numbers<[1], [0], [0], [1], [0, 0, 1, 1], [], []>} : vector<16x128xbf16>, vector<128x128xbf16>, vector<16x128xf32> -> vector<16x128xf32>
    %c0_12 = arith.constant 0 : index
    %c0_13 = arith.constant 0 : index
    %29 = vector.load %arg6[%c0_12, %c0_13] : memref<1x128xf32, #tpu.memory_space<vmem>>, vector<1x128xf32>
    %30 = vector.broadcast %29 : vector<1x128xf32> to vector<16x128xf32>
    %31 = arith.addf %28, %30 : vector<16x128xf32>
    %32 = arith.truncf %31 : vector<16x128xf32> to vector<16x128xbf16>
    %c0_14 = arith.constant 0 : index
    %c0_15 = arith.constant 0 : index
    %33 = vector.load %arg7[%c0_14, %c0_15] : memref<16x128xbf16, #tpu.memory_space<vmem>>, vector<16x128xbf16>
    tpu.vector_store %arg7[%c0_14, %c0_15], %32 {strides = array<i32>} : memref<16x128xbf16, #tpu.memory_space<vmem>>, vector<16x128xbf16>,
    return
  }
  func.func @transform_0(%arg0: i32, %arg1: i32) -> (i32, i32) {
    %c0_i32 = arith.constant 0 : i32
    %c0_i32_0 = arith.constant 0 : i32
    return %arg0, %c0_i32 : i32, i32
  }
  func.func @transform_1(%arg0: i32, %arg1: i32) -> (i32, i32) {
    %c0_i32 = arith.constant 0 : i32
    %c0_i32_0 = arith.constant 0 : i32
    %c0_i32_1 = arith.constant 0 : i32
    return %c0_i32, %c0_i32_0 : i32, i32
  }
  func.func @transform_2(%arg0: i32, %arg1: i32) -> (i32, i32) {
    %c0_i32 = arith.constant 0 : i32
    %c0_i32_0 = arith.constant 0 : i32
    %c0_i32_1 = arith.constant 0 : i32
    return %c0_i32, %c0_i32_0 : i32, i32
  }
  func.func @transform_3(%arg0: i32, %arg1: i32) -> (i32, i32) {
    %c0_i32 = arith.constant 0 : i32
    %c0_i32_0 = arith.constant 0 : i32
    return %c0_i32, %arg1 : i32, i32
  }
  func.func @transform_4(%arg0: i32, %arg1: i32) -> (i32, i32) {
    %c0_i32 = arith.constant 0 : i32
    %c0_i32_0 = arith.constant 0 : i32
    return %c0_i32, %arg1 : i32, i32
  }
  func.func @transform_5(%arg0: i32, %arg1: i32) -> (i32, i32) {
    %c0_i32 = arith.constant 0 : i32
    return %arg0, %arg1 : i32, i32
  }
}

module attributes {stable_mosaic.version = 11 : i64} {
  func.func @_ln_matmul_kernel(%arg0: i32, %arg1: i32, %arg2: memref<16x128xbf16, #tpu.memory_space<vmem>>, %arg3: memref<1x128xf32, #tpu.memory_space<vmem>>, %arg4: memref<1x128xf32, #tpu.memory_space<vmem>>, %arg5: memref<128x128xbf16, #tpu.memory_space<vmem>>, %arg6: memref<1x128xf32, #tpu.memory_space<vmem>>, %arg7: memref<16x128xbf16, #tpu.memory_space<vmem>>) attributes {dimension_semantics = [#tpu.dimension_semantics<parallel>, #tpu.dimension_semantics<parallel>], iteration_bounds = array<i64: 1, 3>, scalar_prefetch = 0 : i64, scratch_operands = 0 : i64, tpu.core_type = #tpu.core_type<tc>, window_params = [{transform_indices = @transform_0, window_bounds = array<i64: 16, 128>}, {pipeline_mode = #tpu.pipeline_mode<synchronous>, transform_indices = @transform_1, window_bounds = array<i64: 1, 128>}, {pipeline_mode = #tpu.pipeline_mode<synchronous>, transform_indices = @transform_2, window_bounds = array<i64: 1, 128>}, {transform_indices = @transform_3, window_bounds = array<i64: 128, 128>}, {transform_indices = @transform_4, window_bounds = array<i64: 1, 128>}, {transform_indices = @transform_5, window_bounds = array<i64: 16, 128>}]} {
    %c0 = arith.constant 0 : index
    %c0_0 = arith.constant 0 : index
    %0 = vector.load %arg2[%c0, %c0_0] : memref<16x128xbf16, #tpu.memory_space<vmem>>, vector<16x128xbf16>
    %1 = arith.extf %0 : vector<16x128xbf16> to vector<16x128xf32>
    %cst = arith.constant dense<0.000000e+00> : vector<16xf32>
    %2 = vector.multi_reduction <add>, %1, %cst [1] : vector<16x128xf32> to vector<16xf32>
    %3 = vector.shape_cast %2 : vector<16xf32> to vector<16x1xf32>
    %cst_1 = arith.constant 1.280000e+02 : f32
    %4 = vector.broadcast %cst_1 : f32 to vector<16x1xf32>
    %5 = arith.divf %3, %4 : vector<16x1xf32>
    %6 = vector.broadcast %5 : vector<16x1xf32> to vector<16x128xf32>
    %7 = arith.subf %1, %6 : vector<16x128xf32>
    %8 = arith.mulf %7, %7 : vector<16x128xf32>
    %cst_2 = arith.constant dense<0.000000e+00> : vector<16xf32>
    %9 = vector.multi_reduction <add>, %8, %cst_2 [1] : vector<16x128xf32> to vector<16xf32>
    %10 = vector.shape_cast %9 : vector<16xf32> to vector<16x1xf32>
    %cst_3 = arith.constant 1.280000e+02 : f32
    %11 = vector.broadcast %cst_3 : f32 to vector<16x1xf32>
    %12 = arith.divf %10, %11 : vector<16x1xf32>
    %13 = vector.broadcast %5 : vector<16x1xf32> to vector<16x128xf32>
    %14 = arith.subf %1, %13 : vector<16x128xf32>
    %cst_4 = arith.constant 9.99999997E-7 : f32
    %15 = vector.broadcast %cst_4 : f32 to vector<16x1xf32>
    %16 = arith.addf %12, %15 : vector<16x1xf32>
    %17 = math.rsqrt %16 : vector<16x1xf32>
    %18 = vector.broadcast %17 : vector<16x1xf32> to vector<16x128xf32>
    %19 = arith.mulf %14, %18 : vector<16x128xf32>
    %c0_5 = arith.constant 0 : index
    %c0_6 = arith.constant 0 : index
    %20 = vector.load %arg3[%c0_5, %c0_6] : memref<1x128xf32, #tpu.memory_space<vmem>>, vector<1x128xf32>
    %21 = vector.broadcast %20 : vector<1x128xf32> to vector<16x128xf32>
    %22 = arith.mulf %19, %21 : vector<16x128xf32>
    %c0_7 = arith.constant 0 : index
    %c0_8 = arith.constant 0 : index
    %23 = vector.load %arg4[%c0_7, %c0_8] : memref<1x128xf32, #tpu.memory_space<vmem>>, vector<1x128xf32>
    %24 = vector.broadcast %23 : vector<1x128xf32> to vector<16x128xf32>
    %25 = arith.addf %22, %24 : vector<16x128xf32>
    %26 = arith.truncf %25 : vector<16x128xf32> to vector<16x128xbf16>
    %c0_9 = arith.constant 0 : index
    %c0_10 = arith.constant 0 : index
    %27 = vector.load %arg5[%c0_9, %c0_10] : memref<128x128xbf16, #tpu.memory_space<vmem>>, vector<128x128xbf16>
    %cst_11 = arith.constant dense<0.000000e+00> : vector<16x128xf32>
    %28 = tpu.matmul %26, %27, %cst_11 {dimension_numbers = #tpu.dot_dimension_numbers<[1], [0], [0], [1], [0, 0, 1, 1], [], []>} : vector<16x128xbf16>, vector<128x128xbf16>, vector<16x128xf32> -> vector<16x128xf32>
    %c0_12 = arith.constant 0 : index
    %c0_13 = arith.constant 0 : index
    %29 = vector.load %arg6[%c0_12, %c0_13] : memref<1x128xf32, #tpu.memory_space<vmem>>, vector<1x128xf32>
    %30 = vector.broadcast %29 : vector<1x128xf32> to vector<16x128xf32>
    %31 = arith.addf %28, %30 : vector<16x128xf32>
    %32 = arith.truncf %31 : vector<16x128xf32> to vector<16x128xbf16>
    %c0_14 = arith.constant 0 : index
    %c0_15 = arith.constant 0 : index
    %33 = vector.load %arg7[%c0_14, %c0_15] : memref<16x128xbf16, #tpu.memory_space<vmem>>, vector<16x128xbf16>
    tpu.vector_store %arg7[%c0_14, %c0_15], %32 {strides = array<i32>} : memref<16x128xbf16, #tpu.memory_space<vmem>>, vector<16x128xbf16>,
    return
  }
  func.func @transform_0(%arg0: i32, %arg1: i32) -> (i32, i32) {
    %c0_i32 = arith.constant 0 : i32
    %c0_i32_0 = arith.constant 0 : i32
    return %arg0, %c0_i32 : i32, i32
  }
  func.func @transform_1(%arg0: i32, %arg1: i32) -> (i32, i32) {
    %c0_i32 = arith.constant 0 : i32
    %c0_i32_0 = arith.constant 0 : i32
    %c0_i32_1 = arith.constant 0 : i32
    return %c0_i32, %c0_i32_0 : i32, i32
  }
  func.func @transform_2(%arg0: i32, %arg1: i32) -> (i32, i32) {
    %c0_i32 = arith.constant 0 : i32
    %c0_i32_0 = arith.constant 0 : i32
    %c0_i32_1 = arith.constant 0 : i32
    return %c0_i32, %c0_i32_0 : i32, i32
  }
  func.func @transform_3(%arg0: i32, %arg1: i32) -> (i32, i32) {
    %c0_i32 = arith.constant 0 : i32
    %c0_i32_0 = arith.constant 0 : i32
    return %c0_i32, %arg1 : i32, i32
  }
  func.func @transform_4(%arg0: i32, %arg1: i32) -> (i32, i32) {
    %c0_i32 = arith.constant 0 : i32
    %c0_i32_0 = arith.constant 0 : i32
    return %c0_i32, %arg1 : i32, i32
  }
  func.func @transform_5(%arg0: i32, %arg1: i32) -> (i32, i32) {
    %c0_i32 = arith.constant 0 : i32
    return %arg0, %arg1 : i32, i32
  }
}

module attributes {stable_mosaic.version = 11 : i64} {
  func.func @_temporal_attn_kernel(%arg0: i32, %arg1: i32, %arg2: memref<1x2x4x384xbf16, #tpu.memory_space<vmem>>, %arg3: memref<1x2x4x128xbf16, #tpu.memory_space<vmem>>) attributes {dimension_semantics = [#tpu.dimension_semantics<parallel>, #tpu.dimension_semantics<parallel>], iteration_bounds = array<i64: 2, 1>, scalar_prefetch = 0 : i64, scratch_operands = 0 : i64, tpu.core_type = #tpu.core_type<tc>, window_params = [{transform_indices = @transform_0, window_bounds = array<i64: 1, 2, 4, 384>}, {transform_indices = @transform_1, window_bounds = array<i64: 1, 2, 4, 128>}]} {
    %c0 = arith.constant 0 : index
    %c0_0 = arith.constant 0 : index
    %c0_1 = arith.constant 0 : index
    %c0_2 = arith.constant 0 : index
    %0 = vector.load %arg2[%c0, %c0_0, %c0_1, %c0_2] : memref<1x2x4x384xbf16, #tpu.memory_space<vmem>>, vector<1x2x4x384xbf16>
    %1 = vector.shape_cast %0 : vector<1x2x4x384xbf16> to vector<2x4x384xbf16>
    %2 = vector.extract_strided_slice %1 {offsets = [0, 0, 0], sizes = [2, 4, 128], strides = [1, 1, 1]} : vector<2x4x384xbf16> to vector<2x4x128xbf16>
    %3 = vector.extract_strided_slice %1 {offsets = [0, 0, 128], sizes = [2, 4, 128], strides = [1, 1, 1]} : vector<2x4x384xbf16> to vector<2x4x128xbf16>
    %4 = vector.extract_strided_slice %1 {offsets = [0, 0, 256], sizes = [2, 4, 128], strides = [1, 1, 1]} : vector<2x4x384xbf16> to vector<2x4x128xbf16>
    %cst = arith.constant dense<0.000000e+00> : vector<4x2x2xf32>
    %5 = tpu.matmul %2, %3, %cst {dimension_numbers = #tpu.dot_dimension_numbers<[2], [2], [0], [0], [0, 1, 0, 0, 1, 0], [1], [1]>} : vector<2x4x128xbf16>, vector<2x4x128xbf16>, vector<4x2x2xf32> -> vector<4x2x2xf32>
    %cst_3 = arith.constant 0.0883883461 : f32
    %6 = vector.broadcast %cst_3 : f32 to vector<4x2x2xf32>
    %7 = arith.mulf %5, %6 : vector<4x2x2xf32>
    %cst_4 = arith.constant dense<0xFF800000> : vector<4x2xf32>
    %8 = vector.multi_reduction <maximumf>, %7, %cst_4 [2] : vector<4x2x2xf32> to vector<4x2xf32>
    %9 = vector.shape_cast %8 : vector<4x2xf32> to vector<4x2x1xf32>
    %10 = vector.broadcast %9 : vector<4x2x1xf32> to vector<4x2x2xf32>
    %11 = arith.subf %7, %10 : vector<4x2x2xf32>
    %12 = math.exp %11 : vector<4x2x2xf32>
    %cst_5 = arith.constant dense<0.000000e+00> : vector<4x2xf32>
    %13 = vector.multi_reduction <add>, %12, %cst_5 [2] : vector<4x2x2xf32> to vector<4x2xf32>
    %14 = vector.shape_cast %13 : vector<4x2xf32> to vector<4x2x1xf32>
    %15 = tpu.reciprocal %14 {approx = true} : vector<4x2x1xf32> -> vector<4x2x1xf32>
    %16 = vector.broadcast %15 : vector<4x2x1xf32> to vector<4x2x2xf32>
    %17 = arith.mulf %12, %16 : vector<4x2x2xf32>
    %18 = arith.truncf %17 : vector<4x2x2xf32> to vector<4x2x2xbf16>
    %cst_6 = arith.constant dense<0.000000e+00> : vector<4x2x128xf32>
    %19 = tpu.matmul %18, %4, %cst_6 {dimension_numbers = #tpu.dot_dimension_numbers<[2], [0], [1], [2], [0, 0, 0, 1, 1, 2], [0], [1]>} : vector<4x2x2xbf16>, vector<2x4x128xbf16>, vector<4x2x128xf32> -> vector<4x2x128xf32>
    %20 = tpu.transpose %19, [1, 0, 2] : vector<4x2x128xf32> -> vector<2x4x128xf32>
    %21 = arith.truncf %20 : vector<2x4x128xf32> to vector<2x4x128xbf16>
    %c0_7 = arith.constant 0 : index
    %c0_8 = arith.constant 0 : index
    %c0_9 = arith.constant 0 : index
    %c0_10 = arith.constant 0 : index
    %22 = vector.load %arg3[%c0_7, %c0_8, %c0_9, %c0_10] : memref<1x2x4x128xbf16, #tpu.memory_space<vmem>>, vector<1x2x4x128xbf16>
    %23 = vector.shape_cast %22 : vector<1x2x4x128xbf16> to vector<2x4x128xbf16>
    %24 = vector.shape_cast %21 : vector<2x4x128xbf16> to vector<1x2x4x128xbf16>
    tpu.vector_store %arg3[%c0_7, %c0_8, %c0_9, %c0_10], %24 {strides = array<i32>} : memref<1x2x4x128xbf16, #tpu.memory_space<vmem>>, vector<1x2x4x128xbf16>,
    return
  }
  func.func @transform_0(%arg0: i32, %arg1: i32) -> (i32, i32, i32, i32) {
    %c0_i32 = arith.constant 0 : i32
    %c0_i32_0 = arith.constant 0 : i32
    %c0_i32_1 = arith.constant 0 : i32
    return %arg0, %c0_i32, %arg1, %c0_i32_0 : i32, i32, i32, i32
  }
  func.func @transform_1(%arg0: i32, %arg1: i32) -> (i32, i32, i32, i32) {
    %c0_i32 = arith.constant 0 : i32
    %c0_i32_0 = arith.constant 0 : i32
    %c0_i32_1 = arith.constant 0 : i32
    return %arg0, %c0_i32, %arg1, %c0_i32_0 : i32, i32, i32, i32
  }
}

module attributes {stable_mosaic.version = 11 : i64} {
  func.func @_matmul_kernel(%arg0: i32, %arg1: i32, %arg2: i32, %arg3: memref<16x128xbf16, #tpu.memory_space<vmem>>, %arg4: memref<128x128xbf16, #tpu.memory_space<vmem>>, %arg5: memref<1x128xf32, #tpu.memory_space<vmem>>, %arg6: memref<16x128xbf16, #tpu.memory_space<vmem>>, %arg7: memref<16x128xbf16, #tpu.memory_space<vmem>>) attributes {dimension_semantics = [#tpu.dimension_semantics<parallel>, #tpu.dimension_semantics<parallel>, #tpu.dimension_semantics<arbitrary>], iteration_bounds = array<i64: 1, 1, 1>, scalar_prefetch = 0 : i64, scratch_operands = 0 : i64, tpu.core_type = #tpu.core_type<tc>, window_params = [{transform_indices = @transform_0, window_bounds = array<i64: 16, 128>}, {transform_indices = @transform_1, window_bounds = array<i64: 128, 128>}, {transform_indices = @transform_2, window_bounds = array<i64: 1, 128>}, {transform_indices = @transform_3, window_bounds = array<i64: 16, 128>}, {transform_indices = @transform_4, window_bounds = array<i64: 16, 128>}]} {
    %c0 = arith.constant 0 : index
    %c0_0 = arith.constant 0 : index
    %0 = vector.load %arg3[%c0, %c0_0] : memref<16x128xbf16, #tpu.memory_space<vmem>>, vector<16x128xbf16>
    %c0_1 = arith.constant 0 : index
    %c0_2 = arith.constant 0 : index
    %1 = vector.load %arg4[%c0_1, %c0_2] : memref<128x128xbf16, #tpu.memory_space<vmem>>, vector<128x128xbf16>
    %cst = arith.constant dense<0.000000e+00> : vector<16x128xf32>
    %2 = tpu.matmul %0, %1, %cst {dimension_numbers = #tpu.dot_dimension_numbers<[1], [0], [0], [1], [0, 0, 1, 1], [], []>} : vector<16x128xbf16>, vector<128x128xbf16>, vector<16x128xf32> -> vector<16x128xf32>
    %c0_3 = arith.constant 0 : index
    %c0_4 = arith.constant 0 : index
    %3 = vector.load %arg5[%c0_3, %c0_4] : memref<1x128xf32, #tpu.memory_space<vmem>>, vector<1x128xf32>
    %4 = vector.broadcast %3 : vector<1x128xf32> to vector<16x128xf32>
    %5 = arith.addf %2, %4 : vector<16x128xf32>
    %c0_5 = arith.constant 0 : index
    %c0_6 = arith.constant 0 : index
    %6 = vector.load %arg6[%c0_5, %c0_6] : memref<16x128xbf16, #tpu.memory_space<vmem>>, vector<16x128xbf16>
    %7 = arith.extf %6 : vector<16x128xbf16> to vector<16x128xf32>
    %8 = arith.addf %5, %7 : vector<16x128xf32>
    %9 = arith.truncf %8 : vector<16x128xf32> to vector<16x128xbf16>
    %c0_7 = arith.constant 0 : index
    %c0_8 = arith.constant 0 : index
    %10 = vector.load %arg7[%c0_7, %c0_8] : memref<16x128xbf16, #tpu.memory_space<vmem>>, vector<16x128xbf16>
    tpu.vector_store %arg7[%c0_7, %c0_8], %9 {strides = array<i32>} : memref<16x128xbf16, #tpu.memory_space<vmem>>, vector<16x128xbf16>,
    return
  }
  func.func @transform_0(%arg0: i32, %arg1: i32, %arg2: i32) -> (i32, i32) {
    %c0_i32 = arith.constant 0 : i32
    return %arg0, %arg2 : i32, i32
  }
  func.func @transform_1(%arg0: i32, %arg1: i32, %arg2: i32) -> (i32, i32) {
    %c0_i32 = arith.constant 0 : i32
    return %arg2, %arg1 : i32, i32
  }
  func.func @transform_2(%arg0: i32, %arg1: i32, %arg2: i32) -> (i32, i32) {
    %c0_i32 = arith.constant 0 : i32
    %c0_i32_0 = arith.constant 0 : i32
    return %c0_i32, %arg1 : i32, i32
  }
  func.func @transform_3(%arg0: i32, %arg1: i32, %arg2: i32) -> (i32, i32) {
    %c0_i32 = arith.constant 0 : i32
    return %arg0, %arg1 : i32, i32
  }
  func.func @transform_4(%arg0: i32, %arg1: i32, %arg2: i32) -> (i32, i32) {
    %c0_i32 = arith.constant 0 : i32
    return %arg0, %arg1 : i32, i32
  }
}

module attributes {stable_mosaic.version = 11 : i64} {
  func.func @_head_tail_kernel(%arg0: i32, %arg1: memref<1x4x128xbf16, #tpu.memory_space<vmem>>, %arg2: memref<128x64xbf16, #tpu.memory_space<vmem>>, %arg3: memref<1x64xf32, #tpu.memory_space<vmem>>, %arg4: memref<64x1xbf16, #tpu.memory_space<vmem>>, %arg5: memref<1x1xf32, #tpu.memory_space<vmem>>, %arg6: memref<28x4xbf16, #tpu.memory_space<vmem>>, %arg7: memref<4x28xf32, #tpu.memory_space<vmem>>, %arg8: memref<1x28x28xf32, #tpu.memory_space<vmem>>) attributes {dimension_semantics = [#tpu.dimension_semantics<parallel>], iteration_bounds = array<i64: 4>, scalar_prefetch = 0 : i64, scratch_operands = 0 : i64, tpu.core_type = #tpu.core_type<tc>, window_params = [{transform_indices = @transform_0, window_bounds = array<i64: 1, 4, 128>}, {pipeline_mode = #tpu.pipeline_mode<synchronous>, transform_indices = @transform_1, window_bounds = array<i64: 128, 64>}, {pipeline_mode = #tpu.pipeline_mode<synchronous>, transform_indices = @transform_2, window_bounds = array<i64: 1, 64>}, {pipeline_mode = #tpu.pipeline_mode<synchronous>, transform_indices = @transform_3, window_bounds = array<i64: 64, 1>}, {pipeline_mode = #tpu.pipeline_mode<synchronous>, transform_indices = @transform_4, window_bounds = array<i64: 1, 1>}, {pipeline_mode = #tpu.pipeline_mode<synchronous>, transform_indices = @transform_5, window_bounds = array<i64: 28, 4>}, {pipeline_mode = #tpu.pipeline_mode<synchronous>, transform_indices = @transform_6, window_bounds = array<i64: 4, 28>}, {transform_indices = @transform_7, window_bounds = array<i64: 1, 28, 28>}]} {
    %c0 = arith.constant 0 : index
    %c0_0 = arith.constant 0 : index
    %c0_1 = arith.constant 0 : index
    %0 = vector.load %arg1[%c0, %c0_0, %c0_1] : memref<1x4x128xbf16, #tpu.memory_space<vmem>>, vector<1x4x128xbf16>
    %1 = vector.shape_cast %0 : vector<1x4x128xbf16> to vector<4x128xbf16>
    %c0_2 = arith.constant 0 : index
    %c0_3 = arith.constant 0 : index
    %2 = vector.load %arg2[%c0_2, %c0_3] : memref<128x64xbf16, #tpu.memory_space<vmem>>, vector<128x64xbf16>
    %cst = arith.constant dense<0.000000e+00> : vector<4x64xf32>
    %3 = tpu.matmul %1, %2, %cst {dimension_numbers = #tpu.dot_dimension_numbers<[1], [0], [0], [1], [0, 0, 1, 1], [], []>} : vector<4x128xbf16>, vector<128x64xbf16>, vector<4x64xf32> -> vector<4x64xf32>
    %c0_4 = arith.constant 0 : index
    %c0_5 = arith.constant 0 : index
    %4 = vector.load %arg3[%c0_4, %c0_5] : memref<1x64xf32, #tpu.memory_space<vmem>>, vector<1x64xf32>
    %5 = vector.broadcast %4 : vector<1x64xf32> to vector<4x64xf32>
    %6 = arith.addf %3, %5 : vector<4x64xf32>
    %cst_6 = arith.constant 0.000000e+00 : f32
    %7 = vector.broadcast %cst_6 : f32 to vector<4x64xf32>
    %8 = arith.maximumf %6, %7 : vector<4x64xf32>
    %9 = arith.truncf %8 : vector<4x64xf32> to vector<4x64xbf16>
    %c0_7 = arith.constant 0 : index
    %c0_8 = arith.constant 0 : index
    %10 = vector.load %arg4[%c0_7, %c0_8] : memref<64x1xbf16, #tpu.memory_space<vmem>>, vector<64x1xbf16>
    %cst_9 = arith.constant dense<0.000000e+00> : vector<4x1xf32>
    %11 = tpu.matmul %9, %10, %cst_9 {dimension_numbers = #tpu.dot_dimension_numbers<[1], [0], [0], [1], [0, 0, 1, 1], [], []>} : vector<4x64xbf16>, vector<64x1xbf16>, vector<4x1xf32> -> vector<4x1xf32>
    %c0_10 = arith.constant 0 : index
    %c0_11 = arith.constant 0 : index
    %12 = vector.load %arg5[%c0_10, %c0_11] : memref<1x1xf32, #tpu.memory_space<vmem>>, vector<1x1xf32>
    %13 = vector.broadcast %12 : vector<1x1xf32> to vector<4x1xf32>
    %14 = arith.addf %11, %13 : vector<4x1xf32>
    %cst_12 = arith.constant 0.000000e+00 : f32
    %15 = vector.broadcast %cst_12 : f32 to vector<4x1xf32>
    %16 = arith.maximumf %14, %15 : vector<4x1xf32>
    %c0_13 = arith.constant 0 : index
    %c0_14 = arith.constant 0 : index
    %17 = vector.load %arg7[%c0_13, %c0_14] : memref<4x28xf32, #tpu.memory_space<vmem>>, vector<4x28xf32>
    %18 = vector.broadcast %16 : vector<4x1xf32> to vector<4x28xf32>
    %19 = arith.mulf %18, %17 : vector<4x28xf32>
    %c0_15 = arith.constant 0 : index
    %c0_16 = arith.constant 0 : index
    %20 = vector.load %arg6[%c0_15, %c0_16] : memref<28x4xbf16, #tpu.memory_space<vmem>>, vector<28x4xbf16>
    %21 = arith.truncf %19 : vector<4x28xf32> to vector<4x28xbf16>
    %cst_17 = arith.constant dense<0.000000e+00> : vector<28x28xf32>
    %22 = tpu.matmul %20, %21, %cst_17 {dimension_numbers = #tpu.dot_dimension_numbers<[1], [0], [0], [1], [0, 0, 1, 1], [], []>} : vector<28x4xbf16>, vector<4x28xbf16>, vector<28x28xf32> -> vector<28x28xf32>
    %cst_18 = arith.constant 0.000000e+00 : f32
    %23 = vector.broadcast %cst_18 : f32 to vector<28x28xf32>
    %24 = arith.maximumf %22, %23 : vector<28x28xf32>
    %c0_19 = arith.constant 0 : index
    %c0_20 = arith.constant 0 : index
    %c0_21 = arith.constant 0 : index
    %25 = vector.load %arg8[%c0_19, %c0_20, %c0_21] : memref<1x28x28xf32, #tpu.memory_space<vmem>>, vector<1x28x28xf32>
    %26 = vector.shape_cast %25 : vector<1x28x28xf32> to vector<28x28xf32>
    %27 = vector.shape_cast %24 : vector<28x28xf32> to vector<1x28x28xf32>
    tpu.vector_store %arg8[%c0_19, %c0_20, %c0_21], %27 {strides = array<i32>} : memref<1x28x28xf32, #tpu.memory_space<vmem>>, vector<1x28x28xf32>,
    return
  }
  func.func @transform_0(%arg0: i32) -> (i32, i32, i32) {
    %c0_i32 = arith.constant 0 : i32
    %c0_i32_0 = arith.constant 0 : i32
    %c0_i32_1 = arith.constant 0 : i32
    return %arg0, %c0_i32, %c0_i32_0 : i32, i32, i32
  }
  func.func @transform_1(%arg0: i32) -> (i32, i32) {
    %c0_i32 = arith.constant 0 : i32
    %c0_i32_0 = arith.constant 0 : i32
    %c0_i32_1 = arith.constant 0 : i32
    return %c0_i32, %c0_i32_0 : i32, i32
  }
  func.func @transform_2(%arg0: i32) -> (i32, i32) {
    %c0_i32 = arith.constant 0 : i32
    %c0_i32_0 = arith.constant 0 : i32
    %c0_i32_1 = arith.constant 0 : i32
    return %c0_i32, %c0_i32_0 : i32, i32
  }
  func.func @transform_3(%arg0: i32) -> (i32, i32) {
    %c0_i32 = arith.constant 0 : i32
    %c0_i32_0 = arith.constant 0 : i32
    %c0_i32_1 = arith.constant 0 : i32
    return %c0_i32, %c0_i32_0 : i32, i32
  }
  func.func @transform_4(%arg0: i32) -> (i32, i32) {
    %c0_i32 = arith.constant 0 : i32
    %c0_i32_0 = arith.constant 0 : i32
    %c0_i32_1 = arith.constant 0 : i32
    return %c0_i32, %c0_i32_0 : i32, i32
  }
  func.func @transform_5(%arg0: i32) -> (i32, i32) {
    %c0_i32 = arith.constant 0 : i32
    %c0_i32_0 = arith.constant 0 : i32
    %c0_i32_1 = arith.constant 0 : i32
    return %c0_i32, %c0_i32_0 : i32, i32
  }
  func.func @transform_6(%arg0: i32) -> (i32, i32) {
    %c0_i32 = arith.constant 0 : i32
    %c0_i32_0 = arith.constant 0 : i32
    %c0_i32_1 = arith.constant 0 : i32
    return %c0_i32, %c0_i32_0 : i32, i32
  }
  func.func @transform_7(%arg0: i32) -> (i32, i32, i32) {
    %c0_i32 = arith.constant 0 : i32
    %c0_i32_0 = arith.constant 0 : i32
    %c0_i32_1 = arith.constant 0 : i32
    return %arg0, %c0_i32, %c0_i32_0 : i32, i32, i32
  }
}

</mosaic_0001>

<llo_original>
// kernel: _lambda_.30
$region0: #{_lambda_.30}
  #allocation0 [shape = 'u32[]', space=smem, size = 0x4, offset = 0x4, fixed_abs, tag = 'smem constant byte address 0x4 - core index']
  #allocation1 [shape = 'u32[144,128]{1,0:T(1,128)}', space=vmem, size = 0x12000, scoped, tag = 'internal scratch']
  %s0 = inlined_call_operand.vmem [shape: bf16[20,128], index: 0, kind: input, shape index: {}]
  %s1 = inlined_call_operand.vmem [shape: f32[1,128], index: 1, kind: input, shape index: {}]
  %s2 = inlined_call_operand.vmem [shape: f32[1,128], index: 2, kind: input, shape index: {}]
  %s3 = inlined_call_operand.vmem [shape: bf16[128,384], index: 3, kind: input, shape index: {}]
  %s4 = inlined_call_operand.vmem [shape: f32[1,384], index: 4, kind: input, shape index: {}]
  %s5 = inlined_call_operand.vmem [shape: bf16[20,384], index: 5, kind: output, shape index: {}]
  %s6 = sld [smem:[#allocation0]]
  $region131: #{_lambda_.30} parent=0
    _
  %s8 = ssub.s32 1, %s6
  %s9 = scalar_select 0, %s8, %s6
  $region1: #{_lambda_.30} parent=0
    #allocation2 [shape = 'u8[65536]{0}', space=vmem, size = 0x10000, scoped, tag = 'input window, operand 3']
    #allocation3 [shape = 'u8[12288]{0}', space=vmem, size = 0x3000, scoped, tag = 'output window, operand 0']
    loop: start=0, step=1, limit=5
    $region2: #{_lambda_.30} parent=1 // loop_pre_header
      _
    $region3: #{_lambda_.30} parent=1 // loop_header
      %s11 = sphi 0, %s15
      %p12 = scmp.ge.s32.totalorder %s11, 5
      %s18 = sphi 0, %s30
      %s19 = sphi 0, %s26
      %s20 = sphi 0, %s18
      %s21 = sphi 0, %s19
      %s22 = sphi 0, %s20
      %s23 = sphi 0, %s21
      %s33 = sphi 0, %s35
      %s36 = sphi 0, %s33
      %s37 = sphi 0, %s36
      %s53 = sphi 0, %s37
      %s57 = sphi 0, %s57
      %s59 = sphi 0, %s57
      %s60 = sphi 0, %s59
      %s74 = sphi 0, %s60
      %s78 = sphi 0, %s78
      %s80 = sphi 0, %s78
      %s81 = sphi 0, %s80
      %s95 = sphi 0, %s81
      %s101 = sphi 0, %s103
      %s104 = sphi 0, %s101
      %s105 = sphi 0, %s104
      %s121 = sphi 0, %s105
      %s127 = sphi 0, %s129
      %s130 = sphi 0, %s127
      %s131 = sphi 0, %s130
      %s147 = sphi 0, %s131
      %s155 = sphi 0, %s157
      %s158 = sphi 0, %s155
      %s159 = sphi 0, %s158
      %s175 = sphi 0, %s159
    $region4: #{_lambda_.30} parent=1 // loop_header_branch
      %14 = sbr.rel (%p12) target = $region8
    $region5: #{_lambda_.30} parent=1 // loop_body
      %s16 = ssub.s32 %s11, 1
      %s17 = ssub.s32 %s11, 2
      %s24 = sadd.s32 1, %s19
      %p25 = scmp.ge.s32.totalorder %s24, 3
      %s26 = scalar_select %p25, 0, %s24
      %s27 = sadd.s32 1, %s18
      %s28 = scalar_select %p25, %s27, %s18
      %p29 = scmp.ge.s32.totalorder %s28, 1
      %s30 = scalar_select %p29, 0, %s28
      %s31 = ssub.s32 %s18, %s30
      %p32 = scmp.eq.s32.totalorder %s31, 0
      %s34 = sadd.s32 %s33, 1
      %s35 = scalar_select %p32, %s33, %s34
      %p38 = pneg %p32
      %p39 = scmp.eq.s32.totalorder %s11, 2
      %p40 = por %p38, %p39
      %p41 = scmp.ne.s32.totalorder %s33, %s36
      %p42 = scmp.eq.s32.totalorder %s11, 0
      %p43 = por %p41, %p42
      %p44 = scmp.ne.s32.totalorder %s33, %s36
      %p45 = scmp.eq.s32.totalorder %s16, 2
      %p46 = por %p44, %p45
      %p47 = scmp.ne.s32.totalorder %s36, %s37
      %p48 = scmp.eq.s32.totalorder %s16, 0
      %p49 = por %p47, %p48
      %p50 = scmp.ne.s32.totalorder %s36, %s37
      %p51 = scmp.eq.s32.totalorder %s17, 2
      %p52 = por %p50, %p51
      %p54 = scmp.ne.s32.totalorder %s37, %s53
      %p55 = scmp.eq.s32.totalorder %s17, 0
      %p56 = por %p54, %p55
      %s58 = sadd.s32 %s57, 1
      %p61 = scmp.eq.s32.totalorder %s11, 2
      %p62 = scmp.ne.s32.totalorder %s57, %s59
      %p63 = scmp.eq.s32.totalorder %s11, 0
      %p64 = por %p62, %p63
      %p65 = scmp.ne.s32.totalorder %s57, %s59
      %p66 = scmp.eq.s32.totalorder %s16, 2
      %p67 = por %p65, %p66
      %p68 = scmp.ne.s32.totalorder %s59, %s60
      %p69 = scmp.eq.s32.totalorder %s16, 0
      %p70 = por %p68, %p69
      %p71 = scmp.ne.s32.totalorder %s59, %s60
      %p72 = scmp.eq.s32.totalorder %s17, 2
      %p73 = por %p71, %p72
      %p75 = scmp.ne.s32.totalorder %s60, %s74
      %p76 = scmp.eq.s32.totalorder %s17, 0
      %p77 = por %p75, %p76
      %s79 = sadd.s32 %s78, 1
      %p82 = scmp.eq.s32.totalorder %s11, 2
      %p83 = scmp.ne.s32.totalorder %s78, %s80
      %p84 = scmp.eq.s32.totalorder %s11, 0
      %p85 = por %p83, %p84
      %p86 = scmp.ne.s32.totalorder %s78, %s80
      %p87 = scmp.eq.s32.totalorder %s16, 2
      %p88 = por %p86, %p87
      %p89 = scmp.ne.s32.totalorder %s80, %s81
      %p90 = scmp.eq.s32.totalorder %s16, 0
      %p91 = por %p89, %p90
      %p92 = scmp.ne.s32.totalorder %s80, %s81
      %p93 = scmp.eq.s32.totalorder %s17, 2
      %p94 = por %p92, %p93
      %p96 = scmp.ne.s32.totalorder %s81, %s95
      %p97 = scmp.eq.s32.totalorder %s17, 0
      %p98 = por %p96, %p97
      %s99 = ssub.s32 %s19, %s26
      %p100 = scmp.eq.s32.totalorder %s99, 0
      %s102 = sadd.s32 %s101, 1
      %s103 = scalar_select %p100, %s101, %s102
      %p106 = pneg %p100
      %p107 = scmp.eq.s32.totalorder %s11, 2
      %p108 = por %p106, %p107
      %p109 = scmp.ne.s32.totalorder %s101, %s104
      %p110 = scmp.eq.s32.totalorder %s11, 0
      %p111 = por %p109, %p110
      %p112 = scmp.ne.s32.totalorder %s101, %s104
      %p113 = scmp.eq.s32.totalorder %s16, 2
      %p114 = por %p112, %p113
      %p115 = scmp.ne.s32.totalorder %s104, %s105
      %p116 = scmp.eq.s32.totalorder %s16, 0
      %p117 = por %p115, %p116
      %p118 = scmp.ne.s32.totalorder %s104, %s105
      %p119 = scmp.eq.s32.totalorder %s17, 2
      %p120 = por %p118, %p119
      %p122 = scmp.ne.s32.totalorder %s105, %s121
      %p123 = scmp.eq.s32.totalorder %s17, 0
      %p124 = por %p122, %p123
      %s125 = ssub.s32 %s19, %s26
      %p126 = scmp.eq.s32.totalorder %s125, 0
      %s128 = sadd.s32 %s127, 1
      %s129 = scalar_select %p126, %s127, %s128
      %p132 = pneg %p126
      %p133 = scmp.eq.s32.totalorder %s11, 2
      %p134 = por %p132, %p133
      %p135 = scmp.ne.s32.totalorder %s127, %s130
      %p136 = scmp.eq.s32.totalorder %s11, 0
      %p137 = por %p135, %p136
      %p138 = scmp.ne.s32.totalorder %s127, %s130
      %p139 = scmp.eq.s32.totalorder %s16, 2
      %p140 = por %p138, %p139
      %p141 = scmp.ne.s32.totalorder %s130, %s131
      %p142 = scmp.eq.s32.totalorder %s16, 0
      %p143 = por %p141, %p142
      %p144 = scmp.ne.s32.totalorder %s130, %s131
      %p145 = scmp.eq.s32.totalorder %s17, 2
      %p146 = por %p144, %p145
      %p148 = scmp.ne.s32.totalorder %s131, %s147
      %p149 = scmp.eq.s32.totalorder %s17, 0
      %p150 = por %p148, %p149
      %s151 = ssub.s32 %s18, %s30
      %s152 = ssub.s32 %s19, %s26
      %s153 = sor.u32 %s151, %s152
      %p154 = scmp.eq.s32.totalorder %s153, 0
      %s156 = sadd.s32 %s155, 1
      %s157 = scalar_select %p154, %s155, %s156
      %p160 = pneg %p154
      %p161 = scmp.eq.s32.totalorder %s11, 2
      %p162 = por %p160, %p161
      %p163 = scmp.ne.s32.totalorder %s155, %s158
      %p164 = scmp.eq.s32.totalorder %s11, 0
      %p165 = por %p163, %p164
      %p166 = scmp.ne.s32.totalorder %s155, %s158
      %p167 = scmp.eq.s32.totalorder %s16, 2
      %p168 = por %p166, %p167
      %p169 = scmp.ne.s32.totalorder %s158, %s159
      %p170 = scmp.eq.s32.totalorder %s16, 0
      %p171 = por %p169, %p170
      %p172 = scmp.ne.s32.totalorder %s158, %s159
      %p173 = scmp.eq.s32.totalorder %s17, 2
      %p174 = por %p172, %p173
      %p176 = scmp.ne.s32.totalorder %s159, %s175
      %p177 = scmp.eq.s32.totalorder %s17, 0
      %p178 = por %p176, %p177
      %p179 = scmp.le.s32.totalorder 1, %s11
      %p180 = scmp.lt.s32.totalorder %s11, 4
      %p181 = pnand %p179, %p180
      %p182 = pneg %p181
      // Predicated region
      $region9: #{_lambda_.30} parent=5 // pred_check
        _
      $region10: #{_lambda_.30} parent=5 // pred_check_branch
        %184 = sbr.rel (%p181) target = $region12
      $region11: #{_lambda_.30} parent=5 // pred_region
        %s185 = ssub.s32 %s11, 1
        // Predicated region
        $region13: #{_lambda_.30} parent=11 // pred_check
          %p186 = pneg %p49
        $region14: #{_lambda_.30} parent=11 // pred_check_branch
          %188 = sbr.rel (%p186) target = $region16
        $region15: #{_lambda_.30} parent=11 // pred_region
          %s189 = smul.u32 3, %s20
          %p190 = scmp.lt.s32.totalorder %s189, 2
          %s191 = scalar_select %p190, %s189, 2
          %s192 = smul.addr %s191, 4
          %s193 = scalar_lea.vmem %s0, %s192
          %s194 = smul.u32 3, %s20
        $region16: #{_lambda_.30} parent=11 // pred_fallthru
          _
        // Predicated region
        $region17: #{_lambda_.30} parent=11 // pred_check
          %p195 = pneg %p70
        $region18: #{_lambda_.30} parent=11 // pred_check_branch
          %197 = sbr.rel (%p195) target = $region20
        $region19: #{_lambda_.30} parent=11 // pred_region
          _
        $region20: #{_lambda_.30} parent=11 // pred_fallthru
          _
        // Predicated region
        $region21: #{_lambda_.30} parent=11 // pred_check
          %p198 = pneg %p91
        $region22: #{_lambda_.30} parent=11 // pred_check_branch
          %200 = sbr.rel (%p198) target = $region24
        $region23: #{_lambda_.30} parent=11 // pred_region
          _
        $region24: #{_lambda_.30} parent=11 // pred_fallthru
          _
      $region12: #{_lambda_.30} parent=5 // pred_fallthru
        _
      %p201 = scmp.lt.s32.totalorder %s11, 3
      // Predicated region
      $region25: #{_lambda_.30} parent=5 // pred_check
        %p202 = pneg %p201
      $region26: #{_lambda_.30} parent=5 // pred_check_branch
        %204 = sbr.rel (%p202) target = $region28
      $region27: #{_lambda_.30} parent=5 // pred_region
        // Predicated region
        $region29: #{_lambda_.30} parent=27 // pred_check
          %p205 = pneg %p111
        $region30: #{_lambda_.30} parent=27 // pred_check_branch
          %207 = sbr.rel (%p205) target = $region32
        $region31: #{_lambda_.30} parent=27 // pred_region
          %s208 = sand.u32 %s101, 1
          %s209 = sand.u32 %s101, 1
          %s210 = smul.addr %s209, 64
          %s211 = scalar_lea.vmem [#allocation2], %s210
          %s212 = smul.addr %s19, 4
          %s213 = scalar_lea.vmem %s3, %s212
          // Predicated region
          $region33: #{_lambda_.30} parent=31 // pred_check
            _
          $region34: #{_lambda_.30} parent=31 // pred_check_branch
            %215 = sbr.rel (0) target = $region36
          $region35: #{_lambda_.30} parent=31 // pred_region
            // Predicated region
            $region37: #{_lambda_.30} parent=35 // pred_check
              _
            $region38: #{_lambda_.30} parent=35 // pred_check_branch
              %217 = sbr.rel target = $region40
            $region39: #{_lambda_.30} parent=35 // pred_region
              // Predicated region
              $region52: #{_lambda_.30} parent=39 // pred_check
                _
              $region53: #{_lambda_.30} parent=39 // pred_check_branch
                %262 = sbr.rel (0) target = $region55
              $region54: #{_lambda_.30} parent=39 // pred_region
                loop: start=0, step=1, limit=1
                $region56: #{_lambda_.30} parent=54 // loop_pre_header
                  _
                $region57: #{_lambda_.30} parent=54 // loop_header
                  %s264 = sphi 0, %s268
                  %p265 = scmp.ge.s32.totalorder %s264, 1
                  %s269 = sphi %s213, %s213
                  %s270 = sphi %s211, %s211
                $region58: #{_lambda_.30} parent=54 // loop_header_branch
                  %267 = sbr.rel (%p265) target = $region62
                $region59: #{_lambda_.30} parent=54 // loop_body
                  _
                $region60: #{_lambda_.30} parent=54 // loop_footer
                  %s268 = sadd.s32 1, %s264
                $region61: #{_lambda_.30} parent=54 // loop_footer_branch
                  %263 = sbr.rel target = $region57
                $region62: #{_lambda_.30} parent=54 // loop_exit
                  _
                loop: start=0, step=1, limit=1
                $region63: #{_lambda_.30} parent=54 // loop_pre_header
                  _
                $region64: #{_lambda_.30} parent=54 // loop_header
                  %s273 = sphi 0, %s277
                  %p274 = scmp.ge.s32.totalorder %s273, 1
                  %s278 = sphi %s213, %s213
                  %s279 = sphi %s211, %s211
                $region65: #{_lambda_.30} parent=54 // loop_header_branch
                  %276 = sbr.rel (%p274) target = $region69
                $region66: #{_lambda_.30} parent=54 // loop_body
                  %v280 = vld [vmem:[%s278] sm:$0xf]
                  %281 = vst [vmem:[%s279] sm:$0xf] %v280
                  %v282 = vld [vmem:[%s278 + $0xc] sm:$0xf]
                  %283 = vst [vmem:[%s279 + $0x4] sm:$0xf] %v282
                  %v284 = vld [vmem:[%s278 + $0x18] sm:$0xf]
                  %285 = vst [vmem:[%s279 + $0x8] sm:$0xf] %v284
                  %v286 = vld [vmem:[%s278 + $0x24] sm:$0xf]
                  %287 = vst [vmem:[%s279 + $0xc] sm:$0xf] %v286
                  %v288 = vld [vmem:[%s278 + $0x30] sm:$0xf]
                  %289 = vst [vmem:[%s279 + $0x10] sm:$0xf] %v288
                  %v290 = vld [vmem:[%s278 + $0x3c] sm:$0xf]
                  %291 = vst [vmem:[%s279 + $0x14] sm:$0xf] %v290
                  %v292 = vld [vmem:[%s278 + $0x48] sm:$0xf]
                  %293 = vst [vmem:[%s279 + $0x18] sm:$0xf] %v292
                  %v294 = vld [vmem:[%s278 + $0x54] sm:$0xf]
                  %295 = vst [vmem:[%s279 + $0x1c] sm:$0xf] %v294
                  %v296 = vld [vmem:[%s278 + $0x60] sm:$0xf]
                  %297 = vst [vmem:[%s279 + $0x20] sm:$0xf] %v296
                  %v298 = vld [vmem:[%s278 + $0x6c] sm:$0xf]
                  %299 = vst [vmem:[%s279 + $0x24] sm:$0xf] %v298
                  %v300 = vld [vmem:[%s278 + $0x78] sm:$0xf]
                  %301 = vst [vmem:[%s279 + $0x28] sm:$0xf] %v300
                  %v302 = vld [vmem:[%s278 + $0x84] sm:$0xf]
                  %303 = vst [vmem:[%s279 + $0x2c] sm:$0xf] %v302
                  %v304 = vld [vmem:[%s278 + $0x90] sm:$0xf]
                  %305 = vst [vmem:[%s279 + $0x30] sm:$0xf] %v304
                  %v306 = vld [vmem:[%s278 + $0x9c] sm:$0xf]
                  %307 = vst [vmem:[%s279 + $0x34] sm:$0xf] %v306
                  %v308 = vld [vmem:[%s278 + $0xa8] sm:$0xf]
                  %309 = vst [vmem:[%s279 + $0x38] sm:$0xf] %v308
                  %v310 = vld [vmem:[%s278 + $0xb4] sm:$0xf]
                  %311 = vst [vmem:[%s279 + $0x3c] sm:$0xf] %v310
                $region67: #{_lambda_.30} parent=54 // loop_footer
                  %s277 = sadd.s32 1, %s273
                $region68: #{_lambda_.30} parent=54 // loop_footer_branch
                  %272 = sbr.rel target = $region64
                $region69: #{_lambda_.30} parent=54 // loop_exit
                  _
              $region55: #{_lambda_.30} parent=39 // pred_fallthru
                _
            $region40: #{_lambda_.30} parent=35 // pred_fallthru
              _
            // Predicated region
            $region41: #{_lambda_.30} parent=35 // pred_check
              _
            $region42: #{_lambda_.30} parent=35 // pred_check_branch
              %219 = sbr.rel (0) target = $region44
            $region43: #{_lambda_.30} parent=35 // pred_region
              loop: start=0, step=1, limit=1
              $region45: #{_lambda_.30} parent=43 // loop_pre_header
                _
              $region46: #{_lambda_.30} parent=43 // loop_header
                %s222 = sphi 0, %s226
                %p223 = scmp.ge.s32.totalorder %s222, 1
                %s227 = sphi %s213, %s213
                %s228 = sphi %s211, %s211
              $region47: #{_lambda_.30} parent=43 // loop_header_branch
                %225 = sbr.rel (%p223) target = $region51
              $region48: #{_lambda_.30} parent=43 // loop_body
                %v229 = vld [vmem:[%s227] sm:$0xf]
                %230 = vst [vmem:[%s228] sm:$0xf] %v229
                %v231 = vld [vmem:[%s227 + $0xc] sm:$0xf]
                %232 = vst [vmem:[%s228 + $0x4] sm:$0xf] %v231
                %v233 = vld [vmem:[%s227 + $0x18] sm:$0xf]
                %234 = vst [vmem:[%s228 + $0x8] sm:$0xf] %v233
                %v235 = vld [vmem:[%s227 + $0x24] sm:$0xf]
                %236 = vst [vmem:[%s228 + $0xc] sm:$0xf] %v235
                %v237 = vld [vmem:[%s227 + $0x30] sm:$0xf]
                %238 = vst [vmem:[%s228 + $0x10] sm:$0xf] %v237
                %v239 = vld [vmem:[%s227 + $0x3c] sm:$0xf]
                %240 = vst [vmem:[%s228 + $0x14] sm:$0xf] %v239
                %v241 = vld [vmem:[%s227 + $0x48] sm:$0xf]
                %242 = vst [vmem:[%s228 + $0x18] sm:$0xf] %v241
                %v243 = vld [vmem:[%s227 + $0x54] sm:$0xf]
                %244 = vst [vmem:[%s228 + $0x1c] sm:$0xf] %v243
                %v245 = vld [vmem:[%s227 + $0x60] sm:$0xf]
                %246 = vst [vmem:[%s228 + $0x20] sm:$0xf] %v245
                %v247 = vld [vmem:[%s227 + $0x6c] sm:$0xf]
                %248 = vst [vmem:[%s228 + $0x24] sm:$0xf] %v247
                %v249 = vld [vmem:[%s227 + $0x78] sm:$0xf]
                %250 = vst [vmem:[%s228 + $0x28] sm:$0xf] %v249
                %v251 = vld [vmem:[%s227 + $0x84] sm:$0xf]
                %252 = vst [vmem:[%s228 + $0x2c] sm:$0xf] %v251
                %v253 = vld [vmem:[%s227 + $0x90] sm:$0xf]
                %254 = vst [vmem:[%s228 + $0x30] sm:$0xf] %v253
                %v255 = vld [vmem:[%s227 + $0x9c] sm:$0xf]
                %256 = vst [vmem:[%s228 + $0x34] sm:$0xf] %v255
                %v257 = vld [vmem:[%s227 + $0xa8] sm:$0xf]
                %258 = vst [vmem:[%s228 + $0x38] sm:$0xf] %v257
                %v259 = vld [vmem:[%s227 + $0xb4] sm:$0xf]
                %260 = vst [vmem:[%s228 + $0x3c] sm:$0xf] %v259
              $region49: #{_lambda_.30} parent=43 // loop_footer
                %s226 = sadd.s32 1, %s222
              $region50: #{_lambda_.30} parent=43 // loop_footer_branch
                %221 = sbr.rel target = $region46
              $region51: #{_lambda_.30} parent=43 // loop_exit
                _
            $region44: #{_lambda_.30} parent=35 // pred_fallthru
              _
          $region36: #{_lambda_.30} parent=31 // pred_fallthru
            _
          %312 = vnop
        $region32: #{_lambda_.30} parent=27 // pred_fallthru
          _
        // Predicated region
        $region70: #{_lambda_.30} parent=27 // pred_check
          %p313 = pneg %p137
        $region71: #{_lambda_.30} parent=27 // pred_check_branch
          %315 = sbr.rel (%p313) target = $region73
        $region72: #{_lambda_.30} parent=27 // pred_region
          %p316 = scmp.lt.s32.totalorder %s19, 2
          %s317 = scalar_select %p316, %s19, 2
          %s318 = scalar_lea.vmem %s4, %s317
        $region73: #{_lambda_.30} parent=27 // pred_fallthru
          _
      $region28: #{_lambda_.30} parent=5 // pred_fallthru
        _
      %p319 = scmp.le.s32.totalorder 1, %s11
      %p320 = scmp.lt.s32.totalorder %s11, 4
      %p321 = pnand %p319, %p320
      %p322 = pneg %p321
      // Predicated region
      $region74: #{_lambda_.30} parent=5 // pred_check
        _
      $region75: #{_lambda_.30} parent=5 // pred_check_branch
        %324 = sbr.rel (%p321) target = $region77
      $region76: #{_lambda_.30} parent=5 // pred_region
        %s325 = ssub.s32 %s11, 1
        %s326 = sand.u32 %s104, 1
        %s327 = sand.u32 %s104, 1
        %s328 = smul.addr %s327, 64
        %s329 = scalar_lea.vmem [#allocation2], %s328
        // Predicated region
        $region78: #{_lambda_.30} parent=76 // pred_check
          %p330 = pneg %p117
        $region79: #{_lambda_.30} parent=76 // pred_check_branch
          %332 = sbr.rel (%p330) target = $region81
        $region80: #{_lambda_.30} parent=76 // pred_region
          _
        $region81: #{_lambda_.30} parent=76 // pred_fallthru
          _
        %s333 = smul.u32 3, %s20
        %p334 = scmp.lt.s32.totalorder %s333, 2
        %s335 = scalar_select %p334, %s333, 2
        %s336 = smul.addr %s335, 4
        %s337 = scalar_lea.vmem %s0, %s336
        %p338 = pneg %p49
        %p339 = pneg %p46
        %p340 = pneg %p70
        %p341 = pneg %p67
        %p342 = pneg %p91
        %p343 = pneg %p88
        %s344 = sand.u32 %s104, 1
        %s345 = sand.u32 %s104, 1
        %s346 = smul.addr %s345, 64
        %s347 = scalar_lea.vmem [#allocation2], %s346
        %p348 = pneg %p117
        %p349 = pneg %p114
        %p350 = scmp.lt.s32.totalorder %s21, 2
        %s351 = scalar_select %p350, %s21, 2
        %s352 = scalar_lea.vmem %s4, %s351
        %p353 = pneg %p143
        %p354 = pneg %p140
        %p355 = pneg %p171
        %p356 = pneg %p168
        %s357 = sand.u32 %s158, 1
        %s358 = sand.u32 %s158, 1
        %s359 = smul.addr %s358, 12
        %s360 = scalar_lea.vmem [#allocation3], %s359
        %s361 = smul.u32 3, %s20
        %p362 = scmp.lt.s32.totalorder %s361, 2
        %s363 = scalar_select %p362, %s361, 2
        %s364 = smul.addr %s363, 4
        %s365 = scalar_lea.vmem %s0, %s364
        %s366 = smul.u32 3, %s20
        %p367 = scmp.lt.s32.totalorder %s21, 2
        %s368 = scalar_select %p367, %s21, 2
        %s369 = scalar_lea.vmem %s4, %s368
        %s370 = smul.u32 3, %s20
        %v372 = vld [vmem:[%s365] sm:$0xf]
        %v373 = vld [vmem:[%s365 + $0x4] sm:$0xf]
        %v374 = vld [vmem:[%s365 + $0x8] sm:$0x3]
        %v375 = vunpack.c.l.bf16 %v372
        %v376 = vunpack.c.l.bf16 %v373
        %v377 = vunpack.c.l.bf16 %v374
        %378 = vadd.xlane.f32.xlu0 %v375
        %v379 = vpop.xlane.xlu0 %378
        %380 = vadd.xlane.f32.xlu0 %v376
        %v381 = vpop.xlane.xlu0 %380
        %vm382 = vcmask 1043456
        %v383 = vsel %vm382, %v377, 0.0
        %384 = vadd.xlane.f32.xlu0 %v383
        %v385 = vpop.xlane.xlu0 %384
        %v386 = vrcp.pop 128.0
        %v387 = vmul.f32 %v379, %v386
        %v388 = vmul.f32 %v381, %v386
        %v389 = vmul.f32 %v385, %v386
        %v390 = vsub.f32 %v375, %v387
        %v391 = vsub.f32 %v376, %v388
        %v392 = vsub.f32 %v377, %v389
        %v393 = vmul.f32 %v390, %v390
        %v394 = vmul.f32 %v391, %v391
        %v395 = vmul.f32 %v392, %v392
        %396 = vadd.xlane.f32.xlu0 %v393
        %v397 = vpop.xlane.xlu0 %396
        %398 = vadd.xlane.f32.xlu0 %v394
        %v399 = vpop.xlane.xlu0 %398
        %v400 = vsel %vm382, %v395, 0.0
        %401 = vadd.xlane.f32.xlu0 %v400
        %v402 = vpop.xlane.xlu0 %401
        %v403 = vmul.f32 %v397, %v386
        %v404 = vmul.f32 %v399, %v386
        %v405 = vmul.f32 %v402, %v386
        %v406 = vadd.f32 %v403, 1e-06
        %v407 = vadd.f32 %v404, 1e-06
        %v408 = vadd.f32 %v405, 1e-06
        %v409 = vrsqrt.pop %v406
        %v410 = vrsqrt.pop %v407
        %v411 = vrsqrt.pop %v408
        %v412 = vmul.f32 %v390, %v409
        %v413 = vmul.f32 %v391, %v410
        %v414 = vmul.f32 %v392, %v411
        %v415 = vld [vmem:[%s1] sm:$0x1]
        %v417 = vlaneseq
        %v418 = vshrl.u32 %v417, 7
        %v419 = vsub.s32 0, %v418
        %v420 = vrot.slane %v415, %v419
        %v422 = vmul.f32 %v412, %v420
        %v423 = vmul.f32 %v413, %v420
        %v424 = vmul.f32 %v414, %v420
        %v425 = vld [vmem:[%s2] sm:$0x1]
        %v427 = vlaneseq
        %v428 = vshrl.u32 %v427, 7
        %v429 = vsub.s32 0, %v428
        %v430 = vrot.slane %v425, %v429
        %v432 = vadd.f32 %v422, %v430
        %v433 = vadd.f32 %v423, %v430
        %v434 = vadd.f32 %v424, %v430
        %v435 = vpack.c.bf16 %v433, %v432
        %v436 = vpack.c.bf16 %v434, %v434
        %v437 = vld [vmem:[%s329] sm:$0xf]
        %v438 = vld [vmem:[%s329 + $0x4] sm:$0xf]
        %v439 = vld [vmem:[%s329 + $0x8] sm:$0xf]
        %v440 = vld [vmem:[%s329 + $0xc] sm:$0xf]
        %v441 = vld [vmem:[%s329 + $0x10] sm:$0xf]
        %v442 = vld [vmem:[%s329 + $0x14] sm:$0xf]
        %v443 = vld [vmem:[%s329 + $0x18] sm:$0xf]
        %v444 = vld [vmem:[%s329 + $0x1c] sm:$0xf]
        %v445 = vld [vmem:[%s329 + $0x20] sm:$0xf]
        %v446 = vld [vmem:[%s329 + $0x24] sm:$0xf]
        %v447 = vld [vmem:[%s329 + $0x28] sm:$0xf]
        %v448 = vld [vmem:[%s329 + $0x2c] sm:$0xf]
        %v449 = vld [vmem:[%s329 + $0x30] sm:$0xf]
        %v450 = vld [vmem:[%s329 + $0x34] sm:$0xf]
        %v451 = vld [vmem:[%s329 + $0x38] sm:$0xf]
        %v452 = vld [vmem:[%s329 + $0x3c] sm:$0xf]
        %v453 = vld [vmem:[%s369] sm:$0x1]
        %v455 = vlaneseq
        %v456 = vshrl.u32 %v455, 7
        %v457 = vsub.s32 0, %v456
        %v458 = vrot.slane %v453, %v457
        %v476 = vunpack.c.l.b16 %v437
        %v477 = vunpack.c.l.b16 %v438
        %v478 = vunpack.c.l.b16 %v439
        %v479 = vunpack.c.l.b16 %v440
        %v480 = vunpack.c.l.b16 %v441
        %v481 = vunpack.c.l.b16 %v442
        %v482 = vunpack.c.l.b16 %v443
        %v483 = vunpack.c.l.b16 %v444
        %v484 = vunpack.c.l.b16 %v445
        %v485 = vunpack.c.l.b16 %v446
        %v486 = vunpack.c.l.b16 %v447
        %v487 = vunpack.c.l.b16 %v448
        %v488 = vunpack.c.l.b16 %v449
        %v489 = vunpack.c.l.b16 %v450
        %v490 = vunpack.c.l.b16 %v451
        %v491 = vunpack.c.l.b16 %v452
        %v492 = vpack.c.b16 %v477, %v476
        %v493 = vpack.c.b16 %v479, %v478
        %v494 = vpack.c.b16 %v481, %v480
        %v495 = vpack.c.b16 %v483, %v482
        %v496 = vpack.c.b16 %v485, %v484
        %v497 = vpack.c.b16 %v487, %v486
        %v498 = vpack.c.b16 %v489, %v488
        %v499 = vpack.c.b16 %v491, %v490
        %508 = vmatprep.subr.bf16.mxu0 0
        %509 = vmatpush1.bf16.msra.mxu0 %v492
        %510 = vmatprep.subr.bf16.mxu0 0
        %511 = vmatpush1.bf16.msra.mxu0 %v493
        %512 = vmatprep.subr.bf16.mxu0 0
        %513 = vmatpush1.bf16.msra.mxu0 %v494
        %514 = vmatprep.subr.bf16.mxu0 0
        %515 = vmatpush1.bf16.msra.mxu0 %v495
        %516 = vmatprep.subr.bf16.mxu0 0
        %517 = vmatpush1.bf16.msra.mxu0 %v496
        %518 = vmatprep.subr.bf16.mxu0 0
        %519 = vmatpush1.bf16.msra.mxu0 %v497
        %520 = vmatprep.subr.bf16.mxu0 0
        %521 = vmatpush1.bf16.msra.mxu0 %v498
        %522 = vmatprep.subr.bf16.mxu0 0
        %523 = vmatpush1.bf16.msra.mxu0 %v499
        %524 = vmatprep.subr.bf16.mxu0 0
        %525 = vmatpush1.bf16.msra.mxu0 0
        %526 = vmatprep.subr.bf16.mxu0 0
        %527 = vmatpush1.bf16.msra.mxu0 0
        %528 = vmatprep.subr.bf16.mxu0 0
        %529 = vmatpush1.bf16.msra.mxu0 0
        %530 = vmatprep.subr.bf16.mxu0 0
        %531 = vmatpush1.bf16.msra.mxu0 0
        %532 = vmatprep.subr.bf16.mxu0 0
        %533 = vmatpush1.bf16.msra.mxu0 0
        %534 = vmatprep.subr.bf16.mxu0 0
        %535 = vmatpush1.bf16.msra.mxu0 0
        %536 = vmatprep.subr.bf16.mxu0 0
        %537 = vmatpush1.bf16.msra.mxu0 0
        %538 = vmatprep.subr.bf16.mxu0 0
        %539 = vmatpush1.bf16.msra.mxu0 0
        %540 = vmatprep.mubr.bf16.mxu0 0
        %541 = vmatmul.mubr.bf16.gmra.mrb[0].mxu0 %v435
        %v542 = vpop.f32.mrb[0].mxu0
        %v543 = vadd.f32 %v458, %v542
        %v544 = vpop.f32.mrb[0].mxu0
        %v545 = vpop.f32.mrb[0].mxu0
        %v546 = vadd.f32 %v458, %v545
        %v547 = vpop.f32.mrb[0].mxu0
        %548 = vmatprep.mubr.bf16.mxu0 0
        %549 = vmatmul.mubr.bf16.gmra.mrb[0].mxu0 %v436
        %v550 = vpop.f32.mrb[0].mxu0
        %v551 = vadd.f32 %v458, %v550
        %v552 = vpop.f32.mrb[0].mxu0
        %v553 = vpop.f32.mrb[0].mxu0
        %v554 = vpop.f32.mrb[0].mxu0
        %555 = vdwg.mxu0
        %v556 = vpack.c.bf16 %v546, %v543
        %v557 = vpack.c.bf16 %v551, %v551
        %v560 = vunpack.c.l.b16 %v556
        %v561 = vunpack.c.h.b16 %v556
        %v562 = vunpack.c.l.b16 %v557
        %v563 = vpack.c.b16 %v560, %v560
        %v564 = vpack.c.b16 %v561, %v561
        %v565 = vpack.c.b16 %v562, %v562
        %569 = vst [vmem:[%s360] sm:$0xf] %v563
        %570 = vst [vmem:[%s360 + $0x4] sm:$0xf] %v564
        %571 = vst [vmem:[%s360 + $0x8] sm:$0x3] %v565
        %s572 = sand.u32 %s158, 1
        %s573 = sand.u32 %s158, 1
        %s574 = smul.addr %s573, 12
        %s575 = scalar_lea.vmem [#allocation3], %s574
        // Predicated region
        $region82: #{_lambda_.30} parent=76 // pred_check
          %p576 = pneg %p168
        $region83: #{_lambda_.30} parent=76 // pred_check_branch
          %578 = sbr.rel (%p576) target = $region85
        $region84: #{_lambda_.30} parent=76 // pred_region
          %s579 = smul.u32 3, %s20
          %s580 = smul.addr %s579, 3
          %s581 = sadd.s32 %s21, %s580
          %s582 = smul.addr %s581, 4
          %s583 = scalar_lea.vmem %s5, %s582
          // Predicated region
          $region86: #{_lambda_.30} parent=84 // pred_check
            _
          $region87: #{_lambda_.30} parent=84 // pred_check_branch
            %585 = sbr.rel (0) target = $region89
          $region88: #{_lambda_.30} parent=84 // pred_region
            // Predicated region
            $region90: #{_lambda_.30} parent=88 // pred_check
              _
            $region91: #{_lambda_.30} parent=88 // pred_check_branch
              %587 = sbr.rel target = $region93
            $region92: #{_lambda_.30} parent=88 // pred_region
              // Predicated region
              $region105: #{_lambda_.30} parent=92 // pred_check
                _
              $region106: #{_lambda_.30} parent=92 // pred_check_branch
                %606 = sbr.rel (0) target = $region108
              $region107: #{_lambda_.30} parent=92 // pred_region
                loop: start=0, step=1, limit=1
                $region109: #{_lambda_.30} parent=107 // loop_pre_header
                  _
                $region110: #{_lambda_.30} parent=107 // loop_header
                  %s608 = sphi 0, %s612
                  %p609 = scmp.ge.s32.totalorder %s608, 1
                  %s613 = sphi %s575, %s575
                  %s614 = sphi %s583, %s583
                $region111: #{_lambda_.30} parent=107 // loop_header_branch
                  %611 = sbr.rel (%p609) target = $region115
                $region112: #{_lambda_.30} parent=107 // loop_body
                  _
                $region113: #{_lambda_.30} parent=107 // loop_footer
                  %s612 = sadd.s32 1, %s608
                $region114: #{_lambda_.30} parent=107 // loop_footer_branch
                  %607 = sbr.rel target = $region110
                $region115: #{_lambda_.30} parent=107 // loop_exit
                  _
                loop: start=0, step=1, limit=1
                $region116: #{_lambda_.30} parent=107 // loop_pre_header
                  _
                $region117: #{_lambda_.30} parent=107 // loop_header
                  %s617 = sphi 0, %s621
                  %p618 = scmp.ge.s32.totalorder %s617, 1
                  %s622 = sphi %s575, %s575
                  %s623 = sphi %s583, %s583
                $region118: #{_lambda_.30} parent=107 // loop_header_branch
                  %620 = sbr.rel (%p618) target = $region122
                $region119: #{_lambda_.30} parent=107 // loop_body
                  %v624 = vld [vmem:[%s622] sm:$0xf]
                  %625 = vst [vmem:[%s623] sm:$0xf] %v624
                  %v626 = vld [vmem:[%s622 + $0x4] sm:$0xf]
                  %627 = vst [vmem:[%s623 + $0xc] sm:$0xf] %v626
                  %v628 = vld [vmem:[%s622 + $0x8] sm:$0xf]
                  %629 = vst [vmem:[%s623 + $0x18] sm:$0xf] %v628
                $region120: #{_lambda_.30} parent=107 // loop_footer
                  %s621 = sadd.s32 1, %s617
                $region121: #{_lambda_.30} parent=107 // loop_footer_branch
                  %616 = sbr.rel target = $region117
                $region122: #{_lambda_.30} parent=107 // loop_exit
                  _
              $region108: #{_lambda_.30} parent=92 // pred_fallthru
                _
            $region93: #{_lambda_.30} parent=88 // pred_fallthru
              _
            // Predicated region
            $region94: #{_lambda_.30} parent=88 // pred_check
              _
            $region95: #{_lambda_.30} parent=88 // pred_check_branch
              %589 = sbr.rel (0) target = $region97
            $region96: #{_lambda_.30} parent=88 // pred_region
              loop: start=0, step=1, limit=1
              $region98: #{_lambda_.30} parent=96 // loop_pre_header
                _
              $region99: #{_lambda_.30} parent=96 // loop_header
                %s592 = sphi 0, %s596
                %p593 = scmp.ge.s32.totalorder %s592, 1
                %s597 = sphi %s575, %s575
                %s598 = sphi %s583, %s583
              $region100: #{_lambda_.30} parent=96 // loop_header_branch
                %595 = sbr.rel (%p593) target = $region104
              $region101: #{_lambda_.30} parent=96 // loop_body
                %v599 = vld [vmem:[%s597] sm:$0xf]
                %600 = vst [vmem:[%s598] sm:$0xf] %v599
                %v601 = vld [vmem:[%s597 + $0x4] sm:$0xf]
                %602 = vst [vmem:[%s598 + $0xc] sm:$0xf] %v601
                %v603 = vld [vmem:[%s597 + $0x8] sm:$0xf]
                %604 = vst [vmem:[%s598 + $0x18] sm:$0xf] %v603
              $region102: #{_lambda_.30} parent=96 // loop_footer
                %s596 = sadd.s32 1, %s592
              $region103: #{_lambda_.30} parent=96 // loop_footer_branch
                %591 = sbr.rel target = $region99
              $region104: #{_lambda_.30} parent=96 // loop_exit
                _
            $region97: #{_lambda_.30} parent=88 // pred_fallthru
              _
          $region89: #{_lambda_.30} parent=84 // pred_fallthru
            _
          %630 = vnop
        $region85: #{_lambda_.30} parent=76 // pred_fallthru
          _
      $region77: #{_lambda_.30} parent=5 // pred_fallthru
        _
      %p631 = scmp.le.s32.totalorder 2, %s11
      // Predicated region
      $region123: #{_lambda_.30} parent=5 // pred_check
        %p632 = pneg %p631
      $region124: #{_lambda_.30} parent=5 // pred_check_branch
        %634 = sbr.rel (%p632) target = $region126
      $region125: #{_lambda_.30} parent=5 // pred_region
        %s635 = ssub.s32 %s11, 2
        // Predicated region
        $region127: #{_lambda_.30} parent=125 // pred_check
          %p636 = pneg %p174
        $region128: #{_lambda_.30} parent=125 // pred_check_branch
          %638 = sbr.rel (%p636) target = $region130
        $region129: #{_lambda_.30} parent=125 // pred_region
          %s639 = sand.u32 %s159, 1
          %s640 = sand.u32 %s159, 1
          %s641 = smul.addr %s640, 12
          %s642 = scalar_lea.vmem [#allocation3], %s641
        $region130: #{_lambda_.30} parent=125 // pred_fallthru
          _
      $region126: #{_lambda_.30} parent=5 // pred_fallthru
        _
    $region6: #{_lambda_.30} parent=1 // loop_footer
      %s15 = sadd.s32 1, %s11
    $region7: #{_lambda_.30} parent=1 // loop_footer_branch
      %10 = sbr.rel target = $region3
    $region8: #{_lambda_.30} parent=1 // loop_exit
      _

// kernel: _lambda_.29
$region0: #{_lambda_.29}
  #allocation0 [shape = 'u32[]', space=smem, size = 0x4, offset = 0x4, fixed_abs, tag = 'smem constant byte address 0x4 - core index']
  #allocation1 [shape = 'u32[144,128]{1,0:T(1,128)}', space=vmem, size = 0x12000, scoped, tag = 'internal scratch']
  %s0 = inlined_call_operand.vmem [shape: bf16[16,588], index: 0, kind: input, shape index: {}]
  %s1 = inlined_call_operand.vmem [shape: bf16[588,128], index: 1, kind: input, shape index: {}]
  %s2 = inlined_call_operand.vmem [shape: f32[1,128], index: 2, kind: input, shape index: {}]
  %s3 = inlined_call_operand.vmem [shape: bf16[16,128], index: 3, kind: output, shape index: {}]
  %s4 = sld [smem:[#allocation0]]
  $region22: #{_lambda_.29} parent=0
    _
  %s6 = ssub.s32 1, %s4
  %s7 = scalar_select 0, %s6, %s4
  // Predicated region
  $region2: #{_lambda_.29} parent=0 // pred_check
    _
  $region3: #{_lambda_.29} parent=0 // pred_check_branch
    %9 = sbr.rel (0) target = $region5
  $region4: #{_lambda_.29} parent=0 // pred_region
    _
  $region5: #{_lambda_.29} parent=0 // pred_fallthru
    _
  // Predicated region
  $region6: #{_lambda_.29} parent=0 // pred_check
    _
  $region7: #{_lambda_.29} parent=0 // pred_check_branch
    %11 = sbr.rel (0) target = $region9
  $region8: #{_lambda_.29} parent=0 // pred_region
    _
  $region9: #{_lambda_.29} parent=0 // pred_fallthru
    _
  // Predicated region
  $region10: #{_lambda_.29} parent=0 // pred_check
    _
  $region11: #{_lambda_.29} parent=0 // pred_check_branch
    %13 = sbr.rel (0) target = $region13
  $region12: #{_lambda_.29} parent=0 // pred_region
    _
  $region13: #{_lambda_.29} parent=0 // pred_fallthru
    _
  %v15 = vld [vmem:[%s0] sm:$0xff]
  %v16 = vld [vmem:[%s0 + $0x8] sm:$0xff]
  %v17 = vld [vmem:[%s0 + $0x10] sm:$0xf]
  %v18 = vld [vmem:[%s0 + $0x14] sm:$0xff]
  %v19 = vld [vmem:[%s0 + $0x1c] sm:$0xff]
  %v20 = vld [vmem:[%s0 + $0x24] sm:$0xf]
  %v21 = vld [vmem:[%s1] sm:$0xf]
  %v22 = vld [vmem:[%s1 + $0x4] sm:$0xf]
  %v23 = vld [vmem:[%s1 + $0x8] sm:$0xf]
  %v24 = vld [vmem:[%s1 + $0xc] sm:$0xf]
  %v25 = vld [vmem:[%s1 + $0x10] sm:$0xf]
  %v26 = vld [vmem:[%s1 + $0x14] sm:$0xf]
  %v27 = vld [vmem:[%s1 + $0x18] sm:$0xf]
  %v28 = vld [vmem:[%s1 + $0x1c] sm:$0xf]
  %v29 = vld [vmem:[%s1 + $0x20] sm:$0xf]
  %v30 = vld [vmem:[%s1 + $0x24] sm:$0xf]
  %v31 = vld [vmem:[%s1 + $0x28] sm:$0xf]
  %v32 = vld [vmem:[%s1 + $0x2c] sm:$0xf]
  %v33 = vld [vmem:[%s1 + $0x30] sm:$0xf]
  %v34 = vld [vmem:[%s1 + $0x34] sm:$0xf]
  %v35 = vld [vmem:[%s1 + $0x38] sm:$0xf]
  %v36 = vld [vmem:[%s1 + $0x3c] sm:$0xf]
  %v37 = vld [vmem:[%s1 + $0x40] sm:$0xf]
  %v38 = vld [vmem:[%s1 + $0x44] sm:$0xf]
  %v39 = vld [vmem:[%s1 + $0x48] sm:$0xf]
  %v40 = vld [vmem:[%s1 + $0x4c] sm:$0xf]
  %v41 = vld [vmem:[%s1 + $0x50] sm:$0xf]
  %v42 = vld [vmem:[%s1 + $0x54] sm:$0xf]
  %v43 = vld [vmem:[%s1 + $0x58] sm:$0xf]
  %v44 = vld [vmem:[%s1 + $0x5c] sm:$0xf]
  %v45 = vld [vmem:[%s1 + $0x60] sm:$0xf]
  %v46 = vld [vmem:[%s1 + $0x64] sm:$0xf]
  %v47 = vld [vmem:[%s1 + $0x68] sm:$0xf]
  %v48 = vld [vmem:[%s1 + $0x6c] sm:$0xf]
  %v49 = vld [vmem:[%s1 + $0x70] sm:$0xf]
  %v50 = vld [vmem:[%s1 + $0x74] sm:$0xf]
  %v51 = vld [vmem:[%s1 + $0x78] sm:$0xf]
  %v52 = vld [vmem:[%s1 + $0x7c] sm:$0xf]
  %v53 = vld [vmem:[%s1 + $0x80] sm:$0xf]
  %v54 = vld [vmem:[%s1 + $0x84] sm:$0xf]
  %v55 = vld [vmem:[%s1 + $0x88] sm:$0xf]
  %v56 = vld [vmem:[%s1 + $0x8c] sm:$0xf]
  %v57 = vld [vmem:[%s1 + $0x90] sm:$0xf]
  %v58 = vld [vmem:[%s1 + $0x94] sm:$0xf]
  %v59 = vld [vmem:[%s1 + $0x98] sm:$0xf]
  %v60 = vld [vmem:[%s1 + $0x9c] sm:$0xf]
  %v61 = vld [vmem:[%s1 + $0xa0] sm:$0xf]
  %v62 = vld [vmem:[%s1 + $0xa4] sm:$0xf]
  %v63 = vld [vmem:[%s1 + $0xa8] sm:$0xf]
  %v64 = vld [vmem:[%s1 + $0xac] sm:$0xf]
  %v65 = vld [vmem:[%s1 + $0xb0] sm:$0xf]
  %v66 = vld [vmem:[%s1 + $0xb4] sm:$0xf]
  %v67 = vld [vmem:[%s1 + $0xb8] sm:$0xf]
  %v68 = vld [vmem:[%s1 + $0xbc] sm:$0xf]
  %v69 = vld [vmem:[%s1 + $0xc0] sm:$0xf]
  %v70 = vld [vmem:[%s1 + $0xc4] sm:$0xf]
  %v71 = vld [vmem:[%s1 + $0xc8] sm:$0xf]
  %v72 = vld [vmem:[%s1 + $0xcc] sm:$0xf]
  %v73 = vld [vmem:[%s1 + $0xd0] sm:$0xf]
  %v74 = vld [vmem:[%s1 + $0xd4] sm:$0xf]
  %v75 = vld [vmem:[%s1 + $0xd8] sm:$0xf]
  %v76 = vld [vmem:[%s1 + $0xdc] sm:$0xf]
  %v77 = vld [vmem:[%s1 + $0xe0] sm:$0xf]
  %v78 = vld [vmem:[%s1 + $0xe4] sm:$0xf]
  %v79 = vld [vmem:[%s1 + $0xe8] sm:$0xf]
  %v80 = vld [vmem:[%s1 + $0xec] sm:$0xf]
  %v81 = vld [vmem:[%s1 + $0xf0] sm:$0xf]
  %v82 = vld [vmem:[%s1 + $0xf4] sm:$0xf]
  %v83 = vld [vmem:[%s1 + $0xf8] sm:$0xf]
  %v84 = vld [vmem:[%s1 + $0xfc] sm:$0xf]
  %v85 = vld [vmem:[%s1 + $0x100] sm:$0xf]
  %v86 = vld [vmem:[%s1 + $0x104] sm:$0xf]
  %v87 = vld [vmem:[%s1 + $0x108] sm:$0xf]
  %v88 = vld [vmem:[%s1 + $0x10c] sm:$0xf]
  %v89 = vld [vmem:[%s1 + $0x110] sm:$0xf]
  %v90 = vld [vmem:[%s1 + $0x114] sm:$0xf]
  %v91 = vld [vmem:[%s1 + $0x118] sm:$0xf]
  %v92 = vld [vmem:[%s1 + $0x11c] sm:$0xf]
  %v93 = vld [vmem:[%s1 + $0x120] sm:$0xf]
  %v94 = vld [vmem:[%s1 + $0x124] sm:$0x3]
  %v95 = vld [vmem:[%s2] sm:$0x1]
  %v97 = vlaneseq
  %v98 = vshrl.u32 %v97, 7
  %v99 = vsub.s32 0, %v98
  %v100 = vrot.slane %v95, %v99
  %v108 = vunpack.c.l.b16 %v15
  %v109 = vunpack.c.h.b16 %v15
  %v110 = vunpack.c.l.b16 %v16
  %v111 = vunpack.c.h.b16 %v16
  %v112 = vunpack.c.l.b16 %v17
  %v113 = vunpack.c.l.b16 %v18
  %v114 = vunpack.c.h.b16 %v18
  %v115 = vunpack.c.l.b16 %v19
  %v116 = vunpack.c.h.b16 %v19
  %v117 = vunpack.c.l.b16 %v20
  %v118 = vpack.c.b16 %v113, %v108
  %v119 = vpack.c.b16 %v114, %v109
  %v120 = vpack.c.b16 %v115, %v110
  %v121 = vpack.c.b16 %v116, %v111
  %v122 = vpack.c.b16 %v117, %v112
  %v201 = vunpack.c.l.b16 %v21
  %v202 = vunpack.c.l.b16 %v22
  %v203 = vunpack.c.l.b16 %v23
  %v204 = vunpack.c.l.b16 %v24
  %v205 = vunpack.c.l.b16 %v25
  %v206 = vunpack.c.l.b16 %v26
  %v207 = vunpack.c.l.b16 %v27
  %v208 = vunpack.c.l.b16 %v28
  %v209 = vunpack.c.l.b16 %v29
  %v210 = vunpack.c.l.b16 %v30
  %v211 = vunpack.c.l.b16 %v31
  %v212 = vunpack.c.l.b16 %v32
  %v213 = vunpack.c.l.b16 %v33
  %v214 = vunpack.c.l.b16 %v34
  %v215 = vunpack.c.l.b16 %v35
  %v216 = vunpack.c.l.b16 %v36
  %v217 = vunpack.c.l.b16 %v37
  %v218 = vunpack.c.l.b16 %v38
  %v219 = vunpack.c.l.b16 %v39
  %v220 = vunpack.c.l.b16 %v40
  %v221 = vunpack.c.l.b16 %v41
  %v222 = vunpack.c.l.b16 %v42
  %v223 = vunpack.c.l.b16 %v43
  %v224 = vunpack.c.l.b16 %v44
  %v225 = vunpack.c.l.b16 %v45
  %v226 = vunpack.c.l.b16 %v46
  %v227 = vunpack.c.l.b16 %v47
  %v228 = vunpack.c.l.b16 %v48
  %v229 = vunpack.c.l.b16 %v49
  %v230 = vunpack.c.l.b16 %v50
  %v231 = vunpack.c.l.b16 %v51
  %v232 = vunpack.c.l.b16 %v52
  %v233 = vunpack.c.l.b16 %v53
  %v234 = vunpack.c.l.b16 %v54
  %v235 = vunpack.c.l.b16 %v55
  %v236 = vunpack.c.l.b16 %v56
  %v237 = vunpack.c.l.b16 %v57
  %v238 = vunpack.c.l.b16 %v58
  %v239 = vunpack.c.l.b16 %v59
  %v240 = vunpack.c.l.b16 %v60
  %v241 = vunpack.c.l.b16 %v61
  %v242 = vunpack.c.l.b16 %v62
  %v243 = vunpack.c.l.b16 %v63
  %v244 = vunpack.c.l.b16 %v64
  %v245 = vunpack.c.l.b16 %v65
  %v246 = vunpack.c.l.b16 %v66
  %v247 = vunpack.c.l.b16 %v67
  %v248 = vunpack.c.l.b16 %v68
  %v249 = vunpack.c.l.b16 %v69
  %v250 = vunpack.c.l.b16 %v70
  %v251 = vunpack.c.l.b16 %v71
  %v252 = vunpack.c.l.b16 %v72
  %v253 = vunpack.c.l.b16 %v73
  %v254 = vunpack.c.l.b16 %v74
  %v255 = vunpack.c.l.b16 %v75
  %v256 = vunpack.c.l.b16 %v76
  %v257 = vunpack.c.l.b16 %v77
  %v258 = vunpack.c.l.b16 %v78
  %v259 = vunpack.c.l.b16 %v79
  %v260 = vunpack.c.l.b16 %v80
  %v261 = vunpack.c.l.b16 %v81
  %v262 = vunpack.c.l.b16 %v82
  %v263 = vunpack.c.l.b16 %v83
  %v264 = vunpack.c.l.b16 %v84
  %v265 = vunpack.c.l.b16 %v85
  %v266 = vunpack.c.l.b16 %v86
  %v267 = vunpack.c.l.b16 %v87
  %v268 = vunpack.c.l.b16 %v88
  %v269 = vunpack.c.l.b16 %v89
  %v270 = vunpack.c.l.b16 %v90
  %v271 = vunpack.c.l.b16 %v91
  %v272 = vunpack.c.l.b16 %v92
  %v273 = vunpack.c.l.b16 %v93
  %v274 = vunpack.c.l.b16 %v94
  %v275 = vpack.c.b16 %v202, %v201
  %v276 = vpack.c.b16 %v204, %v203
  %v277 = vpack.c.b16 %v206, %v205
  %v278 = vpack.c.b16 %v208, %v207
  %v279 = vpack.c.b16 %v210, %v209
  %v280 = vpack.c.b16 %v212, %v211
  %v281 = vpack.c.b16 %v214, %v213
  %v282 = vpack.c.b16 %v216, %v215
  %v283 = vpack.c.b16 %v218, %v217
  %v284 = vpack.c.b16 %v220, %v219
  %v285 = vpack.c.b16 %v222, %v221
  %v286 = vpack.c.b16 %v224, %v223
  %v287 = vpack.c.b16 %v226, %v225
  %v288 = vpack.c.b16 %v228, %v227
  %v289 = vpack.c.b16 %v230, %v229
  %v290 = vpack.c.b16 %v232, %v231
  %v291 = vpack.c.b16 %v234, %v233
  %v292 = vpack.c.b16 %v236, %v235
  %v293 = vpack.c.b16 %v238, %v237
  %v294 = vpack.c.b16 %v240, %v239
  %v295 = vpack.c.b16 %v242, %v241
  %v296 = vpack.c.b16 %v244, %v243
  %v297 = vpack.c.b16 %v246, %v245
  %v298 = vpack.c.b16 %v248, %v247
  %v299 = vpack.c.b16 %v250, %v249
  %v300 = vpack.c.b16 %v252, %v251
  %v301 = vpack.c.b16 %v254, %v253
  %v302 = vpack.c.b16 %v256, %v255
  %v303 = vpack.c.b16 %v258, %v257
  %v304 = vpack.c.b16 %v260, %v259
  %v305 = vpack.c.b16 %v262, %v261
  %v306 = vpack.c.b16 %v264, %v263
  %v307 = vpack.c.b16 %v266, %v265
  %v308 = vpack.c.b16 %v268, %v267
  %v309 = vpack.c.b16 %v270, %v269
  %v310 = vpack.c.b16 %v272, %v271
  %v311 = vpack.c.b16 %v274, %v273
  %vm348 = vcmask 621568
  %v350 = vsel %vm348, %v122, 0
  %vm352 = vcmask 1045504
  %v354 = vsel %vm352, %v311, 0
  %356 = vmatprep.subr.bf16.mxu0 0
  %357 = vmatpush1.bf16.msra.mxu0 %v275
  %358 = vmatprep.subr.bf16.mxu0 0
  %359 = vmatpush1.bf16.msra.mxu0 %v276
  %360 = vmatprep.subr.bf16.mxu0 0
  %361 = vmatpush1.bf16.msra.mxu0 %v277
  %362 = vmatprep.subr.bf16.mxu0 0
  %363 = vmatpush1.bf16.msra.mxu0 %v278
  %364 = vmatprep.subr.bf16.mxu0 0
  %365 = vmatpush1.bf16.msra.mxu0 %v279
  %366 = vmatprep.subr.bf16.mxu0 0
  %367 = vmatpush1.bf16.msra.mxu0 %v280
  %368 = vmatprep.subr.bf16.mxu0 0
  %369 = vmatpush1.bf16.msra.mxu0 %v281
  %370 = vmatprep.subr.bf16.mxu0 0
  %371 = vmatpush1.bf16.msra.mxu0 %v282
  %372 = vmatprep.subr.bf16.mxu0 0
  %373 = vmatpush1.bf16.msra.mxu0 %v283
  %374 = vmatprep.subr.bf16.mxu0 0
  %375 = vmatpush1.bf16.msra.mxu0 %v284
  %376 = vmatprep.subr.bf16.mxu0 0
  %377 = vmatpush1.bf16.msra.mxu0 %v285
  %378 = vmatprep.subr.bf16.mxu0 0
  %379 = vmatpush1.bf16.msra.mxu0 %v286
  %380 = vmatprep.subr.bf16.mxu0 0
  %381 = vmatpush1.bf16.msra.mxu0 %v287
  %382 = vmatprep.subr.bf16.mxu0 0
  %383 = vmatpush1.bf16.msra.mxu0 %v288
  %384 = vmatprep.subr.bf16.mxu0 0
  %385 = vmatpush1.bf16.msra.mxu0 %v289
  %386 = vmatprep.subr.bf16.mxu0 0
  %387 = vmatpush1.bf16.msra.mxu0 %v290
  %388 = vmatprep.mubr.bf16.mxu0 %v119
  %389 = vmatmul.mubr.bf16.gmra.mrb[0].mxu0 %v118
  %v390 = vpop.f32.mrb[0].mxu0
  %v391 = vadd.f32 %v100, %v390
  %v392 = vpop.f32.mrb[0].mxu0
  %v393 = vpop.f32.mrb[0].mxu0
  %v394 = vadd.f32 %v100, %v393
  %v395 = vpop.f32.mrb[0].mxu0
  %396 = vdwg.mxu0
  %397 = vmatprep.subr.bf16.mxu0 0
  %398 = vmatpush1.bf16.msra.mxu0 %v291
  %399 = vmatprep.subr.bf16.mxu0 0
  %400 = vmatpush1.bf16.msra.mxu0 %v292
  %401 = vmatprep.subr.bf16.mxu0 0
  %402 = vmatpush1.bf16.msra.mxu0 %v293
  %403 = vmatprep.subr.bf16.mxu0 0
  %404 = vmatpush1.bf16.msra.mxu0 %v294
  %405 = vmatprep.subr.bf16.mxu0 0
  %406 = vmatpush1.bf16.msra.mxu0 %v295
  %407 = vmatprep.subr.bf16.mxu0 0
  %408 = vmatpush1.bf16.msra.mxu0 %v296
  %409 = vmatprep.subr.bf16.mxu0 0
  %410 = vmatpush1.bf16.msra.mxu0 %v297
  %411 = vmatprep.subr.bf16.mxu0 0
  %412 = vmatpush1.bf16.msra.mxu0 %v298
  %413 = vmatprep.subr.bf16.mxu0 0
  %414 = vmatpush1.bf16.msra.mxu0 %v299
  %415 = vmatprep.subr.bf16.mxu0 0
  %416 = vmatpush1.bf16.msra.mxu0 %v300
  %417 = vmatprep.subr.bf16.mxu0 0
  %418 = vmatpush1.bf16.msra.mxu0 %v301
  %419 = vmatprep.subr.bf16.mxu0 0
  %420 = vmatpush1.bf16.msra.mxu0 %v302
  %421 = vmatprep.subr.bf16.mxu0 0
  %422 = vmatpush1.bf16.msra.mxu0 %v303
  %423 = vmatprep.subr.bf16.mxu0 0
  %424 = vmatpush1.bf16.msra.mxu0 %v304
  %425 = vmatprep.subr.bf16.mxu0 0
  %426 = vmatpush1.bf16.msra.mxu0 %v305
  %427 = vmatprep.subr.bf16.mxu0 0
  %428 = vmatpush1.bf16.msra.mxu0 %v306
  %429 = vmatprep.mubr.bf16.mxu0 %v121
  %430 = vmatmul.mubr.bf16.gmra.mrb[0].mxu0 %v120
  %v431 = vpop.f32.mrb[0].mxu0
  %v432 = vadd.f32 %v391, %v431
  %v433 = vpop.f32.mrb[0].mxu0
  %v434 = vpop.f32.mrb[0].mxu0
  %v435 = vadd.f32 %v394, %v434
  %v436 = vpop.f32.mrb[0].mxu0
  %437 = vdwg.mxu0
  %438 = vmatprep.subr.bf16.mxu0 0
  %439 = vmatpush1.bf16.msra.mxu0 %v307
  %440 = vmatprep.subr.bf16.mxu0 0
  %441 = vmatpush1.bf16.msra.mxu0 %v308
  %442 = vmatprep.subr.bf16.mxu0 0
  %443 = vmatpush1.bf16.msra.mxu0 %v309
  %444 = vmatprep.subr.bf16.mxu0 0
  %445 = vmatpush1.bf16.msra.mxu0 %v310
  %446 = vmatprep.subr.bf16.mxu0 0
  %447 = vmatpush1.bf16.msra.mxu0 %v354
  %448 = vmatprep.subr.bf16.mxu0 0
  %449 = vmatpush1.bf16.msra.mxu0 0
  %450 = vmatprep.subr.bf16.mxu0 0
  %451 = vmatpush1.bf16.msra.mxu0 0
  %452 = vmatprep.subr.bf16.mxu0 0
  %453 = vmatpush1.bf16.msra.mxu0 0
  %454 = vmatprep.subr.bf16.mxu0 0
  %455 = vmatpush1.bf16.msra.mxu0 0
  %456 = vmatprep.subr.bf16.mxu0 0
  %457 = vmatpush1.bf16.msra.mxu0 0
  %458 = vmatprep.subr.bf16.mxu0 0
  %459 = vmatpush1.bf16.msra.mxu0 0
  %460 = vmatprep.subr.bf16.mxu0 0
  %461 = vmatpush1.bf16.msra.mxu0 0
  %462 = vmatprep.subr.bf16.mxu0 0
  %463 = vmatpush1.bf16.msra.mxu0 0
  %464 = vmatprep.subr.bf16.mxu0 0
  %465 = vmatpush1.bf16.msra.mxu0 0
  %466 = vmatprep.subr.bf16.mxu0 0
  %467 = vmatpush1.bf16.msra.mxu0 0
  %468 = vmatprep.subr.bf16.mxu0 0
  %469 = vmatpush1.bf16.msra.mxu0 0
  %470 = vmatprep.mubr.bf16.mxu0 0
  %471 = vmatmul.mubr.bf16.gmra.mrb[0].mxu0 %v350
  %v472 = vpop.f32.mrb[0].mxu0
  %v473 = vadd.f32 %v432, %v472
  %v474 = vpop.f32.mrb[0].mxu0
  %v475 = vpop.f32.mrb[0].mxu0
  %v476 = vadd.f32 %v435, %v475
  %v477 = vpop.f32.mrb[0].mxu0
  %478 = vdwg.mxu0
  %v479 = vpack.c.bf16 %v476, %v473
  %v481 = vunpack.c.l.b16 %v479
  %v482 = vunpack.c.h.b16 %v479
  %v483 = vpack.c.b16 %v481, %v481
  %v484 = vpack.c.b16 %v482, %v482
  %487 = vst [vmem:[%s3] sm:$0xf] %v483
  %488 = vst [vmem:[%s3 + $0x4] sm:$0xf] %v484
  // Predicated region
  $region14: #{_lambda_.29} parent=0 // pred_check
    _
  $region15: #{_lambda_.29} parent=0 // pred_check_branch
    %490 = sbr.rel (0) target = $region17
  $region16: #{_lambda_.29} parent=0 // pred_region
    _
  $region17: #{_lambda_.29} parent=0 // pred_fallthru
    _
  // Predicated region
  $region18: #{_lambda_.29} parent=0 // pred_check
    _
  $region19: #{_lambda_.29} parent=0 // pred_check_branch
    %492 = sbr.rel (0) target = $region21
  $region20: #{_lambda_.29} parent=0 // pred_region
    _
  $region21: #{_lambda_.29} parent=0 // pred_fallthru
    _

// kernel: _lambda_.31
$region0: #{_lambda_.31}
  #allocation0 [shape = 'u32[]', space=smem, size = 0x4, offset = 0x4, fixed_abs, tag = 'smem constant byte address 0x4 - core index']
  #allocation1 [shape = 'u32[144,128]{1,0:T(1,128)}', space=vmem, size = 0x12000, scoped, tag = 'internal scratch']
  #allocation2 [shape = 'f32[2,5,1]{2,1,0:T(8,128)}', space=vmem, size = 0x2000, scoped, tag = 'scratch operand']
  #allocation3 [shape = 'f32[2,5,1]{2,1,0:T(8,128)}', space=vmem, size = 0x2000, scoped, tag = 'scratch operand']
  #allocation4 [shape = 'f32[2,5,64]{2,1,0:T(8,128)}', space=vmem, size = 0x2000, scoped, tag = 'scratch operand']
  %s0 = inlined_call_operand.vmem [shape: bf16[4,5,384], index: 0, kind: input, shape index: {}, may-alias: {0,1}]
  %s1 = inlined_call_operand.vmem [shape: bf16[4,5,384], index: 1, kind: input, shape index: {}, may-alias: {0,1}]
  %s2 = inlined_call_operand.vmem [shape: bf16[4,5,128], index: 2, kind: output, shape index: {}]
  %s3 = sld [smem:[#allocation0]]
  $region49: #{_lambda_.31} parent=0
    _
  %s5 = ssub.s32 1, %s3
  %s6 = scalar_select 0, %s5, %s3
  loop: start=0, step=1, limit=6
  $region2: #{_lambda_.31} parent=0 // loop_pre_header
    _
  $region3: #{_lambda_.31} parent=0 // loop_header
    %s8 = sphi 0, %s12
    %p9 = scmp.ge.s32.totalorder %s8, 6
    %s15 = sphi 0, %s27
    %s16 = sphi 0, %s23
    %s17 = sphi 0, %s15
    %s18 = sphi 0, %s16
    %s19 = sphi 0, %s17
    %s20 = sphi 0, %s18
    %s30 = sphi 0, %s32
    %s33 = sphi 0, %s30
    %s34 = sphi 0, %s33
    %s50 = sphi 0, %s34
    %s58 = sphi 0, %s60
    %s61 = sphi 0, %s58
    %s62 = sphi 0, %s61
    %s78 = sphi 0, %s62
    %s84 = sphi 0, %s86
    %s87 = sphi 0, %s84
    %s88 = sphi 0, %s87
    %s104 = sphi 0, %s88
  $region4: #{_lambda_.31} parent=0 // loop_header_branch
    %11 = sbr.rel (%p9) target = $region8
  $region5: #{_lambda_.31} parent=0 // loop_body
    %s13 = ssub.s32 %s8, 1
    %s14 = ssub.s32 %s8, 2
    %s21 = sadd.s32 1, %s16
    %p22 = scmp.ge.s32.totalorder %s21, 1
    %s23 = scalar_select %p22, 0, %s21
    %s24 = sadd.s32 1, %s15
    %s25 = scalar_select %p22, %s24, %s15
    %p26 = scmp.ge.s32.totalorder %s25, 4
    %s27 = scalar_select %p26, 0, %s25
    %s28 = ssub.s32 %s15, %s27
    %p29 = scmp.eq.s32.totalorder %s28, 0
    %s31 = sadd.s32 %s30, 1
    %s32 = scalar_select %p29, %s30, %s31
    %p35 = pneg %p29
    %p36 = scmp.eq.s32.totalorder %s8, 3
    %p37 = por %p35, %p36
    %p38 = scmp.ne.s32.totalorder %s30, %s33
    %p39 = scmp.eq.s32.totalorder %s8, 0
    %p40 = por %p38, %p39
    %p41 = scmp.ne.s32.totalorder %s30, %s33
    %p42 = scmp.eq.s32.totalorder %s13, 3
    %p43 = por %p41, %p42
    %p44 = scmp.ne.s32.totalorder %s33, %s34
    %p45 = scmp.eq.s32.totalorder %s13, 0
    %p46 = por %p44, %p45
    %p47 = scmp.ne.s32.totalorder %s33, %s34
    %p48 = scmp.eq.s32.totalorder %s14, 3
    %p49 = por %p47, %p48
    %p51 = scmp.ne.s32.totalorder %s34, %s50
    %p52 = scmp.eq.s32.totalorder %s14, 0
    %p53 = por %p51, %p52
    %s54 = ssub.s32 %s15, %s27
    %s55 = ssub.s32 %s16, %s23
    %s56 = sor.u32 %s54, %s55
    %p57 = scmp.eq.s32.totalorder %s56, 0
    %s59 = sadd.s32 %s58, 1
    %s60 = scalar_select %p57, %s58, %s59
    %p63 = pneg %p57
    %p64 = scmp.eq.s32.totalorder %s8, 3
    %p65 = por %p63, %p64
    %p66 = scmp.ne.s32.totalorder %s58, %s61
    %p67 = scmp.eq.s32.totalorder %s8, 0
    %p68 = por %p66, %p67
    %p69 = scmp.ne.s32.totalorder %s58, %s61
    %p70 = scmp.eq.s32.totalorder %s13, 3
    %p71 = por %p69, %p70
    %p72 = scmp.ne.s32.totalorder %s61, %s62
    %p73 = scmp.eq.s32.totalorder %s13, 0
    %p74 = por %p72, %p73
    %p75 = scmp.ne.s32.totalorder %s61, %s62
    %p76 = scmp.eq.s32.totalorder %s14, 3
    %p77 = por %p75, %p76
    %p79 = scmp.ne.s32.totalorder %s62, %s78
    %p80 = scmp.eq.s32.totalorder %s14, 0
    %p81 = por %p79, %p80
    %s82 = ssub.s32 %s15, %s27
    %p83 = scmp.eq.s32.totalorder %s82, 0
    %s85 = sadd.s32 %s84, 1
    %s86 = scalar_select %p83, %s84, %s85
    %p89 = pneg %p83
    %p90 = scmp.eq.s32.totalorder %s8, 3
    %p91 = por %p89, %p90
    %p92 = scmp.ne.s32.totalorder %s84, %s87
    %p93 = scmp.eq.s32.totalorder %s8, 0
    %p94 = por %p92, %p93
    %p95 = scmp.ne.s32.totalorder %s84, %s87
    %p96 = scmp.eq.s32.totalorder %s13, 3
    %p97 = por %p95, %p96
    %p98 = scmp.ne.s32.totalorder %s87, %s88
    %p99 = scmp.eq.s32.totalorder %s13, 0
    %p100 = por %p98, %p99
    %p101 = scmp.ne.s32.totalorder %s87, %s88
    %p102 = scmp.eq.s32.totalorder %s14, 3
    %p103 = por %p101, %p102
    %p105 = scmp.ne.s32.totalorder %s88, %s104
    %p106 = scmp.eq.s32.totalorder %s14, 0
    %p107 = por %p105, %p106
    %p108 = scmp.le.s32.totalorder 1, %s8
    %p109 = scmp.lt.s32.totalorder %s8, 5
    %p110 = pnand %p108, %p109
    %p111 = pneg %p110
    // Predicated region
    $region9: #{_lambda_.31} parent=5 // pred_check
      _
    $region10: #{_lambda_.31} parent=5 // pred_check_branch
      %113 = sbr.rel (%p110) target = $region12
    $region11: #{_lambda_.31} parent=5 // pred_region
      %s114 = ssub.s32 %s8, 1
    $region12: #{_lambda_.31} parent=5 // pred_fallthru
      _
    %p115 = scmp.lt.s32.totalorder %s8, 4
    // Predicated region
    $region13: #{_lambda_.31} parent=5 // pred_check
      %p116 = pneg %p115
    $region14: #{_lambda_.31} parent=5 // pred_check_branch
      %118 = sbr.rel (%p116) target = $region16
    $region15: #{_lambda_.31} parent=5 // pred_region
      // Predicated region
      $region17: #{_lambda_.31} parent=15 // pred_check
        %p119 = pneg %p40
      $region18: #{_lambda_.31} parent=15 // pred_check_branch
        %121 = sbr.rel (%p119) target = $region20
      $region19: #{_lambda_.31} parent=15 // pred_region
        %p122 = scmp.lt.s32.totalorder %s15, 3
        %s123 = scalar_select %p122, %s15, 3
        %s124 = smul.addr %s123, 3
        %s125 = smul.addr %s124, 4
        %s126 = scalar_lea.vmem %s0, %s125
      $region20: #{_lambda_.31} parent=15 // pred_fallthru
        _
      // Predicated region
      $region21: #{_lambda_.31} parent=15 // pred_check
        %p127 = pneg %p68
      $region22: #{_lambda_.31} parent=15 // pred_check_branch
        %129 = sbr.rel (%p127) target = $region24
      $region23: #{_lambda_.31} parent=15 // pred_region
        %p130 = scmp.lt.s32.totalorder %s15, 3
        %s131 = scalar_select %p130, %s15, 3
        %p132 = scmp.lt.s32.totalorder %s16, 0
        %s133 = scalar_select %p132, %s16, 0
        %s134 = smul.addr %s133, 3
        %s135 = smul.addr %s131, 3
        %s136 = sadd.s32 %s134, %s135
        %s137 = smul.addr %s136, 4
        %s138 = scalar_lea.vmem %s1, %s137
      $region24: #{_lambda_.31} parent=15 // pred_fallthru
        _
    $region16: #{_lambda_.31} parent=5 // pred_fallthru
      _
    %p139 = scmp.le.s32.totalorder 1, %s8
    %p140 = scmp.lt.s32.totalorder %s8, 5
    %p141 = pnand %p139, %p140
    %p142 = pneg %p141
    // Predicated region
    $region25: #{_lambda_.31} parent=5 // pred_check
      _
    $region26: #{_lambda_.31} parent=5 // pred_check_branch
      %144 = sbr.rel (%p141) target = $region28
    $region27: #{_lambda_.31} parent=5 // pred_region
      %s145 = ssub.s32 %s8, 1
      %p146 = scmp.lt.s32.totalorder %s17, 3
      %s147 = scalar_select %p146, %s17, 3
      %s148 = smul.addr %s147, 3
      %s149 = smul.addr %s148, 4
      %s150 = scalar_lea.vmem %s0, %s149
      %p151 = pneg %p46
      %p152 = pneg %p43
      %p153 = scmp.lt.s32.totalorder %s17, 3
      %s154 = scalar_select %p153, %s17, 3
      %p155 = scmp.lt.s32.totalorder %s18, 0
      %s156 = scalar_select %p155, %s18, 0
      %s157 = smul.addr %s156, 3
      %s158 = smul.addr %s154, 3
      %s159 = sadd.s32 %s157, %s158
      %s160 = smul.addr %s159, 4
      %s161 = scalar_lea.vmem %s1, %s160
      %p162 = pneg %p74
      %p163 = pneg %p71
      %p164 = pneg %p100
      %p165 = pneg %p97
      %p166 = scmp.lt.s32.totalorder %s17, 3
      %s167 = scalar_select %p166, %s17, 3
      %s168 = smul.addr %s167, 4
      %s169 = scalar_lea.vmem %s2, %s168
      %p170 = scmp.lt.s32.totalorder %s17, 3
      %s171 = scalar_select %p170, %s17, 3
      %s172 = smul.addr %s171, 3
      %s173 = smul.addr %s172, 4
      %s174 = scalar_lea.vmem %s0, %s173
      %p175 = scmp.lt.s32.totalorder %s17, 3
      %s176 = scalar_select %p175, %s17, 3
      %p177 = scmp.lt.s32.totalorder %s18, 0
      %s178 = scalar_select %p177, %s18, 0
      %s179 = smul.addr %s178, 3
      %s180 = smul.addr %s176, 3
      %s181 = sadd.s32 %s179, %s180
      %s182 = smul.addr %s181, 4
      %s183 = scalar_lea.vmem %s1, %s182
      %p184 = scmp.lt.s32.totalorder %s17, 3
      %s185 = scalar_select %p184, %s17, 3
      %s186 = smul.addr %s185, 4
      %s187 = scalar_lea.vmem %s2, %s186
      %p189 = scmp.eq.s32.totalorder %s18, 0
      // Predicated region
      $region29: #{_lambda_.31} parent=27 // pred_check
        %p190 = pneg %p189
      $region30: #{_lambda_.31} parent=27 // pred_check_branch
        %192 = sbr.rel (%p190) target = $region32
      $region31: #{_lambda_.31} parent=27 // pred_region
        %vm193 = vcmask 4096
        %194 = vst.msk [vmem:[#allocation2] sm:$0x1f] %vm193, -inf
        %195 = vst.msk [vmem:[#allocation2 + $0x8] sm:$0x1f] %vm193, -inf
        %196 = vst.msk [vmem:[#allocation3] sm:$0x1f] %vm193, 0.0
        %197 = vst.msk [vmem:[#allocation3 + $0x8] sm:$0x1f] %vm193, 0.0
        %vm198 = vcmask 520192
        %199 = vst.msk [vmem:[#allocation4] sm:$0x1f] %vm198, 0.0
        %200 = vst.msk [vmem:[#allocation4 + $0x8] sm:$0x1f] %vm198, 0.0
      $region32: #{_lambda_.31} parent=27 // pred_fallthru
        _
      %v201 = vld [vmem:[%s174] sm:$0x7]
      %v202 = vld [vmem:[%s183 + $0x4] sm:$0x7]
      %v203 = vld [vmem:[%s183 + $0x8] sm:$0x7]
      %vm204 = vcmask 523264
      %v206 = vsel %vm204, %v201, 0
      %v209 = vsel %vm204, %v202, 0
      %211 = vmatprep.subr.bf16.mxu0 0
      %212 = vmatpush1.bf16.xpose.msra.mxu0 %v209
      %213 = vmatprep.subr.bf16.mxu0 0
      %214 = vmatpush1.bf16.xpose.msra.mxu0 0
      %215 = vmatprep.subr.bf16.mxu0 0
      %216 = vmatpush1.bf16.xpose.msra.mxu0 0
      %217 = vmatprep.subr.bf16.mxu0 0
      %218 = vmatpush1.bf16.xpose.msra.mxu0 0
      %219 = vmatprep.subr.bf16.mxu0 0
      %220 = vmatpush1.bf16.xpose.msra.mxu0 0
      %221 = vmatprep.subr.bf16.mxu0 0
      %222 = vmatpush1.bf16.xpose.msra.mxu0 0
      %223 = vmatprep.subr.bf16.mxu0 0
      %224 = vmatpush1.bf16.xpose.msra.mxu0 0
      %225 = vmatprep.subr.bf16.mxu0 0
      %226 = vmatpush1.bf16.xpose.msra.mxu0 0
      %227 = vmatprep.subr.bf16.mxu0 0
      %228 = vmatpush1.bf16.xpose.msra.mxu0 0
      %229 = vmatprep.subr.bf16.mxu0 0
      %230 = vmatpush1.bf16.xpose.msra.mxu0 0
      %231 = vmatprep.subr.bf16.mxu0 0
      %232 = vmatpush1.bf16.xpose.msra.mxu0 0
      %233 = vmatprep.subr.bf16.mxu0 0
      %234 = vmatpush1.bf16.xpose.msra.mxu0 0
      %235 = vmatprep.subr.bf16.mxu0 0
      %236 = vmatpush1.bf16.xpose.msra.mxu0 0
      %237 = vmatprep.subr.bf16.mxu0 0
      %238 = vmatpush1.bf16.xpose.msra.mxu0 0
      %239 = vmatprep.subr.bf16.mxu0 0
      %240 = vmatpush1.bf16.xpose.msra.mxu0 0
      %241 = vmatprep.subr.bf16.mxu0 0
      %242 = vmatpush1.bf16.xpose.msra.mxu0 0
      %243 = vmatprep.mubr.bf16.mxu0 0
      %244 = vmatmul.mubr.bf16.gmra.mrb[0].mxu0 %v206
      %v245 = vpop.f32.mrb[0].mxu0
      %v246 = vadd.f32 0.0, %v245
      %v247 = vpop.f32.mrb[0].mxu0
      %v248 = vpop.f32.mrb[0].mxu0
      %v249 = vpop.f32.mrb[0].mxu0
      %250 = vdwg.mxu0
      %v251 = vmul.f32 %v246, 0.125
      %v252 = vld [vmem:[#allocation2] sm:$0x1f]
      %vm253 = vcmask 36864
      %v254 = vsel %vm253, %v251, -inf
      %255 = vmax.xlane.f32.xlu0 %v254
      %v256 = vpop.xlane.xlu0 %255
      %v257 = vmax.f32 %v252, %v256
      %v258 = vsub.f32 %v252, %v257
      %v259 = vmul.f32 %v258, 1.442695
      %v260 = vpow.pop %v259
      %262 = vset.pattern.permute.xlu0 0
      %263 = vperm.xlu0 %262, %v257
      %v264 = vpop.permute.xlu0 %263
      %v266 = vsub.f32 %v251, %v264
      %v267 = vmul.f32 %v266, 1.442695
      %v268 = vpow.pop %v267
      %v269 = vld [vmem:[#allocation3] sm:$0x1f]
      %v270 = vmul.f32 %v260, %v269
      %v271 = vsel %vm253, %v268, 0.0
      %272 = vadd.xlane.f32.xlu0 %v271
      %v273 = vpop.xlane.xlu0 %272
      %v274 = vadd.f32 %v270, %v273
      %vm275 = vcmask 4096
      %276 = vst.msk [vmem:[#allocation3] sm:$0x1f] %vm275, %v274
      %v277 = vld [vmem:[#allocation4] sm:$0x1f]
      %279 = vset.pattern.permute.xlu0 0
      %280 = vperm.xlu0 %279, %v260
      %v281 = vpop.permute.xlu0 %280
      %v283 = vmul.f32 %v281, %v277
      %v284 = vpack.c.bf16 %v268, %v268
      %vm285 = vcmask 39936
      %v287 = vsel %vm285, %v284, 0
      %vm289 = vcmask 1041408
      %vm290 = vcmask 1042432
      %v291 = vsel %vm289, 4294967295, 65535
      %v292 = vsel %vm290, %v291, 0
      %v294 = vand.u32 %v203, %v292
      %296 = vmatprep.subr.bf16.mxu0 0
      %297 = vmatpush1.bf16.msra.mxu0 %v294
      %298 = vmatprep.subr.bf16.mxu0 0
      %299 = vmatpush1.bf16.msra.mxu0 0
      %300 = vmatprep.subr.bf16.mxu0 0
      %301 = vmatpush1.bf16.msra.mxu0 0
      %302 = vmatprep.subr.bf16.mxu0 0
      %303 = vmatpush1.bf16.msra.mxu0 0
      %304 = vmatprep.subr.bf16.mxu0 0
      %305 = vmatpush1.bf16.msra.mxu0 0
      %306 = vmatprep.subr.bf16.mxu0 0
      %307 = vmatpush1.bf16.msra.mxu0 0
      %308 = vmatprep.subr.bf16.mxu0 0
      %309 = vmatpush1.bf16.msra.mxu0 0
      %310 = vmatprep.subr.bf16.mxu0 0
      %311 = vmatpush1.bf16.msra.mxu0 0
      %312 = vmatprep.subr.bf16.mxu0 0
      %313 = vmatpush1.bf16.msra.mxu0 0
      %314 = vmatprep.subr.bf16.mxu0 0
      %315 = vmatpush1.bf16.msra.mxu0 0
      %316 = vmatprep.subr.bf16.mxu0 0
      %317 = vmatpush1.bf16.msra.mxu0 0
      %318 = vmatprep.subr.bf16.mxu0 0
      %319 = vmatpush1.bf16.msra.mxu0 0
      %320 = vmatprep.subr.bf16.mxu0 0
      %321 = vmatpush1.bf16.msra.mxu0 0
      %322 = vmatprep.subr.bf16.mxu0 0
      %323 = vmatpush1.bf16.msra.mxu0 0
      %324 = vmatprep.subr.bf16.mxu0 0
      %325 = vmatpush1.bf16.msra.mxu0 0
      %326 = vmatprep.subr.bf16.mxu0 0
      %327 = vmatpush1.bf16.msra.mxu0 0
      %328 = vmatprep.mubr.bf16.mxu0 0
      %329 = vmatmul.mubr.bf16.gmra.mrb[0].mxu0 %v287
      %v330 = vpop.f32.mrb[0].mxu0
      %v331 = vadd.f32 0.0, %v330
      %v332 = vpop.f32.mrb[0].mxu0
      %v333 = vpop.f32.mrb[0].mxu0
      %v334 = vpop.f32.mrb[0].mxu0
      %335 = vdwg.mxu0
      %v336 = vadd.f32 %v283, %v331
      %vm337 = vcmask 520192
      %338 = vst.msk [vmem:[#allocation4] sm:$0x1f] %vm337, %v336
      %339 = vst.msk [vmem:[#allocation2] sm:$0x1f] %vm275, %v257
      %v340 = vld [vmem:[%s174] sm:$0x7]
      %v341 = vld [vmem:[%s183 + $0x4] sm:$0x7]
      %v342 = vld [vmem:[%s183 + $0x8] sm:$0x7]
      %v344 = vunpack.c.l.b16 %v340
      %v345 = vpack.c.b16 %v344, %v344
      %346 = vrot.lane.b32.xlu0 %v345, 64
      %v347 = vpop.permute.xlu0 %346
      %v349 = vunpack.c.l.b16 %v341
      %v350 = vpack.c.b16 %v349, %v349
      %351 = vrot.lane.b32.xlu0 %v350, 64
      %v352 = vpop.permute.xlu0 %351
      %v354 = vsel %vm204, %v347, 0
      %v357 = vsel %vm204, %v352, 0
      %359 = vmatprep.subr.bf16.mxu0 0
      %360 = vmatpush1.bf16.xpose.msra.mxu0 %v357
      %361 = vmatprep.subr.bf16.mxu0 0
      %362 = vmatpush1.bf16.xpose.msra.mxu0 0
      %363 = vmatprep.subr.bf16.mxu0 0
      %364 = vmatpush1.bf16.xpose.msra.mxu0 0
      %365 = vmatprep.subr.bf16.mxu0 0
      %366 = vmatpush1.bf16.xpose.msra.mxu0 0
      %367 = vmatprep.subr.bf16.mxu0 0
      %368 = vmatpush1.bf16.xpose.msra.mxu0 0
      %369 = vmatprep.subr.bf16.mxu0 0
      %370 = vmatpush1.bf16.xpose.msra.mxu0 0
      %371 = vmatprep.subr.bf16.mxu0 0
      %372 = vmatpush1.bf16.xpose.msra.mxu0 0
      %373 = vmatprep.subr.bf16.mxu0 0
      %374 = vmatpush1.bf16.xpose.msra.mxu0 0
      %375 = vmatprep.subr.bf16.mxu0 0
      %376 = vmatpush1.bf16.xpose.msra.mxu0 0
      %377 = vmatprep.subr.bf16.mxu0 0
      %378 = vmatpush1.bf16.xpose.msra.mxu0 0
      %379 = vmatprep.subr.bf16.mxu0 0
      %380 = vmatpush1.bf16.xpose.msra.mxu0 0
      %381 = vmatprep.subr.bf16.mxu0 0
      %382 = vmatpush1.bf16.xpose.msra.mxu0 0
      %383 = vmatprep.subr.bf16.mxu0 0
      %384 = vmatpush1.bf16.xpose.msra.mxu0 0
      %385 = vmatprep.subr.bf16.mxu0 0
      %386 = vmatpush1.bf16.xpose.msra.mxu0 0
      %387 = vmatprep.subr.bf16.mxu0 0
      %388 = vmatpush1.bf16.xpose.msra.mxu0 0
      %389 = vmatprep.subr.bf16.mxu0 0
      %390 = vmatpush1.bf16.xpose.msra.mxu0 0
      %391 = vmatprep.mubr.bf16.mxu0 0
      %392 = vmatmul.mubr.bf16.gmra.mrb[0].mxu0 %v354
      %v393 = vpop.f32.mrb[0].mxu0
      %v394 = vadd.f32 0.0, %v393
      %v395 = vpop.f32.mrb[0].mxu0
      %v396 = vpop.f32.mrb[0].mxu0
      %v397 = vpop.f32.mrb[0].mxu0
      %398 = vdwg.mxu0
      %v399 = vmul.f32 %v394, 0.125
      %s400 = scalar_lea.vmem [#allocation2], 8
      %v401 = vld [vmem:[%s400] sm:$0x1f]
      %v402 = vsel %vm253, %v399, -inf
      %403 = vmax.xlane.f32.xlu0 %v402
      %v404 = vpop.xlane.xlu0 %403
      %v405 = vmax.f32 %v401, %v404
      %v406 = vsub.f32 %v401, %v405
      %v407 = vmul.f32 %v406, 1.442695
      %v408 = vpow.pop %v407
      %410 = vset.pattern.permute.xlu0 0
      %411 = vperm.xlu0 %410, %v405
      %v412 = vpop.permute.xlu0 %411
      %v414 = vsub.f32 %v399, %v412
      %v415 = vmul.f32 %v414, 1.442695
      %v416 = vpow.pop %v415
      %s417 = scalar_lea.vmem [#allocation3], 8
      %v418 = vld [vmem:[%s417] sm:$0x1f]
      %v419 = vmul.f32 %v408, %v418
      %v420 = vsel %vm253, %v416, 0.0
      %421 = vadd.xlane.f32.xlu0 %v420
      %v422 = vpop.xlane.xlu0 %421
      %v423 = vadd.f32 %v419, %v422
      %424 = vst.msk [vmem:[%s417] sm:$0x1f] %vm275, %v423
      %s425 = scalar_lea.vmem [#allocation4], 8
      %v426 = vld [vmem:[%s425] sm:$0x1f]
      %428 = vset.pattern.permute.xlu0 0
      %429 = vperm.xlu0 %428, %v408
      %v430 = vpop.permute.xlu0 %429
      %v432 = vmul.f32 %v430, %v426
      %v433 = vpack.c.bf16 %v416, %v416
      %v435 = vunpack.c.l.b16 %v342
      %v436 = vpack.c.b16 %v435, %v435
      %437 = vrot.lane.b32.xlu0 %v436, 64
      %v438 = vpop.permute.xlu0 %437
      %v440 = vsel %vm285, %v433, 0
      %v443 = vand.u32 %v438, %v292
      %445 = vmatprep.subr.bf16.mxu0 0
      %446 = vmatpush1.bf16.msra.mxu0 %v443
      %447 = vmatprep.subr.bf16.mxu0 0
      %448 = vmatpush1.bf16.msra.mxu0 0
      %449 = vmatprep.subr.bf16.mxu0 0
      %450 = vmatpush1.bf16.msra.mxu0 0
      %451 = vmatprep.subr.bf16.mxu0 0
      %452 = vmatpush1.bf16.msra.mxu0 0
      %453 = vmatprep.subr.bf16.mxu0 0
      %454 = vmatpush1.bf16.msra.mxu0 0
      %455 = vmatprep.subr.bf16.mxu0 0
      %456 = vmatpush1.bf16.msra.mxu0 0
      %457 = vmatprep.subr.bf16.mxu0 0
      %458 = vmatpush1.bf16.msra.mxu0 0
      %459 = vmatprep.subr.bf16.mxu0 0
      %460 = vmatpush1.bf16.msra.mxu0 0
      %461 = vmatprep.subr.bf16.mxu0 0
      %462 = vmatpush1.bf16.msra.mxu0 0
      %463 = vmatprep.subr.bf16.mxu0 0
      %464 = vmatpush1.bf16.msra.mxu0 0
      %465 = vmatprep.subr.bf16.mxu0 0
      %466 = vmatpush1.bf16.msra.mxu0 0
      %467 = vmatprep.subr.bf16.mxu0 0
      %468 = vmatpush1.bf16.msra.mxu0 0
      %469 = vmatprep.subr.bf16.mxu0 0
      %470 = vmatpush1.bf16.msra.mxu0 0
      %471 = vmatprep.subr.bf16.mxu0 0
      %472 = vmatpush1.bf16.msra.mxu0 0
      %473 = vmatprep.subr.bf16.mxu0 0
      %474 = vmatpush1.bf16.msra.mxu0 0
      %475 = vmatprep.subr.bf16.mxu0 0
      %476 = vmatpush1.bf16.msra.mxu0 0
      %477 = vmatprep.mubr.bf16.mxu0 0
      %478 = vmatmul.mubr.bf16.gmra.mrb[0].mxu0 %v440
      %v479 = vpop.f32.mrb[0].mxu0
      %v480 = vadd.f32 0.0, %v479
      %v481 = vpop.f32.mrb[0].mxu0
      %v482 = vpop.f32.mrb[0].mxu0
      %v483 = vpop.f32.mrb[0].mxu0
      %484 = vdwg.mxu0
      %v485 = vadd.f32 %v432, %v480
      %486 = vst.msk [vmem:[%s425] sm:$0x1f] %vm337, %v485
      %487 = vst.msk [vmem:[%s400] sm:$0x1f] %vm275, %v405
      // Predicated region
      $region33: #{_lambda_.31} parent=27 // pred_check
        %p488 = pneg %p189
      $region34: #{_lambda_.31} parent=27 // pred_check_branch
        %490 = sbr.rel (%p488) target = $region36
      $region35: #{_lambda_.31} parent=27 // pred_region
        %v491 = vld [vmem:[#allocation4] sm:$0x1f]
        %v492 = vld [vmem:[#allocation3] sm:$0x1f]
        %v493 = vrcp.pop %v492
        %495 = vset.pattern.permute.xlu0 0
        %496 = vperm.xlu0 %495, %v493
        %v497 = vpop.permute.xlu0 %496
        %v499 = vmul.f32 %v491, %v497
        %v500 = vpack.c.bf16 %v499, %v499
        %vm501 = vcmask 518144
        %vm502 = vsmask.f32 2304
        %vm503 = vmand %vm501, %vm502
        %v504 = vld [vmem:[%s187] sm:$0x7]
        %v505 = vsel %vm503, %v500, %v504
        %506 = vst [vmem:[%s187] sm:$0x7] %v505
        %v507 = vld [vmem:[%s425] sm:$0x1f]
        %v508 = vld [vmem:[%s417] sm:$0x1f]
        %v509 = vrcp.pop %v508
        %511 = vset.pattern.permute.xlu0 0
        %512 = vperm.xlu0 %511, %v509
        %v513 = vpop.permute.xlu0 %512
        %v515 = vmul.f32 %v507, %v513
        %v516 = vpack.c.bf16 %v515, %v515
        %v518 = vunpack.c.l.b16 %v516
        %v519 = vpack.c.b16 %v518, %v518
        %520 = vrot.lane.b32.xlu0 %v519, 64
        %v521 = vpop.permute.xlu0 %520
        %vm523 = vcmask 1042944
        %vm524 = vmand %vm523, %vm502
        %v525 = vld [vmem:[%s187] sm:$0x7]
        %v526 = vsel %vm524, %v521, %v525
        %527 = vst [vmem:[%s187] sm:$0x7] %v526
      $region36: #{_lambda_.31} parent=27 // pred_fallthru
        _
      %p528 = scmp.lt.s32.totalorder %s17, 3
      %s529 = scalar_select %p528, %s17, 3
      %s530 = smul.addr %s529, 4
      %s531 = scalar_lea.vmem %s2, %s530
      // Predicated region
      $region37: #{_lambda_.31} parent=27 // pred_check
        %p532 = pneg %p97
      $region38: #{_lambda_.31} parent=27 // pred_check_branch
        %534 = sbr.rel (%p532) target = $region40
      $region39: #{_lambda_.31} parent=27 // pred_region
        _
      $region40: #{_lambda_.31} parent=27 // pred_fallthru
        _
    $region28: #{_lambda_.31} parent=5 // pred_fallthru
      _
    %p535 = scmp.le.s32.totalorder 2, %s8
    // Predicated region
    $region41: #{_lambda_.31} parent=5 // pred_check
      %p536 = pneg %p535
    $region42: #{_lambda_.31} parent=5 // pred_check_branch
      %538 = sbr.rel (%p536) target = $region44
    $region43: #{_lambda_.31} parent=5 // pred_region
      %s539 = ssub.s32 %s8, 2
      // Predicated region
      $region45: #{_lambda_.31} parent=43 // pred_check
        %p540 = pneg %p103
      $region46: #{_lambda_.31} parent=43 // pred_check_branch
        %542 = sbr.rel (%p540) target = $region48
      $region47: #{_lambda_.31} parent=43 // pred_region
        %p543 = scmp.lt.s32.totalorder %s19, 3
        %s544 = scalar_select %p543, %s19, 3
        %s545 = smul.addr %s544, 4
        %s546 = scalar_lea.vmem %s2, %s545
      $region48: #{_lambda_.31} parent=43 // pred_fallthru
        _
    $region44: #{_lambda_.31} parent=5 // pred_fallthru
      _
  $region6: #{_lambda_.31} parent=0 // loop_footer
    %s12 = sadd.s32 1, %s8
  $region7: #{_lambda_.31} parent=0 // loop_footer_branch
    %7 = sbr.rel target = $region3
  $region8: #{_lambda_.31} parent=0 // loop_exit
    _

// kernel: _lambda_.32
$region0: #{_lambda_.32}
  #allocation0 [shape = 'u32[]', space=smem, size = 0x4, offset = 0x4, fixed_abs, tag = 'smem constant byte address 0x4 - core index']
  #allocation1 [shape = 'u32[144,128]{1,0:T(1,128)}', space=vmem, size = 0x12000, scoped, tag = 'internal scratch']
  %s0 = inlined_call_operand.vmem [shape: bf16[20,128], index: 0, kind: input, shape index: {}]
  %s1 = inlined_call_operand.vmem [shape: bf16[128,128], index: 1, kind: input, shape index: {}]
  %s2 = inlined_call_operand.vmem [shape: f32[1,128], index: 2, kind: input, shape index: {}]
  %s3 = inlined_call_operand.vmem [shape: bf16[20,128], index: 3, kind: input, shape index: {}]
  %s4 = inlined_call_operand.vmem [shape: bf16[20,128], index: 4, kind: output, shape index: {}]
  %s5 = sld [smem:[#allocation0]]
  $region26: #{_lambda_.32} parent=0
    _
  %s7 = ssub.s32 1, %s5
  %s8 = scalar_select 0, %s7, %s5
  // Predicated region
  $region2: #{_lambda_.32} parent=0 // pred_check
    _
  $region3: #{_lambda_.32} parent=0 // pred_check_branch
    %10 = sbr.rel (0) target = $region5
  $region4: #{_lambda_.32} parent=0 // pred_region
    _
  $region5: #{_lambda_.32} parent=0 // pred_fallthru
    _
  // Predicated region
  $region6: #{_lambda_.32} parent=0 // pred_check
    _
  $region7: #{_lambda_.32} parent=0 // pred_check_branch
    %12 = sbr.rel (0) target = $region9
  $region8: #{_lambda_.32} parent=0 // pred_region
    _
  $region9: #{_lambda_.32} parent=0 // pred_fallthru
    _
  // Predicated region
  $region10: #{_lambda_.32} parent=0 // pred_check
    _
  $region11: #{_lambda_.32} parent=0 // pred_check_branch
    %14 = sbr.rel (0) target = $region13
  $region12: #{_lambda_.32} parent=0 // pred_region
    _
  $region13: #{_lambda_.32} parent=0 // pred_fallthru
    _
  // Predicated region
  $region14: #{_lambda_.32} parent=0 // pred_check
    _
  $region15: #{_lambda_.32} parent=0 // pred_check_branch
    %16 = sbr.rel (0) target = $region17
  $region16: #{_lambda_.32} parent=0 // pred_region
    _
  $region17: #{_lambda_.32} parent=0 // pred_fallthru
    _
  %v18 = vld [vmem:[%s0] sm:$0xf]
  %v19 = vld [vmem:[%s0 + $0x4] sm:$0xf]
  %v20 = vld [vmem:[%s0 + $0x8] sm:$0x3]
  %v21 = vld [vmem:[%s1] sm:$0xf]
  %v22 = vld [vmem:[%s1 + $0x4] sm:$0xf]
  %v23 = vld [vmem:[%s1 + $0x8] sm:$0xf]
  %v24 = vld [vmem:[%s1 + $0xc] sm:$0xf]
  %v25 = vld [vmem:[%s1 + $0x10] sm:$0xf]
  %v26 = vld [vmem:[%s1 + $0x14] sm:$0xf]
  %v27 = vld [vmem:[%s1 + $0x18] sm:$0xf]
  %v28 = vld [vmem:[%s1 + $0x1c] sm:$0xf]
  %v29 = vld [vmem:[%s1 + $0x20] sm:$0xf]
  %v30 = vld [vmem:[%s1 + $0x24] sm:$0xf]
  %v31 = vld [vmem:[%s1 + $0x28] sm:$0xf]
  %v32 = vld [vmem:[%s1 + $0x2c] sm:$0xf]
  %v33 = vld [vmem:[%s1 + $0x30] sm:$0xf]
  %v34 = vld [vmem:[%s1 + $0x34] sm:$0xf]
  %v35 = vld [vmem:[%s1 + $0x38] sm:$0xf]
  %v36 = vld [vmem:[%s1 + $0x3c] sm:$0xf]
  %v37 = vld [vmem:[%s2] sm:$0x1]
  %v39 = vlaneseq
  %v40 = vshrl.u32 %v39, 7
  %v41 = vsub.s32 0, %v40
  %v42 = vrot.slane %v37, %v41
  %v47 = vunpack.c.l.b16 %v18
  %v48 = vunpack.c.l.b16 %v19
  %v49 = vunpack.c.l.b16 %v20
  %v50 = vpack.c.b16 %v48, %v47
  %v51 = vpack.c.b16 %v49, %v49
  %v70 = vunpack.c.l.b16 %v21
  %v71 = vunpack.c.l.b16 %v22
  %v72 = vunpack.c.l.b16 %v23
  %v73 = vunpack.c.l.b16 %v24
  %v74 = vunpack.c.l.b16 %v25
  %v75 = vunpack.c.l.b16 %v26
  %v76 = vunpack.c.l.b16 %v27
  %v77 = vunpack.c.l.b16 %v28
  %v78 = vunpack.c.l.b16 %v29
  %v79 = vunpack.c.l.b16 %v30
  %v80 = vunpack.c.l.b16 %v31
  %v81 = vunpack.c.l.b16 %v32
  %v82 = vunpack.c.l.b16 %v33
  %v83 = vunpack.c.l.b16 %v34
  %v84 = vunpack.c.l.b16 %v35
  %v85 = vunpack.c.l.b16 %v36
  %v86 = vpack.c.b16 %v71, %v70
  %v87 = vpack.c.b16 %v73, %v72
  %v88 = vpack.c.b16 %v75, %v74
  %v89 = vpack.c.b16 %v77, %v76
  %v90 = vpack.c.b16 %v79, %v78
  %v91 = vpack.c.b16 %v81, %v80
  %v92 = vpack.c.b16 %v83, %v82
  %v93 = vpack.c.b16 %v85, %v84
  %102 = vmatprep.subr.bf16.mxu0 0
  %103 = vmatpush1.bf16.msra.mxu0 %v86
  %104 = vmatprep.subr.bf16.mxu0 0
  %105 = vmatpush1.bf16.msra.mxu0 %v87
  %106 = vmatprep.subr.bf16.mxu0 0
  %107 = vmatpush1.bf16.msra.mxu0 %v88
  %108 = vmatprep.subr.bf16.mxu0 0
  %109 = vmatpush1.bf16.msra.mxu0 %v89
  %110 = vmatprep.subr.bf16.mxu0 0
  %111 = vmatpush1.bf16.msra.mxu0 %v90
  %112 = vmatprep.subr.bf16.mxu0 0
  %113 = vmatpush1.bf16.msra.mxu0 %v91
  %114 = vmatprep.subr.bf16.mxu0 0
  %115 = vmatpush1.bf16.msra.mxu0 %v92
  %116 = vmatprep.subr.bf16.mxu0 0
  %117 = vmatpush1.bf16.msra.mxu0 %v93
  %118 = vmatprep.subr.bf16.mxu0 0
  %119 = vmatpush1.bf16.msra.mxu0 0
  %120 = vmatprep.subr.bf16.mxu0 0
  %121 = vmatpush1.bf16.msra.mxu0 0
  %122 = vmatprep.subr.bf16.mxu0 0
  %123 = vmatpush1.bf16.msra.mxu0 0
  %124 = vmatprep.subr.bf16.mxu0 0
  %125 = vmatpush1.bf16.msra.mxu0 0
  %126 = vmatprep.subr.bf16.mxu0 0
  %127 = vmatpush1.bf16.msra.mxu0 0
  %128 = vmatprep.subr.bf16.mxu0 0
  %129 = vmatpush1.bf16.msra.mxu0 0
  %130 = vmatprep.subr.bf16.mxu0 0
  %131 = vmatpush1.bf16.msra.mxu0 0
  %132 = vmatprep.subr.bf16.mxu0 0
  %133 = vmatpush1.bf16.msra.mxu0 0
  %134 = vmatprep.mubr.bf16.mxu0 0
  %135 = vmatmul.mubr.bf16.gmra.mrb[0].mxu0 %v50
  %v136 = vpop.f32.mrb[0].mxu0
  %v137 = vadd.f32 %v42, %v136
  %v138 = vpop.f32.mrb[0].mxu0
  %v139 = vpop.f32.mrb[0].mxu0
  %v140 = vadd.f32 %v42, %v139
  %v141 = vpop.f32.mrb[0].mxu0
  %142 = vmatprep.mubr.bf16.mxu0 0
  %143 = vmatmul.mubr.bf16.gmra.mrb[0].mxu0 %v51
  %v144 = vpop.f32.mrb[0].mxu0
  %v145 = vadd.f32 %v42, %v144
  %v146 = vpop.f32.mrb[0].mxu0
  %v147 = vpop.f32.mrb[0].mxu0
  %v148 = vpop.f32.mrb[0].mxu0
  %149 = vdwg.mxu0
  %v150 = vld [vmem:[%s3] sm:$0xf]
  %v151 = vld [vmem:[%s3 + $0x4] sm:$0xf]
  %v152 = vld [vmem:[%s3 + $0x8] sm:$0x3]
  %v153 = vunpack.c.l.bf16 %v150
  %v154 = vunpack.c.l.bf16 %v151
  %v155 = vunpack.c.l.bf16 %v152
  %v156 = vadd.f32 %v137, %v153
  %v157 = vadd.f32 %v140, %v154
  %v158 = vadd.f32 %v145, %v155
  %v159 = vpack.c.bf16 %v157, %v156
  %v160 = vpack.c.bf16 %v158, %v158
  %v163 = vunpack.c.l.b16 %v159
  %v164 = vunpack.c.h.b16 %v159
  %v165 = vunpack.c.l.b16 %v160
  %v166 = vpack.c.b16 %v163, %v163
  %v167 = vpack.c.b16 %v164, %v164
  %v168 = vpack.c.b16 %v165, %v165
  %172 = vst [vmem:[%s4] sm:$0xf] %v166
  %173 = vst [vmem:[%s4 + $0x4] sm:$0xf] %v167
  %174 = vst [vmem:[%s4 + $0x8] sm:$0x3] %v168
  // Predicated region
  $region18: #{_lambda_.32} parent=0 // pred_check
    _
  $region19: #{_lambda_.32} parent=0 // pred_check_branch
    %176 = sbr.rel (0) target = $region21
  $region20: #{_lambda_.32} parent=0 // pred_region
    _
  $region21: #{_lambda_.32} parent=0 // pred_fallthru
    _
  // Predicated region
  $region22: #{_lambda_.32} parent=0 // pred_check
    _
  $region23: #{_lambda_.32} parent=0 // pred_check_branch
    %178 = sbr.rel (0) target = $region25
  $region24: #{_lambda_.32} parent=0 // pred_region
    _
  $region25: #{_lambda_.32} parent=0 // pred_fallthru
    _

// kernel: _lambda_.33
$region0: #{_lambda_.33}
  #allocation0 [shape = 'u32[]', space=smem, size = 0x4, offset = 0x4, fixed_abs, tag = 'smem constant byte address 0x4 - core index']
  #allocation1 [shape = 'u32[144,128]{1,0:T(1,128)}', space=vmem, size = 0x12000, scoped, tag = 'internal scratch']
  %s0 = inlined_call_operand.vmem [shape: bf16[20,128], index: 0, kind: input, shape index: {}]
  %s1 = inlined_call_operand.vmem [shape: f32[1,128], index: 1, kind: input, shape index: {}]
  %s2 = inlined_call_operand.vmem [shape: f32[1,128], index: 2, kind: input, shape index: {}]
  %s3 = inlined_call_operand.vmem [shape: bf16[128,512], index: 3, kind: input, shape index: {}]
  %s4 = inlined_call_operand.vmem [shape: f32[1,512], index: 4, kind: input, shape index: {}]
  %s5 = inlined_call_operand.vmem [shape: bf16[20,512], index: 5, kind: output, shape index: {}]
  %s6 = sld [smem:[#allocation0]]
  $region125: #{_lambda_.33} parent=0
    _
  %s8 = ssub.s32 1, %s6
  %s9 = scalar_select 0, %s8, %s6
  $region1: #{_lambda_.33} parent=0
    #allocation2 [shape = 'u8[131072]{0}', space=vmem, size = 0x20000, scoped, tag = 'input window, operand 3']
    #allocation3 [shape = 'u8[24576]{0}', space=vmem, size = 0x6000, scoped, tag = 'output window, operand 0']
    loop: start=0, step=1, limit=4
    $region2: #{_lambda_.33} parent=1 // loop_pre_header
      _
    $region3: #{_lambda_.33} parent=1 // loop_header
      %s11 = sphi 0, %s15
      %p12 = scmp.ge.s32.totalorder %s11, 4
      %s18 = sphi 0, %s30
      %s19 = sphi 0, %s26
      %s20 = sphi 0, %s18
      %s21 = sphi 0, %s19
      %s22 = sphi 0, %s20
      %s23 = sphi 0, %s21
      %s33 = sphi 0, %s35
      %s36 = sphi 0, %s33
      %s37 = sphi 0, %s36
      %s53 = sphi 0, %s37
      %s57 = sphi 0, %s57
      %s59 = sphi 0, %s57
      %s60 = sphi 0, %s59
      %s74 = sphi 0, %s60
      %s78 = sphi 0, %s78
      %s80 = sphi 0, %s78
      %s81 = sphi 0, %s80
      %s95 = sphi 0, %s81
      %s101 = sphi 0, %s103
      %s104 = sphi 0, %s101
      %s105 = sphi 0, %s104
      %s121 = sphi 0, %s105
      %s127 = sphi 0, %s129
      %s130 = sphi 0, %s127
      %s131 = sphi 0, %s130
      %s147 = sphi 0, %s131
      %s155 = sphi 0, %s157
      %s158 = sphi 0, %s155
      %s159 = sphi 0, %s158
      %s175 = sphi 0, %s159
    $region4: #{_lambda_.33} parent=1 // loop_header_branch
      %14 = sbr.rel (%p12) target = $region8
    $region5: #{_lambda_.33} parent=1 // loop_body
      %s16 = ssub.s32 %s11, 1
      %s17 = ssub.s32 %s11, 2
      %s24 = sadd.s32 1, %s19
      %p25 = scmp.ge.s32.totalorder %s24, 2
      %s26 = scalar_select %p25, 0, %s24
      %s27 = sadd.s32 1, %s18
      %s28 = scalar_select %p25, %s27, %s18
      %p29 = scmp.ge.s32.totalorder %s28, 1
      %s30 = scalar_select %p29, 0, %s28
      %s31 = ssub.s32 %s18, %s30
      %p32 = scmp.eq.s32.totalorder %s31, 0
      %s34 = sadd.s32 %s33, 1
      %s35 = scalar_select %p32, %s33, %s34
      %p38 = pneg %p32
      %p39 = scmp.eq.s32.totalorder %s11, 1
      %p40 = por %p38, %p39
      %p41 = scmp.ne.s32.totalorder %s33, %s36
      %p42 = scmp.eq.s32.totalorder %s11, 0
      %p43 = por %p41, %p42
      %p44 = scmp.ne.s32.totalorder %s33, %s36
      %p45 = scmp.eq.s32.totalorder %s16, 1
      %p46 = por %p44, %p45
      %p47 = scmp.ne.s32.totalorder %s36, %s37
      %p48 = scmp.eq.s32.totalorder %s16, 0
      %p49 = por %p47, %p48
      %p50 = scmp.ne.s32.totalorder %s36, %s37
      %p51 = scmp.eq.s32.totalorder %s17, 1
      %p52 = por %p50, %p51
      %p54 = scmp.ne.s32.totalorder %s37, %s53
      %p55 = scmp.eq.s32.totalorder %s17, 0
      %p56 = por %p54, %p55
      %s58 = sadd.s32 %s57, 1
      %p61 = scmp.eq.s32.totalorder %s11, 1
      %p62 = scmp.ne.s32.totalorder %s57, %s59
      %p63 = scmp.eq.s32.totalorder %s11, 0
      %p64 = por %p62, %p63
      %p65 = scmp.ne.s32.totalorder %s57, %s59
      %p66 = scmp.eq.s32.totalorder %s16, 1
      %p67 = por %p65, %p66
      %p68 = scmp.ne.s32.totalorder %s59, %s60
      %p69 = scmp.eq.s32.totalorder %s16, 0
      %p70 = por %p68, %p69
      %p71 = scmp.ne.s32.totalorder %s59, %s60
      %p72 = scmp.eq.s32.totalorder %s17, 1
      %p73 = por %p71, %p72
      %p75 = scmp.ne.s32.totalorder %s60, %s74
      %p76 = scmp.eq.s32.totalorder %s17, 0
      %p77 = por %p75, %p76
      %s79 = sadd.s32 %s78, 1
      %p82 = scmp.eq.s32.totalorder %s11, 1
      %p83 = scmp.ne.s32.totalorder %s78, %s80
      %p84 = scmp.eq.s32.totalorder %s11, 0
      %p85 = por %p83, %p84
      %p86 = scmp.ne.s32.totalorder %s78, %s80
      %p87 = scmp.eq.s32.totalorder %s16, 1
      %p88 = por %p86, %p87
      %p89 = scmp.ne.s32.totalorder %s80, %s81
      %p90 = scmp.eq.s32.totalorder %s16, 0
      %p91 = por %p89, %p90
      %p92 = scmp.ne.s32.totalorder %s80, %s81
      %p93 = scmp.eq.s32.totalorder %s17, 1
      %p94 = por %p92, %p93
      %p96 = scmp.ne.s32.totalorder %s81, %s95
      %p97 = scmp.eq.s32.totalorder %s17, 0
      %p98 = por %p96, %p97
      %s99 = ssub.s32 %s19, %s26
      %p100 = scmp.eq.s32.totalorder %s99, 0
      %s102 = sadd.s32 %s101, 1
      %s103 = scalar_select %p100, %s101, %s102
      %p106 = pneg %p100
      %p107 = scmp.eq.s32.totalorder %s11, 1
      %p108 = por %p106, %p107
      %p109 = scmp.ne.s32.totalorder %s101, %s104
      %p110 = scmp.eq.s32.totalorder %s11, 0
      %p111 = por %p109, %p110
      %p112 = scmp.ne.s32.totalorder %s101, %s104
      %p113 = scmp.eq.s32.totalorder %s16, 1
      %p114 = por %p112, %p113
      %p115 = scmp.ne.s32.totalorder %s104, %s105
      %p116 = scmp.eq.s32.totalorder %s16, 0
      %p117 = por %p115, %p116
      %p118 = scmp.ne.s32.totalorder %s104, %s105
      %p119 = scmp.eq.s32.totalorder %s17, 1
      %p120 = por %p118, %p119
      %p122 = scmp.ne.s32.totalorder %s105, %s121
      %p123 = scmp.eq.s32.totalorder %s17, 0
      %p124 = por %p122, %p123
      %s125 = ssub.s32 %s19, %s26
      %p126 = scmp.eq.s32.totalorder %s125, 0
      %s128 = sadd.s32 %s127, 1
      %s129 = scalar_select %p126, %s127, %s128
      %p132 = pneg %p126
      %p133 = scmp.eq.s32.totalorder %s11, 1
      %p134 = por %p132, %p133
      %p135 = scmp.ne.s32.totalorder %s127, %s130
      %p136 = scmp.eq.s32.totalorder %s11, 0
      %p137 = por %p135, %p136
      %p138 = scmp.ne.s32.totalorder %s127, %s130
      %p139 = scmp.eq.s32.totalorder %s16, 1
      %p140 = por %p138, %p139
      %p141 = scmp.ne.s32.totalorder %s130, %s131
      %p142 = scmp.eq.s32.totalorder %s16, 0
      %p143 = por %p141, %p142
      %p144 = scmp.ne.s32.totalorder %s130, %s131
      %p145 = scmp.eq.s32.totalorder %s17, 1
      %p146 = por %p144, %p145
      %p148 = scmp.ne.s32.totalorder %s131, %s147
      %p149 = scmp.eq.s32.totalorder %s17, 0
      %p150 = por %p148, %p149
      %s151 = ssub.s32 %s18, %s30
      %s152 = ssub.s32 %s19, %s26
      %s153 = sor.u32 %s151, %s152
      %p154 = scmp.eq.s32.totalorder %s153, 0
      %s156 = sadd.s32 %s155, 1
      %s157 = scalar_select %p154, %s155, %s156
      %p160 = pneg %p154
      %p161 = scmp.eq.s32.totalorder %s11, 1
      %p162 = por %p160, %p161
      %p163 = scmp.ne.s32.totalorder %s155, %s158
      %p164 = scmp.eq.s32.totalorder %s11, 0
      %p165 = por %p163, %p164
      %p166 = scmp.ne.s32.totalorder %s155, %s158
      %p167 = scmp.eq.s32.totalorder %s16, 1
      %p168 = por %p166, %p167
      %p169 = scmp.ne.s32.totalorder %s158, %s159
      %p170 = scmp.eq.s32.totalorder %s16, 0
      %p171 = por %p169, %p170
      %p172 = scmp.ne.s32.totalorder %s158, %s159
      %p173 = scmp.eq.s32.totalorder %s17, 1
      %p174 = por %p172, %p173
      %p176 = scmp.ne.s32.totalorder %s159, %s175
      %p177 = scmp.eq.s32.totalorder %s17, 0
      %p178 = por %p176, %p177
      %p179 = scmp.le.s32.totalorder 1, %s11
      %p180 = scmp.lt.s32.totalorder %s11, 3
      %p181 = pnand %p179, %p180
      %p182 = pneg %p181
      // Predicated region
      $region9: #{_lambda_.33} parent=5 // pred_check
        _
      $region10: #{_lambda_.33} parent=5 // pred_check_branch
        %184 = sbr.rel (%p181) target = $region12
      $region11: #{_lambda_.33} parent=5 // pred_region
        %s185 = ssub.s32 %s11, 1
        // Predicated region
        $region13: #{_lambda_.33} parent=11 // pred_check
          %p186 = pneg %p49
        $region14: #{_lambda_.33} parent=11 // pred_check_branch
          %188 = sbr.rel (%p186) target = $region16
        $region15: #{_lambda_.33} parent=11 // pred_region
          %s189 = smul.u32 3, %s20
          %p190 = scmp.lt.s32.totalorder %s189, 2
          %s191 = scalar_select %p190, %s189, 2
          %s192 = smul.addr %s191, 4
          %s193 = scalar_lea.vmem %s0, %s192
          %s194 = smul.u32 3, %s20
        $region16: #{_lambda_.33} parent=11 // pred_fallthru
          _
        // Predicated region
        $region17: #{_lambda_.33} parent=11 // pred_check
          %p195 = pneg %p70
        $region18: #{_lambda_.33} parent=11 // pred_check_branch
          %197 = sbr.rel (%p195) target = $region20
        $region19: #{_lambda_.33} parent=11 // pred_region
          _
        $region20: #{_lambda_.33} parent=11 // pred_fallthru
          _
        // Predicated region
        $region21: #{_lambda_.33} parent=11 // pred_check
          %p198 = pneg %p91
        $region22: #{_lambda_.33} parent=11 // pred_check_branch
          %200 = sbr.rel (%p198) target = $region24
        $region23: #{_lambda_.33} parent=11 // pred_region
          _
        $region24: #{_lambda_.33} parent=11 // pred_fallthru
          _
      $region12: #{_lambda_.33} parent=5 // pred_fallthru
        _
      %p201 = scmp.lt.s32.totalorder %s11, 2
      // Predicated region
      $region25: #{_lambda_.33} parent=5 // pred_check
        %p202 = pneg %p201
      $region26: #{_lambda_.33} parent=5 // pred_check_branch
        %204 = sbr.rel (%p202) target = $region28
      $region27: #{_lambda_.33} parent=5 // pred_region
        // Predicated region
        $region29: #{_lambda_.33} parent=27 // pred_check
          %p205 = pneg %p111
        $region30: #{_lambda_.33} parent=27 // pred_check_branch
          %207 = sbr.rel (%p205) target = $region32
        $region31: #{_lambda_.33} parent=27 // pred_region
          %s208 = sand.u32 %s101, 1
          %s209 = sand.u32 %s101, 1
          %s210 = smul.addr %s209, 128
          %s211 = scalar_lea.vmem [#allocation2], %s210
          %s212 = smul.u32 2, %s19
          %s213 = smul.addr %s212, 4
          %s214 = scalar_lea.vmem %s3, %s213
          // Predicated region
          $region33: #{_lambda_.33} parent=31 // pred_check
            _
          $region34: #{_lambda_.33} parent=31 // pred_check_branch
            %216 = sbr.rel (0) target = $region36
          $region35: #{_lambda_.33} parent=31 // pred_region
            // Predicated region
            $region37: #{_lambda_.33} parent=35 // pred_check
              _
            $region38: #{_lambda_.33} parent=35 // pred_check_branch
              %218 = sbr.rel (0) target = $region40
            $region39: #{_lambda_.33} parent=35 // pred_region
              // Predicated region
              $region52: #{_lambda_.33} parent=39 // pred_check
                _
              $region53: #{_lambda_.33} parent=39 // pred_check_branch
                %263 = sbr.rel (0) target = $region55
              $region54: #{_lambda_.33} parent=39 // pred_region
                loop: start=0, step=1, limit=1
                $region56: #{_lambda_.33} parent=54 // loop_pre_header
                  _
                $region57: #{_lambda_.33} parent=54 // loop_header
                  %s265 = sphi 0, %s269
                  %p266 = scmp.ge.s32.totalorder %s265, 1
                  %s270 = sphi %s214, %s214
                  %s271 = sphi %s211, %s211
                $region58: #{_lambda_.33} parent=54 // loop_header_branch
                  %268 = sbr.rel (%p266) target = $region62
                $region59: #{_lambda_.33} parent=54 // loop_body
                  %v272 = vld [vmem:[%s270] sm:$0xff]
                  %273 = vst [vmem:[%s271] sm:$0xff] %v272
                  %v274 = vld [vmem:[%s270 + $0x10] sm:$0xff]
                  %275 = vst [vmem:[%s271 + $0x8] sm:$0xff] %v274
                  %v276 = vld [vmem:[%s270 + $0x20] sm:$0xff]
                  %277 = vst [vmem:[%s271 + $0x10] sm:$0xff] %v276
                  %v278 = vld [vmem:[%s270 + $0x30] sm:$0xff]
                  %279 = vst [vmem:[%s271 + $0x18] sm:$0xff] %v278
                  %v280 = vld [vmem:[%s270 + $0x40] sm:$0xff]
                  %281 = vst [vmem:[%s271 + $0x20] sm:$0xff] %v280
                  %v282 = vld [vmem:[%s270 + $0x50] sm:$0xff]
                  %283 = vst [vmem:[%s271 + $0x28] sm:$0xff] %v282
                  %v284 = vld [vmem:[%s270 + $0x60] sm:$0xff]
                  %285 = vst [vmem:[%s271 + $0x30] sm:$0xff] %v284
                  %v286 = vld [vmem:[%s270 + $0x70] sm:$0xff]
                  %287 = vst [vmem:[%s271 + $0x38] sm:$0xff] %v286
                  %v288 = vld [vmem:[%s270 + $0x80] sm:$0xff]
                  %289 = vst [vmem:[%s271 + $0x40] sm:$0xff] %v288
                  %v290 = vld [vmem:[%s270 + $0x90] sm:$0xff]
                  %291 = vst [vmem:[%s271 + $0x48] sm:$0xff] %v290
                  %v292 = vld [vmem:[%s270 + $0xa0] sm:$0xff]
                  %293 = vst [vmem:[%s271 + $0x50] sm:$0xff] %v292
                  %v294 = vld [vmem:[%s270 + $0xb0] sm:$0xff]
                  %295 = vst [vmem:[%s271 + $0x58] sm:$0xff] %v294
                  %v296 = vld [vmem:[%s270 + $0xc0] sm:$0xff]
                  %297 = vst [vmem:[%s271 + $0x60] sm:$0xff] %v296
                  %v298 = vld [vmem:[%s270 + $0xd0] sm:$0xff]
                  %299 = vst [vmem:[%s271 + $0x68] sm:$0xff] %v298
                  %v300 = vld [vmem:[%s270 + $0xe0] sm:$0xff]
                  %301 = vst [vmem:[%s271 + $0x70] sm:$0xff] %v300
                  %v302 = vld [vmem:[%s270 + $0xf0] sm:$0xff]
                  %303 = vst [vmem:[%s271 + $0x78] sm:$0xff] %v302
                $region60: #{_lambda_.33} parent=54 // loop_footer
                  %s269 = sadd.s32 1, %s265
                $region61: #{_lambda_.33} parent=54 // loop_footer_branch
                  %264 = sbr.rel target = $region57
                $region62: #{_lambda_.33} parent=54 // loop_exit
                  _
              $region55: #{_lambda_.33} parent=39 // pred_fallthru
                _
              // Predicated region
              $region63: #{_lambda_.33} parent=39 // pred_check
                _
              $region64: #{_lambda_.33} parent=39 // pred_check_branch
                %305 = sbr.rel target = $region66
              $region65: #{_lambda_.33} parent=39 // pred_region
                _
              $region66: #{_lambda_.33} parent=39 // pred_fallthru
                _
            $region40: #{_lambda_.33} parent=35 // pred_fallthru
              _
            // Predicated region
            $region41: #{_lambda_.33} parent=35 // pred_check
              _
            $region42: #{_lambda_.33} parent=35 // pred_check_branch
              %220 = sbr.rel target = $region44
            $region43: #{_lambda_.33} parent=35 // pred_region
              loop: start=0, step=1, limit=1
              $region45: #{_lambda_.33} parent=43 // loop_pre_header
                _
              $region46: #{_lambda_.33} parent=43 // loop_header
                %s223 = sphi 0, %s227
                %p224 = scmp.ge.s32.totalorder %s223, 1
                %s228 = sphi %s214, %s214
                %s229 = sphi %s211, %s211
              $region47: #{_lambda_.33} parent=43 // loop_header_branch
                %226 = sbr.rel (%p224) target = $region51
              $region48: #{_lambda_.33} parent=43 // loop_body
                %v230 = vld [vmem:[%s228] sm:$0xff]
                %231 = vst [vmem:[%s229] sm:$0xff] %v230
                %v232 = vld [vmem:[%s228 + $0x10] sm:$0xff]
                %233 = vst [vmem:[%s229 + $0x8] sm:$0xff] %v232
                %v234 = vld [vmem:[%s228 + $0x20] sm:$0xff]
                %235 = vst [vmem:[%s229 + $0x10] sm:$0xff] %v234
                %v236 = vld [vmem:[%s228 + $0x30] sm:$0xff]
                %237 = vst [vmem:[%s229 + $0x18] sm:$0xff] %v236
                %v238 = vld [vmem:[%s228 + $0x40] sm:$0xff]
                %239 = vst [vmem:[%s229 + $0x20] sm:$0xff] %v238
                %v240 = vld [vmem:[%s228 + $0x50] sm:$0xff]
                %241 = vst [vmem:[%s229 + $0x28] sm:$0xff] %v240
                %v242 = vld [vmem:[%s228 + $0x60] sm:$0xff]
                %243 = vst [vmem:[%s229 + $0x30] sm:$0xff] %v242
                %v244 = vld [vmem:[%s228 + $0x70] sm:$0xff]
                %245 = vst [vmem:[%s229 + $0x38] sm:$0xff] %v244
                %v246 = vld [vmem:[%s228 + $0x80] sm:$0xff]
                %247 = vst [vmem:[%s229 + $0x40] sm:$0xff] %v246
                %v248 = vld [vmem:[%s228 + $0x90] sm:$0xff]
                %249 = vst [vmem:[%s229 + $0x48] sm:$0xff] %v248
                %v250 = vld [vmem:[%s228 + $0xa0] sm:$0xff]
                %251 = vst [vmem:[%s229 + $0x50] sm:$0xff] %v250
                %v252 = vld [vmem:[%s228 + $0xb0] sm:$0xff]
                %253 = vst [vmem:[%s229 + $0x58] sm:$0xff] %v252
                %v254 = vld [vmem:[%s228 + $0xc0] sm:$0xff]
                %255 = vst [vmem:[%s229 + $0x60] sm:$0xff] %v254
                %v256 = vld [vmem:[%s228 + $0xd0] sm:$0xff]
                %257 = vst [vmem:[%s229 + $0x68] sm:$0xff] %v256
                %v258 = vld [vmem:[%s228 + $0xe0] sm:$0xff]
                %259 = vst [vmem:[%s229 + $0x70] sm:$0xff] %v258
                %v260 = vld [vmem:[%s228 + $0xf0] sm:$0xff]
                %261 = vst [vmem:[%s229 + $0x78] sm:$0xff] %v260
              $region49: #{_lambda_.33} parent=43 // loop_footer
                %s227 = sadd.s32 1, %s223
              $region50: #{_lambda_.33} parent=43 // loop_footer_branch
                %222 = sbr.rel target = $region46
              $region51: #{_lambda_.33} parent=43 // loop_exit
                _
            $region44: #{_lambda_.33} parent=35 // pred_fallthru
              _
          $region36: #{_lambda_.33} parent=31 // pred_fallthru
            _
          %306 = vnop
        $region32: #{_lambda_.33} parent=27 // pred_fallthru
          _
        // Predicated region
        $region67: #{_lambda_.33} parent=27 // pred_check
          %p307 = pneg %p137
        $region68: #{_lambda_.33} parent=27 // pred_check_branch
          %309 = sbr.rel (%p307) target = $region70
        $region69: #{_lambda_.33} parent=27 // pred_region
          %s310 = smul.u32 2, %s19
          %p311 = scmp.lt.s32.totalorder %s310, 3
          %s312 = scalar_select %p311, %s310, 3
          %s313 = scalar_lea.vmem %s4, %s312
          %s314 = smul.u32 2, %s19
        $region70: #{_lambda_.33} parent=27 // pred_fallthru
          _
      $region28: #{_lambda_.33} parent=5 // pred_fallthru
        _
      %p315 = scmp.le.s32.totalorder 1, %s11
      %p316 = scmp.lt.s32.totalorder %s11, 3
      %p317 = pnand %p315, %p316
      %p318 = pneg %p317
      // Predicated region
      $region71: #{_lambda_.33} parent=5 // pred_check
        _
      $region72: #{_lambda_.33} parent=5 // pred_check_branch
        %320 = sbr.rel (%p317) target = $region74
      $region73: #{_lambda_.33} parent=5 // pred_region
        %s321 = ssub.s32 %s11, 1
        %s322 = sand.u32 %s104, 1
        %s323 = sand.u32 %s104, 1
        %s324 = smul.addr %s323, 128
        %s325 = scalar_lea.vmem [#allocation2], %s324
        // Predicated region
        $region75: #{_lambda_.33} parent=73 // pred_check
          %p326 = pneg %p117
        $region76: #{_lambda_.33} parent=73 // pred_check_branch
          %328 = sbr.rel (%p326) target = $region78
        $region77: #{_lambda_.33} parent=73 // pred_region
          _
        $region78: #{_lambda_.33} parent=73 // pred_fallthru
          _
        %s329 = smul.u32 3, %s20
        %p330 = scmp.lt.s32.totalorder %s329, 2
        %s331 = scalar_select %p330, %s329, 2
        %s332 = smul.addr %s331, 4
        %s333 = scalar_lea.vmem %s0, %s332
        %p334 = pneg %p49
        %p335 = pneg %p46
        %p336 = pneg %p70
        %p337 = pneg %p67
        %p338 = pneg %p91
        %p339 = pneg %p88
        %s340 = sand.u32 %s104, 1
        %s341 = sand.u32 %s104, 1
        %s342 = smul.addr %s341, 128
        %s343 = scalar_lea.vmem [#allocation2], %s342
        %p344 = pneg %p117
        %p345 = pneg %p114
        %s346 = smul.u32 2, %s21
        %p347 = scmp.lt.s32.totalorder %s346, 3
        %s348 = scalar_select %p347, %s346, 3
        %s349 = scalar_lea.vmem %s4, %s348
        %p350 = pneg %p143
        %p351 = pneg %p140
        %p352 = pneg %p171
        %p353 = pneg %p168
        %s354 = sand.u32 %s158, 1
        %s355 = sand.u32 %s158, 1
        %s356 = smul.addr %s355, 24
        %s357 = scalar_lea.vmem [#allocation3], %s356
        %s358 = smul.u32 3, %s20
        %p359 = scmp.lt.s32.totalorder %s358, 2
        %s360 = scalar_select %p359, %s358, 2
        %s361 = smul.addr %s360, 4
        %s362 = scalar_lea.vmem %s0, %s361
        %s363 = smul.u32 3, %s20
        %s364 = smul.u32 2, %s21
        %s365 = smul.u32 2, %s21
        %p366 = scmp.lt.s32.totalorder %s365, 3
        %s367 = scalar_select %p366, %s365, 3
        %s368 = scalar_lea.vmem %s4, %s367
        %s369 = smul.u32 2, %s21
        %s370 = smul.u32 3, %s20
        %s371 = smul.u32 2, %s21
        %v373 = vld [vmem:[%s362] sm:$0xf]
        %v374 = vld [vmem:[%s362 + $0x4] sm:$0xf]
        %v375 = vld [vmem:[%s362 + $0x8] sm:$0x3]
        %v376 = vunpack.c.l.bf16 %v373
        %v377 = vunpack.c.l.bf16 %v374
        %v378 = vunpack.c.l.bf16 %v375
        %379 = vadd.xlane.f32.xlu0 %v376
        %v380 = vpop.xlane.xlu0 %379
        %381 = vadd.xlane.f32.xlu0 %v377
        %v382 = vpop.xlane.xlu0 %381
        %vm383 = vcmask 1043456
        %v384 = vsel %vm383, %v378, 0.0
        %385 = vadd.xlane.f32.xlu0 %v384
        %v386 = vpop.xlane.xlu0 %385
        %v387 = vrcp.pop 128.0
        %v388 = vmul.f32 %v380, %v387
        %v389 = vmul.f32 %v382, %v387
        %v390 = vmul.f32 %v386, %v387
        %v391 = vsub.f32 %v376, %v388
        %v392 = vsub.f32 %v377, %v389
        %v393 = vsub.f32 %v378, %v390
        %v394 = vmul.f32 %v391, %v391
        %v395 = vmul.f32 %v392, %v392
        %v396 = vmul.f32 %v393, %v393
        %397 = vadd.xlane.f32.xlu0 %v394
        %v398 = vpop.xlane.xlu0 %397
        %399 = vadd.xlane.f32.xlu0 %v395
        %v400 = vpop.xlane.xlu0 %399
        %v401 = vsel %vm383, %v396, 0.0
        %402 = vadd.xlane.f32.xlu0 %v401
        %v403 = vpop.xlane.xlu0 %402
        %v404 = vmul.f32 %v398, %v387
        %v405 = vmul.f32 %v400, %v387
        %v406 = vmul.f32 %v403, %v387
        %v407 = vadd.f32 %v404, 1e-06
        %v408 = vadd.f32 %v405, 1e-06
        %v409 = vadd.f32 %v406, 1e-06
        %v410 = vrsqrt.pop %v407
        %v411 = vrsqrt.pop %v408
        %v412 = vrsqrt.pop %v409
        %v413 = vmul.f32 %v391, %v410
        %v414 = vmul.f32 %v392, %v411
        %v415 = vmul.f32 %v393, %v412
        %v416 = vld [vmem:[%s1] sm:$0x1]
        %v418 = vlaneseq
        %v419 = vshrl.u32 %v418, 7
        %v420 = vsub.s32 0, %v419
        %v421 = vrot.slane %v416, %v420
        %v423 = vmul.f32 %v413, %v421
        %v424 = vmul.f32 %v414, %v421
        %v425 = vmul.f32 %v415, %v421
        %v426 = vld [vmem:[%s2] sm:$0x1]
        %v428 = vlaneseq
        %v429 = vshrl.u32 %v428, 7
        %v430 = vsub.s32 0, %v429
        %v431 = vrot.slane %v426, %v430
        %v433 = vadd.f32 %v423, %v431
        %v434 = vadd.f32 %v424, %v431
        %v435 = vadd.f32 %v425, %v431
        %v436 = vpack.c.bf16 %v434, %v433
        %v437 = vpack.c.bf16 %v435, %v435
        %v438 = vld [vmem:[%s325] sm:$0xff]
        %v439 = vld [vmem:[%s325 + $0x8] sm:$0xff]
        %v440 = vld [vmem:[%s325 + $0x10] sm:$0xff]
        %v441 = vld [vmem:[%s325 + $0x18] sm:$0xff]
        %v442 = vld [vmem:[%s325 + $0x20] sm:$0xff]
        %v443 = vld [vmem:[%s325 + $0x28] sm:$0xff]
        %v444 = vld [vmem:[%s325 + $0x30] sm:$0xff]
        %v445 = vld [vmem:[%s325 + $0x38] sm:$0xff]
        %v446 = vld [vmem:[%s325 + $0x40] sm:$0xff]
        %v447 = vld [vmem:[%s325 + $0x48] sm:$0xff]
        %v448 = vld [vmem:[%s325 + $0x50] sm:$0xff]
        %v449 = vld [vmem:[%s325 + $0x58] sm:$0xff]
        %v450 = vld [vmem:[%s325 + $0x60] sm:$0xff]
        %v451 = vld [vmem:[%s325 + $0x68] sm:$0xff]
        %v452 = vld [vmem:[%s325 + $0x70] sm:$0xff]
        %v453 = vld [vmem:[%s325 + $0x78] sm:$0xff]
        %v454 = vld [vmem:[%s368] sm:$0x3]
        %v456 = vlaneseq
        %v457 = vshrl.u32 %v456, 7
        %v458 = vsub.s32 0, %v457
        %v459 = vrot.slane %v454, %v458
        %v460 = vlaneseq
        %v461 = vshrl.u32 %v460, 7
        %v462 = vsub.s32 1, %v461
        %v463 = vrot.slane %v454, %v462
        %v482 = vunpack.c.l.b16 %v438
        %v483 = vunpack.c.h.b16 %v438
        %v484 = vunpack.c.l.b16 %v439
        %v485 = vunpack.c.h.b16 %v439
        %v486 = vunpack.c.l.b16 %v440
        %v487 = vunpack.c.h.b16 %v440
        %v488 = vunpack.c.l.b16 %v441
        %v489 = vunpack.c.h.b16 %v441
        %v490 = vunpack.c.l.b16 %v442
        %v491 = vunpack.c.h.b16 %v442
        %v492 = vunpack.c.l.b16 %v443
        %v493 = vunpack.c.h.b16 %v443
        %v494 = vunpack.c.l.b16 %v444
        %v495 = vunpack.c.h.b16 %v444
        %v496 = vunpack.c.l.b16 %v445
        %v497 = vunpack.c.h.b16 %v445
        %v498 = vunpack.c.l.b16 %v446
        %v499 = vunpack.c.h.b16 %v446
        %v500 = vunpack.c.l.b16 %v447
        %v501 = vunpack.c.h.b16 %v447
        %v502 = vunpack.c.l.b16 %v448
        %v503 = vunpack.c.h.b16 %v448
        %v504 = vunpack.c.l.b16 %v449
        %v505 = vunpack.c.h.b16 %v449
        %v506 = vunpack.c.l.b16 %v450
        %v507 = vunpack.c.h.b16 %v450
        %v508 = vunpack.c.l.b16 %v451
        %v509 = vunpack.c.h.b16 %v451
        %v510 = vunpack.c.l.b16 %v452
        %v511 = vunpack.c.h.b16 %v452
        %v512 = vunpack.c.l.b16 %v453
        %v513 = vunpack.c.h.b16 %v453
        %v514 = vpack.c.b16 %v484, %v482
        %v515 = vpack.c.b16 %v485, %v483
        %v516 = vpack.c.b16 %v488, %v486
        %v517 = vpack.c.b16 %v489, %v487
        %v518 = vpack.c.b16 %v492, %v490
        %v519 = vpack.c.b16 %v493, %v491
        %v520 = vpack.c.b16 %v496, %v494
        %v521 = vpack.c.b16 %v497, %v495
        %v522 = vpack.c.b16 %v500, %v498
        %v523 = vpack.c.b16 %v501, %v499
        %v524 = vpack.c.b16 %v504, %v502
        %v525 = vpack.c.b16 %v505, %v503
        %v526 = vpack.c.b16 %v508, %v506
        %v527 = vpack.c.b16 %v509, %v507
        %v528 = vpack.c.b16 %v512, %v510
        %v529 = vpack.c.b16 %v513, %v511
        %546 = vmatprep.subr.bf16.mxu0 %v515
        %547 = vmatpush1.bf16.msra.mxu0 %v514
        %548 = vmatprep.subr.bf16.mxu0 %v517
        %549 = vmatpush1.bf16.msra.mxu0 %v516
        %550 = vmatprep.subr.bf16.mxu0 %v519
        %551 = vmatpush1.bf16.msra.mxu0 %v518
        %552 = vmatprep.subr.bf16.mxu0 %v521
        %553 = vmatpush1.bf16.msra.mxu0 %v520
        %554 = vmatprep.subr.bf16.mxu0 %v523
        %555 = vmatpush1.bf16.msra.mxu0 %v522
        %556 = vmatprep.subr.bf16.mxu0 %v525
        %557 = vmatpush1.bf16.msra.mxu0 %v524
        %558 = vmatprep.subr.bf16.mxu0 %v527
        %559 = vmatpush1.bf16.msra.mxu0 %v526
        %560 = vmatprep.subr.bf16.mxu0 %v529
        %561 = vmatpush1.bf16.msra.mxu0 %v528
        %562 = vmatprep.subr.bf16.mxu0 0
        %563 = vmatpush1.bf16.msra.mxu0 0
        %564 = vmatprep.subr.bf16.mxu0 0
        %565 = vmatpush1.bf16.msra.mxu0 0
        %566 = vmatprep.subr.bf16.mxu0 0
        %567 = vmatpush1.bf16.msra.mxu0 0
        %568 = vmatprep.subr.bf16.mxu0 0
        %569 = vmatpush1.bf16.msra.mxu0 0
        %570 = vmatprep.subr.bf16.mxu0 0
        %571 = vmatpush1.bf16.msra.mxu0 0
        %572 = vmatprep.subr.bf16.mxu0 0
        %573 = vmatpush1.bf16.msra.mxu0 0
        %574 = vmatprep.subr.bf16.mxu0 0
        %575 = vmatpush1.bf16.msra.mxu0 0
        %576 = vmatprep.subr.bf16.mxu0 0
        %577 = vmatpush1.bf16.msra.mxu0 0
        %578 = vmatprep.mubr.bf16.mxu0 0
        %579 = vmatmul.mubr.bf16.gmra.mrb[0].mxu0 %v436
        %v580 = vpop.f32.mrb[0].mxu0
        %v581 = vadd.f32 %v459, %v580
        %v582 = vpop.f32.mrb[0].mxu0
        %v583 = vadd.f32 %v463, %v582
        %v584 = vpop.f32.mrb[0].mxu0
        %v585 = vadd.f32 %v459, %v584
        %v586 = vpop.f32.mrb[0].mxu0
        %v587 = vadd.f32 %v463, %v586
        %588 = vmatprep.mubr.bf16.mxu0 0
        %589 = vmatmul.mubr.bf16.gmra.mrb[0].mxu0 %v437
        %v590 = vpop.f32.mrb[0].mxu0
        %v591 = vadd.f32 %v459, %v590
        %v592 = vpop.f32.mrb[0].mxu0
        %v593 = vadd.f32 %v463, %v592
        %v594 = vpop.f32.mrb[0].mxu0
        %v595 = vpop.f32.mrb[0].mxu0
        %596 = vdwg.mxu0
        %v597 = vmul.f32 %v581, %v581
        %v598 = vmul.f32 %v583, %v583
        %v599 = vmul.f32 %v585, %v585
        %v600 = vmul.f32 %v587, %v587
        %v601 = vmul.f32 %v591, %v591
        %v602 = vmul.f32 %v593, %v593
        %v603 = vmul.f32 %v581, %v597
        %v604 = vmul.f32 %v583, %v598
        %v605 = vmul.f32 %v585, %v599
        %v606 = vmul.f32 %v587, %v600
        %v607 = vmul.f32 %v591, %v601
        %v608 = vmul.f32 %v593, %v602
        %v609 = vmul.f32 %v603, 0.044715
        %v610 = vmul.f32 %v604, 0.044715
        %v611 = vmul.f32 %v605, 0.044715
        %v612 = vmul.f32 %v606, 0.044715
        %v613 = vmul.f32 %v607, 0.044715
        %v614 = vmul.f32 %v608, 0.044715
        %v615 = vadd.f32 %v581, %v609
        %v616 = vadd.f32 %v583, %v610
        %v617 = vadd.f32 %v585, %v611
        %v618 = vadd.f32 %v587, %v612
        %v619 = vadd.f32 %v591, %v613
        %v620 = vadd.f32 %v593, %v614
        %v621 = vmul.f32 %v615, 0.7978846
        %v622 = vmul.f32 %v616, 0.7978846
        %v623 = vmul.f32 %v617, 0.7978846
        %v624 = vmul.f32 %v618, 0.7978846
        %v625 = vmul.f32 %v619, 0.7978846
        %v626 = vmul.f32 %v620, 0.7978846
        %v627 = vtanh.pop %v621
        %v628 = vtanh.pop %v622
        %v629 = vtanh.pop %v623
        %v630 = vtanh.pop %v624
        %v631 = vtanh.pop %v625
        %v632 = vtanh.pop %v626
        %v633 = vadd.f32 %v627, 1.0
        %v634 = vadd.f32 %v628, 1.0
        %v635 = vadd.f32 %v629, 1.0
        %v636 = vadd.f32 %v630, 1.0
        %v637 = vadd.f32 %v631, 1.0
        %v638 = vadd.f32 %v632, 1.0
        %v639 = vmul.f32 %v633, 0.5
        %v640 = vmul.f32 %v634, 0.5
        %v641 = vmul.f32 %v635, 0.5
        %v642 = vmul.f32 %v636, 0.5
        %v643 = vmul.f32 %v637, 0.5
        %v644 = vmul.f32 %v638, 0.5
        %v645 = vmul.f32 %v581, %v639
        %v646 = vmul.f32 %v583, %v640
        %v647 = vmul.f32 %v585, %v641
        %v648 = vmul.f32 %v587, %v642
        %v649 = vmul.f32 %v591, %v643
        %v650 = vmul.f32 %v593, %v644
        %v651 = vpack.c.bf16 %v647, %v645
        %v652 = vpack.c.bf16 %v648, %v646
        %v653 = vpack.c.bf16 %v649, %v649
        %v654 = vpack.c.bf16 %v650, %v650
        %v659 = vunpack.c.l.b16 %v651
        %v660 = vunpack.c.l.b16 %v652
        %v661 = vunpack.c.h.b16 %v651
        %v662 = vunpack.c.h.b16 %v652
        %v663 = vunpack.c.l.b16 %v653
        %v664 = vunpack.c.l.b16 %v654
        %v665 = vpack.c.b16 %v660, %v659
        %v666 = vpack.c.b16 %v662, %v661
        %v667 = vpack.c.b16 %v664, %v663
        %671 = vst [vmem:[%s357] sm:$0xff] %v665
        %672 = vst [vmem:[%s357 + $0x8] sm:$0xff] %v666
        %673 = vst [vmem:[%s357 + $0x10] sm:$0x33] %v667
        %s674 = sand.u32 %s158, 1
        %s675 = sand.u32 %s158, 1
        %s676 = smul.addr %s675, 24
        %s677 = scalar_lea.vmem [#allocation3], %s676
        // Predicated region
        $region79: #{_lambda_.33} parent=73 // pred_check
          %p678 = pneg %p168
        $region80: #{_lambda_.33} parent=73 // pred_check_branch
          %680 = sbr.rel (%p678) target = $region82
        $region81: #{_lambda_.33} parent=73 // pred_region
          %s681 = smul.u32 3, %s20
          %s682 = smul.u32 2, %s21
          %s683 = smul.addr %s681, 4
          %s684 = sadd.s32 %s682, %s683
          %s685 = smul.addr %s684, 4
          %s686 = scalar_lea.vmem %s5, %s685
          // Predicated region
          $region83: #{_lambda_.33} parent=81 // pred_check
            _
          $region84: #{_lambda_.33} parent=81 // pred_check_branch
            %688 = sbr.rel (0) target = $region86
          $region85: #{_lambda_.33} parent=81 // pred_region
            // Predicated region
            $region87: #{_lambda_.33} parent=85 // pred_check
              _
            $region88: #{_lambda_.33} parent=85 // pred_check_branch
              %690 = sbr.rel (0) target = $region90
            $region89: #{_lambda_.33} parent=85 // pred_region
              // Predicated region
              $region102: #{_lambda_.33} parent=89 // pred_check
                _
              $region103: #{_lambda_.33} parent=89 // pred_check_branch
                %709 = sbr.rel (0) target = $region105
              $region104: #{_lambda_.33} parent=89 // pred_region
                loop: start=0, step=1, limit=1
                $region106: #{_lambda_.33} parent=104 // loop_pre_header
                  _
                $region107: #{_lambda_.33} parent=104 // loop_header
                  %s711 = sphi 0, %s715
                  %p712 = scmp.ge.s32.totalorder %s711, 1
                  %s716 = sphi %s677, %s677
                  %s717 = sphi %s686, %s686
                $region108: #{_lambda_.33} parent=104 // loop_header_branch
                  %714 = sbr.rel (%p712) target = $region112
                $region109: #{_lambda_.33} parent=104 // loop_body
                  %v718 = vld [vmem:[%s716] sm:$0xff]
                  %719 = vst [vmem:[%s717] sm:$0xff] %v718
                  %v720 = vld [vmem:[%s716 + $0x8] sm:$0xff]
                  %721 = vst [vmem:[%s717 + $0x10] sm:$0xff] %v720
                  %v722 = vld [vmem:[%s716 + $0x10] sm:$0xff]
                  %723 = vst [vmem:[%s717 + $0x20] sm:$0xff] %v722
                $region110: #{_lambda_.33} parent=104 // loop_footer
                  %s715 = sadd.s32 1, %s711
                $region111: #{_lambda_.33} parent=104 // loop_footer_branch
                  %710 = sbr.rel target = $region107
                $region112: #{_lambda_.33} parent=104 // loop_exit
                  _
              $region105: #{_lambda_.33} parent=89 // pred_fallthru
                _
              // Predicated region
              $region113: #{_lambda_.33} parent=89 // pred_check
                _
              $region114: #{_lambda_.33} parent=89 // pred_check_branch
                %725 = sbr.rel target = $region116
              $region115: #{_lambda_.33} parent=89 // pred_region
                _
              $region116: #{_lambda_.33} parent=89 // pred_fallthru
                _
            $region90: #{_lambda_.33} parent=85 // pred_fallthru
              _
            // Predicated region
            $region91: #{_lambda_.33} parent=85 // pred_check
              _
            $region92: #{_lambda_.33} parent=85 // pred_check_branch
              %692 = sbr.rel target = $region94
            $region93: #{_lambda_.33} parent=85 // pred_region
              loop: start=0, step=1, limit=1
              $region95: #{_lambda_.33} parent=93 // loop_pre_header
                _
              $region96: #{_lambda_.33} parent=93 // loop_header
                %s695 = sphi 0, %s699
                %p696 = scmp.ge.s32.totalorder %s695, 1
                %s700 = sphi %s677, %s677
                %s701 = sphi %s686, %s686
              $region97: #{_lambda_.33} parent=93 // loop_header_branch
                %698 = sbr.rel (%p696) target = $region101
              $region98: #{_lambda_.33} parent=93 // loop_body
                %v702 = vld [vmem:[%s700] sm:$0xff]
                %703 = vst [vmem:[%s701] sm:$0xff] %v702
                %v704 = vld [vmem:[%s700 + $0x8] sm:$0xff]
                %705 = vst [vmem:[%s701 + $0x10] sm:$0xff] %v704
                %v706 = vld [vmem:[%s700 + $0x10] sm:$0xff]
                %707 = vst [vmem:[%s701 + $0x20] sm:$0xff] %v706
              $region99: #{_lambda_.33} parent=93 // loop_footer
                %s699 = sadd.s32 1, %s695
              $region100: #{_lambda_.33} parent=93 // loop_footer_branch
                %694 = sbr.rel target = $region96
              $region101: #{_lambda_.33} parent=93 // loop_exit
                _
            $region94: #{_lambda_.33} parent=85 // pred_fallthru
              _
          $region86: #{_lambda_.33} parent=81 // pred_fallthru
            _
          %726 = vnop
        $region82: #{_lambda_.33} parent=73 // pred_fallthru
          _
      $region74: #{_lambda_.33} parent=5 // pred_fallthru
        _
      %p727 = scmp.le.s32.totalorder 2, %s11
      // Predicated region
      $region117: #{_lambda_.33} parent=5 // pred_check
        %p728 = pneg %p727
      $region118: #{_lambda_.33} parent=5 // pred_check_branch
        %730 = sbr.rel (%p728) target = $region120
      $region119: #{_lambda_.33} parent=5 // pred_region
        %s731 = ssub.s32 %s11, 2
        // Predicated region
        $region121: #{_lambda_.33} parent=119 // pred_check
          %p732 = pneg %p174
        $region122: #{_lambda_.33} parent=119 // pred_check_branch
          %734 = sbr.rel (%p732) target = $region124
        $region123: #{_lambda_.33} parent=119 // pred_region
          %s735 = sand.u32 %s159, 1
          %s736 = sand.u32 %s159, 1
          %s737 = smul.addr %s736, 24
          %s738 = scalar_lea.vmem [#allocation3], %s737
        $region124: #{_lambda_.33} parent=119 // pred_fallthru
          _
      $region120: #{_lambda_.33} parent=5 // pred_fallthru
        _
    $region6: #{_lambda_.33} parent=1 // loop_footer
      %s15 = sadd.s32 1, %s11
    $region7: #{_lambda_.33} parent=1 // loop_footer_branch
      %10 = sbr.rel target = $region3
    $region8: #{_lambda_.33} parent=1 // loop_exit
      _

// kernel: _lambda_.34
$region0: #{_lambda_.34}
  #allocation0 [shape = 'u32[]', space=smem, size = 0x4, offset = 0x4, fixed_abs, tag = 'smem constant byte address 0x4 - core index']
  #allocation1 [shape = 'u32[144,128]{1,0:T(1,128)}', space=vmem, size = 0x12000, scoped, tag = 'internal scratch']
  %s0 = inlined_call_operand.vmem [shape: bf16[20,512], index: 0, kind: input, shape index: {}]
  %s1 = inlined_call_operand.vmem [shape: bf16[512,128], index: 1, kind: input, shape index: {}]
  %s2 = inlined_call_operand.vmem [shape: f32[1,128], index: 2, kind: input, shape index: {}]
  %s3 = inlined_call_operand.vmem [shape: bf16[20,128], index: 3, kind: input, shape index: {}]
  %s4 = inlined_call_operand.vmem [shape: bf16[20,128], index: 4, kind: output, shape index: {}]
  %s5 = sld [smem:[#allocation0]]
  $region26: #{_lambda_.34} parent=0
    _
  %s7 = ssub.s32 1, %s5
  %s8 = scalar_select 0, %s7, %s5
  // Predicated region
  $region2: #{_lambda_.34} parent=0 // pred_check
    _
  $region3: #{_lambda_.34} parent=0 // pred_check_branch
    %10 = sbr.rel (0) target = $region5
  $region4: #{_lambda_.34} parent=0 // pred_region
    _
  $region5: #{_lambda_.34} parent=0 // pred_fallthru
    _
  // Predicated region
  $region6: #{_lambda_.34} parent=0 // pred_check
    _
  $region7: #{_lambda_.34} parent=0 // pred_check_branch
    %12 = sbr.rel (0) target = $region9
  $region8: #{_lambda_.34} parent=0 // pred_region
    _
  $region9: #{_lambda_.34} parent=0 // pred_fallthru
    _
  // Predicated region
  $region10: #{_lambda_.34} parent=0 // pred_check
    _
  $region11: #{_lambda_.34} parent=0 // pred_check_branch
    %14 = sbr.rel (0) target = $region13
  $region12: #{_lambda_.34} parent=0 // pred_region
    _
  $region13: #{_lambda_.34} parent=0 // pred_fallthru
    _
  // Predicated region
  $region14: #{_lambda_.34} parent=0 // pred_check
    _
  $region15: #{_lambda_.34} parent=0 // pred_check_branch
    %16 = sbr.rel (0) target = $region17
  $region16: #{_lambda_.34} parent=0 // pred_region
    _
  $region17: #{_lambda_.34} parent=0 // pred_fallthru
    _
  %v18 = vld [vmem:[%s0] sm:$0xff]
  %v19 = vld [vmem:[%s0 + $0x8] sm:$0xff]
  %v20 = vld [vmem:[%s0 + $0x10] sm:$0xff]
  %v21 = vld [vmem:[%s0 + $0x18] sm:$0xff]
  %v22 = vld [vmem:[%s0 + $0x20] sm:$0x33]
  %v23 = vld [vmem:[%s0 + $0x28] sm:$0x33]
  %v24 = vld [vmem:[%s1] sm:$0xf]
  %v25 = vld [vmem:[%s1 + $0x4] sm:$0xf]
  %v26 = vld [vmem:[%s1 + $0x8] sm:$0xf]
  %v27 = vld [vmem:[%s1 + $0xc] sm:$0xf]
  %v28 = vld [vmem:[%s1 + $0x10] sm:$0xf]
  %v29 = vld [vmem:[%s1 + $0x14] sm:$0xf]
  %v30 = vld [vmem:[%s1 + $0x18] sm:$0xf]
  %v31 = vld [vmem:[%s1 + $0x1c] sm:$0xf]
  %v32 = vld [vmem:[%s1 + $0x20] sm:$0xf]
  %v33 = vld [vmem:[%s1 + $0x24] sm:$0xf]
  %v34 = vld [vmem:[%s1 + $0x28] sm:$0xf]
  %v35 = vld [vmem:[%s1 + $0x2c] sm:$0xf]
  %v36 = vld [vmem:[%s1 + $0x30] sm:$0xf]
  %v37 = vld [vmem:[%s1 + $0x34] sm:$0xf]
  %v38 = vld [vmem:[%s1 + $0x38] sm:$0xf]
  %v39 = vld [vmem:[%s1 + $0x3c] sm:$0xf]
  %v40 = vld [vmem:[%s1 + $0x40] sm:$0xf]
  %v41 = vld [vmem:[%s1 + $0x44] sm:$0xf]
  %v42 = vld [vmem:[%s1 + $0x48] sm:$0xf]
  %v43 = vld [vmem:[%s1 + $0x4c] sm:$0xf]
  %v44 = vld [vmem:[%s1 + $0x50] sm:$0xf]
  %v45 = vld [vmem:[%s1 + $0x54] sm:$0xf]
  %v46 = vld [vmem:[%s1 + $0x58] sm:$0xf]
  %v47 = vld [vmem:[%s1 + $0x5c] sm:$0xf]
  %v48 = vld [vmem:[%s1 + $0x60] sm:$0xf]
  %v49 = vld [vmem:[%s1 + $0x64] sm:$0xf]
  %v50 = vld [vmem:[%s1 + $0x68] sm:$0xf]
  %v51 = vld [vmem:[%s1 + $0x6c] sm:$0xf]
  %v52 = vld [vmem:[%s1 + $0x70] sm:$0xf]
  %v53 = vld [vmem:[%s1 + $0x74] sm:$0xf]
  %v54 = vld [vmem:[%s1 + $0x78] sm:$0xf]
  %v55 = vld [vmem:[%s1 + $0x7c] sm:$0xf]
  %v56 = vld [vmem:[%s1 + $0x80] sm:$0xf]
  %v57 = vld [vmem:[%s1 + $0x84] sm:$0xf]
  %v58 = vld [vmem:[%s1 + $0x88] sm:$0xf]
  %v59 = vld [vmem:[%s1 + $0x8c] sm:$0xf]
  %v60 = vld [vmem:[%s1 + $0x90] sm:$0xf]
  %v61 = vld [vmem:[%s1 + $0x94] sm:$0xf]
  %v62 = vld [vmem:[%s1 + $0x98] sm:$0xf]
  %v63 = vld [vmem:[%s1 + $0x9c] sm:$0xf]
  %v64 = vld [vmem:[%s1 + $0xa0] sm:$0xf]
  %v65 = vld [vmem:[%s1 + $0xa4] sm:$0xf]
  %v66 = vld [vmem:[%s1 + $0xa8] sm:$0xf]
  %v67 = vld [vmem:[%s1 + $0xac] sm:$0xf]
  %v68 = vld [vmem:[%s1 + $0xb0] sm:$0xf]
  %v69 = vld [vmem:[%s1 + $0xb4] sm:$0xf]
  %v70 = vld [vmem:[%s1 + $0xb8] sm:$0xf]
  %v71 = vld [vmem:[%s1 + $0xbc] sm:$0xf]
  %v72 = vld [vmem:[%s1 + $0xc0] sm:$0xf]
  %v73 = vld [vmem:[%s1 + $0xc4] sm:$0xf]
  %v74 = vld [vmem:[%s1 + $0xc8] sm:$0xf]
  %v75 = vld [vmem:[%s1 + $0xcc] sm:$0xf]
  %v76 = vld [vmem:[%s1 + $0xd0] sm:$0xf]
  %v77 = vld [vmem:[%s1 + $0xd4] sm:$0xf]
  %v78 = vld [vmem:[%s1 + $0xd8] sm:$0xf]
  %v79 = vld [vmem:[%s1 + $0xdc] sm:$0xf]
  %v80 = vld [vmem:[%s1 + $0xe0] sm:$0xf]
  %v81 = vld [vmem:[%s1 + $0xe4] sm:$0xf]
  %v82 = vld [vmem:[%s1 + $0xe8] sm:$0xf]
  %v83 = vld [vmem:[%s1 + $0xec] sm:$0xf]
  %v84 = vld [vmem:[%s1 + $0xf0] sm:$0xf]
  %v85 = vld [vmem:[%s1 + $0xf4] sm:$0xf]
  %v86 = vld [vmem:[%s1 + $0xf8] sm:$0xf]
  %v87 = vld [vmem:[%s1 + $0xfc] sm:$0xf]
  %v88 = vld [vmem:[%s2] sm:$0x1]
  %v90 = vlaneseq
  %v91 = vshrl.u32 %v90, 7
  %v92 = vsub.s32 0, %v91
  %v93 = vrot.slane %v88, %v92
  %v101 = vunpack.c.l.b16 %v18
  %v102 = vunpack.c.h.b16 %v18
  %v103 = vunpack.c.l.b16 %v19
  %v104 = vunpack.c.h.b16 %v19
  %v105 = vunpack.c.l.b16 %v20
  %v106 = vunpack.c.h.b16 %v20
  %v107 = vunpack.c.l.b16 %v21
  %v108 = vunpack.c.h.b16 %v21
  %v109 = vunpack.c.l.b16 %v22
  %v110 = vunpack.c.h.b16 %v22
  %v111 = vunpack.c.l.b16 %v23
  %v112 = vunpack.c.h.b16 %v23
  %v113 = vpack.c.b16 %v105, %v101
  %v114 = vpack.c.b16 %v106, %v102
  %v115 = vpack.c.b16 %v107, %v103
  %v116 = vpack.c.b16 %v108, %v104
  %v117 = vpack.c.b16 %v109, %v109
  %v118 = vpack.c.b16 %v110, %v110
  %v119 = vpack.c.b16 %v111, %v111
  %v120 = vpack.c.b16 %v112, %v112
  %v193 = vunpack.c.l.b16 %v24
  %v194 = vunpack.c.l.b16 %v25
  %v195 = vunpack.c.l.b16 %v26
  %v196 = vunpack.c.l.b16 %v27
  %v197 = vunpack.c.l.b16 %v28
  %v198 = vunpack.c.l.b16 %v29
  %v199 = vunpack.c.l.b16 %v30
  %v200 = vunpack.c.l.b16 %v31
  %v201 = vunpack.c.l.b16 %v32
  %v202 = vunpack.c.l.b16 %v33
  %v203 = vunpack.c.l.b16 %v34
  %v204 = vunpack.c.l.b16 %v35
  %v205 = vunpack.c.l.b16 %v36
  %v206 = vunpack.c.l.b16 %v37
  %v207 = vunpack.c.l.b16 %v38
  %v208 = vunpack.c.l.b16 %v39
  %v209 = vunpack.c.l.b16 %v40
  %v210 = vunpack.c.l.b16 %v41
  %v211 = vunpack.c.l.b16 %v42
  %v212 = vunpack.c.l.b16 %v43
  %v213 = vunpack.c.l.b16 %v44
  %v214 = vunpack.c.l.b16 %v45
  %v215 = vunpack.c.l.b16 %v46
  %v216 = vunpack.c.l.b16 %v47
  %v217 = vunpack.c.l.b16 %v48
  %v218 = vunpack.c.l.b16 %v49
  %v219 = vunpack.c.l.b16 %v50
  %v220 = vunpack.c.l.b16 %v51
  %v221 = vunpack.c.l.b16 %v52
  %v222 = vunpack.c.l.b16 %v53
  %v223 = vunpack.c.l.b16 %v54
  %v224 = vunpack.c.l.b16 %v55
  %v225 = vunpack.c.l.b16 %v56
  %v226 = vunpack.c.l.b16 %v57
  %v227 = vunpack.c.l.b16 %v58
  %v228 = vunpack.c.l.b16 %v59
  %v229 = vunpack.c.l.b16 %v60
  %v230 = vunpack.c.l.b16 %v61
  %v231 = vunpack.c.l.b16 %v62
  %v232 = vunpack.c.l.b16 %v63
  %v233 = vunpack.c.l.b16 %v64
  %v234 = vunpack.c.l.b16 %v65
  %v235 = vunpack.c.l.b16 %v66
  %v236 = vunpack.c.l.b16 %v67
  %v237 = vunpack.c.l.b16 %v68
  %v238 = vunpack.c.l.b16 %v69
  %v239 = vunpack.c.l.b16 %v70
  %v240 = vunpack.c.l.b16 %v71
  %v241 = vunpack.c.l.b16 %v72
  %v242 = vunpack.c.l.b16 %v73
  %v243 = vunpack.c.l.b16 %v74
  %v244 = vunpack.c.l.b16 %v75
  %v245 = vunpack.c.l.b16 %v76
  %v246 = vunpack.c.l.b16 %v77
  %v247 = vunpack.c.l.b16 %v78
  %v248 = vunpack.c.l.b16 %v79
  %v249 = vunpack.c.l.b16 %v80
  %v250 = vunpack.c.l.b16 %v81
  %v251 = vunpack.c.l.b16 %v82
  %v252 = vunpack.c.l.b16 %v83
  %v253 = vunpack.c.l.b16 %v84
  %v254 = vunpack.c.l.b16 %v85
  %v255 = vunpack.c.l.b16 %v86
  %v256 = vunpack.c.l.b16 %v87
  %v257 = vpack.c.b16 %v194, %v193
  %v258 = vpack.c.b16 %v196, %v195
  %v259 = vpack.c.b16 %v198, %v197
  %v260 = vpack.c.b16 %v200, %v199
  %v261 = vpack.c.b16 %v202, %v201
  %v262 = vpack.c.b16 %v204, %v203
  %v263 = vpack.c.b16 %v206, %v205
  %v264 = vpack.c.b16 %v208, %v207
  %v265 = vpack.c.b16 %v210, %v209
  %v266 = vpack.c.b16 %v212, %v211
  %v267 = vpack.c.b16 %v214, %v213
  %v268 = vpack.c.b16 %v216, %v215
  %v269 = vpack.c.b16 %v218, %v217
  %v270 = vpack.c.b16 %v220, %v219
  %v271 = vpack.c.b16 %v222, %v221
  %v272 = vpack.c.b16 %v224, %v223
  %v273 = vpack.c.b16 %v226, %v225
  %v274 = vpack.c.b16 %v228, %v227
  %v275 = vpack.c.b16 %v230, %v229
  %v276 = vpack.c.b16 %v232, %v231
  %v277 = vpack.c.b16 %v234, %v233
  %v278 = vpack.c.b16 %v236, %v235
  %v279 = vpack.c.b16 %v238, %v237
  %v280 = vpack.c.b16 %v240, %v239
  %v281 = vpack.c.b16 %v242, %v241
  %v282 = vpack.c.b16 %v244, %v243
  %v283 = vpack.c.b16 %v246, %v245
  %v284 = vpack.c.b16 %v248, %v247
  %v285 = vpack.c.b16 %v250, %v249
  %v286 = vpack.c.b16 %v252, %v251
  %v287 = vpack.c.b16 %v254, %v253
  %v288 = vpack.c.b16 %v256, %v255
  %321 = vmatprep.subr.bf16.mxu0 0
  %322 = vmatpush1.bf16.msra.mxu0 %v257
  %323 = vmatprep.subr.bf16.mxu0 0
  %324 = vmatpush1.bf16.msra.mxu0 %v258
  %325 = vmatprep.subr.bf16.mxu0 0
  %326 = vmatpush1.bf16.msra.mxu0 %v259
  %327 = vmatprep.subr.bf16.mxu0 0
  %328 = vmatpush1.bf16.msra.mxu0 %v260
  %329 = vmatprep.subr.bf16.mxu0 0
  %330 = vmatpush1.bf16.msra.mxu0 %v261
  %331 = vmatprep.subr.bf16.mxu0 0
  %332 = vmatpush1.bf16.msra.mxu0 %v262
  %333 = vmatprep.subr.bf16.mxu0 0
  %334 = vmatpush1.bf16.msra.mxu0 %v263
  %335 = vmatprep.subr.bf16.mxu0 0
  %336 = vmatpush1.bf16.msra.mxu0 %v264
  %337 = vmatprep.subr.bf16.mxu0 0
  %338 = vmatpush1.bf16.msra.mxu0 %v265
  %339 = vmatprep.subr.bf16.mxu0 0
  %340 = vmatpush1.bf16.msra.mxu0 %v266
  %341 = vmatprep.subr.bf16.mxu0 0
  %342 = vmatpush1.bf16.msra.mxu0 %v267
  %343 = vmatprep.subr.bf16.mxu0 0
  %344 = vmatpush1.bf16.msra.mxu0 %v268
  %345 = vmatprep.subr.bf16.mxu0 0
  %346 = vmatpush1.bf16.msra.mxu0 %v269
  %347 = vmatprep.subr.bf16.mxu0 0
  %348 = vmatpush1.bf16.msra.mxu0 %v270
  %349 = vmatprep.subr.bf16.mxu0 0
  %350 = vmatpush1.bf16.msra.mxu0 %v271
  %351 = vmatprep.subr.bf16.mxu0 0
  %352 = vmatpush1.bf16.msra.mxu0 %v272
  %353 = vmatprep.mubr.bf16.mxu0 %v114
  %354 = vmatmul.mubr.bf16.gmra.mrb[0].mxu0 %v113
  %v355 = vpop.f32.mrb[0].mxu0
  %v356 = vadd.f32 %v93, %v355
  %v357 = vpop.f32.mrb[0].mxu0
  %v358 = vpop.f32.mrb[0].mxu0
  %v359 = vadd.f32 %v93, %v358
  %v360 = vpop.f32.mrb[0].mxu0
  %361 = vmatprep.mubr.bf16.mxu0 %v118
  %362 = vmatmul.mubr.bf16.gmra.mrb[0].mxu0 %v117
  %v363 = vpop.f32.mrb[0].mxu0
  %v364 = vadd.f32 %v93, %v363
  %v365 = vpop.f32.mrb[0].mxu0
  %v366 = vpop.f32.mrb[0].mxu0
  %v367 = vpop.f32.mrb[0].mxu0
  %368 = vdwg.mxu0
  %369 = vmatprep.subr.bf16.mxu0 0
  %370 = vmatpush1.bf16.msra.mxu0 %v273
  %371 = vmatprep.subr.bf16.mxu0 0
  %372 = vmatpush1.bf16.msra.mxu0 %v274
  %373 = vmatprep.subr.bf16.mxu0 0
  %374 = vmatpush1.bf16.msra.mxu0 %v275
  %375 = vmatprep.subr.bf16.mxu0 0
  %376 = vmatpush1.bf16.msra.mxu0 %v276
  %377 = vmatprep.subr.bf16.mxu0 0
  %378 = vmatpush1.bf16.msra.mxu0 %v277
  %379 = vmatprep.subr.bf16.mxu0 0
  %380 = vmatpush1.bf16.msra.mxu0 %v278
  %381 = vmatprep.subr.bf16.mxu0 0
  %382 = vmatpush1.bf16.msra.mxu0 %v279
  %383 = vmatprep.subr.bf16.mxu0 0
  %384 = vmatpush1.bf16.msra.mxu0 %v280
  %385 = vmatprep.subr.bf16.mxu0 0
  %386 = vmatpush1.bf16.msra.mxu0 %v281
  %387 = vmatprep.subr.bf16.mxu0 0
  %388 = vmatpush1.bf16.msra.mxu0 %v282
  %389 = vmatprep.subr.bf16.mxu0 0
  %390 = vmatpush1.bf16.msra.mxu0 %v283
  %391 = vmatprep.subr.bf16.mxu0 0
  %392 = vmatpush1.bf16.msra.mxu0 %v284
  %393 = vmatprep.subr.bf16.mxu0 0
  %394 = vmatpush1.bf16.msra.mxu0 %v285
  %395 = vmatprep.subr.bf16.mxu0 0
  %396 = vmatpush1.bf16.msra.mxu0 %v286
  %397 = vmatprep.subr.bf16.mxu0 0
  %398 = vmatpush1.bf16.msra.mxu0 %v287
  %399 = vmatprep.subr.bf16.mxu0 0
  %400 = vmatpush1.bf16.msra.mxu0 %v288
  %401 = vmatprep.mubr.bf16.mxu0 %v116
  %402 = vmatmul.mubr.bf16.gmra.mrb[0].mxu0 %v115
  %v403 = vpop.f32.mrb[0].mxu0
  %v404 = vadd.f32 %v356, %v403
  %v405 = vpop.f32.mrb[0].mxu0
  %v406 = vpop.f32.mrb[0].mxu0
  %v407 = vadd.f32 %v359, %v406
  %v408 = vpop.f32.mrb[0].mxu0
  %409 = vmatprep.mubr.bf16.mxu0 %v120
  %410 = vmatmul.mubr.bf16.gmra.mrb[0].mxu0 %v119
  %v411 = vpop.f32.mrb[0].mxu0
  %v412 = vadd.f32 %v364, %v411
  %v413 = vpop.f32.mrb[0].mxu0
  %v414 = vpop.f32.mrb[0].mxu0
  %v415 = vpop.f32.mrb[0].mxu0
  %416 = vdwg.mxu0
  %v417 = vld [vmem:[%s3] sm:$0xf]
  %v418 = vld [vmem:[%s3 + $0x4] sm:$0xf]
  %v419 = vld [vmem:[%s3 + $0x8] sm:$0x3]
  %v420 = vunpack.c.l.bf16 %v417
  %v421 = vunpack.c.l.bf16 %v418
  %v422 = vunpack.c.l.bf16 %v419
  %v423 = vadd.f32 %v404, %v420
  %v424 = vadd.f32 %v407, %v421
  %v425 = vadd.f32 %v412, %v422
  %v426 = vpack.c.bf16 %v424, %v423
  %v427 = vpack.c.bf16 %v425, %v425
  %v430 = vunpack.c.l.b16 %v426
  %v431 = vunpack.c.h.b16 %v426
  %v432 = vunpack.c.l.b16 %v427
  %v433 = vpack.c.b16 %v430, %v430
  %v434 = vpack.c.b16 %v431, %v431
  %v435 = vpack.c.b16 %v432, %v432
  %439 = vst [vmem:[%s4] sm:$0xf] %v433
  %440 = vst [vmem:[%s4 + $0x4] sm:$0xf] %v434
  %441 = vst [vmem:[%s4 + $0x8] sm:$0x3] %v435
  // Predicated region
  $region18: #{_lambda_.34} parent=0 // pred_check
    _
  $region19: #{_lambda_.34} parent=0 // pred_check_branch
    %443 = sbr.rel (0) target = $region21
  $region20: #{_lambda_.34} parent=0 // pred_region
    _
  $region21: #{_lambda_.34} parent=0 // pred_fallthru
    _
  // Predicated region
  $region22: #{_lambda_.34} parent=0 // pred_check
    _
  $region23: #{_lambda_.34} parent=0 // pred_check_branch
    %445 = sbr.rel (0) target = $region25
  $region24: #{_lambda_.34} parent=0 // pred_region
    _
  $region25: #{_lambda_.34} parent=0 // pred_fallthru
    _

// kernel: _lambda_.53
$region0: #{_lambda_.53}
  #allocation0 [shape = 'u32[]', space=smem, size = 0x4, offset = 0x4, fixed_abs, tag = 'smem constant byte address 0x4 - core index']
  #allocation1 [shape = 'u32[144,128]{1,0:T(1,128)}', space=vmem, size = 0x12000, scoped, tag = 'internal scratch']
  %s0 = inlined_call_operand.vmem [shape: bf16[16,128], index: 0, kind: input, shape index: {}]
  %s1 = inlined_call_operand.vmem [shape: f32[1,128], index: 1, kind: input, shape index: {}]
  %s2 = inlined_call_operand.vmem [shape: f32[1,128], index: 2, kind: input, shape index: {}]
  %s3 = inlined_call_operand.vmem [shape: bf16[128,128], index: 3, kind: input, shape index: {}]
  %s4 = inlined_call_operand.vmem [shape: f32[1,128], index: 4, kind: input, shape index: {}]
  %s5 = inlined_call_operand.vmem [shape: bf16[16,128], index: 5, kind: output, shape index: {}]
  %s6 = sld [smem:[#allocation0]]
  $region30: #{_lambda_.53} parent=0
    _
  %s8 = ssub.s32 1, %s6
  %s9 = scalar_select 0, %s8, %s6
  // Predicated region
  $region2: #{_lambda_.53} parent=0 // pred_check
    _
  $region3: #{_lambda_.53} parent=0 // pred_check_branch
    %11 = sbr.rel (0) target = $region5
  $region4: #{_lambda_.53} parent=0 // pred_region
    _
  $region5: #{_lambda_.53} parent=0 // pred_fallthru
    _
  // Predicated region
  $region6: #{_lambda_.53} parent=0 // pred_check
    _
  $region7: #{_lambda_.53} parent=0 // pred_check_branch
    %13 = sbr.rel (0) target = $region9
  $region8: #{_lambda_.53} parent=0 // pred_region
    _
  $region9: #{_lambda_.53} parent=0 // pred_fallthru
    _
  // Predicated region
  $region10: #{_lambda_.53} parent=0 // pred_check
    _
  $region11: #{_lambda_.53} parent=0 // pred_check_branch
    %15 = sbr.rel (0) target = $region13
  $region12: #{_lambda_.53} parent=0 // pred_region
    _
  $region13: #{_lambda_.53} parent=0 // pred_fallthru
    _
  // Predicated region
  $region14: #{_lambda_.53} parent=0 // pred_check
    _
  $region15: #{_lambda_.53} parent=0 // pred_check_branch
    %17 = sbr.rel (0) target = $region17
  $region16: #{_lambda_.53} parent=0 // pred_region
    _
  $region17: #{_lambda_.53} parent=0 // pred_fallthru
    _
  // Predicated region
  $region18: #{_lambda_.53} parent=0 // pred_check
    _
  $region19: #{_lambda_.53} parent=0 // pred_check_branch
    %19 = sbr.rel (0) target = $region21
  $region20: #{_lambda_.53} parent=0 // pred_region
    _
  $region21: #{_lambda_.53} parent=0 // pred_fallthru
    _
  %v21 = vld [vmem:[%s0] sm:$0xf]
  %v22 = vld [vmem:[%s0 + $0x4] sm:$0xf]
  %v23 = vunpack.c.l.bf16 %v21
  %v24 = vunpack.c.l.bf16 %v22
  %25 = vadd.xlane.f32.xlu0 %v23
  %v26 = vpop.xlane.xlu0 %25
  %27 = vadd.xlane.f32.xlu0 %v24
  %v28 = vpop.xlane.xlu0 %27
  %v29 = vrcp.pop 128.0
  %v30 = vmul.f32 %v26, %v29
  %v31 = vmul.f32 %v28, %v29
  %v32 = vsub.f32 %v23, %v30
  %v33 = vsub.f32 %v24, %v31
  %v34 = vmul.f32 %v32, %v32
  %v35 = vmul.f32 %v33, %v33
  %36 = vadd.xlane.f32.xlu0 %v34
  %v37 = vpop.xlane.xlu0 %36
  %38 = vadd.xlane.f32.xlu0 %v35
  %v39 = vpop.xlane.xlu0 %38
  %v40 = vmul.f32 %v37, %v29
  %v41 = vmul.f32 %v39, %v29
  %v42 = vadd.f32 %v40, 1e-06
  %v43 = vadd.f32 %v41, 1e-06
  %v44 = vrsqrt.pop %v42
  %v45 = vrsqrt.pop %v43
  %v46 = vmul.f32 %v32, %v44
  %v47 = vmul.f32 %v33, %v45
  %v48 = vld [vmem:[%s1] sm:$0x1]
  %v50 = vlaneseq
  %v51 = vshrl.u32 %v50, 7
  %v52 = vsub.s32 0, %v51
  %v53 = vrot.slane %v48, %v52
  %v55 = vmul.f32 %v46, %v53
  %v56 = vmul.f32 %v47, %v53
  %v57 = vld [vmem:[%s2] sm:$0x1]
  %v59 = vlaneseq
  %v60 = vshrl.u32 %v59, 7
  %v61 = vsub.s32 0, %v60
  %v62 = vrot.slane %v57, %v61
  %v64 = vadd.f32 %v55, %v62
  %v65 = vadd.f32 %v56, %v62
  %v66 = vpack.c.bf16 %v65, %v64
  %v67 = vld [vmem:[%s3] sm:$0xf]
  %v68 = vld [vmem:[%s3 + $0x4] sm:$0xf]
  %v69 = vld [vmem:[%s3 + $0x8] sm:$0xf]
  %v70 = vld [vmem:[%s3 + $0xc] sm:$0xf]
  %v71 = vld [vmem:[%s3 + $0x10] sm:$0xf]
  %v72 = vld [vmem:[%s3 + $0x14] sm:$0xf]
  %v73 = vld [vmem:[%s3 + $0x18] sm:$0xf]
  %v74 = vld [vmem:[%s3 + $0x1c] sm:$0xf]
  %v75 = vld [vmem:[%s3 + $0x20] sm:$0xf]
  %v76 = vld [vmem:[%s3 + $0x24] sm:$0xf]
  %v77 = vld [vmem:[%s3 + $0x28] sm:$0xf]
  %v78 = vld [vmem:[%s3 + $0x2c] sm:$0xf]
  %v79 = vld [vmem:[%s3 + $0x30] sm:$0xf]
  %v80 = vld [vmem:[%s3 + $0x34] sm:$0xf]
  %v81 = vld [vmem:[%s3 + $0x38] sm:$0xf]
  %v82 = vld [vmem:[%s3 + $0x3c] sm:$0xf]
  %v83 = vld [vmem:[%s4] sm:$0x1]
  %v85 = vlaneseq
  %v86 = vshrl.u32 %v85, 7
  %v87 = vsub.s32 0, %v86
  %v88 = vrot.slane %v83, %v87
  %v106 = vunpack.c.l.b16 %v67
  %v107 = vunpack.c.l.b16 %v68
  %v108 = vunpack.c.l.b16 %v69
  %v109 = vunpack.c.l.b16 %v70
  %v110 = vunpack.c.l.b16 %v71
  %v111 = vunpack.c.l.b16 %v72
  %v112 = vunpack.c.l.b16 %v73
  %v113 = vunpack.c.l.b16 %v74
  %v114 = vunpack.c.l.b16 %v75
  %v115 = vunpack.c.l.b16 %v76
  %v116 = vunpack.c.l.b16 %v77
  %v117 = vunpack.c.l.b16 %v78
  %v118 = vunpack.c.l.b16 %v79
  %v119 = vunpack.c.l.b16 %v80
  %v120 = vunpack.c.l.b16 %v81
  %v121 = vunpack.c.l.b16 %v82
  %v122 = vpack.c.b16 %v107, %v106
  %v123 = vpack.c.b16 %v109, %v108
  %v124 = vpack.c.b16 %v111, %v110
  %v125 = vpack.c.b16 %v113, %v112
  %v126 = vpack.c.b16 %v115, %v114
  %v127 = vpack.c.b16 %v117, %v116
  %v128 = vpack.c.b16 %v119, %v118
  %v129 = vpack.c.b16 %v121, %v120
  %138 = vmatprep.subr.bf16.mxu0 0
  %139 = vmatpush1.bf16.msra.mxu0 %v122
  %140 = vmatprep.subr.bf16.mxu0 0
  %141 = vmatpush1.bf16.msra.mxu0 %v123
  %142 = vmatprep.subr.bf16.mxu0 0
  %143 = vmatpush1.bf16.msra.mxu0 %v124
  %144 = vmatprep.subr.bf16.mxu0 0
  %145 = vmatpush1.bf16.msra.mxu0 %v125
  %146 = vmatprep.subr.bf16.mxu0 0
  %147 = vmatpush1.bf16.msra.mxu0 %v126
  %148 = vmatprep.subr.bf16.mxu0 0
  %149 = vmatpush1.bf16.msra.mxu0 %v127
  %150 = vmatprep.subr.bf16.mxu0 0
  %151 = vmatpush1.bf16.msra.mxu0 %v128
  %152 = vmatprep.subr.bf16.mxu0 0
  %153 = vmatpush1.bf16.msra.mxu0 %v129
  %154 = vmatprep.subr.bf16.mxu0 0
  %155 = vmatpush1.bf16.msra.mxu0 0
  %156 = vmatprep.subr.bf16.mxu0 0
  %157 = vmatpush1.bf16.msra.mxu0 0
  %158 = vmatprep.subr.bf16.mxu0 0
  %159 = vmatpush1.bf16.msra.mxu0 0
  %160 = vmatprep.subr.bf16.mxu0 0
  %161 = vmatpush1.bf16.msra.mxu0 0
  %162 = vmatprep.subr.bf16.mxu0 0
  %163 = vmatpush1.bf16.msra.mxu0 0
  %164 = vmatprep.subr.bf16.mxu0 0
  %165 = vmatpush1.bf16.msra.mxu0 0
  %166 = vmatprep.subr.bf16.mxu0 0
  %167 = vmatpush1.bf16.msra.mxu0 0
  %168 = vmatprep.subr.bf16.mxu0 0
  %169 = vmatpush1.bf16.msra.mxu0 0
  %170 = vmatprep.mubr.bf16.mxu0 0
  %171 = vmatmul.mubr.bf16.gmra.mrb[0].mxu0 %v66
  %v172 = vpop.f32.mrb[0].mxu0
  %v173 = vadd.f32 %v88, %v172
  %v174 = vpop.f32.mrb[0].mxu0
  %v175 = vpop.f32.mrb[0].mxu0
  %v176 = vadd.f32 %v88, %v175
  %v177 = vpop.f32.mrb[0].mxu0
  %178 = vdwg.mxu0
  %v179 = vpack.c.bf16 %v176, %v173
  %v181 = vunpack.c.l.b16 %v179
  %v182 = vunpack.c.h.b16 %v179
  %v183 = vpack.c.b16 %v181, %v181
  %v184 = vpack.c.b16 %v182, %v182
  %187 = vst [vmem:[%s5] sm:$0xf] %v183
  %188 = vst [vmem:[%s5 + $0x4] sm:$0xf] %v184
  // Predicated region
  $region22: #{_lambda_.53} parent=0 // pred_check
    _
  $region23: #{_lambda_.53} parent=0 // pred_check_branch
    %190 = sbr.rel (0) target = $region25
  $region24: #{_lambda_.53} parent=0 // pred_region
    _
  $region25: #{_lambda_.53} parent=0 // pred_fallthru
    _
  // Predicated region
  $region26: #{_lambda_.53} parent=0 // pred_check
    _
  $region27: #{_lambda_.53} parent=0 // pred_check_branch
    %192 = sbr.rel (0) target = $region29
  $region28: #{_lambda_.53} parent=0 // pred_region
    _
  $region29: #{_lambda_.53} parent=0 // pred_fallthru
    _

// kernel: _lambda_.54
$region0: #{_lambda_.54}
  #allocation0 [shape = 'u32[]', space=smem, size = 0x4, offset = 0x4, fixed_abs, tag = 'smem constant byte address 0x4 - core index']
  #allocation1 [shape = 'u32[144,128]{1,0:T(1,128)}', space=vmem, size = 0x12000, scoped, tag = 'internal scratch']
  %s0 = inlined_call_operand.vmem [shape: bf16[16,128], index: 0, kind: input, shape index: {}]
  %s1 = inlined_call_operand.vmem [shape: f32[1,128], index: 1, kind: input, shape index: {}]
  %s2 = inlined_call_operand.vmem [shape: f32[1,128], index: 2, kind: input, shape index: {}]
  %s3 = inlined_call_operand.vmem [shape: bf16[128,384], index: 3, kind: input, shape index: {}]
  %s4 = inlined_call_operand.vmem [shape: f32[1,384], index: 4, kind: input, shape index: {}]
  %s5 = inlined_call_operand.vmem [shape: bf16[16,384], index: 5, kind: output, shape index: {}]
  %s6 = sld [smem:[#allocation0]]
  $region131: #{_lambda_.54} parent=0
    _
  %s8 = ssub.s32 1, %s6
  %s9 = scalar_select 0, %s8, %s6
  $region1: #{_lambda_.54} parent=0
    #allocation2 [shape = 'u8[65536]{0}', space=vmem, size = 0x10000, scoped, tag = 'input window, operand 3']
    #allocation3 [shape = 'u8[8192]{0}', space=vmem, size = 0x2000, scoped, tag = 'output window, operand 0']
    loop: start=0, step=1, limit=5
    $region2: #{_lambda_.54} parent=1 // loop_pre_header
      _
    $region3: #{_lambda_.54} parent=1 // loop_header
      %s11 = sphi 0, %s15
      %p12 = scmp.ge.s32.totalorder %s11, 5
      %s18 = sphi 0, %s30
      %s19 = sphi 0, %s26
      %s20 = sphi 0, %s18
      %s21 = sphi 0, %s19
      %s22 = sphi 0, %s20
      %s23 = sphi 0, %s21
      %s33 = sphi 0, %s35
      %s36 = sphi 0, %s33
      %s37 = sphi 0, %s36
      %s53 = sphi 0, %s37
      %s57 = sphi 0, %s57
      %s59 = sphi 0, %s57
      %s60 = sphi 0, %s59
      %s74 = sphi 0, %s60
      %s78 = sphi 0, %s78
      %s80 = sphi 0, %s78
      %s81 = sphi 0, %s80
      %s95 = sphi 0, %s81
      %s101 = sphi 0, %s103
      %s104 = sphi 0, %s101
      %s105 = sphi 0, %s104
      %s121 = sphi 0, %s105
      %s127 = sphi 0, %s129
      %s130 = sphi 0, %s127
      %s131 = sphi 0, %s130
      %s147 = sphi 0, %s131
      %s155 = sphi 0, %s157
      %s158 = sphi 0, %s155
      %s159 = sphi 0, %s158
      %s175 = sphi 0, %s159
    $region4: #{_lambda_.54} parent=1 // loop_header_branch
      %14 = sbr.rel (%p12) target = $region8
    $region5: #{_lambda_.54} parent=1 // loop_body
      %s16 = ssub.s32 %s11, 1
      %s17 = ssub.s32 %s11, 2
      %s24 = sadd.s32 1, %s19
      %p25 = scmp.ge.s32.totalorder %s24, 3
      %s26 = scalar_select %p25, 0, %s24
      %s27 = sadd.s32 1, %s18
      %s28 = scalar_select %p25, %s27, %s18
      %p29 = scmp.ge.s32.totalorder %s28, 1
      %s30 = scalar_select %p29, 0, %s28
      %s31 = ssub.s32 %s18, %s30
      %p32 = scmp.eq.s32.totalorder %s31, 0
      %s34 = sadd.s32 %s33, 1
      %s35 = scalar_select %p32, %s33, %s34
      %p38 = pneg %p32
      %p39 = scmp.eq.s32.totalorder %s11, 2
      %p40 = por %p38, %p39
      %p41 = scmp.ne.s32.totalorder %s33, %s36
      %p42 = scmp.eq.s32.totalorder %s11, 0
      %p43 = por %p41, %p42
      %p44 = scmp.ne.s32.totalorder %s33, %s36
      %p45 = scmp.eq.s32.totalorder %s16, 2
      %p46 = por %p44, %p45
      %p47 = scmp.ne.s32.totalorder %s36, %s37
      %p48 = scmp.eq.s32.totalorder %s16, 0
      %p49 = por %p47, %p48
      %p50 = scmp.ne.s32.totalorder %s36, %s37
      %p51 = scmp.eq.s32.totalorder %s17, 2
      %p52 = por %p50, %p51
      %p54 = scmp.ne.s32.totalorder %s37, %s53
      %p55 = scmp.eq.s32.totalorder %s17, 0
      %p56 = por %p54, %p55
      %s58 = sadd.s32 %s57, 1
      %p61 = scmp.eq.s32.totalorder %s11, 2
      %p62 = scmp.ne.s32.totalorder %s57, %s59
      %p63 = scmp.eq.s32.totalorder %s11, 0
      %p64 = por %p62, %p63
      %p65 = scmp.ne.s32.totalorder %s57, %s59
      %p66 = scmp.eq.s32.totalorder %s16, 2
      %p67 = por %p65, %p66
      %p68 = scmp.ne.s32.totalorder %s59, %s60
      %p69 = scmp.eq.s32.totalorder %s16, 0
      %p70 = por %p68, %p69
      %p71 = scmp.ne.s32.totalorder %s59, %s60
      %p72 = scmp.eq.s32.totalorder %s17, 2
      %p73 = por %p71, %p72
      %p75 = scmp.ne.s32.totalorder %s60, %s74
      %p76 = scmp.eq.s32.totalorder %s17, 0
      %p77 = por %p75, %p76
      %s79 = sadd.s32 %s78, 1
      %p82 = scmp.eq.s32.totalorder %s11, 2
      %p83 = scmp.ne.s32.totalorder %s78, %s80
      %p84 = scmp.eq.s32.totalorder %s11, 0
      %p85 = por %p83, %p84
      %p86 = scmp.ne.s32.totalorder %s78, %s80
      %p87 = scmp.eq.s32.totalorder %s16, 2
      %p88 = por %p86, %p87
      %p89 = scmp.ne.s32.totalorder %s80, %s81
      %p90 = scmp.eq.s32.totalorder %s16, 0
      %p91 = por %p89, %p90
      %p92 = scmp.ne.s32.totalorder %s80, %s81
      %p93 = scmp.eq.s32.totalorder %s17, 2
      %p94 = por %p92, %p93
      %p96 = scmp.ne.s32.totalorder %s81, %s95
      %p97 = scmp.eq.s32.totalorder %s17, 0
      %p98 = por %p96, %p97
      %s99 = ssub.s32 %s19, %s26
      %p100 = scmp.eq.s32.totalorder %s99, 0
      %s102 = sadd.s32 %s101, 1
      %s103 = scalar_select %p100, %s101, %s102
      %p106 = pneg %p100
      %p107 = scmp.eq.s32.totalorder %s11, 2
      %p108 = por %p106, %p107
      %p109 = scmp.ne.s32.totalorder %s101, %s104
      %p110 = scmp.eq.s32.totalorder %s11, 0
      %p111 = por %p109, %p110
      %p112 = scmp.ne.s32.totalorder %s101, %s104
      %p113 = scmp.eq.s32.totalorder %s16, 2
      %p114 = por %p112, %p113
      %p115 = scmp.ne.s32.totalorder %s104, %s105
      %p116 = scmp.eq.s32.totalorder %s16, 0
      %p117 = por %p115, %p116
      %p118 = scmp.ne.s32.totalorder %s104, %s105
      %p119 = scmp.eq.s32.totalorder %s17, 2
      %p120 = por %p118, %p119
      %p122 = scmp.ne.s32.totalorder %s105, %s121
      %p123 = scmp.eq.s32.totalorder %s17, 0
      %p124 = por %p122, %p123
      %s125 = ssub.s32 %s19, %s26
      %p126 = scmp.eq.s32.totalorder %s125, 0
      %s128 = sadd.s32 %s127, 1
      %s129 = scalar_select %p126, %s127, %s128
      %p132 = pneg %p126
      %p133 = scmp.eq.s32.totalorder %s11, 2
      %p134 = por %p132, %p133
      %p135 = scmp.ne.s32.totalorder %s127, %s130
      %p136 = scmp.eq.s32.totalorder %s11, 0
      %p137 = por %p135, %p136
      %p138 = scmp.ne.s32.totalorder %s127, %s130
      %p139 = scmp.eq.s32.totalorder %s16, 2
      %p140 = por %p138, %p139
      %p141 = scmp.ne.s32.totalorder %s130, %s131
      %p142 = scmp.eq.s32.totalorder %s16, 0
      %p143 = por %p141, %p142
      %p144 = scmp.ne.s32.totalorder %s130, %s131
      %p145 = scmp.eq.s32.totalorder %s17, 2
      %p146 = por %p144, %p145
      %p148 = scmp.ne.s32.totalorder %s131, %s147
      %p149 = scmp.eq.s32.totalorder %s17, 0
      %p150 = por %p148, %p149
      %s151 = ssub.s32 %s18, %s30
      %s152 = ssub.s32 %s19, %s26
      %s153 = sor.u32 %s151, %s152
      %p154 = scmp.eq.s32.totalorder %s153, 0
      %s156 = sadd.s32 %s155, 1
      %s157 = scalar_select %p154, %s155, %s156
      %p160 = pneg %p154
      %p161 = scmp.eq.s32.totalorder %s11, 2
      %p162 = por %p160, %p161
      %p163 = scmp.ne.s32.totalorder %s155, %s158
      %p164 = scmp.eq.s32.totalorder %s11, 0
      %p165 = por %p163, %p164
      %p166 = scmp.ne.s32.totalorder %s155, %s158
      %p167 = scmp.eq.s32.totalorder %s16, 2
      %p168 = por %p166, %p167
      %p169 = scmp.ne.s32.totalorder %s158, %s159
      %p170 = scmp.eq.s32.totalorder %s16, 0
      %p171 = por %p169, %p170
      %p172 = scmp.ne.s32.totalorder %s158, %s159
      %p173 = scmp.eq.s32.totalorder %s17, 2
      %p174 = por %p172, %p173
      %p176 = scmp.ne.s32.totalorder %s159, %s175
      %p177 = scmp.eq.s32.totalorder %s17, 0
      %p178 = por %p176, %p177
      %p179 = scmp.le.s32.totalorder 1, %s11
      %p180 = scmp.lt.s32.totalorder %s11, 4
      %p181 = pnand %p179, %p180
      %p182 = pneg %p181
      // Predicated region
      $region9: #{_lambda_.54} parent=5 // pred_check
        _
      $region10: #{_lambda_.54} parent=5 // pred_check_branch
        %184 = sbr.rel (%p181) target = $region12
      $region11: #{_lambda_.54} parent=5 // pred_region
        %s185 = ssub.s32 %s11, 1
        // Predicated region
        $region13: #{_lambda_.54} parent=11 // pred_check
          %p186 = pneg %p49
        $region14: #{_lambda_.54} parent=11 // pred_check_branch
          %188 = sbr.rel (%p186) target = $region16
        $region15: #{_lambda_.54} parent=11 // pred_region
          %s189 = smul.u32 2, %s20
          %p190 = scmp.lt.s32.totalorder %s189, 1
          %s191 = scalar_select %p190, %s189, 1
          %s192 = smul.addr %s191, 4
          %s193 = scalar_lea.vmem %s0, %s192
          %s194 = smul.u32 2, %s20
        $region16: #{_lambda_.54} parent=11 // pred_fallthru
          _
        // Predicated region
        $region17: #{_lambda_.54} parent=11 // pred_check
          %p195 = pneg %p70
        $region18: #{_lambda_.54} parent=11 // pred_check_branch
          %197 = sbr.rel (%p195) target = $region20
        $region19: #{_lambda_.54} parent=11 // pred_region
          _
        $region20: #{_lambda_.54} parent=11 // pred_fallthru
          _
        // Predicated region
        $region21: #{_lambda_.54} parent=11 // pred_check
          %p198 = pneg %p91
        $region22: #{_lambda_.54} parent=11 // pred_check_branch
          %200 = sbr.rel (%p198) target = $region24
        $region23: #{_lambda_.54} parent=11 // pred_region
          _
        $region24: #{_lambda_.54} parent=11 // pred_fallthru
          _
      $region12: #{_lambda_.54} parent=5 // pred_fallthru
        _
      %p201 = scmp.lt.s32.totalorder %s11, 3
      // Predicated region
      $region25: #{_lambda_.54} parent=5 // pred_check
        %p202 = pneg %p201
      $region26: #{_lambda_.54} parent=5 // pred_check_branch
        %204 = sbr.rel (%p202) target = $region28
      $region27: #{_lambda_.54} parent=5 // pred_region
        // Predicated region
        $region29: #{_lambda_.54} parent=27 // pred_check
          %p205 = pneg %p111
        $region30: #{_lambda_.54} parent=27 // pred_check_branch
          %207 = sbr.rel (%p205) target = $region32
        $region31: #{_lambda_.54} parent=27 // pred_region
          %s208 = sand.u32 %s101, 1
          %s209 = sand.u32 %s101, 1
          %s210 = smul.addr %s209, 64
          %s211 = scalar_lea.vmem [#allocation2], %s210
          %s212 = smul.addr %s19, 4
          %s213 = scalar_lea.vmem %s3, %s212
          // Predicated region
          $region33: #{_lambda_.54} parent=31 // pred_check
            _
          $region34: #{_lambda_.54} parent=31 // pred_check_branch
            %215 = sbr.rel (0) target = $region36
          $region35: #{_lambda_.54} parent=31 // pred_region
            // Predicated region
            $region37: #{_lambda_.54} parent=35 // pred_check
              _
            $region38: #{_lambda_.54} parent=35 // pred_check_branch
              %217 = sbr.rel target = $region40
            $region39: #{_lambda_.54} parent=35 // pred_region
              // Predicated region
              $region52: #{_lambda_.54} parent=39 // pred_check
                _
              $region53: #{_lambda_.54} parent=39 // pred_check_branch
                %262 = sbr.rel (0) target = $region55
              $region54: #{_lambda_.54} parent=39 // pred_region
                loop: start=0, step=1, limit=1
                $region56: #{_lambda_.54} parent=54 // loop_pre_header
                  _
                $region57: #{_lambda_.54} parent=54 // loop_header
                  %s264 = sphi 0, %s268
                  %p265 = scmp.ge.s32.totalorder %s264, 1
                  %s269 = sphi %s213, %s213
                  %s270 = sphi %s211, %s211
                $region58: #{_lambda_.54} parent=54 // loop_header_branch
                  %267 = sbr.rel (%p265) target = $region62
                $region59: #{_lambda_.54} parent=54 // loop_body
                  _
                $region60: #{_lambda_.54} parent=54 // loop_footer
                  %s268 = sadd.s32 1, %s264
                $region61: #{_lambda_.54} parent=54 // loop_footer_branch
                  %263 = sbr.rel target = $region57
                $region62: #{_lambda_.54} parent=54 // loop_exit
                  _
                loop: start=0, step=1, limit=1
                $region63: #{_lambda_.54} parent=54 // loop_pre_header
                  _
                $region64: #{_lambda_.54} parent=54 // loop_header
                  %s273 = sphi 0, %s277
                  %p274 = scmp.ge.s32.totalorder %s273, 1
                  %s278 = sphi %s213, %s213
                  %s279 = sphi %s211, %s211
                $region65: #{_lambda_.54} parent=54 // loop_header_branch
                  %276 = sbr.rel (%p274) target = $region69
                $region66: #{_lambda_.54} parent=54 // loop_body
                  %v280 = vld [vmem:[%s278] sm:$0xf]
                  %281 = vst [vmem:[%s279] sm:$0xf] %v280
                  %v282 = vld [vmem:[%s278 + $0xc] sm:$0xf]
                  %283 = vst [vmem:[%s279 + $0x4] sm:$0xf] %v282
                  %v284 = vld [vmem:[%s278 + $0x18] sm:$0xf]
                  %285 = vst [vmem:[%s279 + $0x8] sm:$0xf] %v284
                  %v286 = vld [vmem:[%s278 + $0x24] sm:$0xf]
                  %287 = vst [vmem:[%s279 + $0xc] sm:$0xf] %v286
                  %v288 = vld [vmem:[%s278 + $0x30] sm:$0xf]
                  %289 = vst [vmem:[%s279 + $0x10] sm:$0xf] %v288
                  %v290 = vld [vmem:[%s278 + $0x3c] sm:$0xf]
                  %291 = vst [vmem:[%s279 + $0x14] sm:$0xf] %v290
                  %v292 = vld [vmem:[%s278 + $0x48] sm:$0xf]
                  %293 = vst [vmem:[%s279 + $0x18] sm:$0xf] %v292
                  %v294 = vld [vmem:[%s278 + $0x54] sm:$0xf]
                  %295 = vst [vmem:[%s279 + $0x1c] sm:$0xf] %v294
                  %v296 = vld [vmem:[%s278 + $0x60] sm:$0xf]
                  %297 = vst [vmem:[%s279 + $0x20] sm:$0xf] %v296
                  %v298 = vld [vmem:[%s278 + $0x6c] sm:$0xf]
                  %299 = vst [vmem:[%s279 + $0x24] sm:$0xf] %v298
                  %v300 = vld [vmem:[%s278 + $0x78] sm:$0xf]
                  %301 = vst [vmem:[%s279 + $0x28] sm:$0xf] %v300
                  %v302 = vld [vmem:[%s278 + $0x84] sm:$0xf]
                  %303 = vst [vmem:[%s279 + $0x2c] sm:$0xf] %v302
                  %v304 = vld [vmem:[%s278 + $0x90] sm:$0xf]
                  %305 = vst [vmem:[%s279 + $0x30] sm:$0xf] %v304
                  %v306 = vld [vmem:[%s278 + $0x9c] sm:$0xf]
                  %307 = vst [vmem:[%s279 + $0x34] sm:$0xf] %v306
                  %v308 = vld [vmem:[%s278 + $0xa8] sm:$0xf]
                  %309 = vst [vmem:[%s279 + $0x38] sm:$0xf] %v308
                  %v310 = vld [vmem:[%s278 + $0xb4] sm:$0xf]
                  %311 = vst [vmem:[%s279 + $0x3c] sm:$0xf] %v310
                $region67: #{_lambda_.54} parent=54 // loop_footer
                  %s277 = sadd.s32 1, %s273
                $region68: #{_lambda_.54} parent=54 // loop_footer_branch
                  %272 = sbr.rel target = $region64
                $region69: #{_lambda_.54} parent=54 // loop_exit
                  _
              $region55: #{_lambda_.54} parent=39 // pred_fallthru
                _
            $region40: #{_lambda_.54} parent=35 // pred_fallthru
              _
            // Predicated region
            $region41: #{_lambda_.54} parent=35 // pred_check
              _
            $region42: #{_lambda_.54} parent=35 // pred_check_branch
              %219 = sbr.rel (0) target = $region44
            $region43: #{_lambda_.54} parent=35 // pred_region
              loop: start=0, step=1, limit=1
              $region45: #{_lambda_.54} parent=43 // loop_pre_header
                _
              $region46: #{_lambda_.54} parent=43 // loop_header
                %s222 = sphi 0, %s226
                %p223 = scmp.ge.s32.totalorder %s222, 1
                %s227 = sphi %s213, %s213
                %s228 = sphi %s211, %s211
              $region47: #{_lambda_.54} parent=43 // loop_header_branch
                %225 = sbr.rel (%p223) target = $region51
              $region48: #{_lambda_.54} parent=43 // loop_body
                %v229 = vld [vmem:[%s227] sm:$0xf]
                %230 = vst [vmem:[%s228] sm:$0xf] %v229
                %v231 = vld [vmem:[%s227 + $0xc] sm:$0xf]
                %232 = vst [vmem:[%s228 + $0x4] sm:$0xf] %v231
                %v233 = vld [vmem:[%s227 + $0x18] sm:$0xf]
                %234 = vst [vmem:[%s228 + $0x8] sm:$0xf] %v233
                %v235 = vld [vmem:[%s227 + $0x24] sm:$0xf]
                %236 = vst [vmem:[%s228 + $0xc] sm:$0xf] %v235
                %v237 = vld [vmem:[%s227 + $0x30] sm:$0xf]
                %238 = vst [vmem:[%s228 + $0x10] sm:$0xf] %v237
                %v239 = vld [vmem:[%s227 + $0x3c] sm:$0xf]
                %240 = vst [vmem:[%s228 + $0x14] sm:$0xf] %v239
                %v241 = vld [vmem:[%s227 + $0x48] sm:$0xf]
                %242 = vst [vmem:[%s228 + $0x18] sm:$0xf] %v241
                %v243 = vld [vmem:[%s227 + $0x54] sm:$0xf]
                %244 = vst [vmem:[%s228 + $0x1c] sm:$0xf] %v243
                %v245 = vld [vmem:[%s227 + $0x60] sm:$0xf]
                %246 = vst [vmem:[%s228 + $0x20] sm:$0xf] %v245
                %v247 = vld [vmem:[%s227 + $0x6c] sm:$0xf]
                %248 = vst [vmem:[%s228 + $0x24] sm:$0xf] %v247
                %v249 = vld [vmem:[%s227 + $0x78] sm:$0xf]
                %250 = vst [vmem:[%s228 + $0x28] sm:$0xf] %v249
                %v251 = vld [vmem:[%s227 + $0x84] sm:$0xf]
                %252 = vst [vmem:[%s228 + $0x2c] sm:$0xf] %v251
                %v253 = vld [vmem:[%s227 + $0x90] sm:$0xf]
                %254 = vst [vmem:[%s228 + $0x30] sm:$0xf] %v253
                %v255 = vld [vmem:[%s227 + $0x9c] sm:$0xf]
                %256 = vst [vmem:[%s228 + $0x34] sm:$0xf] %v255
                %v257 = vld [vmem:[%s227 + $0xa8] sm:$0xf]
                %258 = vst [vmem:[%s228 + $0x38] sm:$0xf] %v257
                %v259 = vld [vmem:[%s227 + $0xb4] sm:$0xf]
                %260 = vst [vmem:[%s228 + $0x3c] sm:$0xf] %v259
              $region49: #{_lambda_.54} parent=43 // loop_footer
                %s226 = sadd.s32 1, %s222
              $region50: #{_lambda_.54} parent=43 // loop_footer_branch
                %221 = sbr.rel target = $region46
              $region51: #{_lambda_.54} parent=43 // loop_exit
                _
            $region44: #{_lambda_.54} parent=35 // pred_fallthru
              _
          $region36: #{_lambda_.54} parent=31 // pred_fallthru
            _
          %312 = vnop
        $region32: #{_lambda_.54} parent=27 // pred_fallthru
          _
        // Predicated region
        $region70: #{_lambda_.54} parent=27 // pred_check
          %p313 = pneg %p137
        $region71: #{_lambda_.54} parent=27 // pred_check_branch
          %315 = sbr.rel (%p313) target = $region73
        $region72: #{_lambda_.54} parent=27 // pred_region
          %p316 = scmp.lt.s32.totalorder %s19, 2
          %s317 = scalar_select %p316, %s19, 2
          %s318 = scalar_lea.vmem %s4, %s317
        $region73: #{_lambda_.54} parent=27 // pred_fallthru
          _
      $region28: #{_lambda_.54} parent=5 // pred_fallthru
        _
      %p319 = scmp.le.s32.totalorder 1, %s11
      %p320 = scmp.lt.s32.totalorder %s11, 4
      %p321 = pnand %p319, %p320
      %p322 = pneg %p321
      // Predicated region
      $region74: #{_lambda_.54} parent=5 // pred_check
        _
      $region75: #{_lambda_.54} parent=5 // pred_check_branch
        %324 = sbr.rel (%p321) target = $region77
      $region76: #{_lambda_.54} parent=5 // pred_region
        %s325 = ssub.s32 %s11, 1
        %s326 = sand.u32 %s104, 1
        %s327 = sand.u32 %s104, 1
        %s328 = smul.addr %s327, 64
        %s329 = scalar_lea.vmem [#allocation2], %s328
        // Predicated region
        $region78: #{_lambda_.54} parent=76 // pred_check
          %p330 = pneg %p117
        $region79: #{_lambda_.54} parent=76 // pred_check_branch
          %332 = sbr.rel (%p330) target = $region81
        $region80: #{_lambda_.54} parent=76 // pred_region
          _
        $region81: #{_lambda_.54} parent=76 // pred_fallthru
          _
        %s333 = smul.u32 2, %s20
        %p334 = scmp.lt.s32.totalorder %s333, 1
        %s335 = scalar_select %p334, %s333, 1
        %s336 = smul.addr %s335, 4
        %s337 = scalar_lea.vmem %s0, %s336
        %p338 = pneg %p49
        %p339 = pneg %p46
        %p340 = pneg %p70
        %p341 = pneg %p67
        %p342 = pneg %p91
        %p343 = pneg %p88
        %s344 = sand.u32 %s104, 1
        %s345 = sand.u32 %s104, 1
        %s346 = smul.addr %s345, 64
        %s347 = scalar_lea.vmem [#allocation2], %s346
        %p348 = pneg %p117
        %p349 = pneg %p114
        %p350 = scmp.lt.s32.totalorder %s21, 2
        %s351 = scalar_select %p350, %s21, 2
        %s352 = scalar_lea.vmem %s4, %s351
        %p353 = pneg %p143
        %p354 = pneg %p140
        %p355 = pneg %p171
        %p356 = pneg %p168
        %s357 = sand.u32 %s158, 1
        %s358 = sand.u32 %s158, 1
        %s359 = smul.addr %s358, 8
        %s360 = scalar_lea.vmem [#allocation3], %s359
        %s361 = smul.u32 2, %s20
        %p362 = scmp.lt.s32.totalorder %s361, 1
        %s363 = scalar_select %p362, %s361, 1
        %s364 = smul.addr %s363, 4
        %s365 = scalar_lea.vmem %s0, %s364
        %s366 = smul.u32 2, %s20
        %p367 = scmp.lt.s32.totalorder %s21, 2
        %s368 = scalar_select %p367, %s21, 2
        %s369 = scalar_lea.vmem %s4, %s368
        %s370 = smul.u32 2, %s20
        %v372 = vld [vmem:[%s365] sm:$0xf]
        %v373 = vld [vmem:[%s365 + $0x4] sm:$0xf]
        %v374 = vunpack.c.l.bf16 %v372
        %v375 = vunpack.c.l.bf16 %v373
        %376 = vadd.xlane.f32.xlu0 %v374
        %v377 = vpop.xlane.xlu0 %376
        %378 = vadd.xlane.f32.xlu0 %v375
        %v379 = vpop.xlane.xlu0 %378
        %v380 = vrcp.pop 128.0
        %v381 = vmul.f32 %v377, %v380
        %v382 = vmul.f32 %v379, %v380
        %v383 = vsub.f32 %v374, %v381
        %v384 = vsub.f32 %v375, %v382
        %v385 = vmul.f32 %v383, %v383
        %v386 = vmul.f32 %v384, %v384
        %387 = vadd.xlane.f32.xlu0 %v385
        %v388 = vpop.xlane.xlu0 %387
        %389 = vadd.xlane.f32.xlu0 %v386
        %v390 = vpop.xlane.xlu0 %389
        %v391 = vmul.f32 %v388, %v380
        %v392 = vmul.f32 %v390, %v380
        %v393 = vadd.f32 %v391, 1e-06
        %v394 = vadd.f32 %v392, 1e-06
        %v395 = vrsqrt.pop %v393
        %v396 = vrsqrt.pop %v394
        %v397 = vmul.f32 %v383, %v395
        %v398 = vmul.f32 %v384, %v396
        %v399 = vld [vmem:[%s1] sm:$0x1]
        %v401 = vlaneseq
        %v402 = vshrl.u32 %v401, 7
        %v403 = vsub.s32 0, %v402
        %v404 = vrot.slane %v399, %v403
        %v406 = vmul.f32 %v397, %v404
        %v407 = vmul.f32 %v398, %v404
        %v408 = vld [vmem:[%s2] sm:$0x1]
        %v410 = vlaneseq
        %v411 = vshrl.u32 %v410, 7
        %v412 = vsub.s32 0, %v411
        %v413 = vrot.slane %v408, %v412
        %v415 = vadd.f32 %v406, %v413
        %v416 = vadd.f32 %v407, %v413
        %v417 = vpack.c.bf16 %v416, %v415
        %v418 = vld [vmem:[%s329] sm:$0xf]
        %v419 = vld [vmem:[%s329 + $0x4] sm:$0xf]
        %v420 = vld [vmem:[%s329 + $0x8] sm:$0xf]
        %v421 = vld [vmem:[%s329 + $0xc] sm:$0xf]
        %v422 = vld [vmem:[%s329 + $0x10] sm:$0xf]
        %v423 = vld [vmem:[%s329 + $0x14] sm:$0xf]
        %v424 = vld [vmem:[%s329 + $0x18] sm:$0xf]
        %v425 = vld [vmem:[%s329 + $0x1c] sm:$0xf]
        %v426 = vld [vmem:[%s329 + $0x20] sm:$0xf]
        %v427 = vld [vmem:[%s329 + $0x24] sm:$0xf]
        %v428 = vld [vmem:[%s329 + $0x28] sm:$0xf]
        %v429 = vld [vmem:[%s329 + $0x2c] sm:$0xf]
        %v430 = vld [vmem:[%s329 + $0x30] sm:$0xf]
        %v431 = vld [vmem:[%s329 + $0x34] sm:$0xf]
        %v432 = vld [vmem:[%s329 + $0x38] sm:$0xf]
        %v433 = vld [vmem:[%s329 + $0x3c] sm:$0xf]
        %v434 = vld [vmem:[%s369] sm:$0x1]
        %v436 = vlaneseq
        %v437 = vshrl.u32 %v436, 7
        %v438 = vsub.s32 0, %v437
        %v439 = vrot.slane %v434, %v438
        %v457 = vunpack.c.l.b16 %v418
        %v458 = vunpack.c.l.b16 %v419
        %v459 = vunpack.c.l.b16 %v420
        %v460 = vunpack.c.l.b16 %v421
        %v461 = vunpack.c.l.b16 %v422
        %v462 = vunpack.c.l.b16 %v423
        %v463 = vunpack.c.l.b16 %v424
        %v464 = vunpack.c.l.b16 %v425
        %v465 = vunpack.c.l.b16 %v426
        %v466 = vunpack.c.l.b16 %v427
        %v467 = vunpack.c.l.b16 %v428
        %v468 = vunpack.c.l.b16 %v429
        %v469 = vunpack.c.l.b16 %v430
        %v470 = vunpack.c.l.b16 %v431
        %v471 = vunpack.c.l.b16 %v432
        %v472 = vunpack.c.l.b16 %v433
        %v473 = vpack.c.b16 %v458, %v457
        %v474 = vpack.c.b16 %v460, %v459
        %v475 = vpack.c.b16 %v462, %v461
        %v476 = vpack.c.b16 %v464, %v463
        %v477 = vpack.c.b16 %v466, %v465
        %v478 = vpack.c.b16 %v468, %v467
        %v479 = vpack.c.b16 %v470, %v469
        %v480 = vpack.c.b16 %v472, %v471
        %489 = vmatprep.subr.bf16.mxu0 0
        %490 = vmatpush1.bf16.msra.mxu0 %v473
        %491 = vmatprep.subr.bf16.mxu0 0
        %492 = vmatpush1.bf16.msra.mxu0 %v474
        %493 = vmatprep.subr.bf16.mxu0 0
        %494 = vmatpush1.bf16.msra.mxu0 %v475
        %495 = vmatprep.subr.bf16.mxu0 0
        %496 = vmatpush1.bf16.msra.mxu0 %v476
        %497 = vmatprep.subr.bf16.mxu0 0
        %498 = vmatpush1.bf16.msra.mxu0 %v477
        %499 = vmatprep.subr.bf16.mxu0 0
        %500 = vmatpush1.bf16.msra.mxu0 %v478
        %501 = vmatprep.subr.bf16.mxu0 0
        %502 = vmatpush1.bf16.msra.mxu0 %v479
        %503 = vmatprep.subr.bf16.mxu0 0
        %504 = vmatpush1.bf16.msra.mxu0 %v480
        %505 = vmatprep.subr.bf16.mxu0 0
        %506 = vmatpush1.bf16.msra.mxu0 0
        %507 = vmatprep.subr.bf16.mxu0 0
        %508 = vmatpush1.bf16.msra.mxu0 0
        %509 = vmatprep.subr.bf16.mxu0 0
        %510 = vmatpush1.bf16.msra.mxu0 0
        %511 = vmatprep.subr.bf16.mxu0 0
        %512 = vmatpush1.bf16.msra.mxu0 0
        %513 = vmatprep.subr.bf16.mxu0 0
        %514 = vmatpush1.bf16.msra.mxu0 0
        %515 = vmatprep.subr.bf16.mxu0 0
        %516 = vmatpush1.bf16.msra.mxu0 0
        %517 = vmatprep.subr.bf16.mxu0 0
        %518 = vmatpush1.bf16.msra.mxu0 0
        %519 = vmatprep.subr.bf16.mxu0 0
        %520 = vmatpush1.bf16.msra.mxu0 0
        %521 = vmatprep.mubr.bf16.mxu0 0
        %522 = vmatmul.mubr.bf16.gmra.mrb[0].mxu0 %v417
        %v523 = vpop.f32.mrb[0].mxu0
        %v524 = vadd.f32 %v439, %v523
        %v525 = vpop.f32.mrb[0].mxu0
        %v526 = vpop.f32.mrb[0].mxu0
        %v527 = vadd.f32 %v439, %v526
        %v528 = vpop.f32.mrb[0].mxu0
        %529 = vdwg.mxu0
        %v530 = vpack.c.bf16 %v527, %v524
        %v532 = vunpack.c.l.b16 %v530
        %v533 = vunpack.c.h.b16 %v530
        %v534 = vpack.c.b16 %v532, %v532
        %v535 = vpack.c.b16 %v533, %v533
        %538 = vst [vmem:[%s360] sm:$0xf] %v534
        %539 = vst [vmem:[%s360 + $0x4] sm:$0xf] %v535
        %s540 = sand.u32 %s158, 1
        %s541 = sand.u32 %s158, 1
        %s542 = smul.addr %s541, 8
        %s543 = scalar_lea.vmem [#allocation3], %s542
        // Predicated region
        $region82: #{_lambda_.54} parent=76 // pred_check
          %p544 = pneg %p168
        $region83: #{_lambda_.54} parent=76 // pred_check_branch
          %546 = sbr.rel (%p544) target = $region85
        $region84: #{_lambda_.54} parent=76 // pred_region
          %s547 = smul.u32 2, %s20
          %s548 = smul.addr %s547, 3
          %s549 = sadd.s32 %s21, %s548
          %s550 = smul.addr %s549, 4
          %s551 = scalar_lea.vmem %s5, %s550
          // Predicated region
          $region86: #{_lambda_.54} parent=84 // pred_check
            _
          $region87: #{_lambda_.54} parent=84 // pred_check_branch
            %553 = sbr.rel (0) target = $region89
          $region88: #{_lambda_.54} parent=84 // pred_region
            // Predicated region
            $region90: #{_lambda_.54} parent=88 // pred_check
              _
            $region91: #{_lambda_.54} parent=88 // pred_check_branch
              %555 = sbr.rel target = $region93
            $region92: #{_lambda_.54} parent=88 // pred_region
              // Predicated region
              $region105: #{_lambda_.54} parent=92 // pred_check
                _
              $region106: #{_lambda_.54} parent=92 // pred_check_branch
                %572 = sbr.rel (0) target = $region108
              $region107: #{_lambda_.54} parent=92 // pred_region
                loop: start=0, step=1, limit=1
                $region109: #{_lambda_.54} parent=107 // loop_pre_header
                  _
                $region110: #{_lambda_.54} parent=107 // loop_header
                  %s574 = sphi 0, %s578
                  %p575 = scmp.ge.s32.totalorder %s574, 1
                  %s579 = sphi %s543, %s543
                  %s580 = sphi %s551, %s551
                $region111: #{_lambda_.54} parent=107 // loop_header_branch
                  %577 = sbr.rel (%p575) target = $region115
                $region112: #{_lambda_.54} parent=107 // loop_body
                  _
                $region113: #{_lambda_.54} parent=107 // loop_footer
                  %s578 = sadd.s32 1, %s574
                $region114: #{_lambda_.54} parent=107 // loop_footer_branch
                  %573 = sbr.rel target = $region110
                $region115: #{_lambda_.54} parent=107 // loop_exit
                  _
                loop: start=0, step=1, limit=1
                $region116: #{_lambda_.54} parent=107 // loop_pre_header
                  _
                $region117: #{_lambda_.54} parent=107 // loop_header
                  %s583 = sphi 0, %s587
                  %p584 = scmp.ge.s32.totalorder %s583, 1
                  %s588 = sphi %s543, %s543
                  %s589 = sphi %s551, %s551
                $region118: #{_lambda_.54} parent=107 // loop_header_branch
                  %586 = sbr.rel (%p584) target = $region122
                $region119: #{_lambda_.54} parent=107 // loop_body
                  %v590 = vld [vmem:[%s588] sm:$0xf]
                  %591 = vst [vmem:[%s589] sm:$0xf] %v590
                  %v592 = vld [vmem:[%s588 + $0x4] sm:$0xf]
                  %593 = vst [vmem:[%s589 + $0xc] sm:$0xf] %v592
                $region120: #{_lambda_.54} parent=107 // loop_footer
                  %s587 = sadd.s32 1, %s583
                $region121: #{_lambda_.54} parent=107 // loop_footer_branch
                  %582 = sbr.rel target = $region117
                $region122: #{_lambda_.54} parent=107 // loop_exit
                  _
              $region108: #{_lambda_.54} parent=92 // pred_fallthru
                _
            $region93: #{_lambda_.54} parent=88 // pred_fallthru
              _
            // Predicated region
            $region94: #{_lambda_.54} parent=88 // pred_check
              _
            $region95: #{_lambda_.54} parent=88 // pred_check_branch
              %557 = sbr.rel (0) target = $region97
            $region96: #{_lambda_.54} parent=88 // pred_region
              loop: start=0, step=1, limit=1
              $region98: #{_lambda_.54} parent=96 // loop_pre_header
                _
              $region99: #{_lambda_.54} parent=96 // loop_header
                %s560 = sphi 0, %s564
                %p561 = scmp.ge.s32.totalorder %s560, 1
                %s565 = sphi %s543, %s543
                %s566 = sphi %s551, %s551
              $region100: #{_lambda_.54} parent=96 // loop_header_branch
                %563 = sbr.rel (%p561) target = $region104
              $region101: #{_lambda_.54} parent=96 // loop_body
                %v567 = vld [vmem:[%s565] sm:$0xf]
                %568 = vst [vmem:[%s566] sm:$0xf] %v567
                %v569 = vld [vmem:[%s565 + $0x4] sm:$0xf]
                %570 = vst [vmem:[%s566 + $0xc] sm:$0xf] %v569
              $region102: #{_lambda_.54} parent=96 // loop_footer
                %s564 = sadd.s32 1, %s560
              $region103: #{_lambda_.54} parent=96 // loop_footer_branch
                %559 = sbr.rel target = $region99
              $region104: #{_lambda_.54} parent=96 // loop_exit
                _
            $region97: #{_lambda_.54} parent=88 // pred_fallthru
              _
          $region89: #{_lambda_.54} parent=84 // pred_fallthru
            _
          %594 = vnop
        $region85: #{_lambda_.54} parent=76 // pred_fallthru
          _
      $region77: #{_lambda_.54} parent=5 // pred_fallthru
        _
      %p595 = scmp.le.s32.totalorder 2, %s11
      // Predicated region
      $region123: #{_lambda_.54} parent=5 // pred_check
        %p596 = pneg %p595
      $region124: #{_lambda_.54} parent=5 // pred_check_branch
        %598 = sbr.rel (%p596) target = $region126
      $region125: #{_lambda_.54} parent=5 // pred_region
        %s599 = ssub.s32 %s11, 2
        // Predicated region
        $region127: #{_lambda_.54} parent=125 // pred_check
          %p600 = pneg %p174
        $region128: #{_lambda_.54} parent=125 // pred_check_branch
          %602 = sbr.rel (%p600) target = $region130
        $region129: #{_lambda_.54} parent=125 // pred_region
          %s603 = sand.u32 %s159, 1
          %s604 = sand.u32 %s159, 1
          %s605 = smul.addr %s604, 8
          %s606 = scalar_lea.vmem [#allocation3], %s605
        $region130: #{_lambda_.54} parent=125 // pred_fallthru
          _
      $region126: #{_lambda_.54} parent=5 // pred_fallthru
        _
    $region6: #{_lambda_.54} parent=1 // loop_footer
      %s15 = sadd.s32 1, %s11
    $region7: #{_lambda_.54} parent=1 // loop_footer_branch
      %10 = sbr.rel target = $region3
    $region8: #{_lambda_.54} parent=1 // loop_exit
      _

// kernel: _lambda_.56
$region0: #{_lambda_.56}
  #allocation0 [shape = 'u32[]', space=smem, size = 0x4, offset = 0x4, fixed_abs, tag = 'smem constant byte address 0x4 - core index']
  #allocation1 [shape = 'u32[144,128]{1,0:T(1,128)}', space=vmem, size = 0x12000, scoped, tag = 'internal scratch']
  %s0 = inlined_call_operand.vmem [shape: bf16[16,128], index: 0, kind: input, shape index: {}]
  %s1 = inlined_call_operand.vmem [shape: bf16[128,128], index: 1, kind: input, shape index: {}]
  %s2 = inlined_call_operand.vmem [shape: f32[1,128], index: 2, kind: input, shape index: {}]
  %s3 = inlined_call_operand.vmem [shape: bf16[16,128], index: 3, kind: input, shape index: {}]
  %s4 = inlined_call_operand.vmem [shape: bf16[16,128], index: 4, kind: output, shape index: {}]
  %s5 = sld [smem:[#allocation0]]
  $region26: #{_lambda_.56} parent=0
    _
  %s7 = ssub.s32 1, %s5
  %s8 = scalar_select 0, %s7, %s5
  // Predicated region
  $region2: #{_lambda_.56} parent=0 // pred_check
    _
  $region3: #{_lambda_.56} parent=0 // pred_check_branch
    %10 = sbr.rel (0) target = $region5
  $region4: #{_lambda_.56} parent=0 // pred_region
    _
  $region5: #{_lambda_.56} parent=0 // pred_fallthru
    _
  // Predicated region
  $region6: #{_lambda_.56} parent=0 // pred_check
    _
  $region7: #{_lambda_.56} parent=0 // pred_check_branch
    %12 = sbr.rel (0) target = $region9
  $region8: #{_lambda_.56} parent=0 // pred_region
    _
  $region9: #{_lambda_.56} parent=0 // pred_fallthru
    _
  // Predicated region
  $region10: #{_lambda_.56} parent=0 // pred_check
    _
  $region11: #{_lambda_.56} parent=0 // pred_check_branch
    %14 = sbr.rel (0) target = $region13
  $region12: #{_lambda_.56} parent=0 // pred_region
    _
  $region13: #{_lambda_.56} parent=0 // pred_fallthru
    _
  // Predicated region
  $region14: #{_lambda_.56} parent=0 // pred_check
    _
  $region15: #{_lambda_.56} parent=0 // pred_check_branch
    %16 = sbr.rel (0) target = $region17
  $region16: #{_lambda_.56} parent=0 // pred_region
    _
  $region17: #{_lambda_.56} parent=0 // pred_fallthru
    _
  %v18 = vld [vmem:[%s0] sm:$0xf]
  %v19 = vld [vmem:[%s0 + $0x4] sm:$0xf]
  %v20 = vld [vmem:[%s1] sm:$0xf]
  %v21 = vld [vmem:[%s1 + $0x4] sm:$0xf]
  %v22 = vld [vmem:[%s1 + $0x8] sm:$0xf]
  %v23 = vld [vmem:[%s1 + $0xc] sm:$0xf]
  %v24 = vld [vmem:[%s1 + $0x10] sm:$0xf]
  %v25 = vld [vmem:[%s1 + $0x14] sm:$0xf]
  %v26 = vld [vmem:[%s1 + $0x18] sm:$0xf]
  %v27 = vld [vmem:[%s1 + $0x1c] sm:$0xf]
  %v28 = vld [vmem:[%s1 + $0x20] sm:$0xf]
  %v29 = vld [vmem:[%s1 + $0x24] sm:$0xf]
  %v30 = vld [vmem:[%s1 + $0x28] sm:$0xf]
  %v31 = vld [vmem:[%s1 + $0x2c] sm:$0xf]
  %v32 = vld [vmem:[%s1 + $0x30] sm:$0xf]
  %v33 = vld [vmem:[%s1 + $0x34] sm:$0xf]
  %v34 = vld [vmem:[%s1 + $0x38] sm:$0xf]
  %v35 = vld [vmem:[%s1 + $0x3c] sm:$0xf]
  %v36 = vld [vmem:[%s2] sm:$0x1]
  %v38 = vlaneseq
  %v39 = vshrl.u32 %v38, 7
  %v40 = vsub.s32 0, %v39
  %v41 = vrot.slane %v36, %v40
  %v45 = vunpack.c.l.b16 %v18
  %v46 = vunpack.c.l.b16 %v19
  %v47 = vpack.c.b16 %v46, %v45
  %v65 = vunpack.c.l.b16 %v20
  %v66 = vunpack.c.l.b16 %v21
  %v67 = vunpack.c.l.b16 %v22
  %v68 = vunpack.c.l.b16 %v23
  %v69 = vunpack.c.l.b16 %v24
  %v70 = vunpack.c.l.b16 %v25
  %v71 = vunpack.c.l.b16 %v26
  %v72 = vunpack.c.l.b16 %v27
  %v73 = vunpack.c.l.b16 %v28
  %v74 = vunpack.c.l.b16 %v29
  %v75 = vunpack.c.l.b16 %v30
  %v76 = vunpack.c.l.b16 %v31
  %v77 = vunpack.c.l.b16 %v32
  %v78 = vunpack.c.l.b16 %v33
  %v79 = vunpack.c.l.b16 %v34
  %v80 = vunpack.c.l.b16 %v35
  %v81 = vpack.c.b16 %v66, %v65
  %v82 = vpack.c.b16 %v68, %v67
  %v83 = vpack.c.b16 %v70, %v69
  %v84 = vpack.c.b16 %v72, %v71
  %v85 = vpack.c.b16 %v74, %v73
  %v86 = vpack.c.b16 %v76, %v75
  %v87 = vpack.c.b16 %v78, %v77
  %v88 = vpack.c.b16 %v80, %v79
  %97 = vmatprep.subr.bf16.mxu0 0
  %98 = vmatpush1.bf16.msra.mxu0 %v81
  %99 = vmatprep.subr.bf16.mxu0 0
  %100 = vmatpush1.bf16.msra.mxu0 %v82
  %101 = vmatprep.subr.bf16.mxu0 0
  %102 = vmatpush1.bf16.msra.mxu0 %v83
  %103 = vmatprep.subr.bf16.mxu0 0
  %104 = vmatpush1.bf16.msra.mxu0 %v84
  %105 = vmatprep.subr.bf16.mxu0 0
  %106 = vmatpush1.bf16.msra.mxu0 %v85
  %107 = vmatprep.subr.bf16.mxu0 0
  %108 = vmatpush1.bf16.msra.mxu0 %v86
  %109 = vmatprep.subr.bf16.mxu0 0
  %110 = vmatpush1.bf16.msra.mxu0 %v87
  %111 = vmatprep.subr.bf16.mxu0 0
  %112 = vmatpush1.bf16.msra.mxu0 %v88
  %113 = vmatprep.subr.bf16.mxu0 0
  %114 = vmatpush1.bf16.msra.mxu0 0
  %115 = vmatprep.subr.bf16.mxu0 0
  %116 = vmatpush1.bf16.msra.mxu0 0
  %117 = vmatprep.subr.bf16.mxu0 0
  %118 = vmatpush1.bf16.msra.mxu0 0
  %119 = vmatprep.subr.bf16.mxu0 0
  %120 = vmatpush1.bf16.msra.mxu0 0
  %121 = vmatprep.subr.bf16.mxu0 0
  %122 = vmatpush1.bf16.msra.mxu0 0
  %123 = vmatprep.subr.bf16.mxu0 0
  %124 = vmatpush1.bf16.msra.mxu0 0
  %125 = vmatprep.subr.bf16.mxu0 0
  %126 = vmatpush1.bf16.msra.mxu0 0
  %127 = vmatprep.subr.bf16.mxu0 0
  %128 = vmatpush1.bf16.msra.mxu0 0
  %129 = vmatprep.mubr.bf16.mxu0 0
  %130 = vmatmul.mubr.bf16.gmra.mrb[0].mxu0 %v47
  %v131 = vpop.f32.mrb[0].mxu0
  %v132 = vadd.f32 %v41, %v131
  %v133 = vpop.f32.mrb[0].mxu0
  %v134 = vpop.f32.mrb[0].mxu0
  %v135 = vadd.f32 %v41, %v134
  %v136 = vpop.f32.mrb[0].mxu0
  %137 = vdwg.mxu0
  %v138 = vld [vmem:[%s3] sm:$0xf]
  %v139 = vld [vmem:[%s3 + $0x4] sm:$0xf]
  %v140 = vunpack.c.l.bf16 %v138
  %v141 = vunpack.c.l.bf16 %v139
  %v142 = vadd.f32 %v132, %v140
  %v143 = vadd.f32 %v135, %v141
  %v144 = vpack.c.bf16 %v143, %v142
  %v146 = vunpack.c.l.b16 %v144
  %v147 = vunpack.c.h.b16 %v144
  %v148 = vpack.c.b16 %v146, %v146
  %v149 = vpack.c.b16 %v147, %v147
  %152 = vst [vmem:[%s4] sm:$0xf] %v148
  %153 = vst [vmem:[%s4 + $0x4] sm:$0xf] %v149
  // Predicated region
  $region18: #{_lambda_.56} parent=0 // pred_check
    _
  $region19: #{_lambda_.56} parent=0 // pred_check_branch
    %155 = sbr.rel (0) target = $region21
  $region20: #{_lambda_.56} parent=0 // pred_region
    _
  $region21: #{_lambda_.56} parent=0 // pred_fallthru
    _
  // Predicated region
  $region22: #{_lambda_.56} parent=0 // pred_check
    _
  $region23: #{_lambda_.56} parent=0 // pred_check_branch
    %157 = sbr.rel (0) target = $region25
  $region24: #{_lambda_.56} parent=0 // pred_region
    _
  $region25: #{_lambda_.56} parent=0 // pred_fallthru
    _

// kernel: _lambda_.57
$region0: #{_lambda_.57}
  #allocation0 [shape = 'u32[]', space=smem, size = 0x4, offset = 0x4, fixed_abs, tag = 'smem constant byte address 0x4 - core index']
  #allocation1 [shape = 'u32[144,128]{1,0:T(1,128)}', space=vmem, size = 0x12000, scoped, tag = 'internal scratch']
  #allocation2 [shape = 'f32[1,1]{1,0:T(1,128)S(1)}', space=vmem, size = 0x200, scoped, tag = 'scoped memory for _lambda_.57']
  %s0 = inlined_call_operand.vmem [shape: bf16[4,4,128], index: 0, kind: input, shape index: {}]
  %s1 = inlined_call_operand.vmem [shape: bf16[128,64], index: 1, kind: input, shape index: {}]
  %s2 = inlined_call_operand.vmem [shape: f32[1,64], index: 2, kind: input, shape index: {}]
  %s3 = inlined_call_operand.vmem [shape: bf16[64,1], index: 3, kind: input, shape index: {}]
  %s4 = inlined_call_operand.<no memory space> [shape: f32[1,1], index: 4, kind: input, shape index: {}]
  %s5 = inlined_call_operand.vmem [shape: bf16[28,4], index: 5, kind: input, shape index: {}]
  %s6 = inlined_call_operand.vmem [shape: f32[4,28], index: 6, kind: input, shape index: {}]
  %s7 = inlined_call_operand.vmem [shape: f32[4,28,28], index: 7, kind: output, shape index: {}]
  %s8 = sld [smem:[#allocation0]]
  $region61: #{_lambda_.57} parent=0
    _
  %s10 = ssub.s32 1, %s8
  %s11 = scalar_select 0, %s10, %s8
  %v12 = vstv %s4
  %13 = vst [vmem:[#allocation2] sm:$0x1] %v12
  loop: start=0, step=1, limit=6
  $region2: #{_lambda_.57} parent=0 // loop_pre_header
    _
  $region3: #{_lambda_.57} parent=0 // loop_header
    %s15 = sphi 0, %s19
    %p16 = scmp.ge.s32.totalorder %s15, 6
    %s25 = sphi 0, %s27
    %s28 = sphi 0, %s25
    %s29 = sphi 0, %s28
    %s45 = sphi 0, %s29
    %s49 = sphi 0, %s49
    %s51 = sphi 0, %s49
    %s52 = sphi 0, %s51
    %s66 = sphi 0, %s52
    %s70 = sphi 0, %s70
    %s72 = sphi 0, %s70
    %s73 = sphi 0, %s72
    %s87 = sphi 0, %s73
    %s91 = sphi 0, %s91
    %s93 = sphi 0, %s91
    %s94 = sphi 0, %s93
    %s108 = sphi 0, %s94
    %s112 = sphi 0, %s112
    %s114 = sphi 0, %s112
    %s115 = sphi 0, %s114
    %s129 = sphi 0, %s115
    %s133 = sphi 0, %s133
    %s135 = sphi 0, %s133
    %s136 = sphi 0, %s135
    %s150 = sphi 0, %s136
    %s154 = sphi 0, %s154
    %s156 = sphi 0, %s154
    %s157 = sphi 0, %s156
    %s171 = sphi 0, %s157
    %s177 = sphi 0, %s179
    %s180 = sphi 0, %s177
    %s181 = sphi 0, %s180
    %s197 = sphi 0, %s181
  $region4: #{_lambda_.57} parent=0 // loop_header_branch
    %18 = sbr.rel (%p16) target = $region8
  $region5: #{_lambda_.57} parent=0 // loop_body
    %s20 = ssub.s32 %s15, 1
    %s21 = ssub.s32 %s15, 2
    %s22 = sadd.s32 %s15, 1
    %s23 = ssub.s32 %s15, %s22
    %p24 = scmp.eq.s32.totalorder %s23, 0
    %s26 = sadd.s32 %s25, 1
    %s27 = scalar_select %p24, %s25, %s26
    %p30 = pneg %p24
    %p31 = scmp.eq.s32.totalorder %s15, 3
    %p32 = por %p30, %p31
    %p33 = scmp.ne.s32.totalorder %s25, %s28
    %p34 = scmp.eq.s32.totalorder %s15, 0
    %p35 = por %p33, %p34
    %p36 = scmp.ne.s32.totalorder %s25, %s28
    %p37 = scmp.eq.s32.totalorder %s20, 3
    %p38 = por %p36, %p37
    %p39 = scmp.ne.s32.totalorder %s28, %s29
    %p40 = scmp.eq.s32.totalorder %s20, 0
    %p41 = por %p39, %p40
    %p42 = scmp.ne.s32.totalorder %s28, %s29
    %p43 = scmp.eq.s32.totalorder %s21, 3
    %p44 = por %p42, %p43
    %p46 = scmp.ne.s32.totalorder %s29, %s45
    %p47 = scmp.eq.s32.totalorder %s21, 0
    %p48 = por %p46, %p47
    %s50 = sadd.s32 %s49, 1
    %p53 = scmp.eq.s32.totalorder %s15, 3
    %p54 = scmp.ne.s32.totalorder %s49, %s51
    %p55 = scmp.eq.s32.totalorder %s15, 0
    %p56 = por %p54, %p55
    %p57 = scmp.ne.s32.totalorder %s49, %s51
    %p58 = scmp.eq.s32.totalorder %s20, 3
    %p59 = por %p57, %p58
    %p60 = scmp.ne.s32.totalorder %s51, %s52
    %p61 = scmp.eq.s32.totalorder %s20, 0
    %p62 = por %p60, %p61
    %p63 = scmp.ne.s32.totalorder %s51, %s52
    %p64 = scmp.eq.s32.totalorder %s21, 3
    %p65 = por %p63, %p64
    %p67 = scmp.ne.s32.totalorder %s52, %s66
    %p68 = scmp.eq.s32.totalorder %s21, 0
    %p69 = por %p67, %p68
    %s71 = sadd.s32 %s70, 1
    %p74 = scmp.eq.s32.totalorder %s15, 3
    %p75 = scmp.ne.s32.totalorder %s70, %s72
    %p76 = scmp.eq.s32.totalorder %s15, 0
    %p77 = por %p75, %p76
    %p78 = scmp.ne.s32.totalorder %s70, %s72
    %p79 = scmp.eq.s32.totalorder %s20, 3
    %p80 = por %p78, %p79
    %p81 = scmp.ne.s32.totalorder %s72, %s73
    %p82 = scmp.eq.s32.totalorder %s20, 0
    %p83 = por %p81, %p82
    %p84 = scmp.ne.s32.totalorder %s72, %s73
    %p85 = scmp.eq.s32.totalorder %s21, 3
    %p86 = por %p84, %p85
    %p88 = scmp.ne.s32.totalorder %s73, %s87
    %p89 = scmp.eq.s32.totalorder %s21, 0
    %p90 = por %p88, %p89
    %s92 = sadd.s32 %s91, 1
    %p95 = scmp.eq.s32.totalorder %s15, 3
    %p96 = scmp.ne.s32.totalorder %s91, %s93
    %p97 = scmp.eq.s32.totalorder %s15, 0
    %p98 = por %p96, %p97
    %p99 = scmp.ne.s32.totalorder %s91, %s93
    %p100 = scmp.eq.s32.totalorder %s20, 3
    %p101 = por %p99, %p100
    %p102 = scmp.ne.s32.totalorder %s93, %s94
    %p103 = scmp.eq.s32.totalorder %s20, 0
    %p104 = por %p102, %p103
    %p105 = scmp.ne.s32.totalorder %s93, %s94
    %p106 = scmp.eq.s32.totalorder %s21, 3
    %p107 = por %p105, %p106
    %p109 = scmp.ne.s32.totalorder %s94, %s108
    %p110 = scmp.eq.s32.totalorder %s21, 0
    %p111 = por %p109, %p110
    %s113 = sadd.s32 %s112, 1
    %p116 = scmp.eq.s32.totalorder %s15, 3
    %p117 = scmp.ne.s32.totalorder %s112, %s114
    %p118 = scmp.eq.s32.totalorder %s15, 0
    %p119 = por %p117, %p118
    %p120 = scmp.ne.s32.totalorder %s112, %s114
    %p121 = scmp.eq.s32.totalorder %s20, 3
    %p122 = por %p120, %p121
    %p123 = scmp.ne.s32.totalorder %s114, %s115
    %p124 = scmp.eq.s32.totalorder %s20, 0
    %p125 = por %p123, %p124
    %p126 = scmp.ne.s32.totalorder %s114, %s115
    %p127 = scmp.eq.s32.totalorder %s21, 3
    %p128 = por %p126, %p127
    %p130 = scmp.ne.s32.totalorder %s115, %s129
    %p131 = scmp.eq.s32.totalorder %s21, 0
    %p132 = por %p130, %p131
    %s134 = sadd.s32 %s133, 1
    %p137 = scmp.eq.s32.totalorder %s15, 3
    %p138 = scmp.ne.s32.totalorder %s133, %s135
    %p139 = scmp.eq.s32.totalorder %s15, 0
    %p140 = por %p138, %p139
    %p141 = scmp.ne.s32.totalorder %s133, %s135
    %p142 = scmp.eq.s32.totalorder %s20, 3
    %p143 = por %p141, %p142
    %p144 = scmp.ne.s32.totalorder %s135, %s136
    %p145 = scmp.eq.s32.totalorder %s20, 0
    %p146 = por %p144, %p145
    %p147 = scmp.ne.s32.totalorder %s135, %s136
    %p148 = scmp.eq.s32.totalorder %s21, 3
    %p149 = por %p147, %p148
    %p151 = scmp.ne.s32.totalorder %s136, %s150
    %p152 = scmp.eq.s32.totalorder %s21, 0
    %p153 = por %p151, %p152
    %s155 = sadd.s32 %s154, 1
    %p158 = scmp.eq.s32.totalorder %s15, 3
    %p159 = scmp.ne.s32.totalorder %s154, %s156
    %p160 = scmp.eq.s32.totalorder %s15, 0
    %p161 = por %p159, %p160
    %p162 = scmp.ne.s32.totalorder %s154, %s156
    %p163 = scmp.eq.s32.totalorder %s20, 3
    %p164 = por %p162, %p163
    %p165 = scmp.ne.s32.totalorder %s156, %s157
    %p166 = scmp.eq.s32.totalorder %s20, 0
    %p167 = por %p165, %p166
    %p168 = scmp.ne.s32.totalorder %s156, %s157
    %p169 = scmp.eq.s32.totalorder %s21, 3
    %p170 = por %p168, %p169
    %p172 = scmp.ne.s32.totalorder %s157, %s171
    %p173 = scmp.eq.s32.totalorder %s21, 0
    %p174 = por %p172, %p173
    %s175 = ssub.s32 %s15, %s22
    %p176 = scmp.eq.s32.totalorder %s175, 0
    %s178 = sadd.s32 %s177, 1
    %s179 = scalar_select %p176, %s177, %s178
    %p182 = pneg %p176
    %p183 = scmp.eq.s32.totalorder %s15, 3
    %p184 = por %p182, %p183
    %p185 = scmp.ne.s32.totalorder %s177, %s180
    %p186 = scmp.eq.s32.totalorder %s15, 0
    %p187 = por %p185, %p186
    %p188 = scmp.ne.s32.totalorder %s177, %s180
    %p189 = scmp.eq.s32.totalorder %s20, 3
    %p190 = por %p188, %p189
    %p191 = scmp.ne.s32.totalorder %s180, %s181
    %p192 = scmp.eq.s32.totalorder %s20, 0
    %p193 = por %p191, %p192
    %p194 = scmp.ne.s32.totalorder %s180, %s181
    %p195 = scmp.eq.s32.totalorder %s21, 3
    %p196 = por %p194, %p195
    %p198 = scmp.ne.s32.totalorder %s181, %s197
    %p199 = scmp.eq.s32.totalorder %s21, 0
    %p200 = por %p198, %p199
    %p201 = scmp.le.s32.totalorder 1, %s15
    %p202 = scmp.lt.s32.totalorder %s15, 5
    %p203 = pnand %p201, %p202
    %p204 = pneg %p203
    // Predicated region
    $region9: #{_lambda_.57} parent=5 // pred_check
      _
    $region10: #{_lambda_.57} parent=5 // pred_check_branch
      %206 = sbr.rel (%p203) target = $region12
    $region11: #{_lambda_.57} parent=5 // pred_region
      %s207 = ssub.s32 %s15, 1
      // Predicated region
      $region13: #{_lambda_.57} parent=11 // pred_check
        %p208 = pneg %p62
      $region14: #{_lambda_.57} parent=11 // pred_check_branch
        %210 = sbr.rel (%p208) target = $region16
      $region15: #{_lambda_.57} parent=11 // pred_region
        _
      $region16: #{_lambda_.57} parent=11 // pred_fallthru
        _
      // Predicated region
      $region17: #{_lambda_.57} parent=11 // pred_check
        %p211 = pneg %p83
      $region18: #{_lambda_.57} parent=11 // pred_check_branch
        %213 = sbr.rel (%p211) target = $region20
      $region19: #{_lambda_.57} parent=11 // pred_region
        _
      $region20: #{_lambda_.57} parent=11 // pred_fallthru
        _
      // Predicated region
      $region21: #{_lambda_.57} parent=11 // pred_check
        %p214 = pneg %p104
      $region22: #{_lambda_.57} parent=11 // pred_check_branch
        %216 = sbr.rel (%p214) target = $region24
      $region23: #{_lambda_.57} parent=11 // pred_region
        _
      $region24: #{_lambda_.57} parent=11 // pred_fallthru
        _
      // Predicated region
      $region25: #{_lambda_.57} parent=11 // pred_check
        %p217 = pneg %p125
      $region26: #{_lambda_.57} parent=11 // pred_check_branch
        %219 = sbr.rel (%p217) target = $region28
      $region27: #{_lambda_.57} parent=11 // pred_region
        _
      $region28: #{_lambda_.57} parent=11 // pred_fallthru
        _
      // Predicated region
      $region29: #{_lambda_.57} parent=11 // pred_check
        %p220 = pneg %p146
      $region30: #{_lambda_.57} parent=11 // pred_check_branch
        %222 = sbr.rel (%p220) target = $region32
      $region31: #{_lambda_.57} parent=11 // pred_region
        _
      $region32: #{_lambda_.57} parent=11 // pred_fallthru
        _
      // Predicated region
      $region33: #{_lambda_.57} parent=11 // pred_check
        %p223 = pneg %p167
      $region34: #{_lambda_.57} parent=11 // pred_check_branch
        %225 = sbr.rel (%p223) target = $region36
      $region35: #{_lambda_.57} parent=11 // pred_region
        _
      $region36: #{_lambda_.57} parent=11 // pred_fallthru
        _
    $region12: #{_lambda_.57} parent=5 // pred_fallthru
      _
    %p226 = scmp.lt.s32.totalorder %s15, 4
    // Predicated region
    $region37: #{_lambda_.57} parent=5 // pred_check
      %p227 = pneg %p226
    $region38: #{_lambda_.57} parent=5 // pred_check_branch
      %229 = sbr.rel (%p227) target = $region40
    $region39: #{_lambda_.57} parent=5 // pred_region
      // Predicated region
      $region41: #{_lambda_.57} parent=39 // pred_check
        %p230 = pneg %p35
      $region42: #{_lambda_.57} parent=39 // pred_check_branch
        %232 = sbr.rel (%p230) target = $region44
      $region43: #{_lambda_.57} parent=39 // pred_region
        %p233 = scmp.lt.s32.totalorder %s15, 3
        %s234 = scalar_select %p233, %s15, 3
        %s235 = smul.addr %s234, 2
        %s236 = scalar_lea.vmem %s0, %s235
      $region44: #{_lambda_.57} parent=39 // pred_fallthru
        _
    $region40: #{_lambda_.57} parent=5 // pred_fallthru
      _
    %p237 = scmp.le.s32.totalorder 1, %s15
    %p238 = scmp.lt.s32.totalorder %s15, 5
    %p239 = pnand %p237, %p238
    %p240 = pneg %p239
    // Predicated region
    $region45: #{_lambda_.57} parent=5 // pred_check
      _
    $region46: #{_lambda_.57} parent=5 // pred_check_branch
      %242 = sbr.rel (%p239) target = $region48
    $region47: #{_lambda_.57} parent=5 // pred_region
      %s243 = ssub.s32 %s15, 1
      %p244 = scmp.lt.s32.totalorder %s20, 3
      %s245 = scalar_select %p244, %s20, 3
      %s246 = smul.addr %s245, 2
      %s247 = scalar_lea.vmem %s0, %s246
      %p248 = pneg %p41
      %p249 = pneg %p38
      %p250 = pneg %p62
      %p251 = pneg %p59
      %p252 = pneg %p83
      %p253 = pneg %p80
      %p254 = pneg %p104
      %p255 = pneg %p101
      %p256 = pneg %p125
      %p257 = pneg %p122
      %p258 = pneg %p146
      %p259 = pneg %p143
      %p260 = pneg %p167
      %p261 = pneg %p164
      %p262 = pneg %p193
      %p263 = pneg %p190
      %p264 = scmp.lt.s32.totalorder %s20, 3
      %s265 = scalar_select %p264, %s20, 3
      %s266 = smul.addr %s265, 4
      %s267 = smul.addr %s266, 8
      %s268 = scalar_lea.vmem %s7, %s267
      %p269 = scmp.lt.s32.totalorder %s20, 3
      %s270 = scalar_select %p269, %s20, 3
      %s271 = smul.addr %s270, 2
      %s272 = scalar_lea.vmem %s0, %s271
      %p273 = scmp.lt.s32.totalorder %s20, 3
      %s274 = scalar_select %p273, %s20, 3
      %s275 = smul.addr %s274, 4
      %s276 = smul.addr %s275, 8
      %s277 = scalar_lea.vmem %s7, %s276
      %v279 = vld [vmem:[%s272] sm:$0x3]
      %v280 = vld [vmem:[%s1] sm:$0xf]
      %v281 = vld [vmem:[%s1 + $0x4] sm:$0xf]
      %v282 = vld [vmem:[%s1 + $0x8] sm:$0xf]
      %v283 = vld [vmem:[%s1 + $0xc] sm:$0xf]
      %v284 = vld [vmem:[%s1 + $0x10] sm:$0xf]
      %v285 = vld [vmem:[%s1 + $0x14] sm:$0xf]
      %v286 = vld [vmem:[%s1 + $0x18] sm:$0xf]
      %v287 = vld [vmem:[%s1 + $0x1c] sm:$0xf]
      %v288 = vld [vmem:[%s1 + $0x20] sm:$0xf]
      %v289 = vld [vmem:[%s1 + $0x24] sm:$0xf]
      %v290 = vld [vmem:[%s1 + $0x28] sm:$0xf]
      %v291 = vld [vmem:[%s1 + $0x2c] sm:$0xf]
      %v292 = vld [vmem:[%s1 + $0x30] sm:$0xf]
      %v293 = vld [vmem:[%s1 + $0x34] sm:$0xf]
      %v294 = vld [vmem:[%s1 + $0x38] sm:$0xf]
      %v295 = vld [vmem:[%s1 + $0x3c] sm:$0xf]
      %v296 = vld [vmem:[%s2] sm:$0x1]
      %v298 = vlaneseq
      %v299 = vshrl.u32 %v298, 7
      %v300 = vsub.s32 0, %v299
      %v301 = vrot.slane %v296, %v300
      %v319 = vunpack.c.l.b16 %v280
      %v320 = vunpack.c.l.b16 %v281
      %v321 = vunpack.c.l.b16 %v282
      %v322 = vunpack.c.l.b16 %v283
      %v323 = vunpack.c.l.b16 %v284
      %v324 = vunpack.c.l.b16 %v285
      %v325 = vunpack.c.l.b16 %v286
      %v326 = vunpack.c.l.b16 %v287
      %v327 = vunpack.c.l.b16 %v288
      %v328 = vunpack.c.l.b16 %v289
      %v329 = vunpack.c.l.b16 %v290
      %v330 = vunpack.c.l.b16 %v291
      %v331 = vunpack.c.l.b16 %v292
      %v332 = vunpack.c.l.b16 %v293
      %v333 = vunpack.c.l.b16 %v294
      %v334 = vunpack.c.l.b16 %v295
      %v335 = vpack.c.b16 %v320, %v319
      %v336 = vpack.c.b16 %v322, %v321
      %v337 = vpack.c.b16 %v324, %v323
      %v338 = vpack.c.b16 %v326, %v325
      %v339 = vpack.c.b16 %v328, %v327
      %v340 = vpack.c.b16 %v330, %v329
      %v341 = vpack.c.b16 %v332, %v331
      %v342 = vpack.c.b16 %v334, %v333
      %351 = vmatprep.subr.bf16.mxu0 0
      %352 = vmatpush1.bf16.msra.mxu0 %v335
      %353 = vmatprep.subr.bf16.mxu0 0
      %354 = vmatpush1.bf16.msra.mxu0 %v336
      %355 = vmatprep.subr.bf16.mxu0 0
      %356 = vmatpush1.bf16.msra.mxu0 %v337
      %357 = vmatprep.subr.bf16.mxu0 0
      %358 = vmatpush1.bf16.msra.mxu0 %v338
      %359 = vmatprep.subr.bf16.mxu0 0
      %360 = vmatpush1.bf16.msra.mxu0 %v339
      %361 = vmatprep.subr.bf16.mxu0 0
      %362 = vmatpush1.bf16.msra.mxu0 %v340
      %363 = vmatprep.subr.bf16.mxu0 0
      %364 = vmatpush1.bf16.msra.mxu0 %v341
      %365 = vmatprep.subr.bf16.mxu0 0
      %366 = vmatpush1.bf16.msra.mxu0 %v342
      %367 = vmatprep.subr.bf16.mxu0 0
      %368 = vmatpush1.bf16.msra.mxu0 0
      %369 = vmatprep.subr.bf16.mxu0 0
      %370 = vmatpush1.bf16.msra.mxu0 0
      %371 = vmatprep.subr.bf16.mxu0 0
      %372 = vmatpush1.bf16.msra.mxu0 0
      %373 = vmatprep.subr.bf16.mxu0 0
      %374 = vmatpush1.bf16.msra.mxu0 0
      %375 = vmatprep.subr.bf16.mxu0 0
      %376 = vmatpush1.bf16.msra.mxu0 0
      %377 = vmatprep.subr.bf16.mxu0 0
      %378 = vmatpush1.bf16.msra.mxu0 0
      %379 = vmatprep.subr.bf16.mxu0 0
      %380 = vmatpush1.bf16.msra.mxu0 0
      %381 = vmatprep.subr.bf16.mxu0 0
      %382 = vmatpush1.bf16.msra.mxu0 0
      %383 = vmatprep.mubr.bf16.mxu0 0
      %384 = vmatmul.mubr.bf16.gmra.mrb[0].mxu0 %v279
      %v385 = vpop.f32.mrb[0].mxu0
      %v386 = vadd.f32 %v301, %v385
      %v387 = vpop.f32.mrb[0].mxu0
      %v388 = vpop.f32.mrb[0].mxu0
      %v389 = vpop.f32.mrb[0].mxu0
      %390 = vdwg.mxu0
      %v391 = vmax.f32 %v386, 0.0
      %v392 = vpack.c.bf16 %v391, %v391
      %v393 = vld [vmem:[%s3] sm:$0xf]
      %v394 = vld [vmem:[%s3 + $0x4] sm:$0xf]
      %v395 = vld [vmem:[%s3 + $0x8] sm:$0xf]
      %v396 = vld [vmem:[%s3 + $0xc] sm:$0xf]
      %v397 = vld [vmem:[%s3 + $0x10] sm:$0xf]
      %v398 = vld [vmem:[%s3 + $0x14] sm:$0xf]
      %v399 = vld [vmem:[%s3 + $0x18] sm:$0xf]
      %v400 = vld [vmem:[%s3 + $0x1c] sm:$0xf]
      %v401 = vld [vmem:[#allocation2] sm:$0x1]
      %v403 = vlaneseq
      %v404 = vshrl.u32 %v403, 7
      %v405 = vsub.s32 0, %v404
      %v406 = vrot.slane %v401, %v405
      %v416 = vunpack.c.l.b16 %v393
      %v417 = vunpack.c.l.b16 %v394
      %v418 = vunpack.c.l.b16 %v395
      %v419 = vunpack.c.l.b16 %v396
      %v420 = vunpack.c.l.b16 %v397
      %v421 = vunpack.c.l.b16 %v398
      %v422 = vunpack.c.l.b16 %v399
      %v423 = vunpack.c.l.b16 %v400
      %v424 = vpack.c.b16 %v417, %v416
      %v425 = vpack.c.b16 %v419, %v418
      %v426 = vpack.c.b16 %v421, %v420
      %v427 = vpack.c.b16 %v423, %v422
      %vm432 = vcmask 523264
      %v434 = vsel %vm432, %v392, 0
      %436 = vmatprep.subr.bf16.mxu0 0
      %437 = vmatpush1.bf16.msra.mxu0 %v424
      %438 = vmatprep.subr.bf16.mxu0 0
      %439 = vmatpush1.bf16.msra.mxu0 %v425
      %440 = vmatprep.subr.bf16.mxu0 0
      %441 = vmatpush1.bf16.msra.mxu0 %v426
      %442 = vmatprep.subr.bf16.mxu0 0
      %443 = vmatpush1.bf16.msra.mxu0 %v427
      %444 = vmatprep.subr.bf16.mxu0 0
      %445 = vmatpush1.bf16.msra.mxu0 0
      %446 = vmatprep.subr.bf16.mxu0 0
      %447 = vmatpush1.bf16.msra.mxu0 0
      %448 = vmatprep.subr.bf16.mxu0 0
      %449 = vmatpush1.bf16.msra.mxu0 0
      %450 = vmatprep.subr.bf16.mxu0 0
      %451 = vmatpush1.bf16.msra.mxu0 0
      %452 = vmatprep.subr.bf16.mxu0 0
      %453 = vmatpush1.bf16.msra.mxu0 0
      %454 = vmatprep.subr.bf16.mxu0 0
      %455 = vmatpush1.bf16.msra.mxu0 0
      %456 = vmatprep.subr.bf16.mxu0 0
      %457 = vmatpush1.bf16.msra.mxu0 0
      %458 = vmatprep.subr.bf16.mxu0 0
      %459 = vmatpush1.bf16.msra.mxu0 0
      %460 = vmatprep.subr.bf16.mxu0 0
      %461 = vmatpush1.bf16.msra.mxu0 0
      %462 = vmatprep.subr.bf16.mxu0 0
      %463 = vmatpush1.bf16.msra.mxu0 0
      %464 = vmatprep.subr.bf16.mxu0 0
      %465 = vmatpush1.bf16.msra.mxu0 0
      %466 = vmatprep.subr.bf16.mxu0 0
      %467 = vmatpush1.bf16.msra.mxu0 0
      %468 = vmatprep.mubr.bf16.mxu0 0
      %469 = vmatmul.mubr.bf16.gmra.mrb[0].mxu0 %v434
      %v470 = vpop.f32.mrb[0].mxu0
      %v471 = vadd.f32 %v406, %v470
      %v472 = vpop.f32.mrb[0].mxu0
      %v473 = vpop.f32.mrb[0].mxu0
      %v474 = vpop.f32.mrb[0].mxu0
      %475 = vdwg.mxu0
      %v476 = vmax.f32 %v471, 0.0
      %v477 = vld [vmem:[%s6] sm:$0xf]
      %479 = vset.pattern.permute.xlu0 0
      %480 = vperm.xlu0 %479, %v476
      %v481 = vpop.permute.xlu0 %480
      %v483 = vmul.f32 %v481, %v477
      %v484 = vld [vmem:[%s5] sm:$0xf]
      %v485 = vld [vmem:[%s5 + $0x4] sm:$0xf]
      %v486 = vld [vmem:[%s5 + $0x8] sm:$0xf]
      %v487 = vld [vmem:[%s5 + $0xc] sm:$0x3]
      %v488 = vpack.c.bf16 %v483, %v483
      %v493 = vunpack.c.l.b16 %v484
      %v494 = vunpack.c.l.b16 %v485
      %v495 = vunpack.c.l.b16 %v486
      %v496 = vunpack.c.l.b16 %v487
      %v497 = vpack.c.b16 %v494, %v493
      %v498 = vpack.c.b16 %v496, %v495
      %vm499 = vcmask 31744
      %v501 = vsel %vm499, %v497, 0
      %v504 = vsel %vm499, %v498, 0
      %vm506 = vcmask 1041408
      %v508 = vsel %vm506, %v488, 0
      %510 = vmatprep.subr.bf16.mxu0 0
      %511 = vmatpush1.bf16.msra.mxu0 %v508
      %512 = vmatprep.subr.bf16.mxu0 0
      %513 = vmatpush1.bf16.msra.mxu0 0
      %514 = vmatprep.subr.bf16.mxu0 0
      %515 = vmatpush1.bf16.msra.mxu0 0
      %516 = vmatprep.subr.bf16.mxu0 0
      %517 = vmatpush1.bf16.msra.mxu0 0
      %518 = vmatprep.subr.bf16.mxu0 0
      %519 = vmatpush1.bf16.msra.mxu0 0
      %520 = vmatprep.subr.bf16.mxu0 0
      %521 = vmatpush1.bf16.msra.mxu0 0
      %522 = vmatprep.subr.bf16.mxu0 0
      %523 = vmatpush1.bf16.msra.mxu0 0
      %524 = vmatprep.subr.bf16.mxu0 0
      %525 = vmatpush1.bf16.msra.mxu0 0
      %526 = vmatprep.subr.bf16.mxu0 0
      %527 = vmatpush1.bf16.msra.mxu0 0
      %528 = vmatprep.subr.bf16.mxu0 0
      %529 = vmatpush1.bf16.msra.mxu0 0
      %530 = vmatprep.subr.bf16.mxu0 0
      %531 = vmatpush1.bf16.msra.mxu0 0
      %532 = vmatprep.subr.bf16.mxu0 0
      %533 = vmatpush1.bf16.msra.mxu0 0
      %534 = vmatprep.subr.bf16.mxu0 0
      %535 = vmatpush1.bf16.msra.mxu0 0
      %536 = vmatprep.subr.bf16.mxu0 0
      %537 = vmatpush1.bf16.msra.mxu0 0
      %538 = vmatprep.subr.bf16.mxu0 0
      %539 = vmatpush1.bf16.msra.mxu0 0
      %540 = vmatprep.subr.bf16.mxu0 0
      %541 = vmatpush1.bf16.msra.mxu0 0
      %542 = vmatprep.mubr.bf16.mxu0 0
      %543 = vmatmul.mubr.bf16.gmra.mrb[0].mxu0 %v501
      %v544 = vpop.f32.mrb[0].mxu0
      %v545 = vadd.f32 0.0, %v544
      %v546 = vpop.f32.mrb[0].mxu0
      %v547 = vpop.f32.mrb[0].mxu0
      %v548 = vadd.f32 0.0, %v547
      %v549 = vpop.f32.mrb[0].mxu0
      %550 = vmatprep.mubr.bf16.mxu0 0
      %551 = vmatmul.mubr.bf16.gmra.mrb[0].mxu0 %v504
      %v552 = vpop.f32.mrb[0].mxu0
      %v553 = vadd.f32 0.0, %v552
      %v554 = vpop.f32.mrb[0].mxu0
      %v555 = vpop.f32.mrb[0].mxu0
      %v556 = vadd.f32 0.0, %v555
      %v557 = vpop.f32.mrb[0].mxu0
      %558 = vdwg.mxu0
      %v559 = vmax.f32 %v545, 0.0
      %v560 = vmax.f32 %v548, 0.0
      %v561 = vmax.f32 %v553, 0.0
      %v562 = vmax.f32 %v556, 0.0
      %vm563 = vcmask 228352
      %564 = vst.msk [vmem:[%s277] sm:$0xff] %vm563, %v559
      %565 = vst.msk [vmem:[%s277 + $0x8] sm:$0xff] %vm563, %v560
      %566 = vst.msk [vmem:[%s277 + $0x10] sm:$0xff] %vm563, %v561
      %vm567 = vcmask 224256
      %568 = vst.msk [vmem:[%s277 + $0x18] sm:$0xf] %vm567, %v562
      %p569 = scmp.lt.s32.totalorder %s20, 3
      %s570 = scalar_select %p569, %s20, 3
      %s571 = smul.addr %s570, 4
      %s572 = smul.addr %s571, 8
      %s573 = scalar_lea.vmem %s7, %s572
      // Predicated region
      $region49: #{_lambda_.57} parent=47 // pred_check
        %p574 = pneg %p190
      $region50: #{_lambda_.57} parent=47 // pred_check_branch
        %576 = sbr.rel (%p574) target = $region52
      $region51: #{_lambda_.57} parent=47 // pred_region
        _
      $region52: #{_lambda_.57} parent=47 // pred_fallthru
        _
    $region48: #{_lambda_.57} parent=5 // pred_fallthru
      _
    %p577 = scmp.le.s32.totalorder 2, %s15
    // Predicated region
    $region53: #{_lambda_.57} parent=5 // pred_check
      %p578 = pneg %p577
    $region54: #{_lambda_.57} parent=5 // pred_check_branch
      %580 = sbr.rel (%p578) target = $region56
    $region55: #{_lambda_.57} parent=5 // pred_region
      %s581 = ssub.s32 %s15, 2
      // Predicated region
      $region57: #{_lambda_.57} parent=55 // pred_check
        %p582 = pneg %p196
      $region58: #{_lambda_.57} parent=55 // pred_check_branch
        %584 = sbr.rel (%p582) target = $region60
      $region59: #{_lambda_.57} parent=55 // pred_region
        %p585 = scmp.lt.s32.totalorder %s21, 3
        %s586 = scalar_select %p585, %s21, 3
        %s587 = smul.addr %s586, 4
        %s588 = smul.addr %s587, 8
        %s589 = scalar_lea.vmem %s7, %s588
      $region60: #{_lambda_.57} parent=55 // pred_fallthru
        _
    $region56: #{_lambda_.57} parent=5 // pred_fallthru
      _
  $region6: #{_lambda_.57} parent=0 // loop_footer
    %s19 = sadd.s32 1, %s15
  $region7: #{_lambda_.57} parent=0 // loop_footer_branch
    %14 = sbr.rel target = $region3
  $region8: #{_lambda_.57} parent=0 // loop_exit
    _

// kernel: _lambda_.55
$region0: #{_lambda_.55}
  #allocation0 [shape = 'u32[]', space=smem, size = 0x4, offset = 0x4, fixed_abs, tag = 'smem constant byte address 0x4 - core index']
  #allocation1 [shape = 'u32[144,128]{1,0:T(1,128)}', space=vmem, size = 0x12000, scoped, tag = 'internal scratch']
  %s0 = inlined_call_operand.vmem [shape: bf16[2,2,4,384], index: 0, kind: input, shape index: {}]
  %s1 = inlined_call_operand.vmem [shape: bf16[2,2,4,128], index: 1, kind: output, shape index: {}]
  %s2 = sld [smem:[#allocation0]]
  $region37: #{_lambda_.55} parent=0
    _
  %s4 = ssub.s32 1, %s2
  %s5 = scalar_select 0, %s4, %s2
  loop: start=0, step=1, limit=4
  $region2: #{_lambda_.55} parent=0 // loop_pre_header
    _
  $region3: #{_lambda_.55} parent=0 // loop_header
    %s7 = sphi 0, %s11
    %p8 = scmp.ge.s32.totalorder %s7, 4
    %s14 = sphi 0, %s26
    %s15 = sphi 0, %s22
    %s16 = sphi 0, %s14
    %s17 = sphi 0, %s15
    %s18 = sphi 0, %s16
    %s19 = sphi 0, %s17
    %s31 = sphi 0, %s33
    %s34 = sphi 0, %s31
    %s35 = sphi 0, %s34
    %s51 = sphi 0, %s35
    %s59 = sphi 0, %s61
    %s62 = sphi 0, %s59
    %s63 = sphi 0, %s62
    %s79 = sphi 0, %s63
  $region4: #{_lambda_.55} parent=0 // loop_header_branch
    %10 = sbr.rel (%p8) target = $region8
  $region5: #{_lambda_.55} parent=0 // loop_body
    %s12 = ssub.s32 %s7, 1
    %s13 = ssub.s32 %s7, 2
    %s20 = sadd.s32 1, %s15
    %p21 = scmp.ge.s32.totalorder %s20, 1
    %s22 = scalar_select %p21, 0, %s20
    %s23 = sadd.s32 1, %s14
    %s24 = scalar_select %p21, %s23, %s14
    %p25 = scmp.ge.s32.totalorder %s24, 2
    %s26 = scalar_select %p25, 0, %s24
    %s27 = ssub.s32 %s14, %s26
    %s28 = ssub.s32 %s15, %s22
    %s29 = sor.u32 %s27, %s28
    %p30 = scmp.eq.s32.totalorder %s29, 0
    %s32 = sadd.s32 %s31, 1
    %s33 = scalar_select %p30, %s31, %s32
    %p36 = pneg %p30
    %p37 = scmp.eq.s32.totalorder %s7, 1
    %p38 = por %p36, %p37
    %p39 = scmp.ne.s32.totalorder %s31, %s34
    %p40 = scmp.eq.s32.totalorder %s7, 0
    %p41 = por %p39, %p40
    %p42 = scmp.ne.s32.totalorder %s31, %s34
    %p43 = scmp.eq.s32.totalorder %s12, 1
    %p44 = por %p42, %p43
    %p45 = scmp.ne.s32.totalorder %s34, %s35
    %p46 = scmp.eq.s32.totalorder %s12, 0
    %p47 = por %p45, %p46
    %p48 = scmp.ne.s32.totalorder %s34, %s35
    %p49 = scmp.eq.s32.totalorder %s13, 1
    %p50 = por %p48, %p49
    %p52 = scmp.ne.s32.totalorder %s35, %s51
    %p53 = scmp.eq.s32.totalorder %s13, 0
    %p54 = por %p52, %p53
    %s55 = ssub.s32 %s14, %s26
    %s56 = ssub.s32 %s15, %s22
    %s57 = sor.u32 %s55, %s56
    %p58 = scmp.eq.s32.totalorder %s57, 0
    %s60 = sadd.s32 %s59, 1
    %s61 = scalar_select %p58, %s59, %s60
    %p64 = pneg %p58
    %p65 = scmp.eq.s32.totalorder %s7, 1
    %p66 = por %p64, %p65
    %p67 = scmp.ne.s32.totalorder %s59, %s62
    %p68 = scmp.eq.s32.totalorder %s7, 0
    %p69 = por %p67, %p68
    %p70 = scmp.ne.s32.totalorder %s59, %s62
    %p71 = scmp.eq.s32.totalorder %s12, 1
    %p72 = por %p70, %p71
    %p73 = scmp.ne.s32.totalorder %s62, %s63
    %p74 = scmp.eq.s32.totalorder %s12, 0
    %p75 = por %p73, %p74
    %p76 = scmp.ne.s32.totalorder %s62, %s63
    %p77 = scmp.eq.s32.totalorder %s13, 1
    %p78 = por %p76, %p77
    %p80 = scmp.ne.s32.totalorder %s63, %s79
    %p81 = scmp.eq.s32.totalorder %s13, 0
    %p82 = por %p80, %p81
    %p83 = scmp.le.s32.totalorder 1, %s7
    %p84 = scmp.lt.s32.totalorder %s7, 3
    %p85 = pnand %p83, %p84
    %p86 = pneg %p85
    // Predicated region
    $region9: #{_lambda_.55} parent=5 // pred_check
      _
    $region10: #{_lambda_.55} parent=5 // pred_check_branch
      %88 = sbr.rel (%p85) target = $region12
    $region11: #{_lambda_.55} parent=5 // pred_region
      %s89 = ssub.s32 %s7, 1
    $region12: #{_lambda_.55} parent=5 // pred_fallthru
      _
    %p90 = scmp.lt.s32.totalorder %s7, 2
    // Predicated region
    $region13: #{_lambda_.55} parent=5 // pred_check
      %p91 = pneg %p90
    $region14: #{_lambda_.55} parent=5 // pred_check_branch
      %93 = sbr.rel (%p91) target = $region16
    $region15: #{_lambda_.55} parent=5 // pred_region
      // Predicated region
      $region17: #{_lambda_.55} parent=15 // pred_check
        %p94 = pneg %p41
      $region18: #{_lambda_.55} parent=15 // pred_check_branch
        %96 = sbr.rel (%p94) target = $region20
      $region19: #{_lambda_.55} parent=15 // pred_region
        %p97 = scmp.lt.s32.totalorder %s14, 1
        %s98 = scalar_select %p97, %s14, 1
        %p99 = scmp.lt.s32.totalorder %s15, 0
        %s100 = scalar_select %p99, %s15, 0
        %s101 = smul.addr %s100, 3
        %s102 = smul.addr %s98, 6
        %s103 = sadd.s32 %s101, %s102
        %s104 = smul.addr %s103, 2
        %s105 = scalar_lea.vmem %s0, %s104
      $region20: #{_lambda_.55} parent=15 // pred_fallthru
        _
    $region16: #{_lambda_.55} parent=5 // pred_fallthru
      _
    %p106 = scmp.le.s32.totalorder 1, %s7
    %p107 = scmp.lt.s32.totalorder %s7, 3
    %p108 = pnand %p106, %p107
    %p109 = pneg %p108
    // Predicated region
    $region21: #{_lambda_.55} parent=5 // pred_check
      _
    $region22: #{_lambda_.55} parent=5 // pred_check_branch
      %111 = sbr.rel (%p108) target = $region24
    $region23: #{_lambda_.55} parent=5 // pred_region
      %s112 = ssub.s32 %s7, 1
      %p113 = scmp.lt.s32.totalorder %s16, 1
      %s114 = scalar_select %p113, %s16, 1
      %p115 = scmp.lt.s32.totalorder %s17, 0
      %s116 = scalar_select %p115, %s17, 0
      %s117 = smul.addr %s116, 3
      %s118 = smul.addr %s114, 6
      %s119 = sadd.s32 %s117, %s118
      %s120 = smul.addr %s119, 2
      %s121 = scalar_lea.vmem %s0, %s120
      %p122 = pneg %p47
      %p123 = pneg %p44
      %p124 = pneg %p75
      %p125 = pneg %p72
      %p126 = scmp.lt.s32.totalorder %s16, 1
      %s127 = scalar_select %p126, %s16, 1
      %p128 = scmp.lt.s32.totalorder %s17, 0
      %s129 = scalar_select %p128, %s17, 0
      %s130 = smul.addr %s127, 2
      %s131 = sadd.s32 %s129, %s130
      %s132 = smul.addr %s131, 2
      %s133 = scalar_lea.vmem %s1, %s132
      %p134 = scmp.lt.s32.totalorder %s16, 1
      %s135 = scalar_select %p134, %s16, 1
      %p136 = scmp.lt.s32.totalorder %s17, 0
      %s137 = scalar_select %p136, %s17, 0
      %s138 = smul.addr %s137, 3
      %s139 = smul.addr %s135, 6
      %s140 = sadd.s32 %s138, %s139
      %s141 = smul.addr %s140, 2
      %s142 = scalar_lea.vmem %s0, %s141
      %p143 = scmp.lt.s32.totalorder %s16, 1
      %s144 = scalar_select %p143, %s16, 1
      %p145 = scmp.lt.s32.totalorder %s17, 0
      %s146 = scalar_select %p145, %s17, 0
      %s147 = smul.addr %s144, 2
      %s148 = sadd.s32 %s146, %s147
      %s149 = smul.addr %s148, 2
      %s150 = scalar_lea.vmem %s1, %s149
      %v152 = vld [vmem:[%s142] sm:$0x3f]
      %v153 = vld [vmem:[%s142 + $0x6] sm:$0x3f]
      %v156 = vpack.i.b16 %v153, %v152
      %v157 = vshrl.u32 %v152, 16
      %v158 = vshrl.u32 %v153, 16
      %v159 = vpack.i.b16 %v158, %v157
      %v162 = vunpack.c.l.s4 1934713408
      %v163 = vunpack.c.0.s8 %v162
      %v164 = vlaneseq
      %v165 = vshrl.u32 %v164, 7
      %v166 = vsub.s32 %v163, %v165
      %v167 = vrot.slane %v156, %v166
      %v168 = vcombine.high %v167, 0
      %v171 = vunpack.c.l.s4 1934713408
      %v172 = vunpack.c.0.s8 %v171
      %v173 = vlaneseq
      %v174 = vshrl.u32 %v173, 7
      %v175 = vsub.s32 %v172, %v174
      %v176 = vrot.slane %v159, %v175
      %v177 = vcombine.high %v176, 0
      %v181 = vunpack.c.l.s4 1983009808
      %v182 = vunpack.c.0.s8 %v181
      %v183 = vlaneseq
      %v184 = vshrl.u32 %v183, 7
      %v185 = vsub.s32 %v182, %v184
      %v186 = vrot.slane %v152, %v185
      %v187 = vcombine.high %v186, %v186
      %v189 = vunpack.c.l.s4 1983009808
      %v190 = vunpack.c.0.s8 %v189
      %v191 = vlaneseq
      %v192 = vshrl.u32 %v191, 7
      %v193 = vsub.s32 %v190, %v192
      %v194 = vrot.slane %v153, %v193
      %v195 = vcombine.high %v194, %v194
      %198 = vxpose.xlu0.c.b16.start [1/8] %v187, 128
      %199 = vxpose.xlu0.c.b16.cont [2/8] 0, 128
      %200 = vxpose.xlu0.c.b16.cont [3/8] 0, 128
      %201 = vxpose.xlu0.c.b16.cont [4/8] 0, 128
      %202 = vxpose.xlu0.c.b16.cont [5/8] 0, 128
      %203 = vxpose.xlu0.c.b16.cont [6/8] 0, 128
      %204 = vxpose.xlu0.c.b16.cont [7/8] 0, 128
      %205 = vxpose.xlu0.c.b16.end [8/8] 0, 128
      %v206 = vpop.trf.xlu0
      %v207 = vpop.trf.xlu0
      %v208 = vpop.trf.xlu0
      %v209 = vpop.trf.xlu0
      %v210 = vpop.trf.xlu0
      %v211 = vpop.trf.xlu0
      %v212 = vpop.trf.xlu0
      %v213 = vpop.trf.xlu0
      %214 = vxpose.xlu0.c.b16.start [1/8] %v195, 128
      %215 = vxpose.xlu0.c.b16.cont [2/8] 0, 128
      %216 = vxpose.xlu0.c.b16.cont [3/8] 0, 128
      %217 = vxpose.xlu0.c.b16.cont [4/8] 0, 128
      %218 = vxpose.xlu0.c.b16.cont [5/8] 0, 128
      %219 = vxpose.xlu0.c.b16.cont [6/8] 0, 128
      %220 = vxpose.xlu0.c.b16.cont [7/8] 0, 128
      %221 = vxpose.xlu0.c.b16.end [8/8] 0, 128
      %v222 = vpop.trf.xlu0
      %v223 = vpop.trf.xlu0
      %v224 = vpop.trf.xlu0
      %v225 = vpop.trf.xlu0
      %v226 = vpop.trf.xlu0
      %v227 = vpop.trf.xlu0
      %v228 = vpop.trf.xlu0
      %v229 = vpop.trf.xlu0
      %v232 = vpack.i.b16 %v222, %v206
      %v234 = vshrl.u32 %v206, 16
      %v235 = vshrl.u32 %v222, 16
      %v236 = vpack.i.b16 %v235, %v234
      %v239 = vpack.i.b16 0, 0
      %v241 = vshrl.u32 0, 16
      %v242 = vpack.i.b16 %v241, %v241
      %v246 = vpack.i.b16 %v223, %v207
      %v248 = vshrl.u32 %v207, 16
      %v249 = vshrl.u32 %v223, 16
      %v250 = vpack.i.b16 %v249, %v248
      %v254 = vpack.i.b16 %v224, %v208
      %v256 = vshrl.u32 %v208, 16
      %v257 = vshrl.u32 %v224, 16
      %v258 = vpack.i.b16 %v257, %v256
      %v262 = vpack.i.b16 %v225, %v209
      %v264 = vshrl.u32 %v209, 16
      %v265 = vshrl.u32 %v225, 16
      %v266 = vpack.i.b16 %v265, %v264
      %v270 = vpack.i.b16 %v226, %v210
      %v272 = vshrl.u32 %v210, 16
      %v273 = vshrl.u32 %v226, 16
      %v274 = vpack.i.b16 %v273, %v272
      %v278 = vpack.i.b16 %v227, %v211
      %v280 = vshrl.u32 %v211, 16
      %v281 = vshrl.u32 %v227, 16
      %v282 = vpack.i.b16 %v281, %v280
      %v286 = vpack.i.b16 %v228, %v212
      %v288 = vshrl.u32 %v212, 16
      %v289 = vshrl.u32 %v228, 16
      %v290 = vpack.i.b16 %v289, %v288
      %v294 = vpack.i.b16 %v229, %v213
      %v296 = vshrl.u32 %v213, 16
      %v297 = vshrl.u32 %v229, 16
      %v298 = vpack.i.b16 %v297, %v296
      %v300 = vcombine.high %v232, %v239
      %v302 = vunpack.c.l.s4 1983009808
      %v303 = vunpack.c.0.s8 %v302
      %v304 = vlaneseq
      %v305 = vshrl.u32 %v304, 7
      %v306 = vsub.s32 %v303, %v305
      %v307 = vrot.slane %v232, %v306
      %v309 = vunpack.c.l.s4 1983009808
      %v310 = vunpack.c.0.s8 %v309
      %v311 = vlaneseq
      %v312 = vshrl.u32 %v311, 7
      %v313 = vsub.s32 %v310, %v312
      %v314 = vrot.slane %v300, %v313
      %v315 = vcombine.high %v307, 0
      %v317 = vunpack.c.l.s4 1934713408
      %v318 = vunpack.c.0.s8 %v317
      %v319 = vlaneseq
      %v320 = vshrl.u32 %v319, 7
      %v321 = vsub.s32 %v318, %v320
      %v322 = vrot.slane %v307, %v321
      %v324 = vunpack.c.l.s4 1934713408
      %v325 = vunpack.c.0.s8 %v324
      %v326 = vlaneseq
      %v327 = vshrl.u32 %v326, 7
      %v328 = vsub.s32 %v325, %v327
      %v329 = vrot.slane %v315, %v328
      %v330 = vcombine.high %v314, 0
      %v332 = vunpack.c.l.s4 1934713408
      %v333 = vunpack.c.0.s8 %v332
      %v334 = vlaneseq
      %v335 = vshrl.u32 %v334, 7
      %v336 = vsub.s32 %v333, %v335
      %v337 = vrot.slane %v314, %v336
      %v339 = vunpack.c.l.s4 1934713408
      %v340 = vunpack.c.0.s8 %v339
      %v341 = vlaneseq
      %v342 = vshrl.u32 %v341, 7
      %v343 = vsub.s32 %v340, %v342
      %v344 = vrot.slane %v330, %v343
      %v345 = vcombine.high %v322, 0
      %v346 = vcombine.high %v329, 0
      %v347 = vcombine.high %v337, 0
      %v348 = vcombine.high %v344, 0
      %v349 = vcombine.high %v236, %v242
      %v351 = vunpack.c.l.s4 1983009808
      %v352 = vunpack.c.0.s8 %v351
      %v353 = vlaneseq
      %v354 = vshrl.u32 %v353, 7
      %v355 = vsub.s32 %v352, %v354
      %v356 = vrot.slane %v236, %v355
      %v358 = vunpack.c.l.s4 1983009808
      %v359 = vunpack.c.0.s8 %v358
      %v360 = vlaneseq
      %v361 = vshrl.u32 %v360, 7
      %v362 = vsub.s32 %v359, %v361
      %v363 = vrot.slane %v349, %v362
      %v364 = vcombine.high %v356, 0
      %v366 = vunpack.c.l.s4 1934713408
      %v367 = vunpack.c.0.s8 %v366
      %v368 = vlaneseq
      %v369 = vshrl.u32 %v368, 7
      %v370 = vsub.s32 %v367, %v369
      %v371 = vrot.slane %v356, %v370
      %v373 = vunpack.c.l.s4 1934713408
      %v374 = vunpack.c.0.s8 %v373
      %v375 = vlaneseq
      %v376 = vshrl.u32 %v375, 7
      %v377 = vsub.s32 %v374, %v376
      %v378 = vrot.slane %v364, %v377
      %v379 = vcombine.high %v363, 0
      %v381 = vunpack.c.l.s4 1934713408
      %v382 = vunpack.c.0.s8 %v381
      %v383 = vlaneseq
      %v384 = vshrl.u32 %v383, 7
      %v385 = vsub.s32 %v382, %v384
      %v386 = vrot.slane %v363, %v385
      %v388 = vunpack.c.l.s4 1934713408
      %v389 = vunpack.c.0.s8 %v388
      %v390 = vlaneseq
      %v391 = vshrl.u32 %v390, 7
      %v392 = vsub.s32 %v389, %v391
      %v393 = vrot.slane %v379, %v392
      %v394 = vcombine.high %v371, 0
      %v395 = vcombine.high %v378, 0
      %v396 = vcombine.high %v386, 0
      %v397 = vcombine.high %v393, 0
      %v398 = vcombine.high %v246, %v239
      %v400 = vunpack.c.l.s4 1983009808
      %v401 = vunpack.c.0.s8 %v400
      %v402 = vlaneseq
      %v403 = vshrl.u32 %v402, 7
      %v404 = vsub.s32 %v401, %v403
      %v405 = vrot.slane %v246, %v404
      %v407 = vunpack.c.l.s4 1983009808
      %v408 = vunpack.c.0.s8 %v407
      %v409 = vlaneseq
      %v410 = vshrl.u32 %v409, 7
      %v411 = vsub.s32 %v408, %v410
      %v412 = vrot.slane %v398, %v411
      %v413 = vcombine.high %v405, 0
      %v415 = vunpack.c.l.s4 1934713408
      %v416 = vunpack.c.0.s8 %v415
      %v417 = vlaneseq
      %v418 = vshrl.u32 %v417, 7
      %v419 = vsub.s32 %v416, %v418
      %v420 = vrot.slane %v405, %v419
      %v422 = vunpack.c.l.s4 1934713408
      %v423 = vunpack.c.0.s8 %v422
      %v424 = vlaneseq
      %v425 = vshrl.u32 %v424, 7
      %v426 = vsub.s32 %v423, %v425
      %v427 = vrot.slane %v413, %v426
      %v428 = vcombine.high %v412, 0
      %v430 = vunpack.c.l.s4 1934713408
      %v431 = vunpack.c.0.s8 %v430
      %v432 = vlaneseq
      %v433 = vshrl.u32 %v432, 7
      %v434 = vsub.s32 %v431, %v433
      %v435 = vrot.slane %v412, %v434
      %v437 = vunpack.c.l.s4 1934713408
      %v438 = vunpack.c.0.s8 %v437
      %v439 = vlaneseq
      %v440 = vshrl.u32 %v439, 7
      %v441 = vsub.s32 %v438, %v440
      %v442 = vrot.slane %v428, %v441
      %v443 = vcombine.high %v420, 0
      %v444 = vcombine.high %v427, 0
      %v445 = vcombine.high %v435, 0
      %v446 = vcombine.high %v442, 0
      %v447 = vcombine.high %v250, %v242
      %v449 = vunpack.c.l.s4 1983009808
      %v450 = vunpack.c.0.s8 %v449
      %v451 = vlaneseq
      %v452 = vshrl.u32 %v451, 7
      %v453 = vsub.s32 %v450, %v452
      %v454 = vrot.slane %v250, %v453
      %v456 = vunpack.c.l.s4 1983009808
      %v457 = vunpack.c.0.s8 %v456
      %v458 = vlaneseq
      %v459 = vshrl.u32 %v458, 7
      %v460 = vsub.s32 %v457, %v459
      %v461 = vrot.slane %v447, %v460
      %v462 = vcombine.high %v454, 0
      %v464 = vunpack.c.l.s4 1934713408
      %v465 = vunpack.c.0.s8 %v464
      %v466 = vlaneseq
      %v467 = vshrl.u32 %v466, 7
      %v468 = vsub.s32 %v465, %v467
      %v469 = vrot.slane %v454, %v468
      %v471 = vunpack.c.l.s4 1934713408
      %v472 = vunpack.c.0.s8 %v471
      %v473 = vlaneseq
      %v474 = vshrl.u32 %v473, 7
      %v475 = vsub.s32 %v472, %v474
      %v476 = vrot.slane %v462, %v475
      %v477 = vcombine.high %v461, 0
      %v479 = vunpack.c.l.s4 1934713408
      %v480 = vunpack.c.0.s8 %v479
      %v481 = vlaneseq
      %v482 = vshrl.u32 %v481, 7
      %v483 = vsub.s32 %v480, %v482
      %v484 = vrot.slane %v461, %v483
      %v486 = vunpack.c.l.s4 1934713408
      %v487 = vunpack.c.0.s8 %v486
      %v488 = vlaneseq
      %v489 = vshrl.u32 %v488, 7
      %v490 = vsub.s32 %v487, %v489
      %v491 = vrot.slane %v477, %v490
      %v492 = vcombine.high %v469, 0
      %v493 = vcombine.high %v476, 0
      %v494 = vcombine.high %v484, 0
      %v495 = vcombine.high %v491, 0
      %v496 = vcombine.high %v254, %v239
      %v498 = vunpack.c.l.s4 1983009808
      %v499 = vunpack.c.0.s8 %v498
      %v500 = vlaneseq
      %v501 = vshrl.u32 %v500, 7
      %v502 = vsub.s32 %v499, %v501
      %v503 = vrot.slane %v254, %v502
      %v505 = vunpack.c.l.s4 1983009808
      %v506 = vunpack.c.0.s8 %v505
      %v507 = vlaneseq
      %v508 = vshrl.u32 %v507, 7
      %v509 = vsub.s32 %v506, %v508
      %v510 = vrot.slane %v496, %v509
      %v511 = vcombine.high %v503, 0
      %v513 = vunpack.c.l.s4 1934713408
      %v514 = vunpack.c.0.s8 %v513
      %v515 = vlaneseq
      %v516 = vshrl.u32 %v515, 7
      %v517 = vsub.s32 %v514, %v516
      %v518 = vrot.slane %v503, %v517
      %v520 = vunpack.c.l.s4 1934713408
      %v521 = vunpack.c.0.s8 %v520
      %v522 = vlaneseq
      %v523 = vshrl.u32 %v522, 7
      %v524 = vsub.s32 %v521, %v523
      %v525 = vrot.slane %v511, %v524
      %v526 = vcombine.high %v510, 0
      %v528 = vunpack.c.l.s4 1934713408
      %v529 = vunpack.c.0.s8 %v528
      %v530 = vlaneseq
      %v531 = vshrl.u32 %v530, 7
      %v532 = vsub.s32 %v529, %v531
      %v533 = vrot.slane %v510, %v532
      %v535 = vunpack.c.l.s4 1934713408
      %v536 = vunpack.c.0.s8 %v535
      %v537 = vlaneseq
      %v538 = vshrl.u32 %v537, 7
      %v539 = vsub.s32 %v536, %v538
      %v540 = vrot.slane %v526, %v539
      %v541 = vcombine.high %v518, 0
      %v542 = vcombine.high %v525, 0
      %v543 = vcombine.high %v533, 0
      %v544 = vcombine.high %v540, 0
      %v545 = vcombine.high %v258, %v242
      %v547 = vunpack.c.l.s4 1983009808
      %v548 = vunpack.c.0.s8 %v547
      %v549 = vlaneseq
      %v550 = vshrl.u32 %v549, 7
      %v551 = vsub.s32 %v548, %v550
      %v552 = vrot.slane %v258, %v551
      %v554 = vunpack.c.l.s4 1983009808
      %v555 = vunpack.c.0.s8 %v554
      %v556 = vlaneseq
      %v557 = vshrl.u32 %v556, 7
      %v558 = vsub.s32 %v555, %v557
      %v559 = vrot.slane %v545, %v558
      %v560 = vcombine.high %v552, 0
      %v562 = vunpack.c.l.s4 1934713408
      %v563 = vunpack.c.0.s8 %v562
      %v564 = vlaneseq
      %v565 = vshrl.u32 %v564, 7
      %v566 = vsub.s32 %v563, %v565
      %v567 = vrot.slane %v552, %v566
      %v569 = vunpack.c.l.s4 1934713408
      %v570 = vunpack.c.0.s8 %v569
      %v571 = vlaneseq
      %v572 = vshrl.u32 %v571, 7
      %v573 = vsub.s32 %v570, %v572
      %v574 = vrot.slane %v560, %v573
      %v575 = vcombine.high %v559, 0
      %v577 = vunpack.c.l.s4 1934713408
      %v578 = vunpack.c.0.s8 %v577
      %v579 = vlaneseq
      %v580 = vshrl.u32 %v579, 7
      %v581 = vsub.s32 %v578, %v580
      %v582 = vrot.slane %v559, %v581
      %v584 = vunpack.c.l.s4 1934713408
      %v585 = vunpack.c.0.s8 %v584
      %v586 = vlaneseq
      %v587 = vshrl.u32 %v586, 7
      %v588 = vsub.s32 %v585, %v587
      %v589 = vrot.slane %v575, %v588
      %v590 = vcombine.high %v567, 0
      %v591 = vcombine.high %v574, 0
      %v592 = vcombine.high %v582, 0
      %v593 = vcombine.high %v589, 0
      %v594 = vcombine.high %v262, %v239
      %v596 = vunpack.c.l.s4 1983009808
      %v597 = vunpack.c.0.s8 %v596
      %v598 = vlaneseq
      %v599 = vshrl.u32 %v598, 7
      %v600 = vsub.s32 %v597, %v599
      %v601 = vrot.slane %v262, %v600
      %v603 = vunpack.c.l.s4 1983009808
      %v604 = vunpack.c.0.s8 %v603
      %v605 = vlaneseq
      %v606 = vshrl.u32 %v605, 7
      %v607 = vsub.s32 %v604, %v606
      %v608 = vrot.slane %v594, %v607
      %v609 = vcombine.high %v601, 0
      %v611 = vunpack.c.l.s4 1934713408
      %v612 = vunpack.c.0.s8 %v611
      %v613 = vlaneseq
      %v614 = vshrl.u32 %v613, 7
      %v615 = vsub.s32 %v612, %v614
      %v616 = vrot.slane %v601, %v615
      %v618 = vunpack.c.l.s4 1934713408
      %v619 = vunpack.c.0.s8 %v618
      %v620 = vlaneseq
      %v621 = vshrl.u32 %v620, 7
      %v622 = vsub.s32 %v619, %v621
      %v623 = vrot.slane %v609, %v622
      %v624 = vcombine.high %v608, 0
      %v626 = vunpack.c.l.s4 1934713408
      %v627 = vunpack.c.0.s8 %v626
      %v628 = vlaneseq
      %v629 = vshrl.u32 %v628, 7
      %v630 = vsub.s32 %v627, %v629
      %v631 = vrot.slane %v608, %v630
      %v633 = vunpack.c.l.s4 1934713408
      %v634 = vunpack.c.0.s8 %v633
      %v635 = vlaneseq
      %v636 = vshrl.u32 %v635, 7
      %v637 = vsub.s32 %v634, %v636
      %v638 = vrot.slane %v624, %v637
      %v639 = vcombine.high %v616, 0
      %v640 = vcombine.high %v623, 0
      %v641 = vcombine.high %v631, 0
      %v642 = vcombine.high %v638, 0
      %v643 = vcombine.high %v266, %v242
      %v645 = vunpack.c.l.s4 1983009808
      %v646 = vunpack.c.0.s8 %v645
      %v647 = vlaneseq
      %v648 = vshrl.u32 %v647, 7
      %v649 = vsub.s32 %v646, %v648
      %v650 = vrot.slane %v266, %v649
      %v652 = vunpack.c.l.s4 1983009808
      %v653 = vunpack.c.0.s8 %v652
      %v654 = vlaneseq
      %v655 = vshrl.u32 %v654, 7
      %v656 = vsub.s32 %v653, %v655
      %v657 = vrot.slane %v643, %v656
      %v658 = vcombine.high %v650, 0
      %v660 = vunpack.c.l.s4 1934713408
      %v661 = vunpack.c.0.s8 %v660
      %v662 = vlaneseq
      %v663 = vshrl.u32 %v662, 7
      %v664 = vsub.s32 %v661, %v663
      %v665 = vrot.slane %v650, %v664
      %v667 = vunpack.c.l.s4 1934713408
      %v668 = vunpack.c.0.s8 %v667
      %v669 = vlaneseq
      %v670 = vshrl.u32 %v669, 7
      %v671 = vsub.s32 %v668, %v670
      %v672 = vrot.slane %v658, %v671
      %v673 = vcombine.high %v657, 0
      %v675 = vunpack.c.l.s4 1934713408
      %v676 = vunpack.c.0.s8 %v675
      %v677 = vlaneseq
      %v678 = vshrl.u32 %v677, 7
      %v679 = vsub.s32 %v676, %v678
      %v680 = vrot.slane %v657, %v679
      %v682 = vunpack.c.l.s4 1934713408
      %v683 = vunpack.c.0.s8 %v682
      %v684 = vlaneseq
      %v685 = vshrl.u32 %v684, 7
      %v686 = vsub.s32 %v683, %v685
      %v687 = vrot.slane %v673, %v686
      %v688 = vcombine.high %v665, 0
      %v689 = vcombine.high %v672, 0
      %v690 = vcombine.high %v680, 0
      %v691 = vcombine.high %v687, 0
      %v692 = vcombine.high %v270, %v239
      %v694 = vunpack.c.l.s4 1983009808
      %v695 = vunpack.c.0.s8 %v694
      %v696 = vlaneseq
      %v697 = vshrl.u32 %v696, 7
      %v698 = vsub.s32 %v695, %v697
      %v699 = vrot.slane %v270, %v698
      %v701 = vunpack.c.l.s4 1983009808
      %v702 = vunpack.c.0.s8 %v701
      %v703 = vlaneseq
      %v704 = vshrl.u32 %v703, 7
      %v705 = vsub.s32 %v702, %v704
      %v706 = vrot.slane %v692, %v705
      %v707 = vcombine.high %v699, 0
      %v709 = vunpack.c.l.s4 1934713408
      %v710 = vunpack.c.0.s8 %v709
      %v711 = vlaneseq
      %v712 = vshrl.u32 %v711, 7
      %v713 = vsub.s32 %v710, %v712
      %v714 = vrot.slane %v699, %v713
      %v716 = vunpack.c.l.s4 1934713408
      %v717 = vunpack.c.0.s8 %v716
      %v718 = vlaneseq
      %v719 = vshrl.u32 %v718, 7
      %v720 = vsub.s32 %v717, %v719
      %v721 = vrot.slane %v707, %v720
      %v722 = vcombine.high %v706, 0
      %v724 = vunpack.c.l.s4 1934713408
      %v725 = vunpack.c.0.s8 %v724
      %v726 = vlaneseq
      %v727 = vshrl.u32 %v726, 7
      %v728 = vsub.s32 %v725, %v727
      %v729 = vrot.slane %v706, %v728
      %v731 = vunpack.c.l.s4 1934713408
      %v732 = vunpack.c.0.s8 %v731
      %v733 = vlaneseq
      %v734 = vshrl.u32 %v733, 7
      %v735 = vsub.s32 %v732, %v734
      %v736 = vrot.slane %v722, %v735
      %v737 = vcombine.high %v714, 0
      %v738 = vcombine.high %v721, 0
      %v739 = vcombine.high %v729, 0
      %v740 = vcombine.high %v736, 0
      %v741 = vcombine.high %v274, %v242
      %v743 = vunpack.c.l.s4 1983009808
      %v744 = vunpack.c.0.s8 %v743
      %v745 = vlaneseq
      %v746 = vshrl.u32 %v745, 7
      %v747 = vsub.s32 %v744, %v746
      %v748 = vrot.slane %v274, %v747
      %v750 = vunpack.c.l.s4 1983009808
      %v751 = vunpack.c.0.s8 %v750
      %v752 = vlaneseq
      %v753 = vshrl.u32 %v752, 7
      %v754 = vsub.s32 %v751, %v753
      %v755 = vrot.slane %v741, %v754
      %v756 = vcombine.high %v748, 0
      %v758 = vunpack.c.l.s4 1934713408
      %v759 = vunpack.c.0.s8 %v758
      %v760 = vlaneseq
      %v761 = vshrl.u32 %v760, 7
      %v762 = vsub.s32 %v759, %v761
      %v763 = vrot.slane %v748, %v762
      %v765 = vunpack.c.l.s4 1934713408
      %v766 = vunpack.c.0.s8 %v765
      %v767 = vlaneseq
      %v768 = vshrl.u32 %v767, 7
      %v769 = vsub.s32 %v766, %v768
      %v770 = vrot.slane %v756, %v769
      %v771 = vcombine.high %v755, 0
      %v773 = vunpack.c.l.s4 1934713408
      %v774 = vunpack.c.0.s8 %v773
      %v775 = vlaneseq
      %v776 = vshrl.u32 %v775, 7
      %v777 = vsub.s32 %v774, %v776
      %v778 = vrot.slane %v755, %v777
      %v780 = vunpack.c.l.s4 1934713408
      %v781 = vunpack.c.0.s8 %v780
      %v782 = vlaneseq
      %v783 = vshrl.u32 %v782, 7
      %v784 = vsub.s32 %v781, %v783
      %v785 = vrot.slane %v771, %v784
      %v786 = vcombine.high %v763, 0
      %v787 = vcombine.high %v770, 0
      %v788 = vcombine.high %v778, 0
      %v789 = vcombine.high %v785, 0
      %v790 = vcombine.high %v278, %v239
      %v792 = vunpack.c.l.s4 1983009808
      %v793 = vunpack.c.0.s8 %v792
      %v794 = vlaneseq
      %v795 = vshrl.u32 %v794, 7
      %v796 = vsub.s32 %v793, %v795
      %v797 = vrot.slane %v278, %v796
      %v799 = vunpack.c.l.s4 1983009808
      %v800 = vunpack.c.0.s8 %v799
      %v801 = vlaneseq
      %v802 = vshrl.u32 %v801, 7
      %v803 = vsub.s32 %v800, %v802
      %v804 = vrot.slane %v790, %v803
      %v805 = vcombine.high %v797, 0
      %v807 = vunpack.c.l.s4 1934713408
      %v808 = vunpack.c.0.s8 %v807
      %v809 = vlaneseq
      %v810 = vshrl.u32 %v809, 7
      %v811 = vsub.s32 %v808, %v810
      %v812 = vrot.slane %v797, %v811
      %v814 = vunpack.c.l.s4 1934713408
      %v815 = vunpack.c.0.s8 %v814
      %v816 = vlaneseq
      %v817 = vshrl.u32 %v816, 7
      %v818 = vsub.s32 %v815, %v817
      %v819 = vrot.slane %v805, %v818
      %v820 = vcombine.high %v804, 0
      %v822 = vunpack.c.l.s4 1934713408
      %v823 = vunpack.c.0.s8 %v822
      %v824 = vlaneseq
      %v825 = vshrl.u32 %v824, 7
      %v826 = vsub.s32 %v823, %v825
      %v827 = vrot.slane %v804, %v826
      %v829 = vunpack.c.l.s4 1934713408
      %v830 = vunpack.c.0.s8 %v829
      %v831 = vlaneseq
      %v832 = vshrl.u32 %v831, 7
      %v833 = vsub.s32 %v830, %v832
      %v834 = vrot.slane %v820, %v833
      %v835 = vcombine.high %v812, 0
      %v836 = vcombine.high %v819, 0
      %v837 = vcombine.high %v827, 0
      %v838 = vcombine.high %v834, 0
      %v839 = vcombine.high %v282, %v242
      %v841 = vunpack.c.l.s4 1983009808
      %v842 = vunpack.c.0.s8 %v841
      %v843 = vlaneseq
      %v844 = vshrl.u32 %v843, 7
      %v845 = vsub.s32 %v842, %v844
      %v846 = vrot.slane %v282, %v845
      %v848 = vunpack.c.l.s4 1983009808
      %v849 = vunpack.c.0.s8 %v848
      %v850 = vlaneseq
      %v851 = vshrl.u32 %v850, 7
      %v852 = vsub.s32 %v849, %v851
      %v853 = vrot.slane %v839, %v852
      %v854 = vcombine.high %v846, 0
      %v856 = vunpack.c.l.s4 1934713408
      %v857 = vunpack.c.0.s8 %v856
      %v858 = vlaneseq
      %v859 = vshrl.u32 %v858, 7
      %v860 = vsub.s32 %v857, %v859
      %v861 = vrot.slane %v846, %v860
      %v863 = vunpack.c.l.s4 1934713408
      %v864 = vunpack.c.0.s8 %v863
      %v865 = vlaneseq
      %v866 = vshrl.u32 %v865, 7
      %v867 = vsub.s32 %v864, %v866
      %v868 = vrot.slane %v854, %v867
      %v869 = vcombine.high %v853, 0
      %v871 = vunpack.c.l.s4 1934713408
      %v872 = vunpack.c.0.s8 %v871
      %v873 = vlaneseq
      %v874 = vshrl.u32 %v873, 7
      %v875 = vsub.s32 %v872, %v874
      %v876 = vrot.slane %v853, %v875
      %v878 = vunpack.c.l.s4 1934713408
      %v879 = vunpack.c.0.s8 %v878
      %v880 = vlaneseq
      %v881 = vshrl.u32 %v880, 7
      %v882 = vsub.s32 %v879, %v881
      %v883 = vrot.slane %v869, %v882
      %v884 = vcombine.high %v861, 0
      %v885 = vcombine.high %v868, 0
      %v886 = vcombine.high %v876, 0
      %v887 = vcombine.high %v883, 0
      %v888 = vcombine.high %v286, %v239
      %v890 = vunpack.c.l.s4 1983009808
      %v891 = vunpack.c.0.s8 %v890
      %v892 = vlaneseq
      %v893 = vshrl.u32 %v892, 7
      %v894 = vsub.s32 %v891, %v893
      %v895 = vrot.slane %v286, %v894
      %v897 = vunpack.c.l.s4 1983009808
      %v898 = vunpack.c.0.s8 %v897
      %v899 = vlaneseq
      %v900 = vshrl.u32 %v899, 7
      %v901 = vsub.s32 %v898, %v900
      %v902 = vrot.slane %v888, %v901
      %v903 = vcombine.high %v895, 0
      %v905 = vunpack.c.l.s4 1934713408
      %v906 = vunpack.c.0.s8 %v905
      %v907 = vlaneseq
      %v908 = vshrl.u32 %v907, 7
      %v909 = vsub.s32 %v906, %v908
      %v910 = vrot.slane %v895, %v909
      %v912 = vunpack.c.l.s4 1934713408
      %v913 = vunpack.c.0.s8 %v912
      %v914 = vlaneseq
      %v915 = vshrl.u32 %v914, 7
      %v916 = vsub.s32 %v913, %v915
      %v917 = vrot.slane %v903, %v916
      %v918 = vcombine.high %v902, 0
      %v920 = vunpack.c.l.s4 1934713408
      %v921 = vunpack.c.0.s8 %v920
      %v922 = vlaneseq
      %v923 = vshrl.u32 %v922, 7
      %v924 = vsub.s32 %v921, %v923
      %v925 = vrot.slane %v902, %v924
      %v927 = vunpack.c.l.s4 1934713408
      %v928 = vunpack.c.0.s8 %v927
      %v929 = vlaneseq
      %v930 = vshrl.u32 %v929, 7
      %v931 = vsub.s32 %v928, %v930
      %v932 = vrot.slane %v918, %v931
      %v933 = vcombine.high %v910, 0
      %v934 = vcombine.high %v917, 0
      %v935 = vcombine.high %v925, 0
      %v936 = vcombine.high %v932, 0
      %v937 = vcombine.high %v290, %v242
      %v939 = vunpack.c.l.s4 1983009808
      %v940 = vunpack.c.0.s8 %v939
      %v941 = vlaneseq
      %v942 = vshrl.u32 %v941, 7
      %v943 = vsub.s32 %v940, %v942
      %v944 = vrot.slane %v290, %v943
      %v946 = vunpack.c.l.s4 1983009808
      %v947 = vunpack.c.0.s8 %v946
      %v948 = vlaneseq
      %v949 = vshrl.u32 %v948, 7
      %v950 = vsub.s32 %v947, %v949
      %v951 = vrot.slane %v937, %v950
      %v952 = vcombine.high %v944, 0
      %v954 = vunpack.c.l.s4 1934713408
      %v955 = vunpack.c.0.s8 %v954
      %v956 = vlaneseq
      %v957 = vshrl.u32 %v956, 7
      %v958 = vsub.s32 %v955, %v957
      %v959 = vrot.slane %v944, %v958
      %v961 = vunpack.c.l.s4 1934713408
      %v962 = vunpack.c.0.s8 %v961
      %v963 = vlaneseq
      %v964 = vshrl.u32 %v963, 7
      %v965 = vsub.s32 %v962, %v964
      %v966 = vrot.slane %v952, %v965
      %v967 = vcombine.high %v951, 0
      %v969 = vunpack.c.l.s4 1934713408
      %v970 = vunpack.c.0.s8 %v969
      %v971 = vlaneseq
      %v972 = vshrl.u32 %v971, 7
      %v973 = vsub.s32 %v970, %v972
      %v974 = vrot.slane %v951, %v973
      %v976 = vunpack.c.l.s4 1934713408
      %v977 = vunpack.c.0.s8 %v976
      %v978 = vlaneseq
      %v979 = vshrl.u32 %v978, 7
      %v980 = vsub.s32 %v977, %v979
      %v981 = vrot.slane %v967, %v980
      %v982 = vcombine.high %v959, 0
      %v983 = vcombine.high %v966, 0
      %v984 = vcombine.high %v974, 0
      %v985 = vcombine.high %v981, 0
      %v986 = vcombine.high %v294, %v239
      %v988 = vunpack.c.l.s4 1983009808
      %v989 = vunpack.c.0.s8 %v988
      %v990 = vlaneseq
      %v991 = vshrl.u32 %v990, 7
      %v992 = vsub.s32 %v989, %v991
      %v993 = vrot.slane %v294, %v992
      %v995 = vunpack.c.l.s4 1983009808
      %v996 = vunpack.c.0.s8 %v995
      %v997 = vlaneseq
      %v998 = vshrl.u32 %v997, 7
      %v999 = vsub.s32 %v996, %v998
      %v1000 = vrot.slane %v986, %v999
      %v1001 = vcombine.high %v993, 0
      %v1003 = vunpack.c.l.s4 1934713408
      %v1004 = vunpack.c.0.s8 %v1003
      %v1005 = vlaneseq
      %v1006 = vshrl.u32 %v1005, 7
      %v1007 = vsub.s32 %v1004, %v1006
      %v1008 = vrot.slane %v993, %v1007
      %v1010 = vunpack.c.l.s4 1934713408
      %v1011 = vunpack.c.0.s8 %v1010
      %v1012 = vlaneseq
      %v1013 = vshrl.u32 %v1012, 7
      %v1014 = vsub.s32 %v1011, %v1013
      %v1015 = vrot.slane %v1001, %v1014
      %v1016 = vcombine.high %v1000, 0
      %v1018 = vunpack.c.l.s4 1934713408
      %v1019 = vunpack.c.0.s8 %v1018
      %v1020 = vlaneseq
      %v1021 = vshrl.u32 %v1020, 7
      %v1022 = vsub.s32 %v1019, %v1021
      %v1023 = vrot.slane %v1000, %v1022
      %v1025 = vunpack.c.l.s4 1934713408
      %v1026 = vunpack.c.0.s8 %v1025
      %v1027 = vlaneseq
      %v1028 = vshrl.u32 %v1027, 7
      %v1029 = vsub.s32 %v1026, %v1028
      %v1030 = vrot.slane %v1016, %v1029
      %v1031 = vcombine.high %v1008, 0
      %v1032 = vcombine.high %v1015, 0
      %v1033 = vcombine.high %v1023, 0
      %v1034 = vcombine.high %v1030, 0
      %v1035 = vcombine.high %v298, %v242
      %v1037 = vunpack.c.l.s4 1983009808
      %v1038 = vunpack.c.0.s8 %v1037
      %v1039 = vlaneseq
      %v1040 = vshrl.u32 %v1039, 7
      %v1041 = vsub.s32 %v1038, %v1040
      %v1042 = vrot.slane %v298, %v1041
      %v1044 = vunpack.c.l.s4 1983009808
      %v1045 = vunpack.c.0.s8 %v1044
      %v1046 = vlaneseq
      %v1047 = vshrl.u32 %v1046, 7
      %v1048 = vsub.s32 %v1045, %v1047
      %v1049 = vrot.slane %v1035, %v1048
      %v1050 = vcombine.high %v1042, 0
      %v1052 = vunpack.c.l.s4 1934713408
      %v1053 = vunpack.c.0.s8 %v1052
      %v1054 = vlaneseq
      %v1055 = vshrl.u32 %v1054, 7
      %v1056 = vsub.s32 %v1053, %v1055
      %v1057 = vrot.slane %v1042, %v1056
      %v1059 = vunpack.c.l.s4 1934713408
      %v1060 = vunpack.c.0.s8 %v1059
      %v1061 = vlaneseq
      %v1062 = vshrl.u32 %v1061, 7
      %v1063 = vsub.s32 %v1060, %v1062
      %v1064 = vrot.slane %v1050, %v1063
      %v1065 = vcombine.high %v1049, 0
      %v1067 = vunpack.c.l.s4 1934713408
      %v1068 = vunpack.c.0.s8 %v1067
      %v1069 = vlaneseq
      %v1070 = vshrl.u32 %v1069, 7
      %v1071 = vsub.s32 %v1068, %v1070
      %v1072 = vrot.slane %v1049, %v1071
      %v1074 = vunpack.c.l.s4 1934713408
      %v1075 = vunpack.c.0.s8 %v1074
      %v1076 = vlaneseq
      %v1077 = vshrl.u32 %v1076, 7
      %v1078 = vsub.s32 %v1075, %v1077
      %v1079 = vrot.slane %v1065, %v1078
      %v1080 = vcombine.high %v1057, 0
      %v1081 = vcombine.high %v1064, 0
      %v1082 = vcombine.high %v1072, 0
      %v1083 = vcombine.high %v1079, 0
      %1084 = vxpose.xlu0.c.b16.start [1/8] %v322, 128
      %1085 = vxpose.xlu0.c.b16.cont [2/8] 0, 128
      %1086 = vxpose.xlu0.c.b16.cont [3/8] 0, 128
      %1087 = vxpose.xlu0.c.b16.cont [4/8] 0, 128
      %1088 = vxpose.xlu0.c.b16.cont [5/8] 0, 128
      %1089 = vxpose.xlu0.c.b16.cont [6/8] 0, 128
      %1090 = vxpose.xlu0.c.b16.cont [7/8] 0, 128
      %1091 = vxpose.xlu0.c.b16.end [8/8] 0, 128
      %v1092 = vpop.trf.xlu0
      %v1093 = vpop.trf.xlu0
      %v1094 = vpop.trf.xlu0
      %v1095 = vpop.trf.xlu0
      %v1096 = vpop.trf.xlu0
      %v1097 = vpop.trf.xlu0
      %v1098 = vpop.trf.xlu0
      %v1099 = vpop.trf.xlu0
      %1100 = vxpose.xlu0.c.b16.start [1/8] %v371, 128
      %1101 = vxpose.xlu0.c.b16.cont [2/8] 0, 128
      %1102 = vxpose.xlu0.c.b16.cont [3/8] 0, 128
      %1103 = vxpose.xlu0.c.b16.cont [4/8] 0, 128
      %1104 = vxpose.xlu0.c.b16.cont [5/8] 0, 128
      %1105 = vxpose.xlu0.c.b16.cont [6/8] 0, 128
      %1106 = vxpose.xlu0.c.b16.cont [7/8] 0, 128
      %1107 = vxpose.xlu0.c.b16.end [8/8] 0, 128
      %v1108 = vpop.trf.xlu0
      %v1109 = vpop.trf.xlu0
      %v1110 = vpop.trf.xlu0
      %v1111 = vpop.trf.xlu0
      %v1112 = vpop.trf.xlu0
      %v1113 = vpop.trf.xlu0
      %v1114 = vpop.trf.xlu0
      %v1115 = vpop.trf.xlu0
      %1116 = vxpose.xlu0.c.b16.start [1/8] %v345, 128
      %1117 = vxpose.xlu0.c.b16.cont [2/8] 0, 128
      %1118 = vxpose.xlu0.c.b16.cont [3/8] 0, 128
      %1119 = vxpose.xlu0.c.b16.cont [4/8] 0, 128
      %1120 = vxpose.xlu0.c.b16.cont [5/8] 0, 128
      %1121 = vxpose.xlu0.c.b16.cont [6/8] 0, 128
      %1122 = vxpose.xlu0.c.b16.cont [7/8] 0, 128
      %1123 = vxpose.xlu0.c.b16.end [8/8] 0, 128
      %v1124 = vpop.trf.xlu0
      %v1125 = vpop.trf.xlu0
      %v1126 = vpop.trf.xlu0
      %v1127 = vpop.trf.xlu0
      %v1128 = vpop.trf.xlu0
      %v1129 = vpop.trf.xlu0
      %v1130 = vpop.trf.xlu0
      %v1131 = vpop.trf.xlu0
      %1132 = vxpose.xlu0.c.b16.start [1/8] %v394, 128
      %1133 = vxpose.xlu0.c.b16.cont [2/8] 0, 128
      %1134 = vxpose.xlu0.c.b16.cont [3/8] 0, 128
      %1135 = vxpose.xlu0.c.b16.cont [4/8] 0, 128
      %1136 = vxpose.xlu0.c.b16.cont [5/8] 0, 128
      %1137 = vxpose.xlu0.c.b16.cont [6/8] 0, 128
      %1138 = vxpose.xlu0.c.b16.cont [7/8] 0, 128
      %1139 = vxpose.xlu0.c.b16.end [8/8] 0, 128
      %v1140 = vpop.trf.xlu0
      %v1141 = vpop.trf.xlu0
      %v1142 = vpop.trf.xlu0
      %v1143 = vpop.trf.xlu0
      %v1144 = vpop.trf.xlu0
      %v1145 = vpop.trf.xlu0
      %v1146 = vpop.trf.xlu0
      %v1147 = vpop.trf.xlu0
      %1148 = vxpose.xlu0.c.b16.start [1/8] %v329, 128
      %1149 = vxpose.xlu0.c.b16.cont [2/8] 0, 128
      %1150 = vxpose.xlu0.c.b16.cont [3/8] 0, 128
      %1151 = vxpose.xlu0.c.b16.cont [4/8] 0, 128
      %1152 = vxpose.xlu0.c.b16.cont [5/8] 0, 128
      %1153 = vxpose.xlu0.c.b16.cont [6/8] 0, 128
      %1154 = vxpose.xlu0.c.b16.cont [7/8] 0, 128
      %1155 = vxpose.xlu0.c.b16.end [8/8] 0, 128
      %v1156 = vpop.trf.xlu0
      %v1157 = vpop.trf.xlu0
      %v1158 = vpop.trf.xlu0
      %v1159 = vpop.trf.xlu0
      %v1160 = vpop.trf.xlu0
      %v1161 = vpop.trf.xlu0
      %v1162 = vpop.trf.xlu0
      %v1163 = vpop.trf.xlu0
      %1164 = vxpose.xlu0.c.b16.start [1/8] %v378, 128
      %1165 = vxpose.xlu0.c.b16.cont [2/8] 0, 128
      %1166 = vxpose.xlu0.c.b16.cont [3/8] 0, 128
      %1167 = vxpose.xlu0.c.b16.cont [4/8] 0, 128
      %1168 = vxpose.xlu0.c.b16.cont [5/8] 0, 128
      %1169 = vxpose.xlu0.c.b16.cont [6/8] 0, 128
      %1170 = vxpose.xlu0.c.b16.cont [7/8] 0, 128
      %1171 = vxpose.xlu0.c.b16.end [8/8] 0, 128
      %v1172 = vpop.trf.xlu0
      %v1173 = vpop.trf.xlu0
      %v1174 = vpop.trf.xlu0
      %v1175 = vpop.trf.xlu0
      %v1176 = vpop.trf.xlu0
      %v1177 = vpop.trf.xlu0
      %v1178 = vpop.trf.xlu0
      %v1179 = vpop.trf.xlu0
      %1180 = vxpose.xlu0.c.b16.start [1/8] %v346, 128
      %1181 = vxpose.xlu0.c.b16.cont [2/8] 0, 128
      %1182 = vxpose.xlu0.c.b16.cont [3/8] 0, 128
      %1183 = vxpose.xlu0.c.b16.cont [4/8] 0, 128
      %1184 = vxpose.xlu0.c.b16.cont [5/8] 0, 128
      %1185 = vxpose.xlu0.c.b16.cont [6/8] 0, 128
      %1186 = vxpose.xlu0.c.b16.cont [7/8] 0, 128
      %1187 = vxpose.xlu0.c.b16.end [8/8] 0, 128
      %v1188 = vpop.trf.xlu0
      %v1189 = vpop.trf.xlu0
      %v1190 = vpop.trf.xlu0
      %v1191 = vpop.trf.xlu0
      %v1192 = vpop.trf.xlu0
      %v1193 = vpop.trf.xlu0
      %v1194 = vpop.trf.xlu0
      %v1195 = vpop.trf.xlu0
      %1196 = vxpose.xlu0.c.b16.start [1/8] %v395, 128
      %1197 = vxpose.xlu0.c.b16.cont [2/8] 0, 128
      %1198 = vxpose.xlu0.c.b16.cont [3/8] 0, 128
      %1199 = vxpose.xlu0.c.b16.cont [4/8] 0, 128
      %1200 = vxpose.xlu0.c.b16.cont [5/8] 0, 128
      %1201 = vxpose.xlu0.c.b16.cont [6/8] 0, 128
      %1202 = vxpose.xlu0.c.b16.cont [7/8] 0, 128
      %1203 = vxpose.xlu0.c.b16.end [8/8] 0, 128
      %v1204 = vpop.trf.xlu0
      %v1205 = vpop.trf.xlu0
      %v1206 = vpop.trf.xlu0
      %v1207 = vpop.trf.xlu0
      %v1208 = vpop.trf.xlu0
      %v1209 = vpop.trf.xlu0
      %v1210 = vpop.trf.xlu0
      %v1211 = vpop.trf.xlu0
      %1212 = vxpose.xlu0.c.b16.start [1/8] %v337, 128
      %1213 = vxpose.xlu0.c.b16.cont [2/8] 0, 128
      %1214 = vxpose.xlu0.c.b16.cont [3/8] 0, 128
      %1215 = vxpose.xlu0.c.b16.cont [4/8] 0, 128
      %1216 = vxpose.xlu0.c.b16.cont [5/8] 0, 128
      %1217 = vxpose.xlu0.c.b16.cont [6/8] 0, 128
      %1218 = vxpose.xlu0.c.b16.cont [7/8] 0, 128
      %1219 = vxpose.xlu0.c.b16.end [8/8] 0, 128
      %v1220 = vpop.trf.xlu0
      %v1221 = vpop.trf.xlu0
      %v1222 = vpop.trf.xlu0
      %v1223 = vpop.trf.xlu0
      %v1224 = vpop.trf.xlu0
      %v1225 = vpop.trf.xlu0
      %v1226 = vpop.trf.xlu0
      %v1227 = vpop.trf.xlu0
      %1228 = vxpose.xlu0.c.b16.start [1/8] %v386, 128
      %1229 = vxpose.xlu0.c.b16.cont [2/8] 0, 128
      %1230 = vxpose.xlu0.c.b16.cont [3/8] 0, 128
      %1231 = vxpose.xlu0.c.b16.cont [4/8] 0, 128
      %1232 = vxpose.xlu0.c.b16.cont [5/8] 0, 128
      %1233 = vxpose.xlu0.c.b16.cont [6/8] 0, 128
      %1234 = vxpose.xlu0.c.b16.cont [7/8] 0, 128
      %1235 = vxpose.xlu0.c.b16.end [8/8] 0, 128
      %v1236 = vpop.trf.xlu0
      %v1237 = vpop.trf.xlu0
      %v1238 = vpop.trf.xlu0
      %v1239 = vpop.trf.xlu0
      %v1240 = vpop.trf.xlu0
      %v1241 = vpop.trf.xlu0
      %v1242 = vpop.trf.xlu0
      %v1243 = vpop.trf.xlu0
      %1244 = vxpose.xlu0.c.b16.start [1/8] %v347, 128
      %1245 = vxpose.xlu0.c.b16.cont [2/8] 0, 128
      %1246 = vxpose.xlu0.c.b16.cont [3/8] 0, 128
      %1247 = vxpose.xlu0.c.b16.cont [4/8] 0, 128
      %1248 = vxpose.xlu0.c.b16.cont [5/8] 0, 128
      %1249 = vxpose.xlu0.c.b16.cont [6/8] 0, 128
      %1250 = vxpose.xlu0.c.b16.cont [7/8] 0, 128
      %1251 = vxpose.xlu0.c.b16.end [8/8] 0, 128
      %v1252 = vpop.trf.xlu0
      %v1253 = vpop.trf.xlu0
      %v1254 = vpop.trf.xlu0
      %v1255 = vpop.trf.xlu0
      %v1256 = vpop.trf.xlu0
      %v1257 = vpop.trf.xlu0
      %v1258 = vpop.trf.xlu0
      %v1259 = vpop.trf.xlu0
      %1260 = vxpose.xlu0.c.b16.start [1/8] %v396, 128
      %1261 = vxpose.xlu0.c.b16.cont [2/8] 0, 128
      %1262 = vxpose.xlu0.c.b16.cont [3/8] 0, 128
      %1263 = vxpose.xlu0.c.b16.cont [4/8] 0, 128
      %1264 = vxpose.xlu0.c.b16.cont [5/8] 0, 128
      %1265 = vxpose.xlu0.c.b16.cont [6/8] 0, 128
      %1266 = vxpose.xlu0.c.b16.cont [7/8] 0, 128
      %1267 = vxpose.xlu0.c.b16.end [8/8] 0, 128
      %v1268 = vpop.trf.xlu0
      %v1269 = vpop.trf.xlu0
      %v1270 = vpop.trf.xlu0
      %v1271 = vpop.trf.xlu0
      %v1272 = vpop.trf.xlu0
      %v1273 = vpop.trf.xlu0
      %v1274 = vpop.trf.xlu0
      %v1275 = vpop.trf.xlu0
      %1276 = vxpose.xlu0.c.b16.start [1/8] %v344, 128
      %1277 = vxpose.xlu0.c.b16.cont [2/8] 0, 128
      %1278 = vxpose.xlu0.c.b16.cont [3/8] 0, 128
      %1279 = vxpose.xlu0.c.b16.cont [4/8] 0, 128
      %1280 = vxpose.xlu0.c.b16.cont [5/8] 0, 128
      %1281 = vxpose.xlu0.c.b16.cont [6/8] 0, 128
      %1282 = vxpose.xlu0.c.b16.cont [7/8] 0, 128
      %1283 = vxpose.xlu0.c.b16.end [8/8] 0, 128
      %v1284 = vpop.trf.xlu0
      %v1285 = vpop.trf.xlu0
      %v1286 = vpop.trf.xlu0
      %v1287 = vpop.trf.xlu0
      %v1288 = vpop.trf.xlu0
      %v1289 = vpop.trf.xlu0
      %v1290 = vpop.trf.xlu0
      %v1291 = vpop.trf.xlu0
      %1292 = vxpose.xlu0.c.b16.start [1/8] %v393, 128
      %1293 = vxpose.xlu0.c.b16.cont [2/8] 0, 128
      %1294 = vxpose.xlu0.c.b16.cont [3/8] 0, 128
      %1295 = vxpose.xlu0.c.b16.cont [4/8] 0, 128
      %1296 = vxpose.xlu0.c.b16.cont [5/8] 0, 128
      %1297 = vxpose.xlu0.c.b16.cont [6/8] 0, 128
      %1298 = vxpose.xlu0.c.b16.cont [7/8] 0, 128
      %1299 = vxpose.xlu0.c.b16.end [8/8] 0, 128
      %v1300 = vpop.trf.xlu0
      %v1301 = vpop.trf.xlu0
      %v1302 = vpop.trf.xlu0
      %v1303 = vpop.trf.xlu0
      %v1304 = vpop.trf.xlu0
      %v1305 = vpop.trf.xlu0
      %v1306 = vpop.trf.xlu0
      %v1307 = vpop.trf.xlu0
      %1308 = vxpose.xlu0.c.b16.start [1/8] %v348, 128
      %1309 = vxpose.xlu0.c.b16.cont [2/8] 0, 128
      %1310 = vxpose.xlu0.c.b16.cont [3/8] 0, 128
      %1311 = vxpose.xlu0.c.b16.cont [4/8] 0, 128
      %1312 = vxpose.xlu0.c.b16.cont [5/8] 0, 128
      %1313 = vxpose.xlu0.c.b16.cont [6/8] 0, 128
      %1314 = vxpose.xlu0.c.b16.cont [7/8] 0, 128
      %1315 = vxpose.xlu0.c.b16.end [8/8] 0, 128
      %v1316 = vpop.trf.xlu0
      %v1317 = vpop.trf.xlu0
      %v1318 = vpop.trf.xlu0
      %v1319 = vpop.trf.xlu0
      %v1320 = vpop.trf.xlu0
      %v1321 = vpop.trf.xlu0
      %v1322 = vpop.trf.xlu0
      %v1323 = vpop.trf.xlu0
      %1324 = vxpose.xlu0.c.b16.start [1/8] %v397, 128
      %1325 = vxpose.xlu0.c.b16.cont [2/8] 0, 128
      %1326 = vxpose.xlu0.c.b16.cont [3/8] 0, 128
      %1327 = vxpose.xlu0.c.b16.cont [4/8] 0, 128
      %1328 = vxpose.xlu0.c.b16.cont [5/8] 0, 128
      %1329 = vxpose.xlu0.c.b16.cont [6/8] 0, 128
      %1330 = vxpose.xlu0.c.b16.cont [7/8] 0, 128
      %1331 = vxpose.xlu0.c.b16.end [8/8] 0, 128
      %v1332 = vpop.trf.xlu0
      %v1333 = vpop.trf.xlu0
      %v1334 = vpop.trf.xlu0
      %v1335 = vpop.trf.xlu0
      %v1336 = vpop.trf.xlu0
      %v1337 = vpop.trf.xlu0
      %v1338 = vpop.trf.xlu0
      %v1339 = vpop.trf.xlu0
      %1340 = vxpose.xlu0.c.b16.start [1/8] %v420, 128
      %1341 = vxpose.xlu0.c.b16.cont [2/8] 0, 128
      %1342 = vxpose.xlu0.c.b16.cont [3/8] 0, 128
      %1343 = vxpose.xlu0.c.b16.cont [4/8] 0, 128
      %1344 = vxpose.xlu0.c.b16.cont [5/8] 0, 128
      %1345 = vxpose.xlu0.c.b16.cont [6/8] 0, 128
      %1346 = vxpose.xlu0.c.b16.cont [7/8] 0, 128
      %1347 = vxpose.xlu0.c.b16.end [8/8] 0, 128
      %v1348 = vpop.trf.xlu0
      %v1349 = vpop.trf.xlu0
      %v1350 = vpop.trf.xlu0
      %v1351 = vpop.trf.xlu0
      %v1352 = vpop.trf.xlu0
      %v1353 = vpop.trf.xlu0
      %v1354 = vpop.trf.xlu0
      %v1355 = vpop.trf.xlu0
      %1356 = vxpose.xlu0.c.b16.start [1/8] %v469, 128
      %1357 = vxpose.xlu0.c.b16.cont [2/8] 0, 128
      %1358 = vxpose.xlu0.c.b16.cont [3/8] 0, 128
      %1359 = vxpose.xlu0.c.b16.cont [4/8] 0, 128
      %1360 = vxpose.xlu0.c.b16.cont [5/8] 0, 128
      %1361 = vxpose.xlu0.c.b16.cont [6/8] 0, 128
      %1362 = vxpose.xlu0.c.b16.cont [7/8] 0, 128
      %1363 = vxpose.xlu0.c.b16.end [8/8] 0, 128
      %v1364 = vpop.trf.xlu0
      %v1365 = vpop.trf.xlu0
      %v1366 = vpop.trf.xlu0
      %v1367 = vpop.trf.xlu0
      %v1368 = vpop.trf.xlu0
      %v1369 = vpop.trf.xlu0
      %v1370 = vpop.trf.xlu0
      %v1371 = vpop.trf.xlu0
      %1372 = vxpose.xlu0.c.b16.start [1/8] %v443, 128
      %1373 = vxpose.xlu0.c.b16.cont [2/8] 0, 128
      %1374 = vxpose.xlu0.c.b16.cont [3/8] 0, 128
      %1375 = vxpose.xlu0.c.b16.cont [4/8] 0, 128
      %1376 = vxpose.xlu0.c.b16.cont [5/8] 0, 128
      %1377 = vxpose.xlu0.c.b16.cont [6/8] 0, 128
      %1378 = vxpose.xlu0.c.b16.cont [7/8] 0, 128
      %1379 = vxpose.xlu0.c.b16.end [8/8] 0, 128
      %v1380 = vpop.trf.xlu0
      %v1381 = vpop.trf.xlu0
      %v1382 = vpop.trf.xlu0
      %v1383 = vpop.trf.xlu0
      %v1384 = vpop.trf.xlu0
      %v1385 = vpop.trf.xlu0
      %v1386 = vpop.trf.xlu0
      %v1387 = vpop.trf.xlu0
      %1388 = vxpose.xlu0.c.b16.start [1/8] %v492, 128
      %1389 = vxpose.xlu0.c.b16.cont [2/8] 0, 128
      %1390 = vxpose.xlu0.c.b16.cont [3/8] 0, 128
      %1391 = vxpose.xlu0.c.b16.cont [4/8] 0, 128
      %1392 = vxpose.xlu0.c.b16.cont [5/8] 0, 128
      %1393 = vxpose.xlu0.c.b16.cont [6/8] 0, 128
      %1394 = vxpose.xlu0.c.b16.cont [7/8] 0, 128
      %1395 = vxpose.xlu0.c.b16.end [8/8] 0, 128
      %v1396 = vpop.trf.xlu0
      %v1397 = vpop.trf.xlu0
      %v1398 = vpop.trf.xlu0
      %v1399 = vpop.trf.xlu0
      %v1400 = vpop.trf.xlu0
      %v1401 = vpop.trf.xlu0
      %v1402 = vpop.trf.xlu0
      %v1403 = vpop.trf.xlu0
      %1404 = vxpose.xlu0.c.b16.start [1/8] %v427, 128
      %1405 = vxpose.xlu0.c.b16.cont [2/8] 0, 128
      %1406 = vxpose.xlu0.c.b16.cont [3/8] 0, 128
      %1407 = vxpose.xlu0.c.b16.cont [4/8] 0, 128
      %1408 = vxpose.xlu0.c.b16.cont [5/8] 0, 128
      %1409 = vxpose.xlu0.c.b16.cont [6/8] 0, 128
      %1410 = vxpose.xlu0.c.b16.cont [7/8] 0, 128
      %1411 = vxpose.xlu0.c.b16.end [8/8] 0, 128
      %v1412 = vpop.trf.xlu0
      %v1413 = vpop.trf.xlu0
      %v1414 = vpop.trf.xlu0
      %v1415 = vpop.trf.xlu0
      %v1416 = vpop.trf.xlu0
      %v1417 = vpop.trf.xlu0
      %v1418 = vpop.trf.xlu0
      %v1419 = vpop.trf.xlu0
      %1420 = vxpose.xlu0.c.b16.start [1/8] %v476, 128
      %1421 = vxpose.xlu0.c.b16.cont [2/8] 0, 128
      %1422 = vxpose.xlu0.c.b16.cont [3/8] 0, 128
      %1423 = vxpose.xlu0.c.b16.cont [4/8] 0, 128
      %1424 = vxpose.xlu0.c.b16.cont [5/8] 0, 128
      %1425 = vxpose.xlu0.c.b16.cont [6/8] 0, 128
      %1426 = vxpose.xlu0.c.b16.cont [7/8] 0, 128
      %1427 = vxpose.xlu0.c.b16.end [8/8] 0, 128
      %v1428 = vpop.trf.xlu0
      %v1429 = vpop.trf.xlu0
      %v1430 = vpop.trf.xlu0
      %v1431 = vpop.trf.xlu0
      %v1432 = vpop.trf.xlu0
      %v1433 = vpop.trf.xlu0
      %v1434 = vpop.trf.xlu0
      %v1435 = vpop.trf.xlu0
      %1436 = vxpose.xlu0.c.b16.start [1/8] %v444, 128
      %1437 = vxpose.xlu0.c.b16.cont [2/8] 0, 128
      %1438 = vxpose.xlu0.c.b16.cont [3/8] 0, 128
      %1439 = vxpose.xlu0.c.b16.cont [4/8] 0, 128
      %1440 = vxpose.xlu0.c.b16.cont [5/8] 0, 128
      %1441 = vxpose.xlu0.c.b16.cont [6/8] 0, 128
      %1442 = vxpose.xlu0.c.b16.cont [7/8] 0, 128
      %1443 = vxpose.xlu0.c.b16.end [8/8] 0, 128
      %v1444 = vpop.trf.xlu0
      %v1445 = vpop.trf.xlu0
      %v1446 = vpop.trf.xlu0
      %v1447 = vpop.trf.xlu0
      %v1448 = vpop.trf.xlu0
      %v1449 = vpop.trf.xlu0
      %v1450 = vpop.trf.xlu0
      %v1451 = vpop.trf.xlu0
      %1452 = vxpose.xlu0.c.b16.start [1/8] %v493, 128
      %1453 = vxpose.xlu0.c.b16.cont [2/8] 0, 128
      %1454 = vxpose.xlu0.c.b16.cont [3/8] 0, 128
      %1455 = vxpose.xlu0.c.b16.cont [4/8] 0, 128
      %1456 = vxpose.xlu0.c.b16.cont [5/8] 0, 128
      %1457 = vxpose.xlu0.c.b16.cont [6/8] 0, 128
      %1458 = vxpose.xlu0.c.b16.cont [7/8] 0, 128
      %1459 = vxpose.xlu0.c.b16.end [8/8] 0, 128
      %v1460 = vpop.trf.xlu0
      %v1461 = vpop.trf.xlu0
      %v1462 = vpop.trf.xlu0
      %v1463 = vpop.trf.xlu0
      %v1464 = vpop.trf.xlu0
      %v1465 = vpop.trf.xlu0
      %v1466 = vpop.trf.xlu0
      %v1467 = vpop.trf.xlu0
      %1468 = vxpose.xlu0.c.b16.start [1/8] %v435, 128
      %1469 = vxpose.xlu0.c.b16.cont [2/8] 0, 128
      %1470 = vxpose.xlu0.c.b16.cont [3/8] 0, 128
      %1471 = vxpose.xlu0.c.b16.cont [4/8] 0, 128
      %1472 = vxpose.xlu0.c.b16.cont [5/8] 0, 128
      %1473 = vxpose.xlu0.c.b16.cont [6/8] 0, 128
      %1474 = vxpose.xlu0.c.b16.cont [7/8] 0, 128
      %1475 = vxpose.xlu0.c.b16.end [8/8] 0, 128
      %v1476 = vpop.trf.xlu0
      %v1477 = vpop.trf.xlu0
      %v1478 = vpop.trf.xlu0
      %v1479 = vpop.trf.xlu0
      %v1480 = vpop.trf.xlu0
      %v1481 = vpop.trf.xlu0
      %v1482 = vpop.trf.xlu0
      %v1483 = vpop.trf.xlu0
      %1484 = vxpose.xlu0.c.b16.start [1/8] %v484, 128
      %1485 = vxpose.xlu0.c.b16.cont [2/8] 0, 128
      %1486 = vxpose.xlu0.c.b16.cont [3/8] 0, 128
      %1487 = vxpose.xlu0.c.b16.cont [4/8] 0, 128
      %1488 = vxpose.xlu0.c.b16.cont [5/8] 0, 128
      %1489 = vxpose.xlu0.c.b16.cont [6/8] 0, 128
      %1490 = vxpose.xlu0.c.b16.cont [7/8] 0, 128
      %1491 = vxpose.xlu0.c.b16.end [8/8] 0, 128
      %v1492 = vpop.trf.xlu0
      %v1493 = vpop.trf.xlu0
      %v1494 = vpop.trf.xlu0
      %v1495 = vpop.trf.xlu0
      %v1496 = vpop.trf.xlu0
      %v1497 = vpop.trf.xlu0
      %v1498 = vpop.trf.xlu0
      %v1499 = vpop.trf.xlu0
      %1500 = vxpose.xlu0.c.b16.start [1/8] %v445, 128
      %1501 = vxpose.xlu0.c.b16.cont [2/8] 0, 128
      %1502 = vxpose.xlu0.c.b16.cont [3/8] 0, 128
      %1503 = vxpose.xlu0.c.b16.cont [4/8] 0, 128
      %1504 = vxpose.xlu0.c.b16.cont [5/8] 0, 128
      %1505 = vxpose.xlu0.c.b16.cont [6/8] 0, 128
      %1506 = vxpose.xlu0.c.b16.cont [7/8] 0, 128
      %1507 = vxpose.xlu0.c.b16.end [8/8] 0, 128
      %v1508 = vpop.trf.xlu0
      %v1509 = vpop.trf.xlu0
      %v1510 = vpop.trf.xlu0
      %v1511 = vpop.trf.xlu0
      %v1512 = vpop.trf.xlu0
      %v1513 = vpop.trf.xlu0
      %v1514 = vpop.trf.xlu0
      %v1515 = vpop.trf.xlu0
      %1516 = vxpose.xlu0.c.b16.start [1/8] %v494, 128
      %1517 = vxpose.xlu0.c.b16.cont [2/8] 0, 128
      %1518 = vxpose.xlu0.c.b16.cont [3/8] 0, 128
      %1519 = vxpose.xlu0.c.b16.cont [4/8] 0, 128
      %1520 = vxpose.xlu0.c.b16.cont [5/8] 0, 128
      %1521 = vxpose.xlu0.c.b16.cont [6/8] 0, 128
      %1522 = vxpose.xlu0.c.b16.cont [7/8] 0, 128
      %1523 = vxpose.xlu0.c.b16.end [8/8] 0, 128
      %v1524 = vpop.trf.xlu0
      %v1525 = vpop.trf.xlu0
      %v1526 = vpop.trf.xlu0
      %v1527 = vpop.trf.xlu0
      %v1528 = vpop.trf.xlu0
      %v1529 = vpop.trf.xlu0
      %v1530 = vpop.trf.xlu0
      %v1531 = vpop.trf.xlu0
      %1532 = vxpose.xlu0.c.b16.start [1/8] %v442, 128
      %1533 = vxpose.xlu0.c.b16.cont [2/8] 0, 128
      %1534 = vxpose.xlu0.c.b16.cont [3/8] 0, 128
      %1535 = vxpose.xlu0.c.b16.cont [4/8] 0, 128
      %1536 = vxpose.xlu0.c.b16.cont [5/8] 0, 128
      %1537 = vxpose.xlu0.c.b16.cont [6/8] 0, 128
      %1538 = vxpose.xlu0.c.b16.cont [7/8] 0, 128
      %1539 = vxpose.xlu0.c.b16.end [8/8] 0, 128
      %v1540 = vpop.trf.xlu0
      %v1541 = vpop.trf.xlu0
      %v1542 = vpop.trf.xlu0
      %v1543 = vpop.trf.xlu0
      %v1544 = vpop.trf.xlu0
      %v1545 = vpop.trf.xlu0
      %v1546 = vpop.trf.xlu0
      %v1547 = vpop.trf.xlu0
      %1548 = vxpose.xlu0.c.b16.start [1/8] %v491, 128
      %1549 = vxpose.xlu0.c.b16.cont [2/8] 0, 128
      %1550 = vxpose.xlu0.c.b16.cont [3/8] 0, 128
      %1551 = vxpose.xlu0.c.b16.cont [4/8] 0, 128
      %1552 = vxpose.xlu0.c.b16.cont [5/8] 0, 128
      %1553 = vxpose.xlu0.c.b16.cont [6/8] 0, 128
      %1554 = vxpose.xlu0.c.b16.cont [7/8] 0, 128
      %1555 = vxpose.xlu0.c.b16.end [8/8] 0, 128
      %v1556 = vpop.trf.xlu0
      %v1557 = vpop.trf.xlu0
      %v1558 = vpop.trf.xlu0
      %v1559 = vpop.trf.xlu0
      %v1560 = vpop.trf.xlu0
      %v1561 = vpop.trf.xlu0
      %v1562 = vpop.trf.xlu0
      %v1563 = vpop.trf.xlu0
      %1564 = vxpose.xlu0.c.b16.start [1/8] %v446, 128
      %1565 = vxpose.xlu0.c.b16.cont [2/8] 0, 128
      %1566 = vxpose.xlu0.c.b16.cont [3/8] 0, 128
      %1567 = vxpose.xlu0.c.b16.cont [4/8] 0, 128
      %1568 = vxpose.xlu0.c.b16.cont [5/8] 0, 128
      %1569 = vxpose.xlu0.c.b16.cont [6/8] 0, 128
      %1570 = vxpose.xlu0.c.b16.cont [7/8] 0, 128
      %1571 = vxpose.xlu0.c.b16.end [8/8] 0, 128
      %v1572 = vpop.trf.xlu0
      %v1573 = vpop.trf.xlu0
      %v1574 = vpop.trf.xlu0
      %v1575 = vpop.trf.xlu0
      %v1576 = vpop.trf.xlu0
      %v1577 = vpop.trf.xlu0
      %v1578 = vpop.trf.xlu0
      %v1579 = vpop.trf.xlu0
      %1580 = vxpose.xlu0.c.b16.start [1/8] %v495, 128
      %1581 = vxpose.xlu0.c.b16.cont [2/8] 0, 128
      %1582 = vxpose.xlu0.c.b16.cont [3/8] 0, 128
      %1583 = vxpose.xlu0.c.b16.cont [4/8] 0, 128
      %1584 = vxpose.xlu0.c.b16.cont [5/8] 0, 128
      %1585 = vxpose.xlu0.c.b16.cont [6/8] 0, 128
      %1586 = vxpose.xlu0.c.b16.cont [7/8] 0, 128
      %1587 = vxpose.xlu0.c.b16.end [8/8] 0, 128
      %v1588 = vpop.trf.xlu0
      %v1589 = vpop.trf.xlu0
      %v1590 = vpop.trf.xlu0
      %v1591 = vpop.trf.xlu0
      %v1592 = vpop.trf.xlu0
      %v1593 = vpop.trf.xlu0
      %v1594 = vpop.trf.xlu0
      %v1595 = vpop.trf.xlu0
      %1596 = vxpose.xlu0.c.b16.start [1/8] %v518, 128
      %1597 = vxpose.xlu0.c.b16.cont [2/8] 0, 128
      %1598 = vxpose.xlu0.c.b16.cont [3/8] 0, 128
      %1599 = vxpose.xlu0.c.b16.cont [4/8] 0, 128
      %1600 = vxpose.xlu0.c.b16.cont [5/8] 0, 128
      %1601 = vxpose.xlu0.c.b16.cont [6/8] 0, 128
      %1602 = vxpose.xlu0.c.b16.cont [7/8] 0, 128
      %1603 = vxpose.xlu0.c.b16.end [8/8] 0, 128
      %v1604 = vpop.trf.xlu0
      %v1605 = vpop.trf.xlu0
      %v1606 = vpop.trf.xlu0
      %v1607 = vpop.trf.xlu0
      %v1608 = vpop.trf.xlu0
      %v1609 = vpop.trf.xlu0
      %v1610 = vpop.trf.xlu0
      %v1611 = vpop.trf.xlu0
      %1612 = vxpose.xlu0.c.b16.start [1/8] %v567, 128
      %1613 = vxpose.xlu0.c.b16.cont [2/8] 0, 128
      %1614 = vxpose.xlu0.c.b16.cont [3/8] 0, 128
      %1615 = vxpose.xlu0.c.b16.cont [4/8] 0, 128
      %1616 = vxpose.xlu0.c.b16.cont [5/8] 0, 128
      %1617 = vxpose.xlu0.c.b16.cont [6/8] 0, 128
      %1618 = vxpose.xlu0.c.b16.cont [7/8] 0, 128
      %1619 = vxpose.xlu0.c.b16.end [8/8] 0, 128
      %v1620 = vpop.trf.xlu0
      %v1621 = vpop.trf.xlu0
      %v1622 = vpop.trf.xlu0
      %v1623 = vpop.trf.xlu0
      %v1624 = vpop.trf.xlu0
      %v1625 = vpop.trf.xlu0
      %v1626 = vpop.trf.xlu0
      %v1627 = vpop.trf.xlu0
      %1628 = vxpose.xlu0.c.b16.start [1/8] %v541, 128
      %1629 = vxpose.xlu0.c.b16.cont [2/8] 0, 128
      %1630 = vxpose.xlu0.c.b16.cont [3/8] 0, 128
      %1631 = vxpose.xlu0.c.b16.cont [4/8] 0, 128
      %1632 = vxpose.xlu0.c.b16.cont [5/8] 0, 128
      %1633 = vxpose.xlu0.c.b16.cont [6/8] 0, 128
      %1634 = vxpose.xlu0.c.b16.cont [7/8] 0, 128
      %1635 = vxpose.xlu0.c.b16.end [8/8] 0, 128
      %v1636 = vpop.trf.xlu0
      %v1637 = vpop.trf.xlu0
      %v1638 = vpop.trf.xlu0
      %v1639 = vpop.trf.xlu0
      %v1640 = vpop.trf.xlu0
      %v1641 = vpop.trf.xlu0
      %v1642 = vpop.trf.xlu0
      %v1643 = vpop.trf.xlu0
      %1644 = vxpose.xlu0.c.b16.start [1/8] %v590, 128
      %1645 = vxpose.xlu0.c.b16.cont [2/8] 0, 128
      %1646 = vxpose.xlu0.c.b16.cont [3/8] 0, 128
      %1647 = vxpose.xlu0.c.b16.cont [4/8] 0, 128
      %1648 = vxpose.xlu0.c.b16.cont [5/8] 0, 128
      %1649 = vxpose.xlu0.c.b16.cont [6/8] 0, 128
      %1650 = vxpose.xlu0.c.b16.cont [7/8] 0, 128
      %1651 = vxpose.xlu0.c.b16.end [8/8] 0, 128
      %v1652 = vpop.trf.xlu0
      %v1653 = vpop.trf.xlu0
      %v1654 = vpop.trf.xlu0
      %v1655 = vpop.trf.xlu0
      %v1656 = vpop.trf.xlu0
      %v1657 = vpop.trf.xlu0
      %v1658 = vpop.trf.xlu0
      %v1659 = vpop.trf.xlu0
      %1660 = vxpose.xlu0.c.b16.start [1/8] %v525, 128
      %1661 = vxpose.xlu0.c.b16.cont [2/8] 0, 128
      %1662 = vxpose.xlu0.c.b16.cont [3/8] 0, 128
      %1663 = vxpose.xlu0.c.b16.cont [4/8] 0, 128
      %1664 = vxpose.xlu0.c.b16.cont [5/8] 0, 128
      %1665 = vxpose.xlu0.c.b16.cont [6/8] 0, 128
      %1666 = vxpose.xlu0.c.b16.cont [7/8] 0, 128
      %1667 = vxpose.xlu0.c.b16.end [8/8] 0, 128
      %v1668 = vpop.trf.xlu0
      %v1669 = vpop.trf.xlu0
      %v1670 = vpop.trf.xlu0
      %v1671 = vpop.trf.xlu0
      %v1672 = vpop.trf.xlu0
      %v1673 = vpop.trf.xlu0
      %v1674 = vpop.trf.xlu0
      %v1675 = vpop.trf.xlu0
      %1676 = vxpose.xlu0.c.b16.start [1/8] %v574, 128
      %1677 = vxpose.xlu0.c.b16.cont [2/8] 0, 128
      %1678 = vxpose.xlu0.c.b16.cont [3/8] 0, 128
      %1679 = vxpose.xlu0.c.b16.cont [4/8] 0, 128
      %1680 = vxpose.xlu0.c.b16.cont [5/8] 0, 128
      %1681 = vxpose.xlu0.c.b16.cont [6/8] 0, 128
      %1682 = vxpose.xlu0.c.b16.cont [7/8] 0, 128
      %1683 = vxpose.xlu0.c.b16.end [8/8] 0, 128
      %v1684 = vpop.trf.xlu0
      %v1685 = vpop.trf.xlu0
      %v1686 = vpop.trf.xlu0
      %v1687 = vpop.trf.xlu0
      %v1688 = vpop.trf.xlu0
      %v1689 = vpop.trf.xlu0
      %v1690 = vpop.trf.xlu0
      %v1691 = vpop.trf.xlu0
      %1692 = vxpose.xlu0.c.b16.start [1/8] %v542, 128
      %1693 = vxpose.xlu0.c.b16.cont [2/8] 0, 128
      %1694 = vxpose.xlu0.c.b16.cont [3/8] 0, 128
      %1695 = vxpose.xlu0.c.b16.cont [4/8] 0, 128
      %1696 = vxpose.xlu0.c.b16.cont [5/8] 0, 128
      %1697 = vxpose.xlu0.c.b16.cont [6/8] 0, 128
      %1698 = vxpose.xlu0.c.b16.cont [7/8] 0, 128
      %1699 = vxpose.xlu0.c.b16.end [8/8] 0, 128
      %v1700 = vpop.trf.xlu0
      %v1701 = vpop.trf.xlu0
      %v1702 = vpop.trf.xlu0
      %v1703 = vpop.trf.xlu0
      %v1704 = vpop.trf.xlu0
      %v1705 = vpop.trf.xlu0
      %v1706 = vpop.trf.xlu0
      %v1707 = vpop.trf.xlu0
      %1708 = vxpose.xlu0.c.b16.start [1/8] %v591, 128
      %1709 = vxpose.xlu0.c.b16.cont [2/8] 0, 128
      %1710 = vxpose.xlu0.c.b16.cont [3/8] 0, 128
      %1711 = vxpose.xlu0.c.b16.cont [4/8] 0, 128
      %1712 = vxpose.xlu0.c.b16.cont [5/8] 0, 128
      %1713 = vxpose.xlu0.c.b16.cont [6/8] 0, 128
      %1714 = vxpose.xlu0.c.b16.cont [7/8] 0, 128
      %1715 = vxpose.xlu0.c.b16.end [8/8] 0, 128
      %v1716 = vpop.trf.xlu0
      %v1717 = vpop.trf.xlu0
      %v1718 = vpop.trf.xlu0
      %v1719 = vpop.trf.xlu0
      %v1720 = vpop.trf.xlu0
      %v1721 = vpop.trf.xlu0
      %v1722 = vpop.trf.xlu0
      %v1723 = vpop.trf.xlu0
      %1724 = vxpose.xlu0.c.b16.start [1/8] %v533, 128
      %1725 = vxpose.xlu0.c.b16.cont [2/8] 0, 128
      %1726 = vxpose.xlu0.c.b16.cont [3/8] 0, 128
      %1727 = vxpose.xlu0.c.b16.cont [4/8] 0, 128
      %1728 = vxpose.xlu0.c.b16.cont [5/8] 0, 128
      %1729 = vxpose.xlu0.c.b16.cont [6/8] 0, 128
      %1730 = vxpose.xlu0.c.b16.cont [7/8] 0, 128
      %1731 = vxpose.xlu0.c.b16.end [8/8] 0, 128
      %v1732 = vpop.trf.xlu0
      %v1733 = vpop.trf.xlu0
      %v1734 = vpop.trf.xlu0
      %v1735 = vpop.trf.xlu0
      %v1736 = vpop.trf.xlu0
      %v1737 = vpop.trf.xlu0
      %v1738 = vpop.trf.xlu0
      %v1739 = vpop.trf.xlu0
      %1740 = vxpose.xlu0.c.b16.start [1/8] %v582, 128
      %1741 = vxpose.xlu0.c.b16.cont [2/8] 0, 128
      %1742 = vxpose.xlu0.c.b16.cont [3/8] 0, 128
      %1743 = vxpose.xlu0.c.b16.cont [4/8] 0, 128
      %1744 = vxpose.xlu0.c.b16.cont [5/8] 0, 128
      %1745 = vxpose.xlu0.c.b16.cont [6/8] 0, 128
      %1746 = vxpose.xlu0.c.b16.cont [7/8] 0, 128
      %1747 = vxpose.xlu0.c.b16.end [8/8] 0, 128
      %v1748 = vpop.trf.xlu0
      %v1749 = vpop.trf.xlu0
      %v1750 = vpop.trf.xlu0
      %v1751 = vpop.trf.xlu0
      %v1752 = vpop.trf.xlu0
      %v1753 = vpop.trf.xlu0
      %v1754 = vpop.trf.xlu0
      %v1755 = vpop.trf.xlu0
      %1756 = vxpose.xlu0.c.b16.start [1/8] %v543, 128
      %1757 = vxpose.xlu0.c.b16.cont [2/8] 0, 128
      %1758 = vxpose.xlu0.c.b16.cont [3/8] 0, 128
      %1759 = vxpose.xlu0.c.b16.cont [4/8] 0, 128
      %1760 = vxpose.xlu0.c.b16.cont [5/8] 0, 128
      %1761 = vxpose.xlu0.c.b16.cont [6/8] 0, 128
      %1762 = vxpose.xlu0.c.b16.cont [7/8] 0, 128
      %1763 = vxpose.xlu0.c.b16.end [8/8] 0, 128
      %v1764 = vpop.trf.xlu0
      %v1765 = vpop.trf.xlu0
      %v1766 = vpop.trf.xlu0
      %v1767 = vpop.trf.xlu0
      %v1768 = vpop.trf.xlu0
      %v1769 = vpop.trf.xlu0
      %v1770 = vpop.trf.xlu0
      %v1771 = vpop.trf.xlu0
      %1772 = vxpose.xlu0.c.b16.start [1/8] %v592, 128
      %1773 = vxpose.xlu0.c.b16.cont [2/8] 0, 128
      %1774 = vxpose.xlu0.c.b16.cont [3/8] 0, 128
      %1775 = vxpose.xlu0.c.b16.cont [4/8] 0, 128
      %1776 = vxpose.xlu0.c.b16.cont [5/8] 0, 128
      %1777 = vxpose.xlu0.c.b16.cont [6/8] 0, 128
      %1778 = vxpose.xlu0.c.b16.cont [7/8] 0, 128
      %1779 = vxpose.xlu0.c.b16.end [8/8] 0, 128
      %v1780 = vpop.trf.xlu0
      %v1781 = vpop.trf.xlu0
      %v1782 = vpop.trf.xlu0
      %v1783 = vpop.trf.xlu0
      %v1784 = vpop.trf.xlu0
      %v1785 = vpop.trf.xlu0
      %v1786 = vpop.trf.xlu0
      %v1787 = vpop.trf.xlu0
      %1788 = vxpose.xlu0.c.b16.start [1/8] %v540, 128
      %1789 = vxpose.xlu0.c.b16.cont [2/8] 0, 128
      %1790 = vxpose.xlu0.c.b16.cont [3/8] 0, 128
      %1791 = vxpose.xlu0.c.b16.cont [4/8] 0, 128
      %1792 = vxpose.xlu0.c.b16.cont [5/8] 0, 128
      %1793 = vxpose.xlu0.c.b16.cont [6/8] 0, 128
      %1794 = vxpose.xlu0.c.b16.cont [7/8] 0, 128
      %1795 = vxpose.xlu0.c.b16.end [8/8] 0, 128
      %v1796 = vpop.trf.xlu0
      %v1797 = vpop.trf.xlu0
      %v1798 = vpop.trf.xlu0
      %v1799 = vpop.trf.xlu0
      %v1800 = vpop.trf.xlu0
      %v1801 = vpop.trf.xlu0
      %v1802 = vpop.trf.xlu0
      %v1803 = vpop.trf.xlu0
      %1804 = vxpose.xlu0.c.b16.start [1/8] %v589, 128
      %1805 = vxpose.xlu0.c.b16.cont [2/8] 0, 128
      %1806 = vxpose.xlu0.c.b16.cont [3/8] 0, 128
      %1807 = vxpose.xlu0.c.b16.cont [4/8] 0, 128
      %1808 = vxpose.xlu0.c.b16.cont [5/8] 0, 128
      %1809 = vxpose.xlu0.c.b16.cont [6/8] 0, 128
      %1810 = vxpose.xlu0.c.b16.cont [7/8] 0, 128
      %1811 = vxpose.xlu0.c.b16.end [8/8] 0, 128
      %v1812 = vpop.trf.xlu0
      %v1813 = vpop.trf.xlu0
      %v1814 = vpop.trf.xlu0
      %v1815 = vpop.trf.xlu0
      %v1816 = vpop.trf.xlu0
      %v1817 = vpop.trf.xlu0
      %v1818 = vpop.trf.xlu0
      %v1819 = vpop.trf.xlu0
      %1820 = vxpose.xlu0.c.b16.start [1/8] %v544, 128
      %1821 = vxpose.xlu0.c.b16.cont [2/8] 0, 128
      %1822 = vxpose.xlu0.c.b16.cont [3/8] 0, 128
      %1823 = vxpose.xlu0.c.b16.cont [4/8] 0, 128
      %1824 = vxpose.xlu0.c.b16.cont [5/8] 0, 128
      %1825 = vxpose.xlu0.c.b16.cont [6/8] 0, 128
      %1826 = vxpose.xlu0.c.b16.cont [7/8] 0, 128
      %1827 = vxpose.xlu0.c.b16.end [8/8] 0, 128
      %v1828 = vpop.trf.xlu0
      %v1829 = vpop.trf.xlu0
      %v1830 = vpop.trf.xlu0
      %v1831 = vpop.trf.xlu0
      %v1832 = vpop.trf.xlu0
      %v1833 = vpop.trf.xlu0
      %v1834 = vpop.trf.xlu0
      %v1835 = vpop.trf.xlu0
      %1836 = vxpose.xlu0.c.b16.start [1/8] %v593, 128
      %1837 = vxpose.xlu0.c.b16.cont [2/8] 0, 128
      %1838 = vxpose.xlu0.c.b16.cont [3/8] 0, 128
      %1839 = vxpose.xlu0.c.b16.cont [4/8] 0, 128
      %1840 = vxpose.xlu0.c.b16.cont [5/8] 0, 128
      %1841 = vxpose.xlu0.c.b16.cont [6/8] 0, 128
      %1842 = vxpose.xlu0.c.b16.cont [7/8] 0, 128
      %1843 = vxpose.xlu0.c.b16.end [8/8] 0, 128
      %v1844 = vpop.trf.xlu0
      %v1845 = vpop.trf.xlu0
      %v1846 = vpop.trf.xlu0
      %v1847 = vpop.trf.xlu0
      %v1848 = vpop.trf.xlu0
      %v1849 = vpop.trf.xlu0
      %v1850 = vpop.trf.xlu0
      %v1851 = vpop.trf.xlu0
      %1852 = vxpose.xlu0.c.b16.start [1/8] %v616, 128
      %1853 = vxpose.xlu0.c.b16.cont [2/8] 0, 128
      %1854 = vxpose.xlu0.c.b16.cont [3/8] 0, 128
      %1855 = vxpose.xlu0.c.b16.cont [4/8] 0, 128
      %1856 = vxpose.xlu0.c.b16.cont [5/8] 0, 128
      %1857 = vxpose.xlu0.c.b16.cont [6/8] 0, 128
      %1858 = vxpose.xlu0.c.b16.cont [7/8] 0, 128
      %1859 = vxpose.xlu0.c.b16.end [8/8] 0, 128
      %v1860 = vpop.trf.xlu0
      %v1861 = vpop.trf.xlu0
      %v1862 = vpop.trf.xlu0
      %v1863 = vpop.trf.xlu0
      %v1864 = vpop.trf.xlu0
      %v1865 = vpop.trf.xlu0
      %v1866 = vpop.trf.xlu0
      %v1867 = vpop.trf.xlu0
      %1868 = vxpose.xlu0.c.b16.start [1/8] %v665, 128
      %1869 = vxpose.xlu0.c.b16.cont [2/8] 0, 128
      %1870 = vxpose.xlu0.c.b16.cont [3/8] 0, 128
      %1871 = vxpose.xlu0.c.b16.cont [4/8] 0, 128
      %1872 = vxpose.xlu0.c.b16.cont [5/8] 0, 128
      %1873 = vxpose.xlu0.c.b16.cont [6/8] 0, 128
      %1874 = vxpose.xlu0.c.b16.cont [7/8] 0, 128
      %1875 = vxpose.xlu0.c.b16.end [8/8] 0, 128
      %v1876 = vpop.trf.xlu0
      %v1877 = vpop.trf.xlu0
      %v1878 = vpop.trf.xlu0
      %v1879 = vpop.trf.xlu0
      %v1880 = vpop.trf.xlu0
      %v1881 = vpop.trf.xlu0
      %v1882 = vpop.trf.xlu0
      %v1883 = vpop.trf.xlu0
      %1884 = vxpose.xlu0.c.b16.start [1/8] %v639, 128
      %1885 = vxpose.xlu0.c.b16.cont [2/8] 0, 128
      %1886 = vxpose.xlu0.c.b16.cont [3/8] 0, 128
      %1887 = vxpose.xlu0.c.b16.cont [4/8] 0, 128
      %1888 = vxpose.xlu0.c.b16.cont [5/8] 0, 128
      %1889 = vxpose.xlu0.c.b16.cont [6/8] 0, 128
      %1890 = vxpose.xlu0.c.b16.cont [7/8] 0, 128
      %1891 = vxpose.xlu0.c.b16.end [8/8] 0, 128
      %v1892 = vpop.trf.xlu0
      %v1893 = vpop.trf.xlu0
      %v1894 = vpop.trf.xlu0
      %v1895 = vpop.trf.xlu0
      %v1896 = vpop.trf.xlu0
      %v1897 = vpop.trf.xlu0
      %v1898 = vpop.trf.xlu0
      %v1899 = vpop.trf.xlu0
      %1900 = vxpose.xlu0.c.b16.start [1/8] %v688, 128
      %1901 = vxpose.xlu0.c.b16.cont [2/8] 0, 128
      %1902 = vxpose.xlu0.c.b16.cont [3/8] 0, 128
      %1903 = vxpose.xlu0.c.b16.cont [4/8] 0, 128
      %1904 = vxpose.xlu0.c.b16.cont [5/8] 0, 128
      %1905 = vxpose.xlu0.c.b16.cont [6/8] 0, 128
      %1906 = vxpose.xlu0.c.b16.cont [7/8] 0, 128
      %1907 = vxpose.xlu0.c.b16.end [8/8] 0, 128
      %v1908 = vpop.trf.xlu0
      %v1909 = vpop.trf.xlu0
      %v1910 = vpop.trf.xlu0
      %v1911 = vpop.trf.xlu0
      %v1912 = vpop.trf.xlu0
      %v1913 = vpop.trf.xlu0
      %v1914 = vpop.trf.xlu0
      %v1915 = vpop.trf.xlu0
      %1916 = vxpose.xlu0.c.b16.start [1/8] %v623, 128
      %1917 = vxpose.xlu0.c.b16.cont [2/8] 0, 128
      %1918 = vxpose.xlu0.c.b16.cont [3/8] 0, 128
      %1919 = vxpose.xlu0.c.b16.cont [4/8] 0, 128
      %1920 = vxpose.xlu0.c.b16.cont [5/8] 0, 128
      %1921 = vxpose.xlu0.c.b16.cont [6/8] 0, 128
      %1922 = vxpose.xlu0.c.b16.cont [7/8] 0, 128
      %1923 = vxpose.xlu0.c.b16.end [8/8] 0, 128
      %v1924 = vpop.trf.xlu0
      %v1925 = vpop.trf.xlu0
      %v1926 = vpop.trf.xlu0
      %v1927 = vpop.trf.xlu0
      %v1928 = vpop.trf.xlu0
      %v1929 = vpop.trf.xlu0
      %v1930 = vpop.trf.xlu0
      %v1931 = vpop.trf.xlu0
      %1932 = vxpose.xlu0.c.b16.start [1/8] %v672, 128
      %1933 = vxpose.xlu0.c.b16.cont [2/8] 0, 128
      %1934 = vxpose.xlu0.c.b16.cont [3/8] 0, 128
      %1935 = vxpose.xlu0.c.b16.cont [4/8] 0, 128
      %1936 = vxpose.xlu0.c.b16.cont [5/8] 0, 128
      %1937 = vxpose.xlu0.c.b16.cont [6/8] 0, 128
      %1938 = vxpose.xlu0.c.b16.cont [7/8] 0, 128
      %1939 = vxpose.xlu0.c.b16.end [8/8] 0, 128
      %v1940 = vpop.trf.xlu0
      %v1941 = vpop.trf.xlu0
      %v1942 = vpop.trf.xlu0
      %v1943 = vpop.trf.xlu0
      %v1944 = vpop.trf.xlu0
      %v1945 = vpop.trf.xlu0
      %v1946 = vpop.trf.xlu0
      %v1947 = vpop.trf.xlu0
      %1948 = vxpose.xlu0.c.b16.start [1/8] %v640, 128
      %1949 = vxpose.xlu0.c.b16.cont [2/8] 0, 128
      %1950 = vxpose.xlu0.c.b16.cont [3/8] 0, 128
      %1951 = vxpose.xlu0.c.b16.cont [4/8] 0, 128
      %1952 = vxpose.xlu0.c.b16.cont [5/8] 0, 128
      %1953 = vxpose.xlu0.c.b16.cont [6/8] 0, 128
      %1954 = vxpose.xlu0.c.b16.cont [7/8] 0, 128
      %1955 = vxpose.xlu0.c.b16.end [8/8] 0, 128
      %v1956 = vpop.trf.xlu0
      %v1957 = vpop.trf.xlu0
      %v1958 = vpop.trf.xlu0
      %v1959 = vpop.trf.xlu0
      %v1960 = vpop.trf.xlu0
      %v1961 = vpop.trf.xlu0
      %v1962 = vpop.trf.xlu0
      %v1963 = vpop.trf.xlu0
      %1964 = vxpose.xlu0.c.b16.start [1/8] %v689, 128
      %1965 = vxpose.xlu0.c.b16.cont [2/8] 0, 128
      %1966 = vxpose.xlu0.c.b16.cont [3/8] 0, 128
      %1967 = vxpose.xlu0.c.b16.cont [4/8] 0, 128
      %1968 = vxpose.xlu0.c.b16.cont [5/8] 0, 128
      %1969 = vxpose.xlu0.c.b16.cont [6/8] 0, 128
      %1970 = vxpose.xlu0.c.b16.cont [7/8] 0, 128
      %1971 = vxpose.xlu0.c.b16.end [8/8] 0, 128
      %v1972 = vpop.trf.xlu0
      %v1973 = vpop.trf.xlu0
      %v1974 = vpop.trf.xlu0
      %v1975 = vpop.trf.xlu0
      %v1976 = vpop.trf.xlu0
      %v1977 = vpop.trf.xlu0
      %v1978 = vpop.trf.xlu0
      %v1979 = vpop.trf.xlu0
      %1980 = vxpose.xlu0.c.b16.start [1/8] %v631, 128
      %1981 = vxpose.xlu0.c.b16.cont [2/8] 0, 128
      %1982 = vxpose.xlu0.c.b16.cont [3/8] 0, 128
      %1983 = vxpose.xlu0.c.b16.cont [4/8] 0, 128
      %1984 = vxpose.xlu0.c.b16.cont [5/8] 0, 128
      %1985 = vxpose.xlu0.c.b16.cont [6/8] 0, 128
      %1986 = vxpose.xlu0.c.b16.cont [7/8] 0, 128
      %1987 = vxpose.xlu0.c.b16.end [8/8] 0, 128
      %v1988 = vpop.trf.xlu0
      %v1989 = vpop.trf.xlu0
      %v1990 = vpop.trf.xlu0
      %v1991 = vpop.trf.xlu0
      %v1992 = vpop.trf.xlu0
      %v1993 = vpop.trf.xlu0
      %v1994 = vpop.trf.xlu0
      %v1995 = vpop.trf.xlu0
      %1996 = vxpose.xlu0.c.b16.start [1/8] %v680, 128
      %1997 = vxpose.xlu0.c.b16.cont [2/8] 0, 128
      %1998 = vxpose.xlu0.c.b16.cont [3/8] 0, 128
      %1999 = vxpose.xlu0.c.b16.cont [4/8] 0, 128
      %2000 = vxpose.xlu0.c.b16.cont [5/8] 0, 128
      %2001 = vxpose.xlu0.c.b16.cont [6/8] 0, 128
      %2002 = vxpose.xlu0.c.b16.cont [7/8] 0, 128
      %2003 = vxpose.xlu0.c.b16.end [8/8] 0, 128
      %v2004 = vpop.trf.xlu0
      %v2005 = vpop.trf.xlu0
      %v2006 = vpop.trf.xlu0
      %v2007 = vpop.trf.xlu0
      %v2008 = vpop.trf.xlu0
      %v2009 = vpop.trf.xlu0
      %v2010 = vpop.trf.xlu0
      %v2011 = vpop.trf.xlu0
      %2012 = vxpose.xlu0.c.b16.start [1/8] %v641, 128
      %2013 = vxpose.xlu0.c.b16.cont [2/8] 0, 128
      %2014 = vxpose.xlu0.c.b16.cont [3/8] 0, 128
      %2015 = vxpose.xlu0.c.b16.cont [4/8] 0, 128
      %2016 = vxpose.xlu0.c.b16.cont [5/8] 0, 128
      %2017 = vxpose.xlu0.c.b16.cont [6/8] 0, 128
      %2018 = vxpose.xlu0.c.b16.cont [7/8] 0, 128
      %2019 = vxpose.xlu0.c.b16.end [8/8] 0, 128
      %v2020 = vpop.trf.xlu0
      %v2021 = vpop.trf.xlu0
      %v2022 = vpop.trf.xlu0
      %v2023 = vpop.trf.xlu0
      %v2024 = vpop.trf.xlu0
      %v2025 = vpop.trf.xlu0
      %v2026 = vpop.trf.xlu0
      %v2027 = vpop.trf.xlu0
      %2028 = vxpose.xlu0.c.b16.start [1/8] %v690, 128
      %2029 = vxpose.xlu0.c.b16.cont [2/8] 0, 128
      %2030 = vxpose.xlu0.c.b16.cont [3/8] 0, 128
      %2031 = vxpose.xlu0.c.b16.cont [4/8] 0, 128
      %2032 = vxpose.xlu0.c.b16.cont [5/8] 0, 128
      %2033 = vxpose.xlu0.c.b16.cont [6/8] 0, 128
      %2034 = vxpose.xlu0.c.b16.cont [7/8] 0, 128
      %2035 = vxpose.xlu0.c.b16.end [8/8] 0, 128
      %v2036 = vpop.trf.xlu0
      %v2037 = vpop.trf.xlu0
      %v2038 = vpop.trf.xlu0
      %v2039 = vpop.trf.xlu0
      %v2040 = vpop.trf.xlu0
      %v2041 = vpop.trf.xlu0
      %v2042 = vpop.trf.xlu0
      %v2043 = vpop.trf.xlu0
      %2044 = vxpose.xlu0.c.b16.start [1/8] %v638, 128
      %2045 = vxpose.xlu0.c.b16.cont [2/8] 0, 128
      %2046 = vxpose.xlu0.c.b16.cont [3/8] 0, 128
      %2047 = vxpose.xlu0.c.b16.cont [4/8] 0, 128
      %2048 = vxpose.xlu0.c.b16.cont [5/8] 0, 128
      %2049 = vxpose.xlu0.c.b16.cont [6/8] 0, 128
      %2050 = vxpose.xlu0.c.b16.cont [7/8] 0, 128
      %2051 = vxpose.xlu0.c.b16.end [8/8] 0, 128
      %v2052 = vpop.trf.xlu0
      %v2053 = vpop.trf.xlu0
      %v2054 = vpop.trf.xlu0
      %v2055 = vpop.trf.xlu0
      %v2056 = vpop.trf.xlu0
      %v2057 = vpop.trf.xlu0
      %v2058 = vpop.trf.xlu0
      %v2059 = vpop.trf.xlu0
      %2060 = vxpose.xlu0.c.b16.start [1/8] %v687, 128
      %2061 = vxpose.xlu0.c.b16.cont [2/8] 0, 128
      %2062 = vxpose.xlu0.c.b16.cont [3/8] 0, 128
      %2063 = vxpose.xlu0.c.b16.cont [4/8] 0, 128
      %2064 = vxpose.xlu0.c.b16.cont [5/8] 0, 128
      %2065 = vxpose.xlu0.c.b16.cont [6/8] 0, 128
      %2066 = vxpose.xlu0.c.b16.cont [7/8] 0, 128
      %2067 = vxpose.xlu0.c.b16.end [8/8] 0, 128
      %v2068 = vpop.trf.xlu0
      %v2069 = vpop.trf.xlu0
      %v2070 = vpop.trf.xlu0
      %v2071 = vpop.trf.xlu0
      %v2072 = vpop.trf.xlu0
      %v2073 = vpop.trf.xlu0
      %v2074 = vpop.trf.xlu0
      %v2075 = vpop.trf.xlu0
      %2076 = vxpose.xlu0.c.b16.start [1/8] %v642, 128
      %2077 = vxpose.xlu0.c.b16.cont [2/8] 0, 128
      %2078 = vxpose.xlu0.c.b16.cont [3/8] 0, 128
      %2079 = vxpose.xlu0.c.b16.cont [4/8] 0, 128
      %2080 = vxpose.xlu0.c.b16.cont [5/8] 0, 128
      %2081 = vxpose.xlu0.c.b16.cont [6/8] 0, 128
      %2082 = vxpose.xlu0.c.b16.cont [7/8] 0, 128
      %2083 = vxpose.xlu0.c.b16.end [8/8] 0, 128
      %v2084 = vpop.trf.xlu0
      %v2085 = vpop.trf.xlu0
      %v2086 = vpop.trf.xlu0
      %v2087 = vpop.trf.xlu0
      %v2088 = vpop.trf.xlu0
      %v2089 = vpop.trf.xlu0
      %v2090 = vpop.trf.xlu0
      %v2091 = vpop.trf.xlu0
      %2092 = vxpose.xlu0.c.b16.start [1/8] %v691, 128
      %2093 = vxpose.xlu0.c.b16.cont [2/8] 0, 128
      %2094 = vxpose.xlu0.c.b16.cont [3/8] 0, 128
      %2095 = vxpose.xlu0.c.b16.cont [4/8] 0, 128
      %2096 = vxpose.xlu0.c.b16.cont [5/8] 0, 128
      %2097 = vxpose.xlu0.c.b16.cont [6/8] 0, 128
      %2098 = vxpose.xlu0.c.b16.cont [7/8] 0, 128
      %2099 = vxpose.xlu0.c.b16.end [8/8] 0, 128
      %v2100 = vpop.trf.xlu0
      %v2101 = vpop.trf.xlu0
      %v2102 = vpop.trf.xlu0
      %v2103 = vpop.trf.xlu0
      %v2104 = vpop.trf.xlu0
      %v2105 = vpop.trf.xlu0
      %v2106 = vpop.trf.xlu0
      %v2107 = vpop.trf.xlu0
      %2108 = vxpose.xlu0.c.b16.start [1/8] %v714, 128
      %2109 = vxpose.xlu0.c.b16.cont [2/8] 0, 128
      %2110 = vxpose.xlu0.c.b16.cont [3/8] 0, 128
      %2111 = vxpose.xlu0.c.b16.cont [4/8] 0, 128
      %2112 = vxpose.xlu0.c.b16.cont [5/8] 0, 128
      %2113 = vxpose.xlu0.c.b16.cont [6/8] 0, 128
      %2114 = vxpose.xlu0.c.b16.cont [7/8] 0, 128
      %2115 = vxpose.xlu0.c.b16.end [8/8] 0, 128
      %v2116 = vpop.trf.xlu0
      %v2117 = vpop.trf.xlu0
      %v2118 = vpop.trf.xlu0
      %v2119 = vpop.trf.xlu0
      %v2120 = vpop.trf.xlu0
      %v2121 = vpop.trf.xlu0
      %v2122 = vpop.trf.xlu0
      %v2123 = vpop.trf.xlu0
      %2124 = vxpose.xlu0.c.b16.start [1/8] %v763, 128
      %2125 = vxpose.xlu0.c.b16.cont [2/8] 0, 128
      %2126 = vxpose.xlu0.c.b16.cont [3/8] 0, 128
      %2127 = vxpose.xlu0.c.b16.cont [4/8] 0, 128
      %2128 = vxpose.xlu0.c.b16.cont [5/8] 0, 128
      %2129 = vxpose.xlu0.c.b16.cont [6/8] 0, 128
      %2130 = vxpose.xlu0.c.b16.cont [7/8] 0, 128
      %2131 = vxpose.xlu0.c.b16.end [8/8] 0, 128
      %v2132 = vpop.trf.xlu0
      %v2133 = vpop.trf.xlu0
      %v2134 = vpop.trf.xlu0
      %v2135 = vpop.trf.xlu0
      %v2136 = vpop.trf.xlu0
      %v2137 = vpop.trf.xlu0
      %v2138 = vpop.trf.xlu0
      %v2139 = vpop.trf.xlu0
      %2140 = vxpose.xlu0.c.b16.start [1/8] %v737, 128
      %2141 = vxpose.xlu0.c.b16.cont [2/8] 0, 128
      %2142 = vxpose.xlu0.c.b16.cont [3/8] 0, 128
      %2143 = vxpose.xlu0.c.b16.cont [4/8] 0, 128
      %2144 = vxpose.xlu0.c.b16.cont [5/8] 0, 128
      %2145 = vxpose.xlu0.c.b16.cont [6/8] 0, 128
      %2146 = vxpose.xlu0.c.b16.cont [7/8] 0, 128
      %2147 = vxpose.xlu0.c.b16.end [8/8] 0, 128
      %v2148 = vpop.trf.xlu0
      %v2149 = vpop.trf.xlu0
      %v2150 = vpop.trf.xlu0
      %v2151 = vpop.trf.xlu0
      %v2152 = vpop.trf.xlu0
      %v2153 = vpop.trf.xlu0
      %v2154 = vpop.trf.xlu0
      %v2155 = vpop.trf.xlu0
      %2156 = vxpose.xlu0.c.b16.start [1/8] %v786, 128
      %2157 = vxpose.xlu0.c.b16.cont [2/8] 0, 128
      %2158 = vxpose.xlu0.c.b16.cont [3/8] 0, 128
      %2159 = vxpose.xlu0.c.b16.cont [4/8] 0, 128
      %2160 = vxpose.xlu0.c.b16.cont [5/8] 0, 128
      %2161 = vxpose.xlu0.c.b16.cont [6/8] 0, 128
      %2162 = vxpose.xlu0.c.b16.cont [7/8] 0, 128
      %2163 = vxpose.xlu0.c.b16.end [8/8] 0, 128
      %v2164 = vpop.trf.xlu0
      %v2165 = vpop.trf.xlu0
      %v2166 = vpop.trf.xlu0
      %v2167 = vpop.trf.xlu0
      %v2168 = vpop.trf.xlu0
      %v2169 = vpop.trf.xlu0
      %v2170 = vpop.trf.xlu0
      %v2171 = vpop.trf.xlu0
      %2172 = vxpose.xlu0.c.b16.start [1/8] %v721, 128
      %2173 = vxpose.xlu0.c.b16.cont [2/8] 0, 128
      %2174 = vxpose.xlu0.c.b16.cont [3/8] 0, 128
      %2175 = vxpose.xlu0.c.b16.cont [4/8] 0, 128
      %2176 = vxpose.xlu0.c.b16.cont [5/8] 0, 128
      %2177 = vxpose.xlu0.c.b16.cont [6/8] 0, 128
      %2178 = vxpose.xlu0.c.b16.cont [7/8] 0, 128
      %2179 = vxpose.xlu0.c.b16.end [8/8] 0, 128
      %v2180 = vpop.trf.xlu0
      %v2181 = vpop.trf.xlu0
      %v2182 = vpop.trf.xlu0
      %v2183 = vpop.trf.xlu0
      %v2184 = vpop.trf.xlu0
      %v2185 = vpop.trf.xlu0
      %v2186 = vpop.trf.xlu0
      %v2187 = vpop.trf.xlu0
      %2188 = vxpose.xlu0.c.b16.start [1/8] %v770, 128
      %2189 = vxpose.xlu0.c.b16.cont [2/8] 0, 128
      %2190 = vxpose.xlu0.c.b16.cont [3/8] 0, 128
      %2191 = vxpose.xlu0.c.b16.cont [4/8] 0, 128
      %2192 = vxpose.xlu0.c.b16.cont [5/8] 0, 128
      %2193 = vxpose.xlu0.c.b16.cont [6/8] 0, 128
      %2194 = vxpose.xlu0.c.b16.cont [7/8] 0, 128
      %2195 = vxpose.xlu0.c.b16.end [8/8] 0, 128
      %v2196 = vpop.trf.xlu0
      %v2197 = vpop.trf.xlu0
      %v2198 = vpop.trf.xlu0
      %v2199 = vpop.trf.xlu0
      %v2200 = vpop.trf.xlu0
      %v2201 = vpop.trf.xlu0
      %v2202 = vpop.trf.xlu0
      %v2203 = vpop.trf.xlu0
      %2204 = vxpose.xlu0.c.b16.start [1/8] %v738, 128
      %2205 = vxpose.xlu0.c.b16.cont [2/8] 0, 128
      %2206 = vxpose.xlu0.c.b16.cont [3/8] 0, 128
      %2207 = vxpose.xlu0.c.b16.cont [4/8] 0, 128
      %2208 = vxpose.xlu0.c.b16.cont [5/8] 0, 128
      %2209 = vxpose.xlu0.c.b16.cont [6/8] 0, 128
      %2210 = vxpose.xlu0.c.b16.cont [7/8] 0, 128
      %2211 = vxpose.xlu0.c.b16.end [8/8] 0, 128
      %v2212 = vpop.trf.xlu0
      %v2213 = vpop.trf.xlu0
      %v2214 = vpop.trf.xlu0
      %v2215 = vpop.trf.xlu0
      %v2216 = vpop.trf.xlu0
      %v2217 = vpop.trf.xlu0
      %v2218 = vpop.trf.xlu0
      %v2219 = vpop.trf.xlu0
      %2220 = vxpose.xlu0.c.b16.start [1/8] %v787, 128
      %2221 = vxpose.xlu0.c.b16.cont [2/8] 0, 128
      %2222 = vxpose.xlu0.c.b16.cont [3/8] 0, 128
      %2223 = vxpose.xlu0.c.b16.cont [4/8] 0, 128
      %2224 = vxpose.xlu0.c.b16.cont [5/8] 0, 128
      %2225 = vxpose.xlu0.c.b16.cont [6/8] 0, 128
      %2226 = vxpose.xlu0.c.b16.cont [7/8] 0, 128
      %2227 = vxpose.xlu0.c.b16.end [8/8] 0, 128
      %v2228 = vpop.trf.xlu0
      %v2229 = vpop.trf.xlu0
      %v2230 = vpop.trf.xlu0
      %v2231 = vpop.trf.xlu0
      %v2232 = vpop.trf.xlu0
      %v2233 = vpop.trf.xlu0
      %v2234 = vpop.trf.xlu0
      %v2235 = vpop.trf.xlu0
      %2236 = vxpose.xlu0.c.b16.start [1/8] %v729, 128
      %2237 = vxpose.xlu0.c.b16.cont [2/8] 0, 128
      %2238 = vxpose.xlu0.c.b16.cont [3/8] 0, 128
      %2239 = vxpose.xlu0.c.b16.cont [4/8] 0, 128
      %2240 = vxpose.xlu0.c.b16.cont [5/8] 0, 128
      %2241 = vxpose.xlu0.c.b16.cont [6/8] 0, 128
      %2242 = vxpose.xlu0.c.b16.cont [7/8] 0, 128
      %2243 = vxpose.xlu0.c.b16.end [8/8] 0, 128
      %v2244 = vpop.trf.xlu0
      %v2245 = vpop.trf.xlu0
      %v2246 = vpop.trf.xlu0
      %v2247 = vpop.trf.xlu0
      %v2248 = vpop.trf.xlu0
      %v2249 = vpop.trf.xlu0
      %v2250 = vpop.trf.xlu0
      %v2251 = vpop.trf.xlu0
      %2252 = vxpose.xlu0.c.b16.start [1/8] %v778, 128
      %2253 = vxpose.xlu0.c.b16.cont [2/8] 0, 128
      %2254 = vxpose.xlu0.c.b16.cont [3/8] 0, 128
      %2255 = vxpose.xlu0.c.b16.cont [4/8] 0, 128
      %2256 = vxpose.xlu0.c.b16.cont [5/8] 0, 128
      %2257 = vxpose.xlu0.c.b16.cont [6/8] 0, 128
      %2258 = vxpose.xlu0.c.b16.cont [7/8] 0, 128
      %2259 = vxpose.xlu0.c.b16.end [8/8] 0, 128
      %v2260 = vpop.trf.xlu0
      %v2261 = vpop.trf.xlu0
      %v2262 = vpop.trf.xlu0
      %v2263 = vpop.trf.xlu0
      %v2264 = vpop.trf.xlu0
      %v2265 = vpop.trf.xlu0
      %v2266 = vpop.trf.xlu0
      %v2267 = vpop.trf.xlu0
      %2268 = vxpose.xlu0.c.b16.start [1/8] %v739, 128
      %2269 = vxpose.xlu0.c.b16.cont [2/8] 0, 128
      %2270 = vxpose.xlu0.c.b16.cont [3/8] 0, 128
      %2271 = vxpose.xlu0.c.b16.cont [4/8] 0, 128
      %2272 = vxpose.xlu0.c.b16.cont [5/8] 0, 128
      %2273 = vxpose.xlu0.c.b16.cont [6/8] 0, 128
      %2274 = vxpose.xlu0.c.b16.cont [7/8] 0, 128
      %2275 = vxpose.xlu0.c.b16.end [8/8] 0, 128
      %v2276 = vpop.trf.xlu0
      %v2277 = vpop.trf.xlu0
      %v2278 = vpop.trf.xlu0
      %v2279 = vpop.trf.xlu0
      %v2280 = vpop.trf.xlu0
      %v2281 = vpop.trf.xlu0
      %v2282 = vpop.trf.xlu0
      %v2283 = vpop.trf.xlu0
      %2284 = vxpose.xlu0.c.b16.start [1/8] %v788, 128
      %2285 = vxpose.xlu0.c.b16.cont [2/8] 0, 128
      %2286 = vxpose.xlu0.c.b16.cont [3/8] 0, 128
      %2287 = vxpose.xlu0.c.b16.cont [4/8] 0, 128
      %2288 = vxpose.xlu0.c.b16.cont [5/8] 0, 128
      %2289 = vxpose.xlu0.c.b16.cont [6/8] 0, 128
      %2290 = vxpose.xlu0.c.b16.cont [7/8] 0, 128
      %2291 = vxpose.xlu0.c.b16.end [8/8] 0, 128
      %v2292 = vpop.trf.xlu0
      %v2293 = vpop.trf.xlu0
      %v2294 = vpop.trf.xlu0
      %v2295 = vpop.trf.xlu0
      %v2296 = vpop.trf.xlu0
      %v2297 = vpop.trf.xlu0
      %v2298 = vpop.trf.xlu0
      %v2299 = vpop.trf.xlu0
      %2300 = vxpose.xlu0.c.b16.start [1/8] %v736, 128
      %2301 = vxpose.xlu0.c.b16.cont [2/8] 0, 128
      %2302 = vxpose.xlu0.c.b16.cont [3/8] 0, 128
      %2303 = vxpose.xlu0.c.b16.cont [4/8] 0, 128
      %2304 = vxpose.xlu0.c.b16.cont [5/8] 0, 128
      %2305 = vxpose.xlu0.c.b16.cont [6/8] 0, 128
      %2306 = vxpose.xlu0.c.b16.cont [7/8] 0, 128
      %2307 = vxpose.xlu0.c.b16.end [8/8] 0, 128
      %v2308 = vpop.trf.xlu0
      %v2309 = vpop.trf.xlu0
      %v2310 = vpop.trf.xlu0
      %v2311 = vpop.trf.xlu0
      %v2312 = vpop.trf.xlu0
      %v2313 = vpop.trf.xlu0
      %v2314 = vpop.trf.xlu0
      %v2315 = vpop.trf.xlu0
      %2316 = vxpose.xlu0.c.b16.start [1/8] %v785, 128
      %2317 = vxpose.xlu0.c.b16.cont [2/8] 0, 128
      %2318 = vxpose.xlu0.c.b16.cont [3/8] 0, 128
      %2319 = vxpose.xlu0.c.b16.cont [4/8] 0, 128
      %2320 = vxpose.xlu0.c.b16.cont [5/8] 0, 128
      %2321 = vxpose.xlu0.c.b16.cont [6/8] 0, 128
      %2322 = vxpose.xlu0.c.b16.cont [7/8] 0, 128
      %2323 = vxpose.xlu0.c.b16.end [8/8] 0, 128
      %v2324 = vpop.trf.xlu0
      %v2325 = vpop.trf.xlu0
      %v2326 = vpop.trf.xlu0
      %v2327 = vpop.trf.xlu0
      %v2328 = vpop.trf.xlu0
      %v2329 = vpop.trf.xlu0
      %v2330 = vpop.trf.xlu0
      %v2331 = vpop.trf.xlu0
      %2332 = vxpose.xlu0.c.b16.start [1/8] %v740, 128
      %2333 = vxpose.xlu0.c.b16.cont [2/8] 0, 128
      %2334 = vxpose.xlu0.c.b16.cont [3/8] 0, 128
      %2335 = vxpose.xlu0.c.b16.cont [4/8] 0, 128
      %2336 = vxpose.xlu0.c.b16.cont [5/8] 0, 128
      %2337 = vxpose.xlu0.c.b16.cont [6/8] 0, 128
      %2338 = vxpose.xlu0.c.b16.cont [7/8] 0, 128
      %2339 = vxpose.xlu0.c.b16.end [8/8] 0, 128
      %v2340 = vpop.trf.xlu0
      %v2341 = vpop.trf.xlu0
      %v2342 = vpop.trf.xlu0
      %v2343 = vpop.trf.xlu0
      %v2344 = vpop.trf.xlu0
      %v2345 = vpop.trf.xlu0
      %v2346 = vpop.trf.xlu0
      %v2347 = vpop.trf.xlu0
      %2348 = vxpose.xlu0.c.b16.start [1/8] %v789, 128
      %2349 = vxpose.xlu0.c.b16.cont [2/8] 0, 128
      %2350 = vxpose.xlu0.c.b16.cont [3/8] 0, 128
      %2351 = vxpose.xlu0.c.b16.cont [4/8] 0, 128
      %2352 = vxpose.xlu0.c.b16.cont [5/8] 0, 128
      %2353 = vxpose.xlu0.c.b16.cont [6/8] 0, 128
      %2354 = vxpose.xlu0.c.b16.cont [7/8] 0, 128
      %2355 = vxpose.xlu0.c.b16.end [8/8] 0, 128
      %v2356 = vpop.trf.xlu0
      %v2357 = vpop.trf.xlu0
      %v2358 = vpop.trf.xlu0
      %v2359 = vpop.trf.xlu0
      %v2360 = vpop.trf.xlu0
      %v2361 = vpop.trf.xlu0
      %v2362 = vpop.trf.xlu0
      %v2363 = vpop.trf.xlu0
      %2364 = vxpose.xlu0.c.b16.start [1/8] %v812, 128
      %2365 = vxpose.xlu0.c.b16.cont [2/8] 0, 128
      %2366 = vxpose.xlu0.c.b16.cont [3/8] 0, 128
      %2367 = vxpose.xlu0.c.b16.cont [4/8] 0, 128
      %2368 = vxpose.xlu0.c.b16.cont [5/8] 0, 128
      %2369 = vxpose.xlu0.c.b16.cont [6/8] 0, 128
      %2370 = vxpose.xlu0.c.b16.cont [7/8] 0, 128
      %2371 = vxpose.xlu0.c.b16.end [8/8] 0, 128
      %v2372 = vpop.trf.xlu0
      %v2373 = vpop.trf.xlu0
      %v2374 = vpop.trf.xlu0
      %v2375 = vpop.trf.xlu0
      %v2376 = vpop.trf.xlu0
      %v2377 = vpop.trf.xlu0
      %v2378 = vpop.trf.xlu0
      %v2379 = vpop.trf.xlu0
      %2380 = vxpose.xlu0.c.b16.start [1/8] %v861, 128
      %2381 = vxpose.xlu0.c.b16.cont [2/8] 0, 128
      %2382 = vxpose.xlu0.c.b16.cont [3/8] 0, 128
      %2383 = vxpose.xlu0.c.b16.cont [4/8] 0, 128
      %2384 = vxpose.xlu0.c.b16.cont [5/8] 0, 128
      %2385 = vxpose.xlu0.c.b16.cont [6/8] 0, 128
      %2386 = vxpose.xlu0.c.b16.cont [7/8] 0, 128
      %2387 = vxpose.xlu0.c.b16.end [8/8] 0, 128
      %v2388 = vpop.trf.xlu0
      %v2389 = vpop.trf.xlu0
      %v2390 = vpop.trf.xlu0
      %v2391 = vpop.trf.xlu0
      %v2392 = vpop.trf.xlu0
      %v2393 = vpop.trf.xlu0
      %v2394 = vpop.trf.xlu0
      %v2395 = vpop.trf.xlu0
      %2396 = vxpose.xlu0.c.b16.start [1/8] %v835, 128
      %2397 = vxpose.xlu0.c.b16.cont [2/8] 0, 128
      %2398 = vxpose.xlu0.c.b16.cont [3/8] 0, 128
      %2399 = vxpose.xlu0.c.b16.cont [4/8] 0, 128
      %2400 = vxpose.xlu0.c.b16.cont [5/8] 0, 128
      %2401 = vxpose.xlu0.c.b16.cont [6/8] 0, 128
      %2402 = vxpose.xlu0.c.b16.cont [7/8] 0, 128
      %2403 = vxpose.xlu0.c.b16.end [8/8] 0, 128
      %v2404 = vpop.trf.xlu0
      %v2405 = vpop.trf.xlu0
      %v2406 = vpop.trf.xlu0
      %v2407 = vpop.trf.xlu0
      %v2408 = vpop.trf.xlu0
      %v2409 = vpop.trf.xlu0
      %v2410 = vpop.trf.xlu0
      %v2411 = vpop.trf.xlu0
      %2412 = vxpose.xlu0.c.b16.start [1/8] %v884, 128
      %2413 = vxpose.xlu0.c.b16.cont [2/8] 0, 128
      %2414 = vxpose.xlu0.c.b16.cont [3/8] 0, 128
      %2415 = vxpose.xlu0.c.b16.cont [4/8] 0, 128
      %2416 = vxpose.xlu0.c.b16.cont [5/8] 0, 128
      %2417 = vxpose.xlu0.c.b16.cont [6/8] 0, 128
      %2418 = vxpose.xlu0.c.b16.cont [7/8] 0, 128
      %2419 = vxpose.xlu0.c.b16.end [8/8] 0, 128
      %v2420 = vpop.trf.xlu0
      %v2421 = vpop.trf.xlu0
      %v2422 = vpop.trf.xlu0
      %v2423 = vpop.trf.xlu0
      %v2424 = vpop.trf.xlu0
      %v2425 = vpop.trf.xlu0
      %v2426 = vpop.trf.xlu0
      %v2427 = vpop.trf.xlu0
      %2428 = vxpose.xlu0.c.b16.start [1/8] %v819, 128
      %2429 = vxpose.xlu0.c.b16.cont [2/8] 0, 128
      %2430 = vxpose.xlu0.c.b16.cont [3/8] 0, 128
      %2431 = vxpose.xlu0.c.b16.cont [4/8] 0, 128
      %2432 = vxpose.xlu0.c.b16.cont [5/8] 0, 128
      %2433 = vxpose.xlu0.c.b16.cont [6/8] 0, 128
      %2434 = vxpose.xlu0.c.b16.cont [7/8] 0, 128
      %2435 = vxpose.xlu0.c.b16.end [8/8] 0, 128
      %v2436 = vpop.trf.xlu0
      %v2437 = vpop.trf.xlu0
      %v2438 = vpop.trf.xlu0
      %v2439 = vpop.trf.xlu0
      %v2440 = vpop.trf.xlu0
      %v2441 = vpop.trf.xlu0
      %v2442 = vpop.trf.xlu0
      %v2443 = vpop.trf.xlu0
      %2444 = vxpose.xlu0.c.b16.start [1/8] %v868, 128
      %2445 = vxpose.xlu0.c.b16.cont [2/8] 0, 128
      %2446 = vxpose.xlu0.c.b16.cont [3/8] 0, 128
      %2447 = vxpose.xlu0.c.b16.cont [4/8] 0, 128
      %2448 = vxpose.xlu0.c.b16.cont [5/8] 0, 128
      %2449 = vxpose.xlu0.c.b16.cont [6/8] 0, 128
      %2450 = vxpose.xlu0.c.b16.cont [7/8] 0, 128
      %2451 = vxpose.xlu0.c.b16.end [8/8] 0, 128
      %v2452 = vpop.trf.xlu0
      %v2453 = vpop.trf.xlu0
      %v2454 = vpop.trf.xlu0
      %v2455 = vpop.trf.xlu0
      %v2456 = vpop.trf.xlu0
      %v2457 = vpop.trf.xlu0
      %v2458 = vpop.trf.xlu0
      %v2459 = vpop.trf.xlu0
      %2460 = vxpose.xlu0.c.b16.start [1/8] %v836, 128
      %2461 = vxpose.xlu0.c.b16.cont [2/8] 0, 128
      %2462 = vxpose.xlu0.c.b16.cont [3/8] 0, 128
      %2463 = vxpose.xlu0.c.b16.cont [4/8] 0, 128
      %2464 = vxpose.xlu0.c.b16.cont [5/8] 0, 128
      %2465 = vxpose.xlu0.c.b16.cont [6/8] 0, 128
      %2466 = vxpose.xlu0.c.b16.cont [7/8] 0, 128
      %2467 = vxpose.xlu0.c.b16.end [8/8] 0, 128
      %v2468 = vpop.trf.xlu0
      %v2469 = vpop.trf.xlu0
      %v2470 = vpop.trf.xlu0
      %v2471 = vpop.trf.xlu0
      %v2472 = vpop.trf.xlu0
      %v2473 = vpop.trf.xlu0
      %v2474 = vpop.trf.xlu0
      %v2475 = vpop.trf.xlu0
      %2476 = vxpose.xlu0.c.b16.start [1/8] %v885, 128
      %2477 = vxpose.xlu0.c.b16.cont [2/8] 0, 128
      %2478 = vxpose.xlu0.c.b16.cont [3/8] 0, 128
      %2479 = vxpose.xlu0.c.b16.cont [4/8] 0, 128
      %2480 = vxpose.xlu0.c.b16.cont [5/8] 0, 128
      %2481 = vxpose.xlu0.c.b16.cont [6/8] 0, 128
      %2482 = vxpose.xlu0.c.b16.cont [7/8] 0, 128
      %2483 = vxpose.xlu0.c.b16.end [8/8] 0, 128
      %v2484 = vpop.trf.xlu0
      %v2485 = vpop.trf.xlu0
      %v2486 = vpop.trf.xlu0
      %v2487 = vpop.trf.xlu0
      %v2488 = vpop.trf.xlu0
      %v2489 = vpop.trf.xlu0
      %v2490 = vpop.trf.xlu0
      %v2491 = vpop.trf.xlu0
      %2492 = vxpose.xlu0.c.b16.start [1/8] %v827, 128
      %2493 = vxpose.xlu0.c.b16.cont [2/8] 0, 128
      %2494 = vxpose.xlu0.c.b16.cont [3/8] 0, 128
      %2495 = vxpose.xlu0.c.b16.cont [4/8] 0, 128
      %2496 = vxpose.xlu0.c.b16.cont [5/8] 0, 128
      %2497 = vxpose.xlu0.c.b16.cont [6/8] 0, 128
      %2498 = vxpose.xlu0.c.b16.cont [7/8] 0, 128
      %2499 = vxpose.xlu0.c.b16.end [8/8] 0, 128
      %v2500 = vpop.trf.xlu0
      %v2501 = vpop.trf.xlu0
      %v2502 = vpop.trf.xlu0
      %v2503 = vpop.trf.xlu0
      %v2504 = vpop.trf.xlu0
      %v2505 = vpop.trf.xlu0
      %v2506 = vpop.trf.xlu0
      %v2507 = vpop.trf.xlu0
      %2508 = vxpose.xlu0.c.b16.start [1/8] %v876, 128
      %2509 = vxpose.xlu0.c.b16.cont [2/8] 0, 128
      %2510 = vxpose.xlu0.c.b16.cont [3/8] 0, 128
      %2511 = vxpose.xlu0.c.b16.cont [4/8] 0, 128
      %2512 = vxpose.xlu0.c.b16.cont [5/8] 0, 128
      %2513 = vxpose.xlu0.c.b16.cont [6/8] 0, 128
      %2514 = vxpose.xlu0.c.b16.cont [7/8] 0, 128
      %2515 = vxpose.xlu0.c.b16.end [8/8] 0, 128
      %v2516 = vpop.trf.xlu0
      %v2517 = vpop.trf.xlu0
      %v2518 = vpop.trf.xlu0
      %v2519 = vpop.trf.xlu0
      %v2520 = vpop.trf.xlu0
      %v2521 = vpop.trf.xlu0
      %v2522 = vpop.trf.xlu0
      %v2523 = vpop.trf.xlu0
      %2524 = vxpose.xlu0.c.b16.start [1/8] %v837, 128
      %2525 = vxpose.xlu0.c.b16.cont [2/8] 0, 128
      %2526 = vxpose.xlu0.c.b16.cont [3/8] 0, 128
      %2527 = vxpose.xlu0.c.b16.cont [4/8] 0, 128
      %2528 = vxpose.xlu0.c.b16.cont [5/8] 0, 128
      %2529 = vxpose.xlu0.c.b16.cont [6/8] 0, 128
      %2530 = vxpose.xlu0.c.b16.cont [7/8] 0, 128
      %2531 = vxpose.xlu0.c.b16.end [8/8] 0, 128
      %v2532 = vpop.trf.xlu0
      %v2533 = vpop.trf.xlu0
      %v2534 = vpop.trf.xlu0
      %v2535 = vpop.trf.xlu0
      %v2536 = vpop.trf.xlu0
      %v2537 = vpop.trf.xlu0
      %v2538 = vpop.trf.xlu0
      %v2539 = vpop.trf.xlu0
      %2540 = vxpose.xlu0.c.b16.start [1/8] %v886, 128
      %2541 = vxpose.xlu0.c.b16.cont [2/8] 0, 128
      %2542 = vxpose.xlu0.c.b16.cont [3/8] 0, 128
      %2543 = vxpose.xlu0.c.b16.cont [4/8] 0, 128
      %2544 = vxpose.xlu0.c.b16.cont [5/8] 0, 128
      %2545 = vxpose.xlu0.c.b16.cont [6/8] 0, 128
      %2546 = vxpose.xlu0.c.b16.cont [7/8] 0, 128
      %2547 = vxpose.xlu0.c.b16.end [8/8] 0, 128
      %v2548 = vpop.trf.xlu0
      %v2549 = vpop.trf.xlu0
      %v2550 = vpop.trf.xlu0
      %v2551 = vpop.trf.xlu0
      %v2552 = vpop.trf.xlu0
      %v2553 = vpop.trf.xlu0
      %v2554 = vpop.trf.xlu0
      %v2555 = vpop.trf.xlu0
      %2556 = vxpose.xlu0.c.b16.start [1/8] %v834, 128
      %2557 = vxpose.xlu0.c.b16.cont [2/8] 0, 128
      %2558 = vxpose.xlu0.c.b16.cont [3/8] 0, 128
      %2559 = vxpose.xlu0.c.b16.cont [4/8] 0, 128
      %2560 = vxpose.xlu0.c.b16.cont [5/8] 0, 128
      %2561 = vxpose.xlu0.c.b16.cont [6/8] 0, 128
      %2562 = vxpose.xlu0.c.b16.cont [7/8] 0, 128
      %2563 = vxpose.xlu0.c.b16.end [8/8] 0, 128
      %v2564 = vpop.trf.xlu0
      %v2565 = vpop.trf.xlu0
      %v2566 = vpop.trf.xlu0
      %v2567 = vpop.trf.xlu0
      %v2568 = vpop.trf.xlu0
      %v2569 = vpop.trf.xlu0
      %v2570 = vpop.trf.xlu0
      %v2571 = vpop.trf.xlu0
      %2572 = vxpose.xlu0.c.b16.start [1/8] %v883, 128
      %2573 = vxpose.xlu0.c.b16.cont [2/8] 0, 128
      %2574 = vxpose.xlu0.c.b16.cont [3/8] 0, 128
      %2575 = vxpose.xlu0.c.b16.cont [4/8] 0, 128
      %2576 = vxpose.xlu0.c.b16.cont [5/8] 0, 128
      %2577 = vxpose.xlu0.c.b16.cont [6/8] 0, 128
      %2578 = vxpose.xlu0.c.b16.cont [7/8] 0, 128
      %2579 = vxpose.xlu0.c.b16.end [8/8] 0, 128
      %v2580 = vpop.trf.xlu0
      %v2581 = vpop.trf.xlu0
      %v2582 = vpop.trf.xlu0
      %v2583 = vpop.trf.xlu0
      %v2584 = vpop.trf.xlu0
      %v2585 = vpop.trf.xlu0
      %v2586 = vpop.trf.xlu0
      %v2587 = vpop.trf.xlu0
      %2588 = vxpose.xlu0.c.b16.start [1/8] %v838, 128
      %2589 = vxpose.xlu0.c.b16.cont [2/8] 0, 128
      %2590 = vxpose.xlu0.c.b16.cont [3/8] 0, 128
      %2591 = vxpose.xlu0.c.b16.cont [4/8] 0, 128
      %2592 = vxpose.xlu0.c.b16.cont [5/8] 0, 128
      %2593 = vxpose.xlu0.c.b16.cont [6/8] 0, 128
      %2594 = vxpose.xlu0.c.b16.cont [7/8] 0, 128
      %2595 = vxpose.xlu0.c.b16.end [8/8] 0, 128
      %v2596 = vpop.trf.xlu0
      %v2597 = vpop.trf.xlu0
      %v2598 = vpop.trf.xlu0
      %v2599 = vpop.trf.xlu0
      %v2600 = vpop.trf.xlu0
      %v2601 = vpop.trf.xlu0
      %v2602 = vpop.trf.xlu0
      %v2603 = vpop.trf.xlu0
      %2604 = vxpose.xlu0.c.b16.start [1/8] %v887, 128
      %2605 = vxpose.xlu0.c.b16.cont [2/8] 0, 128
      %2606 = vxpose.xlu0.c.b16.cont [3/8] 0, 128
      %2607 = vxpose.xlu0.c.b16.cont [4/8] 0, 128
      %2608 = vxpose.xlu0.c.b16.cont [5/8] 0, 128
      %2609 = vxpose.xlu0.c.b16.cont [6/8] 0, 128
      %2610 = vxpose.xlu0.c.b16.cont [7/8] 0, 128
      %2611 = vxpose.xlu0.c.b16.end [8/8] 0, 128
      %v2612 = vpop.trf.xlu0
      %v2613 = vpop.trf.xlu0
      %v2614 = vpop.trf.xlu0
      %v2615 = vpop.trf.xlu0
      %v2616 = vpop.trf.xlu0
      %v2617 = vpop.trf.xlu0
      %v2618 = vpop.trf.xlu0
      %v2619 = vpop.trf.xlu0
      %2620 = vxpose.xlu0.c.b16.start [1/8] %v910, 128
      %2621 = vxpose.xlu0.c.b16.cont [2/8] 0, 128
      %2622 = vxpose.xlu0.c.b16.cont [3/8] 0, 128
      %2623 = vxpose.xlu0.c.b16.cont [4/8] 0, 128
      %2624 = vxpose.xlu0.c.b16.cont [5/8] 0, 128
      %2625 = vxpose.xlu0.c.b16.cont [6/8] 0, 128
      %2626 = vxpose.xlu0.c.b16.cont [7/8] 0, 128
      %2627 = vxpose.xlu0.c.b16.end [8/8] 0, 128
      %v2628 = vpop.trf.xlu0
      %v2629 = vpop.trf.xlu0
      %v2630 = vpop.trf.xlu0
      %v2631 = vpop.trf.xlu0
      %v2632 = vpop.trf.xlu0
      %v2633 = vpop.trf.xlu0
      %v2634 = vpop.trf.xlu0
      %v2635 = vpop.trf.xlu0
      %2636 = vxpose.xlu0.c.b16.start [1/8] %v959, 128
      %2637 = vxpose.xlu0.c.b16.cont [2/8] 0, 128
      %2638 = vxpose.xlu0.c.b16.cont [3/8] 0, 128
      %2639 = vxpose.xlu0.c.b16.cont [4/8] 0, 128
      %2640 = vxpose.xlu0.c.b16.cont [5/8] 0, 128
      %2641 = vxpose.xlu0.c.b16.cont [6/8] 0, 128
      %2642 = vxpose.xlu0.c.b16.cont [7/8] 0, 128
      %2643 = vxpose.xlu0.c.b16.end [8/8] 0, 128
      %v2644 = vpop.trf.xlu0
      %v2645 = vpop.trf.xlu0
      %v2646 = vpop.trf.xlu0
      %v2647 = vpop.trf.xlu0
      %v2648 = vpop.trf.xlu0
      %v2649 = vpop.trf.xlu0
      %v2650 = vpop.trf.xlu0
      %v2651 = vpop.trf.xlu0
      %2652 = vxpose.xlu0.c.b16.start [1/8] %v933, 128
      %2653 = vxpose.xlu0.c.b16.cont [2/8] 0, 128
      %2654 = vxpose.xlu0.c.b16.cont [3/8] 0, 128
      %2655 = vxpose.xlu0.c.b16.cont [4/8] 0, 128
      %2656 = vxpose.xlu0.c.b16.cont [5/8] 0, 128
      %2657 = vxpose.xlu0.c.b16.cont [6/8] 0, 128
      %2658 = vxpose.xlu0.c.b16.cont [7/8] 0, 128
      %2659 = vxpose.xlu0.c.b16.end [8/8] 0, 128
      %v2660 = vpop.trf.xlu0
      %v2661 = vpop.trf.xlu0
      %v2662 = vpop.trf.xlu0
      %v2663 = vpop.trf.xlu0
      %v2664 = vpop.trf.xlu0
      %v2665 = vpop.trf.xlu0
      %v2666 = vpop.trf.xlu0
      %v2667 = vpop.trf.xlu0
      %2668 = vxpose.xlu0.c.b16.start [1/8] %v982, 128
      %2669 = vxpose.xlu0.c.b16.cont [2/8] 0, 128
      %2670 = vxpose.xlu0.c.b16.cont [3/8] 0, 128
      %2671 = vxpose.xlu0.c.b16.cont [4/8] 0, 128
      %2672 = vxpose.xlu0.c.b16.cont [5/8] 0, 128
      %2673 = vxpose.xlu0.c.b16.cont [6/8] 0, 128
      %2674 = vxpose.xlu0.c.b16.cont [7/8] 0, 128
      %2675 = vxpose.xlu0.c.b16.end [8/8] 0, 128
      %v2676 = vpop.trf.xlu0
      %v2677 = vpop.trf.xlu0
      %v2678 = vpop.trf.xlu0
      %v2679 = vpop.trf.xlu0
      %v2680 = vpop.trf.xlu0
      %v2681 = vpop.trf.xlu0
      %v2682 = vpop.trf.xlu0
      %v2683 = vpop.trf.xlu0
      %2684 = vxpose.xlu0.c.b16.start [1/8] %v917, 128
      %2685 = vxpose.xlu0.c.b16.cont [2/8] 0, 128
      %2686 = vxpose.xlu0.c.b16.cont [3/8] 0, 128
      %2687 = vxpose.xlu0.c.b16.cont [4/8] 0, 128
      %2688 = vxpose.xlu0.c.b16.cont [5/8] 0, 128
      %2689 = vxpose.xlu0.c.b16.cont [6/8] 0, 128
      %2690 = vxpose.xlu0.c.b16.cont [7/8] 0, 128
      %2691 = vxpose.xlu0.c.b16.end [8/8] 0, 128
      %v2692 = vpop.trf.xlu0
      %v2693 = vpop.trf.xlu0
      %v2694 = vpop.trf.xlu0
      %v2695 = vpop.trf.xlu0
      %v2696 = vpop.trf.xlu0
      %v2697 = vpop.trf.xlu0
      %v2698 = vpop.trf.xlu0
      %v2699 = vpop.trf.xlu0
      %2700 = vxpose.xlu0.c.b16.start [1/8] %v966, 128
      %2701 = vxpose.xlu0.c.b16.cont [2/8] 0, 128
      %2702 = vxpose.xlu0.c.b16.cont [3/8] 0, 128
      %2703 = vxpose.xlu0.c.b16.cont [4/8] 0, 128
      %2704 = vxpose.xlu0.c.b16.cont [5/8] 0, 128
      %2705 = vxpose.xlu0.c.b16.cont [6/8] 0, 128
      %2706 = vxpose.xlu0.c.b16.cont [7/8] 0, 128
      %2707 = vxpose.xlu0.c.b16.end [8/8] 0, 128
      %v2708 = vpop.trf.xlu0
      %v2709 = vpop.trf.xlu0
      %v2710 = vpop.trf.xlu0
      %v2711 = vpop.trf.xlu0
      %v2712 = vpop.trf.xlu0
      %v2713 = vpop.trf.xlu0
      %v2714 = vpop.trf.xlu0
      %v2715 = vpop.trf.xlu0
      %2716 = vxpose.xlu0.c.b16.start [1/8] %v934, 128
      %2717 = vxpose.xlu0.c.b16.cont [2/8] 0, 128
      %2718 = vxpose.xlu0.c.b16.cont [3/8] 0, 128
      %2719 = vxpose.xlu0.c.b16.cont [4/8] 0, 128
      %2720 = vxpose.xlu0.c.b16.cont [5/8] 0, 128
      %2721 = vxpose.xlu0.c.b16.cont [6/8] 0, 128
      %2722 = vxpose.xlu0.c.b16.cont [7/8] 0, 128
      %2723 = vxpose.xlu0.c.b16.end [8/8] 0, 128
      %v2724 = vpop.trf.xlu0
      %v2725 = vpop.trf.xlu0
      %v2726 = vpop.trf.xlu0
      %v2727 = vpop.trf.xlu0
      %v2728 = vpop.trf.xlu0
      %v2729 = vpop.trf.xlu0
      %v2730 = vpop.trf.xlu0
      %v2731 = vpop.trf.xlu0
      %2732 = vxpose.xlu0.c.b16.start [1/8] %v983, 128
      %2733 = vxpose.xlu0.c.b16.cont [2/8] 0, 128
      %2734 = vxpose.xlu0.c.b16.cont [3/8] 0, 128
      %2735 = vxpose.xlu0.c.b16.cont [4/8] 0, 128
      %2736 = vxpose.xlu0.c.b16.cont [5/8] 0, 128
      %2737 = vxpose.xlu0.c.b16.cont [6/8] 0, 128
      %2738 = vxpose.xlu0.c.b16.cont [7/8] 0, 128
      %2739 = vxpose.xlu0.c.b16.end [8/8] 0, 128
      %v2740 = vpop.trf.xlu0
      %v2741 = vpop.trf.xlu0
      %v2742 = vpop.trf.xlu0
      %v2743 = vpop.trf.xlu0
      %v2744 = vpop.trf.xlu0
      %v2745 = vpop.trf.xlu0
      %v2746 = vpop.trf.xlu0
      %v2747 = vpop.trf.xlu0
      %2748 = vxpose.xlu0.c.b16.start [1/8] %v925, 128
      %2749 = vxpose.xlu0.c.b16.cont [2/8] 0, 128
      %2750 = vxpose.xlu0.c.b16.cont [3/8] 0, 128
      %2751 = vxpose.xlu0.c.b16.cont [4/8] 0, 128
      %2752 = vxpose.xlu0.c.b16.cont [5/8] 0, 128
      %2753 = vxpose.xlu0.c.b16.cont [6/8] 0, 128
      %2754 = vxpose.xlu0.c.b16.cont [7/8] 0, 128
      %2755 = vxpose.xlu0.c.b16.end [8/8] 0, 128
      %v2756 = vpop.trf.xlu0
      %v2757 = vpop.trf.xlu0
      %v2758 = vpop.trf.xlu0
      %v2759 = vpop.trf.xlu0
      %v2760 = vpop.trf.xlu0
      %v2761 = vpop.trf.xlu0
      %v2762 = vpop.trf.xlu0
      %v2763 = vpop.trf.xlu0
      %2764 = vxpose.xlu0.c.b16.start [1/8] %v974, 128
      %2765 = vxpose.xlu0.c.b16.cont [2/8] 0, 128
      %2766 = vxpose.xlu0.c.b16.cont [3/8] 0, 128
      %2767 = vxpose.xlu0.c.b16.cont [4/8] 0, 128
      %2768 = vxpose.xlu0.c.b16.cont [5/8] 0, 128
      %2769 = vxpose.xlu0.c.b16.cont [6/8] 0, 128
      %2770 = vxpose.xlu0.c.b16.cont [7/8] 0, 128
      %2771 = vxpose.xlu0.c.b16.end [8/8] 0, 128
      %v2772 = vpop.trf.xlu0
      %v2773 = vpop.trf.xlu0
      %v2774 = vpop.trf.xlu0
      %v2775 = vpop.trf.xlu0
      %v2776 = vpop.trf.xlu0
      %v2777 = vpop.trf.xlu0
      %v2778 = vpop.trf.xlu0
      %v2779 = vpop.trf.xlu0
      %2780 = vxpose.xlu0.c.b16.start [1/8] %v935, 128
      %2781 = vxpose.xlu0.c.b16.cont [2/8] 0, 128
      %2782 = vxpose.xlu0.c.b16.cont [3/8] 0, 128
      %2783 = vxpose.xlu0.c.b16.cont [4/8] 0, 128
      %2784 = vxpose.xlu0.c.b16.cont [5/8] 0, 128
      %2785 = vxpose.xlu0.c.b16.cont [6/8] 0, 128
      %2786 = vxpose.xlu0.c.b16.cont [7/8] 0, 128
      %2787 = vxpose.xlu0.c.b16.end [8/8] 0, 128
      %v2788 = vpop.trf.xlu0
      %v2789 = vpop.trf.xlu0
      %v2790 = vpop.trf.xlu0
      %v2791 = vpop.trf.xlu0
      %v2792 = vpop.trf.xlu0
      %v2793 = vpop.trf.xlu0
      %v2794 = vpop.trf.xlu0
      %v2795 = vpop.trf.xlu0
      %2796 = vxpose.xlu0.c.b16.start [1/8] %v984, 128
      %2797 = vxpose.xlu0.c.b16.cont [2/8] 0, 128
      %2798 = vxpose.xlu0.c.b16.cont [3/8] 0, 128
      %2799 = vxpose.xlu0.c.b16.cont [4/8] 0, 128
      %2800 = vxpose.xlu0.c.b16.cont [5/8] 0, 128
      %2801 = vxpose.xlu0.c.b16.cont [6/8] 0, 128
      %2802 = vxpose.xlu0.c.b16.cont [7/8] 0, 128
      %2803 = vxpose.xlu0.c.b16.end [8/8] 0, 128
      %v2804 = vpop.trf.xlu0
      %v2805 = vpop.trf.xlu0
      %v2806 = vpop.trf.xlu0
      %v2807 = vpop.trf.xlu0
      %v2808 = vpop.trf.xlu0
      %v2809 = vpop.trf.xlu0
      %v2810 = vpop.trf.xlu0
      %v2811 = vpop.trf.xlu0
      %2812 = vxpose.xlu0.c.b16.start [1/8] %v932, 128
      %2813 = vxpose.xlu0.c.b16.cont [2/8] 0, 128
      %2814 = vxpose.xlu0.c.b16.cont [3/8] 0, 128
      %2815 = vxpose.xlu0.c.b16.cont [4/8] 0, 128
      %2816 = vxpose.xlu0.c.b16.cont [5/8] 0, 128
      %2817 = vxpose.xlu0.c.b16.cont [6/8] 0, 128
      %2818 = vxpose.xlu0.c.b16.cont [7/8] 0, 128
      %2819 = vxpose.xlu0.c.b16.end [8/8] 0, 128
      %v2820 = vpop.trf.xlu0
      %v2821 = vpop.trf.xlu0
      %v2822 = vpop.trf.xlu0
      %v2823 = vpop.trf.xlu0
      %v2824 = vpop.trf.xlu0
      %v2825 = vpop.trf.xlu0
      %v2826 = vpop.trf.xlu0
      %v2827 = vpop.trf.xlu0
      %2828 = vxpose.xlu0.c.b16.start [1/8] %v981, 128
      %2829 = vxpose.xlu0.c.b16.cont [2/8] 0, 128
      %2830 = vxpose.xlu0.c.b16.cont [3/8] 0, 128
      %2831 = vxpose.xlu0.c.b16.cont [4/8] 0, 128
      %2832 = vxpose.xlu0.c.b16.cont [5/8] 0, 128
      %2833 = vxpose.xlu0.c.b16.cont [6/8] 0, 128
      %2834 = vxpose.xlu0.c.b16.cont [7/8] 0, 128
      %2835 = vxpose.xlu0.c.b16.end [8/8] 0, 128
      %v2836 = vpop.trf.xlu0
      %v2837 = vpop.trf.xlu0
      %v2838 = vpop.trf.xlu0
      %v2839 = vpop.trf.xlu0
      %v2840 = vpop.trf.xlu0
      %v2841 = vpop.trf.xlu0
      %v2842 = vpop.trf.xlu0
      %v2843 = vpop.trf.xlu0
      %2844 = vxpose.xlu0.c.b16.start [1/8] %v936, 128
      %2845 = vxpose.xlu0.c.b16.cont [2/8] 0, 128
      %2846 = vxpose.xlu0.c.b16.cont [3/8] 0, 128
      %2847 = vxpose.xlu0.c.b16.cont [4/8] 0, 128
      %2848 = vxpose.xlu0.c.b16.cont [5/8] 0, 128
      %2849 = vxpose.xlu0.c.b16.cont [6/8] 0, 128
      %2850 = vxpose.xlu0.c.b16.cont [7/8] 0, 128
      %2851 = vxpose.xlu0.c.b16.end [8/8] 0, 128
      %v2852 = vpop.trf.xlu0
      %v2853 = vpop.trf.xlu0
      %v2854 = vpop.trf.xlu0
      %v2855 = vpop.trf.xlu0
      %v2856 = vpop.trf.xlu0
      %v2857 = vpop.trf.xlu0
      %v2858 = vpop.trf.xlu0
      %v2859 = vpop.trf.xlu0
      %2860 = vxpose.xlu0.c.b16.start [1/8] %v985, 128
      %2861 = vxpose.xlu0.c.b16.cont [2/8] 0, 128
      %2862 = vxpose.xlu0.c.b16.cont [3/8] 0, 128
      %2863 = vxpose.xlu0.c.b16.cont [4/8] 0, 128
      %2864 = vxpose.xlu0.c.b16.cont [5/8] 0, 128
      %2865 = vxpose.xlu0.c.b16.cont [6/8] 0, 128
      %2866 = vxpose.xlu0.c.b16.cont [7/8] 0, 128
      %2867 = vxpose.xlu0.c.b16.end [8/8] 0, 128
      %v2868 = vpop.trf.xlu0
      %v2869 = vpop.trf.xlu0
      %v2870 = vpop.trf.xlu0
      %v2871 = vpop.trf.xlu0
      %v2872 = vpop.trf.xlu0
      %v2873 = vpop.trf.xlu0
      %v2874 = vpop.trf.xlu0
      %v2875 = vpop.trf.xlu0
      %2876 = vxpose.xlu0.c.b16.start [1/8] %v1008, 128
      %2877 = vxpose.xlu0.c.b16.cont [2/8] 0, 128
      %2878 = vxpose.xlu0.c.b16.cont [3/8] 0, 128
      %2879 = vxpose.xlu0.c.b16.cont [4/8] 0, 128
      %2880 = vxpose.xlu0.c.b16.cont [5/8] 0, 128
      %2881 = vxpose.xlu0.c.b16.cont [6/8] 0, 128
      %2882 = vxpose.xlu0.c.b16.cont [7/8] 0, 128
      %2883 = vxpose.xlu0.c.b16.end [8/8] 0, 128
      %v2884 = vpop.trf.xlu0
      %v2885 = vpop.trf.xlu0
      %v2886 = vpop.trf.xlu0
      %v2887 = vpop.trf.xlu0
      %v2888 = vpop.trf.xlu0
      %v2889 = vpop.trf.xlu0
      %v2890 = vpop.trf.xlu0
      %v2891 = vpop.trf.xlu0
      %2892 = vxpose.xlu0.c.b16.start [1/8] %v1057, 128
      %2893 = vxpose.xlu0.c.b16.cont [2/8] 0, 128
      %2894 = vxpose.xlu0.c.b16.cont [3/8] 0, 128
      %2895 = vxpose.xlu0.c.b16.cont [4/8] 0, 128
      %2896 = vxpose.xlu0.c.b16.cont [5/8] 0, 128
      %2897 = vxpose.xlu0.c.b16.cont [6/8] 0, 128
      %2898 = vxpose.xlu0.c.b16.cont [7/8] 0, 128
      %2899 = vxpose.xlu0.c.b16.end [8/8] 0, 128
      %v2900 = vpop.trf.xlu0
      %v2901 = vpop.trf.xlu0
      %v2902 = vpop.trf.xlu0
      %v2903 = vpop.trf.xlu0
      %v2904 = vpop.trf.xlu0
      %v2905 = vpop.trf.xlu0
      %v2906 = vpop.trf.xlu0
      %v2907 = vpop.trf.xlu0
      %2908 = vxpose.xlu0.c.b16.start [1/8] %v1031, 128
      %2909 = vxpose.xlu0.c.b16.cont [2/8] 0, 128
      %2910 = vxpose.xlu0.c.b16.cont [3/8] 0, 128
      %2911 = vxpose.xlu0.c.b16.cont [4/8] 0, 128
      %2912 = vxpose.xlu0.c.b16.cont [5/8] 0, 128
      %2913 = vxpose.xlu0.c.b16.cont [6/8] 0, 128
      %2914 = vxpose.xlu0.c.b16.cont [7/8] 0, 128
      %2915 = vxpose.xlu0.c.b16.end [8/8] 0, 128
      %v2916 = vpop.trf.xlu0
      %v2917 = vpop.trf.xlu0
      %v2918 = vpop.trf.xlu0
      %v2919 = vpop.trf.xlu0
      %v2920 = vpop.trf.xlu0
      %v2921 = vpop.trf.xlu0
      %v2922 = vpop.trf.xlu0
      %v2923 = vpop.trf.xlu0
      %2924 = vxpose.xlu0.c.b16.start [1/8] %v1080, 128
      %2925 = vxpose.xlu0.c.b16.cont [2/8] 0, 128
      %2926 = vxpose.xlu0.c.b16.cont [3/8] 0, 128
      %2927 = vxpose.xlu0.c.b16.cont [4/8] 0, 128
      %2928 = vxpose.xlu0.c.b16.cont [5/8] 0, 128
      %2929 = vxpose.xlu0.c.b16.cont [6/8] 0, 128
      %2930 = vxpose.xlu0.c.b16.cont [7/8] 0, 128
      %2931 = vxpose.xlu0.c.b16.end [8/8] 0, 128
      %v2932 = vpop.trf.xlu0
      %v2933 = vpop.trf.xlu0
      %v2934 = vpop.trf.xlu0
      %v2935 = vpop.trf.xlu0
      %v2936 = vpop.trf.xlu0
      %v2937 = vpop.trf.xlu0
      %v2938 = vpop.trf.xlu0
      %v2939 = vpop.trf.xlu0
      %2940 = vxpose.xlu0.c.b16.start [1/8] %v1015, 128
      %2941 = vxpose.xlu0.c.b16.cont [2/8] 0, 128
      %2942 = vxpose.xlu0.c.b16.cont [3/8] 0, 128
      %2943 = vxpose.xlu0.c.b16.cont [4/8] 0, 128
      %2944 = vxpose.xlu0.c.b16.cont [5/8] 0, 128
      %2945 = vxpose.xlu0.c.b16.cont [6/8] 0, 128
      %2946 = vxpose.xlu0.c.b16.cont [7/8] 0, 128
      %2947 = vxpose.xlu0.c.b16.end [8/8] 0, 128
      %v2948 = vpop.trf.xlu0
      %v2949 = vpop.trf.xlu0
      %v2950 = vpop.trf.xlu0
      %v2951 = vpop.trf.xlu0
      %v2952 = vpop.trf.xlu0
      %v2953 = vpop.trf.xlu0
      %v2954 = vpop.trf.xlu0
      %v2955 = vpop.trf.xlu0
      %2956 = vxpose.xlu0.c.b16.start [1/8] %v1064, 128
      %2957 = vxpose.xlu0.c.b16.cont [2/8] 0, 128
      %2958 = vxpose.xlu0.c.b16.cont [3/8] 0, 128
      %2959 = vxpose.xlu0.c.b16.cont [4/8] 0, 128
      %2960 = vxpose.xlu0.c.b16.cont [5/8] 0, 128
      %2961 = vxpose.xlu0.c.b16.cont [6/8] 0, 128
      %2962 = vxpose.xlu0.c.b16.cont [7/8] 0, 128
      %2963 = vxpose.xlu0.c.b16.end [8/8] 0, 128
      %v2964 = vpop.trf.xlu0
      %v2965 = vpop.trf.xlu0
      %v2966 = vpop.trf.xlu0
      %v2967 = vpop.trf.xlu0
      %v2968 = vpop.trf.xlu0
      %v2969 = vpop.trf.xlu0
      %v2970 = vpop.trf.xlu0
      %v2971 = vpop.trf.xlu0
      %2972 = vxpose.xlu0.c.b16.start [1/8] %v1032, 128
      %2973 = vxpose.xlu0.c.b16.cont [2/8] 0, 128
      %2974 = vxpose.xlu0.c.b16.cont [3/8] 0, 128
      %2975 = vxpose.xlu0.c.b16.cont [4/8] 0, 128
      %2976 = vxpose.xlu0.c.b16.cont [5/8] 0, 128
      %2977 = vxpose.xlu0.c.b16.cont [6/8] 0, 128
      %2978 = vxpose.xlu0.c.b16.cont [7/8] 0, 128
      %2979 = vxpose.xlu0.c.b16.end [8/8] 0, 128
      %v2980 = vpop.trf.xlu0
      %v2981 = vpop.trf.xlu0
      %v2982 = vpop.trf.xlu0
      %v2983 = vpop.trf.xlu0
      %v2984 = vpop.trf.xlu0
      %v2985 = vpop.trf.xlu0
      %v2986 = vpop.trf.xlu0
      %v2987 = vpop.trf.xlu0
      %2988 = vxpose.xlu0.c.b16.start [1/8] %v1081, 128
      %2989 = vxpose.xlu0.c.b16.cont [2/8] 0, 128
      %2990 = vxpose.xlu0.c.b16.cont [3/8] 0, 128
      %2991 = vxpose.xlu0.c.b16.cont [4/8] 0, 128
      %2992 = vxpose.xlu0.c.b16.cont [5/8] 0, 128
      %2993 = vxpose.xlu0.c.b16.cont [6/8] 0, 128
      %2994 = vxpose.xlu0.c.b16.cont [7/8] 0, 128
      %2995 = vxpose.xlu0.c.b16.end [8/8] 0, 128
      %v2996 = vpop.trf.xlu0
      %v2997 = vpop.trf.xlu0
      %v2998 = vpop.trf.xlu0
      %v2999 = vpop.trf.xlu0
      %v3000 = vpop.trf.xlu0
      %v3001 = vpop.trf.xlu0
      %v3002 = vpop.trf.xlu0
      %v3003 = vpop.trf.xlu0
      %3004 = vxpose.xlu0.c.b16.start [1/8] %v1023, 128
      %3005 = vxpose.xlu0.c.b16.cont [2/8] 0, 128
      %3006 = vxpose.xlu0.c.b16.cont [3/8] 0, 128
      %3007 = vxpose.xlu0.c.b16.cont [4/8] 0, 128
      %3008 = vxpose.xlu0.c.b16.cont [5/8] 0, 128
      %3009 = vxpose.xlu0.c.b16.cont [6/8] 0, 128
      %3010 = vxpose.xlu0.c.b16.cont [7/8] 0, 128
      %3011 = vxpose.xlu0.c.b16.end [8/8] 0, 128
      %v3012 = vpop.trf.xlu0
      %v3013 = vpop.trf.xlu0
      %v3014 = vpop.trf.xlu0
      %v3015 = vpop.trf.xlu0
      %v3016 = vpop.trf.xlu0
      %v3017 = vpop.trf.xlu0
      %v3018 = vpop.trf.xlu0
      %v3019 = vpop.trf.xlu0
      %3020 = vxpose.xlu0.c.b16.start [1/8] %v1072, 128
      %3021 = vxpose.xlu0.c.b16.cont [2/8] 0, 128
      %3022 = vxpose.xlu0.c.b16.cont [3/8] 0, 128
      %3023 = vxpose.xlu0.c.b16.cont [4/8] 0, 128
      %3024 = vxpose.xlu0.c.b16.cont [5/8] 0, 128
      %3025 = vxpose.xlu0.c.b16.cont [6/8] 0, 128
      %3026 = vxpose.xlu0.c.b16.cont [7/8] 0, 128
      %3027 = vxpose.xlu0.c.b16.end [8/8] 0, 128
      %v3028 = vpop.trf.xlu0
      %v3029 = vpop.trf.xlu0
      %v3030 = vpop.trf.xlu0
      %v3031 = vpop.trf.xlu0
      %v3032 = vpop.trf.xlu0
      %v3033 = vpop.trf.xlu0
      %v3034 = vpop.trf.xlu0
      %v3035 = vpop.trf.xlu0
      %3036 = vxpose.xlu0.c.b16.start [1/8] %v1033, 128
      %3037 = vxpose.xlu0.c.b16.cont [2/8] 0, 128
      %3038 = vxpose.xlu0.c.b16.cont [3/8] 0, 128
      %3039 = vxpose.xlu0.c.b16.cont [4/8] 0, 128
      %3040 = vxpose.xlu0.c.b16.cont [5/8] 0, 128
      %3041 = vxpose.xlu0.c.b16.cont [6/8] 0, 128
      %3042 = vxpose.xlu0.c.b16.cont [7/8] 0, 128
      %3043 = vxpose.xlu0.c.b16.end [8/8] 0, 128
      %v3044 = vpop.trf.xlu0
      %v3045 = vpop.trf.xlu0
      %v3046 = vpop.trf.xlu0
      %v3047 = vpop.trf.xlu0
      %v3048 = vpop.trf.xlu0
      %v3049 = vpop.trf.xlu0
      %v3050 = vpop.trf.xlu0
      %v3051 = vpop.trf.xlu0
      %3052 = vxpose.xlu0.c.b16.start [1/8] %v1082, 128
      %3053 = vxpose.xlu0.c.b16.cont [2/8] 0, 128
      %3054 = vxpose.xlu0.c.b16.cont [3/8] 0, 128
      %3055 = vxpose.xlu0.c.b16.cont [4/8] 0, 128
      %3056 = vxpose.xlu0.c.b16.cont [5/8] 0, 128
      %3057 = vxpose.xlu0.c.b16.cont [6/8] 0, 128
      %3058 = vxpose.xlu0.c.b16.cont [7/8] 0, 128
      %3059 = vxpose.xlu0.c.b16.end [8/8] 0, 128
      %v3060 = vpop.trf.xlu0
      %v3061 = vpop.trf.xlu0
      %v3062 = vpop.trf.xlu0
      %v3063 = vpop.trf.xlu0
      %v3064 = vpop.trf.xlu0
      %v3065 = vpop.trf.xlu0
      %v3066 = vpop.trf.xlu0
      %v3067 = vpop.trf.xlu0
      %3068 = vxpose.xlu0.c.b16.start [1/8] %v1030, 128
      %3069 = vxpose.xlu0.c.b16.cont [2/8] 0, 128
      %3070 = vxpose.xlu0.c.b16.cont [3/8] 0, 128
      %3071 = vxpose.xlu0.c.b16.cont [4/8] 0, 128
      %3072 = vxpose.xlu0.c.b16.cont [5/8] 0, 128
      %3073 = vxpose.xlu0.c.b16.cont [6/8] 0, 128
      %3074 = vxpose.xlu0.c.b16.cont [7/8] 0, 128
      %3075 = vxpose.xlu0.c.b16.end [8/8] 0, 128
      %v3076 = vpop.trf.xlu0
      %v3077 = vpop.trf.xlu0
      %v3078 = vpop.trf.xlu0
      %v3079 = vpop.trf.xlu0
      %v3080 = vpop.trf.xlu0
      %v3081 = vpop.trf.xlu0
      %v3082 = vpop.trf.xlu0
      %v3083 = vpop.trf.xlu0
      %3084 = vxpose.xlu0.c.b16.start [1/8] %v1079, 128
      %3085 = vxpose.xlu0.c.b16.cont [2/8] 0, 128
      %3086 = vxpose.xlu0.c.b16.cont [3/8] 0, 128
      %3087 = vxpose.xlu0.c.b16.cont [4/8] 0, 128
      %3088 = vxpose.xlu0.c.b16.cont [5/8] 0, 128
      %3089 = vxpose.xlu0.c.b16.cont [6/8] 0, 128
      %3090 = vxpose.xlu0.c.b16.cont [7/8] 0, 128
      %3091 = vxpose.xlu0.c.b16.end [8/8] 0, 128
      %v3092 = vpop.trf.xlu0
      %v3093 = vpop.trf.xlu0
      %v3094 = vpop.trf.xlu0
      %v3095 = vpop.trf.xlu0
      %v3096 = vpop.trf.xlu0
      %v3097 = vpop.trf.xlu0
      %v3098 = vpop.trf.xlu0
      %v3099 = vpop.trf.xlu0
      %3100 = vxpose.xlu0.c.b16.start [1/8] %v1034, 128
      %3101 = vxpose.xlu0.c.b16.cont [2/8] 0, 128
      %3102 = vxpose.xlu0.c.b16.cont [3/8] 0, 128
      %3103 = vxpose.xlu0.c.b16.cont [4/8] 0, 128
      %3104 = vxpose.xlu0.c.b16.cont [5/8] 0, 128
      %3105 = vxpose.xlu0.c.b16.cont [6/8] 0, 128
      %3106 = vxpose.xlu0.c.b16.cont [7/8] 0, 128
      %3107 = vxpose.xlu0.c.b16.end [8/8] 0, 128
      %v3108 = vpop.trf.xlu0
      %v3109 = vpop.trf.xlu0
      %v3110 = vpop.trf.xlu0
      %v3111 = vpop.trf.xlu0
      %v3112 = vpop.trf.xlu0
      %v3113 = vpop.trf.xlu0
      %v3114 = vpop.trf.xlu0
      %v3115 = vpop.trf.xlu0
      %3116 = vxpose.xlu0.c.b16.start [1/8] %v1083, 128
      %3117 = vxpose.xlu0.c.b16.cont [2/8] 0, 128
      %3118 = vxpose.xlu0.c.b16.cont [3/8] 0, 128
      %3119 = vxpose.xlu0.c.b16.cont [4/8] 0, 128
      %3120 = vxpose.xlu0.c.b16.cont [5/8] 0, 128
      %3121 = vxpose.xlu0.c.b16.cont [6/8] 0, 128
      %3122 = vxpose.xlu0.c.b16.cont [7/8] 0, 128
      %3123 = vxpose.xlu0.c.b16.end [8/8] 0, 128
      %v3124 = vpop.trf.xlu0
      %v3125 = vpop.trf.xlu0
      %v3126 = vpop.trf.xlu0
      %v3127 = vpop.trf.xlu0
      %v3128 = vpop.trf.xlu0
      %v3129 = vpop.trf.xlu0
      %v3130 = vpop.trf.xlu0
      %v3131 = vpop.trf.xlu0
      %v3132 = vcombine.low %v1092, %v1156
      %v3134 = vunpack.c.l.s4 1983009808
      %v3135 = vunpack.c.0.s8 %v3134
      %v3136 = vlaneseq
      %v3137 = vshrl.u32 %v3136, 7
      %v3138 = vsub.s32 %v3135, %v3137
      %v3139 = vrot.slane %v3132, %v3138
      %v3140 = vcombine.low %v1124, %v1188
      %v3142 = vunpack.c.l.s4 1983009808
      %v3143 = vunpack.c.0.s8 %v3142
      %v3144 = vlaneseq
      %v3145 = vshrl.u32 %v3144, 7
      %v3146 = vsub.s32 %v3143, %v3145
      %v3147 = vrot.slane %v3140, %v3146
      %v3148 = vcombine.low %v1220, %v1284
      %v3150 = vunpack.c.l.s4 1983009808
      %v3151 = vunpack.c.0.s8 %v3150
      %v3152 = vlaneseq
      %v3153 = vshrl.u32 %v3152, 7
      %v3154 = vsub.s32 %v3151, %v3153
      %v3155 = vrot.slane %v3148, %v3154
      %v3156 = vcombine.low %v1252, %v1316
      %v3158 = vunpack.c.l.s4 1983009808
      %v3159 = vunpack.c.0.s8 %v3158
      %v3160 = vlaneseq
      %v3161 = vshrl.u32 %v3160, 7
      %v3162 = vsub.s32 %v3159, %v3161
      %v3163 = vrot.slane %v3156, %v3162
      %v3164 = vcombine.low %v3139, %v3147
      %v3166 = vunpack.c.l.s4 1934713408
      %v3167 = vunpack.c.0.s8 %v3166
      %v3168 = vlaneseq
      %v3169 = vshrl.u32 %v3168, 7
      %v3170 = vsub.s32 %v3167, %v3169
      %v3171 = vrot.slane %v3164, %v3170
      %v3172 = vcombine.low %v3155, %v3163
      %v3174 = vunpack.c.l.s4 1934713408
      %v3175 = vunpack.c.0.s8 %v3174
      %v3176 = vlaneseq
      %v3177 = vshrl.u32 %v3176, 7
      %v3178 = vsub.s32 %v3175, %v3177
      %v3179 = vrot.slane %v3172, %v3178
      %v3180 = vcombine.low %v3171, %v3179
      %v3181 = vcombine.high %v3171, %v3179
      %v3182 = vcombine.low %v1108, %v1172
      %v3184 = vunpack.c.l.s4 1983009808
      %v3185 = vunpack.c.0.s8 %v3184
      %v3186 = vlaneseq
      %v3187 = vshrl.u32 %v3186, 7
      %v3188 = vsub.s32 %v3185, %v3187
      %v3189 = vrot.slane %v3182, %v3188
      %v3190 = vcombine.low %v1140, %v1204
      %v3192 = vunpack.c.l.s4 1983009808
      %v3193 = vunpack.c.0.s8 %v3192
      %v3194 = vlaneseq
      %v3195 = vshrl.u32 %v3194, 7
      %v3196 = vsub.s32 %v3193, %v3195
      %v3197 = vrot.slane %v3190, %v3196
      %v3198 = vcombine.low %v1236, %v1300
      %v3200 = vunpack.c.l.s4 1983009808
      %v3201 = vunpack.c.0.s8 %v3200
      %v3202 = vlaneseq
      %v3203 = vshrl.u32 %v3202, 7
      %v3204 = vsub.s32 %v3201, %v3203
      %v3205 = vrot.slane %v3198, %v3204
      %v3206 = vcombine.low %v1268, %v1332
      %v3208 = vunpack.c.l.s4 1983009808
      %v3209 = vunpack.c.0.s8 %v3208
      %v3210 = vlaneseq
      %v3211 = vshrl.u32 %v3210, 7
      %v3212 = vsub.s32 %v3209, %v3211
      %v3213 = vrot.slane %v3206, %v3212
      %v3214 = vcombine.low %v3189, %v3197
      %v3216 = vunpack.c.l.s4 1934713408
      %v3217 = vunpack.c.0.s8 %v3216
      %v3218 = vlaneseq
      %v3219 = vshrl.u32 %v3218, 7
      %v3220 = vsub.s32 %v3217, %v3219
      %v3221 = vrot.slane %v3214, %v3220
      %v3222 = vcombine.low %v3205, %v3213
      %v3224 = vunpack.c.l.s4 1934713408
      %v3225 = vunpack.c.0.s8 %v3224
      %v3226 = vlaneseq
      %v3227 = vshrl.u32 %v3226, 7
      %v3228 = vsub.s32 %v3225, %v3227
      %v3229 = vrot.slane %v3222, %v3228
      %v3230 = vcombine.low %v3221, %v3229
      %v3231 = vcombine.high %v3221, %v3229
      %v3232 = vcombine.low %v1348, %v1412
      %v3234 = vunpack.c.l.s4 1983009808
      %v3235 = vunpack.c.0.s8 %v3234
      %v3236 = vlaneseq
      %v3237 = vshrl.u32 %v3236, 7
      %v3238 = vsub.s32 %v3235, %v3237
      %v3239 = vrot.slane %v3232, %v3238
      %v3240 = vcombine.low %v1380, %v1444
      %v3242 = vunpack.c.l.s4 1983009808
      %v3243 = vunpack.c.0.s8 %v3242
      %v3244 = vlaneseq
      %v3245 = vshrl.u32 %v3244, 7
      %v3246 = vsub.s32 %v3243, %v3245
      %v3247 = vrot.slane %v3240, %v3246
      %v3248 = vcombine.low %v1476, %v1540
      %v3250 = vunpack.c.l.s4 1983009808
      %v3251 = vunpack.c.0.s8 %v3250
      %v3252 = vlaneseq
      %v3253 = vshrl.u32 %v3252, 7
      %v3254 = vsub.s32 %v3251, %v3253
      %v3255 = vrot.slane %v3248, %v3254
      %v3256 = vcombine.low %v1508, %v1572
      %v3258 = vunpack.c.l.s4 1983009808
      %v3259 = vunpack.c.0.s8 %v3258
      %v3260 = vlaneseq
      %v3261 = vshrl.u32 %v3260, 7
      %v3262 = vsub.s32 %v3259, %v3261
      %v3263 = vrot.slane %v3256, %v3262
      %v3264 = vcombine.low %v3239, %v3247
      %v3266 = vunpack.c.l.s4 1934713408
      %v3267 = vunpack.c.0.s8 %v3266
      %v3268 = vlaneseq
      %v3269 = vshrl.u32 %v3268, 7
      %v3270 = vsub.s32 %v3267, %v3269
      %v3271 = vrot.slane %v3264, %v3270
      %v3272 = vcombine.low %v3255, %v3263
      %v3274 = vunpack.c.l.s4 1934713408
      %v3275 = vunpack.c.0.s8 %v3274
      %v3276 = vlaneseq
      %v3277 = vshrl.u32 %v3276, 7
      %v3278 = vsub.s32 %v3275, %v3277
      %v3279 = vrot.slane %v3272, %v3278
      %v3280 = vcombine.low %v3271, %v3279
      %v3281 = vcombine.high %v3271, %v3279
      %v3282 = vcombine.low %v1364, %v1428
      %v3284 = vunpack.c.l.s4 1983009808
      %v3285 = vunpack.c.0.s8 %v3284
      %v3286 = vlaneseq
      %v3287 = vshrl.u32 %v3286, 7
      %v3288 = vsub.s32 %v3285, %v3287
      %v3289 = vrot.slane %v3282, %v3288
      %v3290 = vcombine.low %v1396, %v1460
      %v3292 = vunpack.c.l.s4 1983009808
      %v3293 = vunpack.c.0.s8 %v3292
      %v3294 = vlaneseq
      %v3295 = vshrl.u32 %v3294, 7
      %v3296 = vsub.s32 %v3293, %v3295
      %v3297 = vrot.slane %v3290, %v3296
      %v3298 = vcombine.low %v1492, %v1556
      %v3300 = vunpack.c.l.s4 1983009808
      %v3301 = vunpack.c.0.s8 %v3300
      %v3302 = vlaneseq
      %v3303 = vshrl.u32 %v3302, 7
      %v3304 = vsub.s32 %v3301, %v3303
      %v3305 = vrot.slane %v3298, %v3304
      %v3306 = vcombine.low %v1524, %v1588
      %v3308 = vunpack.c.l.s4 1983009808
      %v3309 = vunpack.c.0.s8 %v3308
      %v3310 = vlaneseq
      %v3311 = vshrl.u32 %v3310, 7
      %v3312 = vsub.s32 %v3309, %v3311
      %v3313 = vrot.slane %v3306, %v3312
      %v3314 = vcombine.low %v3289, %v3297
      %v3316 = vunpack.c.l.s4 1934713408
      %v3317 = vunpack.c.0.s8 %v3316
      %v3318 = vlaneseq
      %v3319 = vshrl.u32 %v3318, 7
      %v3320 = vsub.s32 %v3317, %v3319
      %v3321 = vrot.slane %v3314, %v3320
      %v3322 = vcombine.low %v3305, %v3313
      %v3324 = vunpack.c.l.s4 1934713408
      %v3325 = vunpack.c.0.s8 %v3324
      %v3326 = vlaneseq
      %v3327 = vshrl.u32 %v3326, 7
      %v3328 = vsub.s32 %v3325, %v3327
      %v3329 = vrot.slane %v3322, %v3328
      %v3330 = vcombine.low %v3321, %v3329
      %v3331 = vcombine.high %v3321, %v3329
      %v3332 = vcombine.low %v1604, %v1668
      %v3334 = vunpack.c.l.s4 1983009808
      %v3335 = vunpack.c.0.s8 %v3334
      %v3336 = vlaneseq
      %v3337 = vshrl.u32 %v3336, 7
      %v3338 = vsub.s32 %v3335, %v3337
      %v3339 = vrot.slane %v3332, %v3338
      %v3340 = vcombine.low %v1636, %v1700
      %v3342 = vunpack.c.l.s4 1983009808
      %v3343 = vunpack.c.0.s8 %v3342
      %v3344 = vlaneseq
      %v3345 = vshrl.u32 %v3344, 7
      %v3346 = vsub.s32 %v3343, %v3345
      %v3347 = vrot.slane %v3340, %v3346
      %v3348 = vcombine.low %v1732, %v1796
      %v3350 = vunpack.c.l.s4 1983009808
      %v3351 = vunpack.c.0.s8 %v3350
      %v3352 = vlaneseq
      %v3353 = vshrl.u32 %v3352, 7
      %v3354 = vsub.s32 %v3351, %v3353
      %v3355 = vrot.slane %v3348, %v3354
      %v3356 = vcombine.low %v1764, %v1828
      %v3358 = vunpack.c.l.s4 1983009808
      %v3359 = vunpack.c.0.s8 %v3358
      %v3360 = vlaneseq
      %v3361 = vshrl.u32 %v3360, 7
      %v3362 = vsub.s32 %v3359, %v3361
      %v3363 = vrot.slane %v3356, %v3362
      %v3364 = vcombine.low %v3339, %v3347
      %v3366 = vunpack.c.l.s4 1934713408
      %v3367 = vunpack.c.0.s8 %v3366
      %v3368 = vlaneseq
      %v3369 = vshrl.u32 %v3368, 7
      %v3370 = vsub.s32 %v3367, %v3369
      %v3371 = vrot.slane %v3364, %v3370
      %v3372 = vcombine.low %v3355, %v3363
      %v3374 = vunpack.c.l.s4 1934713408
      %v3375 = vunpack.c.0.s8 %v3374
      %v3376 = vlaneseq
      %v3377 = vshrl.u32 %v3376, 7
      %v3378 = vsub.s32 %v3375, %v3377
      %v3379 = vrot.slane %v3372, %v3378
      %v3380 = vcombine.low %v3371, %v3379
      %v3381 = vcombine.high %v3371, %v3379
      %v3382 = vcombine.low %v1620, %v1684
      %v3384 = vunpack.c.l.s4 1983009808
      %v3385 = vunpack.c.0.s8 %v3384
      %v3386 = vlaneseq
      %v3387 = vshrl.u32 %v3386, 7
      %v3388 = vsub.s32 %v3385, %v3387
      %v3389 = vrot.slane %v3382, %v3388
      %v3390 = vcombine.low %v1652, %v1716
      %v3392 = vunpack.c.l.s4 1983009808
      %v3393 = vunpack.c.0.s8 %v3392
      %v3394 = vlaneseq
      %v3395 = vshrl.u32 %v3394, 7
      %v3396 = vsub.s32 %v3393, %v3395
      %v3397 = vrot.slane %v3390, %v3396
      %v3398 = vcombine.low %v1748, %v1812
      %v3400 = vunpack.c.l.s4 1983009808
      %v3401 = vunpack.c.0.s8 %v3400
      %v3402 = vlaneseq
      %v3403 = vshrl.u32 %v3402, 7
      %v3404 = vsub.s32 %v3401, %v3403
      %v3405 = vrot.slane %v3398, %v3404
      %v3406 = vcombine.low %v1780, %v1844
      %v3408 = vunpack.c.l.s4 1983009808
      %v3409 = vunpack.c.0.s8 %v3408
      %v3410 = vlaneseq
      %v3411 = vshrl.u32 %v3410, 7
      %v3412 = vsub.s32 %v3409, %v3411
      %v3413 = vrot.slane %v3406, %v3412
      %v3414 = vcombine.low %v3389, %v3397
      %v3416 = vunpack.c.l.s4 1934713408
      %v3417 = vunpack.c.0.s8 %v3416
      %v3418 = vlaneseq
      %v3419 = vshrl.u32 %v3418, 7
      %v3420 = vsub.s32 %v3417, %v3419
      %v3421 = vrot.slane %v3414, %v3420
      %v3422 = vcombine.low %v3405, %v3413
      %v3424 = vunpack.c.l.s4 1934713408
      %v3425 = vunpack.c.0.s8 %v3424
      %v3426 = vlaneseq
      %v3427 = vshrl.u32 %v3426, 7
      %v3428 = vsub.s32 %v3425, %v3427
      %v3429 = vrot.slane %v3422, %v3428
      %v3430 = vcombine.low %v3421, %v3429
      %v3431 = vcombine.high %v3421, %v3429
      %v3432 = vcombine.low %v1860, %v1924
      %v3434 = vunpack.c.l.s4 1983009808
      %v3435 = vunpack.c.0.s8 %v3434
      %v3436 = vlaneseq
      %v3437 = vshrl.u32 %v3436, 7
      %v3438 = vsub.s32 %v3435, %v3437
      %v3439 = vrot.slane %v3432, %v3438
      %v3440 = vcombine.low %v1892, %v1956
      %v3442 = vunpack.c.l.s4 1983009808
      %v3443 = vunpack.c.0.s8 %v3442
      %v3444 = vlaneseq
      %v3445 = vshrl.u32 %v3444, 7
      %v3446 = vsub.s32 %v3443, %v3445
      %v3447 = vrot.slane %v3440, %v3446
      %v3448 = vcombine.low %v1988, %v2052
      %v3450 = vunpack.c.l.s4 1983009808
      %v3451 = vunpack.c.0.s8 %v3450
      %v3452 = vlaneseq
      %v3453 = vshrl.u32 %v3452, 7
      %v3454 = vsub.s32 %v3451, %v3453
      %v3455 = vrot.slane %v3448, %v3454
      %v3456 = vcombine.low %v2020, %v2084
      %v3458 = vunpack.c.l.s4 1983009808
      %v3459 = vunpack.c.0.s8 %v3458
      %v3460 = vlaneseq
      %v3461 = vshrl.u32 %v3460, 7
      %v3462 = vsub.s32 %v3459, %v3461
      %v3463 = vrot.slane %v3456, %v3462
      %v3464 = vcombine.low %v3439, %v3447
      %v3466 = vunpack.c.l.s4 1934713408
      %v3467 = vunpack.c.0.s8 %v3466
      %v3468 = vlaneseq
      %v3469 = vshrl.u32 %v3468, 7
      %v3470 = vsub.s32 %v3467, %v3469
      %v3471 = vrot.slane %v3464, %v3470
      %v3472 = vcombine.low %v3455, %v3463
      %v3474 = vunpack.c.l.s4 1934713408
      %v3475 = vunpack.c.0.s8 %v3474
      %v3476 = vlaneseq
      %v3477 = vshrl.u32 %v3476, 7
      %v3478 = vsub.s32 %v3475, %v3477
      %v3479 = vrot.slane %v3472, %v3478
      %v3480 = vcombine.low %v3471, %v3479
      %v3481 = vcombine.high %v3471, %v3479
      %v3482 = vcombine.low %v1876, %v1940
      %v3484 = vunpack.c.l.s4 1983009808
      %v3485 = vunpack.c.0.s8 %v3484
      %v3486 = vlaneseq
      %v3487 = vshrl.u32 %v3486, 7
      %v3488 = vsub.s32 %v3485, %v3487
      %v3489 = vrot.slane %v3482, %v3488
      %v3490 = vcombine.low %v1908, %v1972
      %v3492 = vunpack.c.l.s4 1983009808
      %v3493 = vunpack.c.0.s8 %v3492
      %v3494 = vlaneseq
      %v3495 = vshrl.u32 %v3494, 7
      %v3496 = vsub.s32 %v3493, %v3495
      %v3497 = vrot.slane %v3490, %v3496
      %v3498 = vcombine.low %v2004, %v2068
      %v3500 = vunpack.c.l.s4 1983009808
      %v3501 = vunpack.c.0.s8 %v3500
      %v3502 = vlaneseq
      %v3503 = vshrl.u32 %v3502, 7
      %v3504 = vsub.s32 %v3501, %v3503
      %v3505 = vrot.slane %v3498, %v3504
      %v3506 = vcombine.low %v2036, %v2100
      %v3508 = vunpack.c.l.s4 1983009808
      %v3509 = vunpack.c.0.s8 %v3508
      %v3510 = vlaneseq
      %v3511 = vshrl.u32 %v3510, 7
      %v3512 = vsub.s32 %v3509, %v3511
      %v3513 = vrot.slane %v3506, %v3512
      %v3514 = vcombine.low %v3489, %v3497
      %v3516 = vunpack.c.l.s4 1934713408
      %v3517 = vunpack.c.0.s8 %v3516
      %v3518 = vlaneseq
      %v3519 = vshrl.u32 %v3518, 7
      %v3520 = vsub.s32 %v3517, %v3519
      %v3521 = vrot.slane %v3514, %v3520
      %v3522 = vcombine.low %v3505, %v3513
      %v3524 = vunpack.c.l.s4 1934713408
      %v3525 = vunpack.c.0.s8 %v3524
      %v3526 = vlaneseq
      %v3527 = vshrl.u32 %v3526, 7
      %v3528 = vsub.s32 %v3525, %v3527
      %v3529 = vrot.slane %v3522, %v3528
      %v3530 = vcombine.low %v3521, %v3529
      %v3531 = vcombine.high %v3521, %v3529
      %v3532 = vcombine.low %v2116, %v2180
      %v3534 = vunpack.c.l.s4 1983009808
      %v3535 = vunpack.c.0.s8 %v3534
      %v3536 = vlaneseq
      %v3537 = vshrl.u32 %v3536, 7
      %v3538 = vsub.s32 %v3535, %v3537
      %v3539 = vrot.slane %v3532, %v3538
      %v3540 = vcombine.low %v2148, %v2212
      %v3542 = vunpack.c.l.s4 1983009808
      %v3543 = vunpack.c.0.s8 %v3542
      %v3544 = vlaneseq
      %v3545 = vshrl.u32 %v3544, 7
      %v3546 = vsub.s32 %v3543, %v3545
      %v3547 = vrot.slane %v3540, %v3546
      %v3548 = vcombine.low %v2244, %v2308
      %v3550 = vunpack.c.l.s4 1983009808
      %v3551 = vunpack.c.0.s8 %v3550
      %v3552 = vlaneseq
      %v3553 = vshrl.u32 %v3552, 7
      %v3554 = vsub.s32 %v3551, %v3553
      %v3555 = vrot.slane %v3548, %v3554
      %v3556 = vcombine.low %v2276, %v2340
      %v3558 = vunpack.c.l.s4 1983009808
      %v3559 = vunpack.c.0.s8 %v3558
      %v3560 = vlaneseq
      %v3561 = vshrl.u32 %v3560, 7
      %v3562 = vsub.s32 %v3559, %v3561
      %v3563 = vrot.slane %v3556, %v3562
      %v3564 = vcombine.low %v3539, %v3547
      %v3566 = vunpack.c.l.s4 1934713408
      %v3567 = vunpack.c.0.s8 %v3566
      %v3568 = vlaneseq
      %v3569 = vshrl.u32 %v3568, 7
      %v3570 = vsub.s32 %v3567, %v3569
      %v3571 = vrot.slane %v3564, %v3570
      %v3572 = vcombine.low %v3555, %v3563
      %v3574 = vunpack.c.l.s4 1934713408
      %v3575 = vunpack.c.0.s8 %v3574
      %v3576 = vlaneseq
      %v3577 = vshrl.u32 %v3576, 7
      %v3578 = vsub.s32 %v3575, %v3577
      %v3579 = vrot.slane %v3572, %v3578
      %v3580 = vcombine.low %v3571, %v3579
      %v3581 = vcombine.high %v3571, %v3579
      %v3582 = vcombine.low %v2132, %v2196
      %v3584 = vunpack.c.l.s4 1983009808
      %v3585 = vunpack.c.0.s8 %v3584
      %v3586 = vlaneseq
      %v3587 = vshrl.u32 %v3586, 7
      %v3588 = vsub.s32 %v3585, %v3587
      %v3589 = vrot.slane %v3582, %v3588
      %v3590 = vcombine.low %v2164, %v2228
      %v3592 = vunpack.c.l.s4 1983009808
      %v3593 = vunpack.c.0.s8 %v3592
      %v3594 = vlaneseq
      %v3595 = vshrl.u32 %v3594, 7
      %v3596 = vsub.s32 %v3593, %v3595
      %v3597 = vrot.slane %v3590, %v3596
      %v3598 = vcombine.low %v2260, %v2324
      %v3600 = vunpack.c.l.s4 1983009808
      %v3601 = vunpack.c.0.s8 %v3600
      %v3602 = vlaneseq
      %v3603 = vshrl.u32 %v3602, 7
      %v3604 = vsub.s32 %v3601, %v3603
      %v3605 = vrot.slane %v3598, %v3604
      %v3606 = vcombine.low %v2292, %v2356
      %v3608 = vunpack.c.l.s4 1983009808
      %v3609 = vunpack.c.0.s8 %v3608
      %v3610 = vlaneseq
      %v3611 = vshrl.u32 %v3610, 7
      %v3612 = vsub.s32 %v3609, %v3611
      %v3613 = vrot.slane %v3606, %v3612
      %v3614 = vcombine.low %v3589, %v3597
      %v3616 = vunpack.c.l.s4 1934713408
      %v3617 = vunpack.c.0.s8 %v3616
      %v3618 = vlaneseq
      %v3619 = vshrl.u32 %v3618, 7
      %v3620 = vsub.s32 %v3617, %v3619
      %v3621 = vrot.slane %v3614, %v3620
      %v3622 = vcombine.low %v3605, %v3613
      %v3624 = vunpack.c.l.s4 1934713408
      %v3625 = vunpack.c.0.s8 %v3624
      %v3626 = vlaneseq
      %v3627 = vshrl.u32 %v3626, 7
      %v3628 = vsub.s32 %v3625, %v3627
      %v3629 = vrot.slane %v3622, %v3628
      %v3630 = vcombine.low %v3621, %v3629
      %v3631 = vcombine.high %v3621, %v3629
      %v3632 = vcombine.low %v2372, %v2436
      %v3634 = vunpack.c.l.s4 1983009808
      %v3635 = vunpack.c.0.s8 %v3634
      %v3636 = vlaneseq
      %v3637 = vshrl.u32 %v3636, 7
      %v3638 = vsub.s32 %v3635, %v3637
      %v3639 = vrot.slane %v3632, %v3638
      %v3640 = vcombine.low %v2404, %v2468
      %v3642 = vunpack.c.l.s4 1983009808
      %v3643 = vunpack.c.0.s8 %v3642
      %v3644 = vlaneseq
      %v3645 = vshrl.u32 %v3644, 7
      %v3646 = vsub.s32 %v3643, %v3645
      %v3647 = vrot.slane %v3640, %v3646
      %v3648 = vcombine.low %v2500, %v2564
      %v3650 = vunpack.c.l.s4 1983009808
      %v3651 = vunpack.c.0.s8 %v3650
      %v3652 = vlaneseq
      %v3653 = vshrl.u32 %v3652, 7
      %v3654 = vsub.s32 %v3651, %v3653
      %v3655 = vrot.slane %v3648, %v3654
      %v3656 = vcombine.low %v2532, %v2596
      %v3658 = vunpack.c.l.s4 1983009808
      %v3659 = vunpack.c.0.s8 %v3658
      %v3660 = vlaneseq
      %v3661 = vshrl.u32 %v3660, 7
      %v3662 = vsub.s32 %v3659, %v3661
      %v3663 = vrot.slane %v3656, %v3662
      %v3664 = vcombine.low %v3639, %v3647
      %v3666 = vunpack.c.l.s4 1934713408
      %v3667 = vunpack.c.0.s8 %v3666
      %v3668 = vlaneseq
      %v3669 = vshrl.u32 %v3668, 7
      %v3670 = vsub.s32 %v3667, %v3669
      %v3671 = vrot.slane %v3664, %v3670
      %v3672 = vcombine.low %v3655, %v3663
      %v3674 = vunpack.c.l.s4 1934713408
      %v3675 = vunpack.c.0.s8 %v3674
      %v3676 = vlaneseq
      %v3677 = vshrl.u32 %v3676, 7
      %v3678 = vsub.s32 %v3675, %v3677
      %v3679 = vrot.slane %v3672, %v3678
      %v3680 = vcombine.low %v3671, %v3679
      %v3681 = vcombine.high %v3671, %v3679
      %v3682 = vcombine.low %v2388, %v2452
      %v3684 = vunpack.c.l.s4 1983009808
      %v3685 = vunpack.c.0.s8 %v3684
      %v3686 = vlaneseq
      %v3687 = vshrl.u32 %v3686, 7
      %v3688 = vsub.s32 %v3685, %v3687
      %v3689 = vrot.slane %v3682, %v3688
      %v3690 = vcombine.low %v2420, %v2484
      %v3692 = vunpack.c.l.s4 1983009808
      %v3693 = vunpack.c.0.s8 %v3692
      %v3694 = vlaneseq
      %v3695 = vshrl.u32 %v3694, 7
      %v3696 = vsub.s32 %v3693, %v3695
      %v3697 = vrot.slane %v3690, %v3696
      %v3698 = vcombine.low %v2516, %v2580
      %v3700 = vunpack.c.l.s4 1983009808
      %v3701 = vunpack.c.0.s8 %v3700
      %v3702 = vlaneseq
      %v3703 = vshrl.u32 %v3702, 7
      %v3704 = vsub.s32 %v3701, %v3703
      %v3705 = vrot.slane %v3698, %v3704
      %v3706 = vcombine.low %v2548, %v2612
      %v3708 = vunpack.c.l.s4 1983009808
      %v3709 = vunpack.c.0.s8 %v3708
      %v3710 = vlaneseq
      %v3711 = vshrl.u32 %v3710, 7
      %v3712 = vsub.s32 %v3709, %v3711
      %v3713 = vrot.slane %v3706, %v3712
      %v3714 = vcombine.low %v3689, %v3697
      %v3716 = vunpack.c.l.s4 1934713408
      %v3717 = vunpack.c.0.s8 %v3716
      %v3718 = vlaneseq
      %v3719 = vshrl.u32 %v3718, 7
      %v3720 = vsub.s32 %v3717, %v3719
      %v3721 = vrot.slane %v3714, %v3720
      %v3722 = vcombine.low %v3705, %v3713
      %v3724 = vunpack.c.l.s4 1934713408
      %v3725 = vunpack.c.0.s8 %v3724
      %v3726 = vlaneseq
      %v3727 = vshrl.u32 %v3726, 7
      %v3728 = vsub.s32 %v3725, %v3727
      %v3729 = vrot.slane %v3722, %v3728
      %v3730 = vcombine.low %v3721, %v3729
      %v3731 = vcombine.high %v3721, %v3729
      %v3732 = vcombine.low %v2628, %v2692
      %v3734 = vunpack.c.l.s4 1983009808
      %v3735 = vunpack.c.0.s8 %v3734
      %v3736 = vlaneseq
      %v3737 = vshrl.u32 %v3736, 7
      %v3738 = vsub.s32 %v3735, %v3737
      %v3739 = vrot.slane %v3732, %v3738
      %v3740 = vcombine.low %v2660, %v2724
      %v3742 = vunpack.c.l.s4 1983009808
      %v3743 = vunpack.c.0.s8 %v3742
      %v3744 = vlaneseq
      %v3745 = vshrl.u32 %v3744, 7
      %v3746 = vsub.s32 %v3743, %v3745
      %v3747 = vrot.slane %v3740, %v3746
      %v3748 = vcombine.low %v2756, %v2820
      %v3750 = vunpack.c.l.s4 1983009808
      %v3751 = vunpack.c.0.s8 %v3750
      %v3752 = vlaneseq
      %v3753 = vshrl.u32 %v3752, 7
      %v3754 = vsub.s32 %v3751, %v3753
      %v3755 = vrot.slane %v3748, %v3754
      %v3756 = vcombine.low %v2788, %v2852
      %v3758 = vunpack.c.l.s4 1983009808
      %v3759 = vunpack.c.0.s8 %v3758
      %v3760 = vlaneseq
      %v3761 = vshrl.u32 %v3760, 7
      %v3762 = vsub.s32 %v3759, %v3761
      %v3763 = vrot.slane %v3756, %v3762
      %v3764 = vcombine.low %v3739, %v3747
      %v3766 = vunpack.c.l.s4 1934713408
      %v3767 = vunpack.c.0.s8 %v3766
      %v3768 = vlaneseq
      %v3769 = vshrl.u32 %v3768, 7
      %v3770 = vsub.s32 %v3767, %v3769
      %v3771 = vrot.slane %v3764, %v3770
      %v3772 = vcombine.low %v3755, %v3763
      %v3774 = vunpack.c.l.s4 1934713408
      %v3775 = vunpack.c.0.s8 %v3774
      %v3776 = vlaneseq
      %v3777 = vshrl.u32 %v3776, 7
      %v3778 = vsub.s32 %v3775, %v3777
      %v3779 = vrot.slane %v3772, %v3778
      %v3780 = vcombine.low %v3771, %v3779
      %v3781 = vcombine.high %v3771, %v3779
      %v3782 = vcombine.low %v2644, %v2708
      %v3784 = vunpack.c.l.s4 1983009808
      %v3785 = vunpack.c.0.s8 %v3784
      %v3786 = vlaneseq
      %v3787 = vshrl.u32 %v3786, 7
      %v3788 = vsub.s32 %v3785, %v3787
      %v3789 = vrot.slane %v3782, %v3788
      %v3790 = vcombine.low %v2676, %v2740
      %v3792 = vunpack.c.l.s4 1983009808
      %v3793 = vunpack.c.0.s8 %v3792
      %v3794 = vlaneseq
      %v3795 = vshrl.u32 %v3794, 7
      %v3796 = vsub.s32 %v3793, %v3795
      %v3797 = vrot.slane %v3790, %v3796
      %v3798 = vcombine.low %v2772, %v2836
      %v3800 = vunpack.c.l.s4 1983009808
      %v3801 = vunpack.c.0.s8 %v3800
      %v3802 = vlaneseq
      %v3803 = vshrl.u32 %v3802, 7
      %v3804 = vsub.s32 %v3801, %v3803
      %v3805 = vrot.slane %v3798, %v3804
      %v3806 = vcombine.low %v2804, %v2868
      %v3808 = vunpack.c.l.s4 1983009808
      %v3809 = vunpack.c.0.s8 %v3808
      %v3810 = vlaneseq
      %v3811 = vshrl.u32 %v3810, 7
      %v3812 = vsub.s32 %v3809, %v3811
      %v3813 = vrot.slane %v3806, %v3812
      %v3814 = vcombine.low %v3789, %v3797
      %v3816 = vunpack.c.l.s4 1934713408
      %v3817 = vunpack.c.0.s8 %v3816
      %v3818 = vlaneseq
      %v3819 = vshrl.u32 %v3818, 7
      %v3820 = vsub.s32 %v3817, %v3819
      %v3821 = vrot.slane %v3814, %v3820
      %v3822 = vcombine.low %v3805, %v3813
      %v3824 = vunpack.c.l.s4 1934713408
      %v3825 = vunpack.c.0.s8 %v3824
      %v3826 = vlaneseq
      %v3827 = vshrl.u32 %v3826, 7
      %v3828 = vsub.s32 %v3825, %v3827
      %v3829 = vrot.slane %v3822, %v3828
      %v3830 = vcombine.low %v3821, %v3829
      %v3831 = vcombine.high %v3821, %v3829
      %v3832 = vcombine.low %v2884, %v2948
      %v3834 = vunpack.c.l.s4 1983009808
      %v3835 = vunpack.c.0.s8 %v3834
      %v3836 = vlaneseq
      %v3837 = vshrl.u32 %v3836, 7
      %v3838 = vsub.s32 %v3835, %v3837
      %v3839 = vrot.slane %v3832, %v3838
      %v3840 = vcombine.low %v2916, %v2980
      %v3842 = vunpack.c.l.s4 1983009808
      %v3843 = vunpack.c.0.s8 %v3842
      %v3844 = vlaneseq
      %v3845 = vshrl.u32 %v3844, 7
      %v3846 = vsub.s32 %v3843, %v3845
      %v3847 = vrot.slane %v3840, %v3846
      %v3848 = vcombine.low %v3012, %v3076
      %v3850 = vunpack.c.l.s4 1983009808
      %v3851 = vunpack.c.0.s8 %v3850
      %v3852 = vlaneseq
      %v3853 = vshrl.u32 %v3852, 7
      %v3854 = vsub.s32 %v3851, %v3853
      %v3855 = vrot.slane %v3848, %v3854
      %v3856 = vcombine.low %v3044, %v3108
      %v3858 = vunpack.c.l.s4 1983009808
      %v3859 = vunpack.c.0.s8 %v3858
      %v3860 = vlaneseq
      %v3861 = vshrl.u32 %v3860, 7
      %v3862 = vsub.s32 %v3859, %v3861
      %v3863 = vrot.slane %v3856, %v3862
      %v3864 = vcombine.low %v3839, %v3847
      %v3866 = vunpack.c.l.s4 1934713408
      %v3867 = vunpack.c.0.s8 %v3866
      %v3868 = vlaneseq
      %v3869 = vshrl.u32 %v3868, 7
      %v3870 = vsub.s32 %v3867, %v3869
      %v3871 = vrot.slane %v3864, %v3870
      %v3872 = vcombine.low %v3855, %v3863
      %v3874 = vunpack.c.l.s4 1934713408
      %v3875 = vunpack.c.0.s8 %v3874
      %v3876 = vlaneseq
      %v3877 = vshrl.u32 %v3876, 7
      %v3878 = vsub.s32 %v3875, %v3877
      %v3879 = vrot.slane %v3872, %v3878
      %v3880 = vcombine.low %v3871, %v3879
      %v3881 = vcombine.high %v3871, %v3879
      %v3882 = vcombine.low %v2900, %v2964
      %v3884 = vunpack.c.l.s4 1983009808
      %v3885 = vunpack.c.0.s8 %v3884
      %v3886 = vlaneseq
      %v3887 = vshrl.u32 %v3886, 7
      %v3888 = vsub.s32 %v3885, %v3887
      %v3889 = vrot.slane %v3882, %v3888
      %v3890 = vcombine.low %v2932, %v2996
      %v3892 = vunpack.c.l.s4 1983009808
      %v3893 = vunpack.c.0.s8 %v3892
      %v3894 = vlaneseq
      %v3895 = vshrl.u32 %v3894, 7
      %v3896 = vsub.s32 %v3893, %v3895
      %v3897 = vrot.slane %v3890, %v3896
      %v3898 = vcombine.low %v3028, %v3092
      %v3900 = vunpack.c.l.s4 1983009808
      %v3901 = vunpack.c.0.s8 %v3900
      %v3902 = vlaneseq
      %v3903 = vshrl.u32 %v3902, 7
      %v3904 = vsub.s32 %v3901, %v3903
      %v3905 = vrot.slane %v3898, %v3904
      %v3906 = vcombine.low %v3060, %v3124
      %v3908 = vunpack.c.l.s4 1983009808
      %v3909 = vunpack.c.0.s8 %v3908
      %v3910 = vlaneseq
      %v3911 = vshrl.u32 %v3910, 7
      %v3912 = vsub.s32 %v3909, %v3911
      %v3913 = vrot.slane %v3906, %v3912
      %v3914 = vcombine.low %v3889, %v3897
      %v3916 = vunpack.c.l.s4 1934713408
      %v3917 = vunpack.c.0.s8 %v3916
      %v3918 = vlaneseq
      %v3919 = vshrl.u32 %v3918, 7
      %v3920 = vsub.s32 %v3917, %v3919
      %v3921 = vrot.slane %v3914, %v3920
      %v3922 = vcombine.low %v3905, %v3913
      %v3924 = vunpack.c.l.s4 1934713408
      %v3925 = vunpack.c.0.s8 %v3924
      %v3926 = vlaneseq
      %v3927 = vshrl.u32 %v3926, 7
      %v3928 = vsub.s32 %v3925, %v3927
      %v3929 = vrot.slane %v3922, %v3928
      %v3930 = vcombine.low %v3921, %v3929
      %v3931 = vcombine.high %v3921, %v3929
      %v3934 = vpack.i.b16 %v3230, %v3180
      %v3936 = vshrl.u32 %v3180, 16
      %v3937 = vshrl.u32 %v3230, 16
      %v3938 = vpack.i.b16 %v3937, %v3936
      %v3942 = vpack.i.b16 %v3231, %v3181
      %v3944 = vshrl.u32 %v3181, 16
      %v3945 = vshrl.u32 %v3231, 16
      %v3946 = vpack.i.b16 %v3945, %v3944
      %v3950 = vpack.i.b16 %v3330, %v3280
      %v3952 = vshrl.u32 %v3280, 16
      %v3953 = vshrl.u32 %v3330, 16
      %v3954 = vpack.i.b16 %v3953, %v3952
      %v3958 = vpack.i.b16 %v3331, %v3281
      %v3960 = vshrl.u32 %v3281, 16
      %v3961 = vshrl.u32 %v3331, 16
      %v3962 = vpack.i.b16 %v3961, %v3960
      %v3966 = vpack.i.b16 %v3430, %v3380
      %v3968 = vshrl.u32 %v3380, 16
      %v3969 = vshrl.u32 %v3430, 16
      %v3970 = vpack.i.b16 %v3969, %v3968
      %v3974 = vpack.i.b16 %v3431, %v3381
      %v3976 = vshrl.u32 %v3381, 16
      %v3977 = vshrl.u32 %v3431, 16
      %v3978 = vpack.i.b16 %v3977, %v3976
      %v3982 = vpack.i.b16 %v3530, %v3480
      %v3984 = vshrl.u32 %v3480, 16
      %v3985 = vshrl.u32 %v3530, 16
      %v3986 = vpack.i.b16 %v3985, %v3984
      %v3990 = vpack.i.b16 %v3531, %v3481
      %v3992 = vshrl.u32 %v3481, 16
      %v3993 = vshrl.u32 %v3531, 16
      %v3994 = vpack.i.b16 %v3993, %v3992
      %v3998 = vpack.i.b16 %v3630, %v3580
      %v4000 = vshrl.u32 %v3580, 16
      %v4001 = vshrl.u32 %v3630, 16
      %v4002 = vpack.i.b16 %v4001, %v4000
      %v4006 = vpack.i.b16 %v3631, %v3581
      %v4008 = vshrl.u32 %v3581, 16
      %v4009 = vshrl.u32 %v3631, 16
      %v4010 = vpack.i.b16 %v4009, %v4008
      %v4014 = vpack.i.b16 %v3730, %v3680
      %v4016 = vshrl.u32 %v3680, 16
      %v4017 = vshrl.u32 %v3730, 16
      %v4018 = vpack.i.b16 %v4017, %v4016
      %v4022 = vpack.i.b16 %v3731, %v3681
      %v4024 = vshrl.u32 %v3681, 16
      %v4025 = vshrl.u32 %v3731, 16
      %v4026 = vpack.i.b16 %v4025, %v4024
      %v4030 = vpack.i.b16 %v3830, %v3780
      %v4032 = vshrl.u32 %v3780, 16
      %v4033 = vshrl.u32 %v3830, 16
      %v4034 = vpack.i.b16 %v4033, %v4032
      %v4038 = vpack.i.b16 %v3831, %v3781
      %v4040 = vshrl.u32 %v3781, 16
      %v4041 = vshrl.u32 %v3831, 16
      %v4042 = vpack.i.b16 %v4041, %v4040
      %v4046 = vpack.i.b16 %v3930, %v3880
      %v4048 = vshrl.u32 %v3880, 16
      %v4049 = vshrl.u32 %v3930, 16
      %v4050 = vpack.i.b16 %v4049, %v4048
      %v4054 = vpack.i.b16 %v3931, %v3881
      %v4056 = vshrl.u32 %v3881, 16
      %v4057 = vshrl.u32 %v3931, 16
      %v4058 = vpack.i.b16 %v4057, %v4056
      %4060 = vmatprep.subr.bf16.mxu0 0
      %4061 = vmatpush1.bf16.msra.mxu0 %v3934
      %4062 = vmatprep.subr.bf16.mxu0 0
      %4063 = vmatpush1.bf16.msra.mxu0 %v3950
      %4064 = vmatprep.subr.bf16.mxu0 0
      %4065 = vmatpush1.bf16.msra.mxu0 %v3966
      %4066 = vmatprep.subr.bf16.mxu0 0
      %4067 = vmatpush1.bf16.msra.mxu0 %v3982
      %4068 = vmatprep.subr.bf16.mxu0 0
      %4069 = vmatpush1.bf16.msra.mxu0 %v3998
      %4070 = vmatprep.subr.bf16.mxu0 0
      %4071 = vmatpush1.bf16.msra.mxu0 %v4014
      %4072 = vmatprep.subr.bf16.mxu0 0
      %4073 = vmatpush1.bf16.msra.mxu0 %v4030
      %4074 = vmatprep.subr.bf16.mxu0 0
      %4075 = vmatpush1.bf16.msra.mxu0 %v4046
      %4076 = vmatprep.subr.bf16.mxu0 0
      %4077 = vmatpush1.bf16.msra.mxu0 0
      %4078 = vmatprep.subr.bf16.mxu0 0
      %4079 = vmatpush1.bf16.msra.mxu0 0
      %4080 = vmatprep.subr.bf16.mxu0 0
      %4081 = vmatpush1.bf16.msra.mxu0 0
      %4082 = vmatprep.subr.bf16.mxu0 0
      %4083 = vmatpush1.bf16.msra.mxu0 0
      %4084 = vmatprep.subr.bf16.mxu0 0
      %4085 = vmatpush1.bf16.msra.mxu0 0
      %4086 = vmatprep.subr.bf16.mxu0 0
      %4087 = vmatpush1.bf16.msra.mxu0 0
      %4088 = vmatprep.subr.bf16.mxu0 0
      %4089 = vmatpush1.bf16.msra.mxu0 0
      %4090 = vmatprep.subr.bf16.mxu0 0
      %4091 = vmatpush1.bf16.msra.mxu0 0
      %4092 = vmatprep.mubr.bf16.mxu0 0
      %4093 = vmatmul.mubr.bf16.gmra.mrb[0].mxu0 %v167
      %v4094 = vpop.f32.mrb[0].mxu0
      %v4095 = vadd.f32 0.0, %v4094
      %v4096 = vpop.f32.mrb[0].mxu0
      %v4097 = vpop.f32.mrb[0].mxu0
      %v4098 = vpop.f32.mrb[0].mxu0
      %4099 = vdwg.mxu0
      %4100 = vmatprep.subr.bf16.mxu0 0
      %4101 = vmatpush1.bf16.msra.mxu0 %v3938
      %4102 = vmatprep.subr.bf16.mxu0 0
      %4103 = vmatpush1.bf16.msra.mxu0 %v3954
      %4104 = vmatprep.subr.bf16.mxu0 0
      %4105 = vmatpush1.bf16.msra.mxu0 %v3970
      %4106 = vmatprep.subr.bf16.mxu0 0
      %4107 = vmatpush1.bf16.msra.mxu0 %v3986
      %4108 = vmatprep.subr.bf16.mxu0 0
      %4109 = vmatpush1.bf16.msra.mxu0 %v4002
      %4110 = vmatprep.subr.bf16.mxu0 0
      %4111 = vmatpush1.bf16.msra.mxu0 %v4018
      %4112 = vmatprep.subr.bf16.mxu0 0
      %4113 = vmatpush1.bf16.msra.mxu0 %v4034
      %4114 = vmatprep.subr.bf16.mxu0 0
      %4115 = vmatpush1.bf16.msra.mxu0 %v4050
      %4116 = vmatprep.subr.bf16.mxu0 0
      %4117 = vmatpush1.bf16.msra.mxu0 0
      %4118 = vmatprep.subr.bf16.mxu0 0
      %4119 = vmatpush1.bf16.msra.mxu0 0
      %4120 = vmatprep.subr.bf16.mxu0 0
      %4121 = vmatpush1.bf16.msra.mxu0 0
      %4122 = vmatprep.subr.bf16.mxu0 0
      %4123 = vmatpush1.bf16.msra.mxu0 0
      %4124 = vmatprep.subr.bf16.mxu0 0
      %4125 = vmatpush1.bf16.msra.mxu0 0
      %4126 = vmatprep.subr.bf16.mxu0 0
      %4127 = vmatpush1.bf16.msra.mxu0 0
      %4128 = vmatprep.subr.bf16.mxu0 0
      %4129 = vmatpush1.bf16.msra.mxu0 0
      %4130 = vmatprep.subr.bf16.mxu0 0
      %4131 = vmatpush1.bf16.msra.mxu0 0
      %4132 = vmatprep.mubr.bf16.mxu0 0
      %4133 = vmatmul.mubr.bf16.gmra.mrb[0].mxu0 %v176
      %v4134 = vpop.f32.mrb[0].mxu0
      %v4135 = vadd.f32 0.0, %v4134
      %v4136 = vpop.f32.mrb[0].mxu0
      %v4137 = vpop.f32.mrb[0].mxu0
      %v4138 = vpop.f32.mrb[0].mxu0
      %4139 = vdwg.mxu0
      %4140 = vmatprep.subr.bf16.mxu0 0
      %4141 = vmatpush1.bf16.msra.mxu0 %v3942
      %4142 = vmatprep.subr.bf16.mxu0 0
      %4143 = vmatpush1.bf16.msra.mxu0 %v3958
      %4144 = vmatprep.subr.bf16.mxu0 0
      %4145 = vmatpush1.bf16.msra.mxu0 %v3974
      %4146 = vmatprep.subr.bf16.mxu0 0
      %4147 = vmatpush1.bf16.msra.mxu0 %v3990
      %4148 = vmatprep.subr.bf16.mxu0 0
      %4149 = vmatpush1.bf16.msra.mxu0 %v4006
      %4150 = vmatprep.subr.bf16.mxu0 0
      %4151 = vmatpush1.bf16.msra.mxu0 %v4022
      %4152 = vmatprep.subr.bf16.mxu0 0
      %4153 = vmatpush1.bf16.msra.mxu0 %v4038
      %4154 = vmatprep.subr.bf16.mxu0 0
      %4155 = vmatpush1.bf16.msra.mxu0 %v4054
      %4156 = vmatprep.subr.bf16.mxu0 0
      %4157 = vmatpush1.bf16.msra.mxu0 0
      %4158 = vmatprep.subr.bf16.mxu0 0
      %4159 = vmatpush1.bf16.msra.mxu0 0
      %4160 = vmatprep.subr.bf16.mxu0 0
      %4161 = vmatpush1.bf16.msra.mxu0 0
      %4162 = vmatprep.subr.bf16.mxu0 0
      %4163 = vmatpush1.bf16.msra.mxu0 0
      %4164 = vmatprep.subr.bf16.mxu0 0
      %4165 = vmatpush1.bf16.msra.mxu0 0
      %4166 = vmatprep.subr.bf16.mxu0 0
      %4167 = vmatpush1.bf16.msra.mxu0 0
      %4168 = vmatprep.subr.bf16.mxu0 0
      %4169 = vmatpush1.bf16.msra.mxu0 0
      %4170 = vmatprep.subr.bf16.mxu0 0
      %4171 = vmatpush1.bf16.msra.mxu0 0
      %4172 = vmatprep.mubr.bf16.mxu0 0
      %4173 = vmatmul.mubr.bf16.gmra.mrb[0].mxu0 %v168
      %v4174 = vpop.f32.mrb[0].mxu0
      %v4175 = vadd.f32 0.0, %v4174
      %v4176 = vpop.f32.mrb[0].mxu0
      %v4177 = vpop.f32.mrb[0].mxu0
      %v4178 = vpop.f32.mrb[0].mxu0
      %4179 = vdwg.mxu0
      %4180 = vmatprep.subr.bf16.mxu0 0
      %4181 = vmatpush1.bf16.msra.mxu0 %v3946
      %4182 = vmatprep.subr.bf16.mxu0 0
      %4183 = vmatpush1.bf16.msra.mxu0 %v3962
      %4184 = vmatprep.subr.bf16.mxu0 0
      %4185 = vmatpush1.bf16.msra.mxu0 %v3978
      %4186 = vmatprep.subr.bf16.mxu0 0
      %4187 = vmatpush1.bf16.msra.mxu0 %v3994
      %4188 = vmatprep.subr.bf16.mxu0 0
      %4189 = vmatpush1.bf16.msra.mxu0 %v4010
      %4190 = vmatprep.subr.bf16.mxu0 0
      %4191 = vmatpush1.bf16.msra.mxu0 %v4026
      %4192 = vmatprep.subr.bf16.mxu0 0
      %4193 = vmatpush1.bf16.msra.mxu0 %v4042
      %4194 = vmatprep.subr.bf16.mxu0 0
      %4195 = vmatpush1.bf16.msra.mxu0 %v4058
      %4196 = vmatprep.subr.bf16.mxu0 0
      %4197 = vmatpush1.bf16.msra.mxu0 0
      %4198 = vmatprep.subr.bf16.mxu0 0
      %4199 = vmatpush1.bf16.msra.mxu0 0
      %4200 = vmatprep.subr.bf16.mxu0 0
      %4201 = vmatpush1.bf16.msra.mxu0 0
      %4202 = vmatprep.subr.bf16.mxu0 0
      %4203 = vmatpush1.bf16.msra.mxu0 0
      %4204 = vmatprep.subr.bf16.mxu0 0
      %4205 = vmatpush1.bf16.msra.mxu0 0
      %4206 = vmatprep.subr.bf16.mxu0 0
      %4207 = vmatpush1.bf16.msra.mxu0 0
      %4208 = vmatprep.subr.bf16.mxu0 0
      %4209 = vmatpush1.bf16.msra.mxu0 0
      %4210 = vmatprep.subr.bf16.mxu0 0
      %4211 = vmatpush1.bf16.msra.mxu0 0
      %4212 = vmatprep.mubr.bf16.mxu0 0
      %4213 = vmatmul.mubr.bf16.gmra.mrb[0].mxu0 %v177
      %v4214 = vpop.f32.mrb[0].mxu0
      %v4215 = vadd.f32 0.0, %v4214
      %v4216 = vpop.f32.mrb[0].mxu0
      %v4217 = vpop.f32.mrb[0].mxu0
      %v4218 = vpop.f32.mrb[0].mxu0
      %4219 = vdwg.mxu0
      %v4220 = vmul.f32 %v4095, 0.088388346
      %v4221 = vmul.f32 %v4135, 0.088388346
      %v4222 = vmul.f32 %v4175, 0.088388346
      %v4223 = vmul.f32 %v4215, 0.088388346
      %vm4224 = vcmask 9216
      %v4225 = vsel %vm4224, %v4220, -inf
      %4226 = vmax.xlane.f32.xlu0 %v4225
      %v4227 = vpop.xlane.xlu0 %4226
      %v4228 = vsel %vm4224, %v4221, -inf
      %4229 = vmax.xlane.f32.xlu0 %v4228
      %v4230 = vpop.xlane.xlu0 %4229
      %v4231 = vsel %vm4224, %v4222, -inf
      %4232 = vmax.xlane.f32.xlu0 %v4231
      %v4233 = vpop.xlane.xlu0 %4232
      %v4234 = vsel %vm4224, %v4223, -inf
      %4235 = vmax.xlane.f32.xlu0 %v4234
      %v4236 = vpop.xlane.xlu0 %4235
      %v4237 = vsub.f32 %v4220, %v4227
      %v4238 = vsub.f32 %v4221, %v4230
      %v4239 = vsub.f32 %v4222, %v4233
      %v4240 = vsub.f32 %v4223, %v4236
      %v4241 = vmul.f32 %v4237, 1.442695
      %v4242 = vpow.pop %v4241
      %v4243 = vmul.f32 %v4238, 1.442695
      %v4244 = vpow.pop %v4243
      %v4245 = vmul.f32 %v4239, 1.442695
      %v4246 = vpow.pop %v4245
      %v4247 = vmul.f32 %v4240, 1.442695
      %v4248 = vpow.pop %v4247
      %v4249 = vsel %vm4224, %v4242, 0.0
      %4250 = vadd.xlane.f32.xlu0 %v4249
      %v4251 = vpop.xlane.xlu0 %4250
      %v4252 = vsel %vm4224, %v4244, 0.0
      %4253 = vadd.xlane.f32.xlu0 %v4252
      %v4254 = vpop.xlane.xlu0 %4253
      %v4255 = vsel %vm4224, %v4246, 0.0
      %4256 = vadd.xlane.f32.xlu0 %v4255
      %v4257 = vpop.xlane.xlu0 %4256
      %v4258 = vsel %vm4224, %v4248, 0.0
      %4259 = vadd.xlane.f32.xlu0 %v4258
      %v4260 = vpop.xlane.xlu0 %4259
      %v4261 = vrcp.pop %v4251
      %v4262 = vrcp.pop %v4254
      %v4263 = vrcp.pop %v4257
      %v4264 = vrcp.pop %v4260
      %v4265 = vmul.f32 %v4242, %v4261
      %v4266 = vmul.f32 %v4244, %v4262
      %v4267 = vmul.f32 %v4246, %v4263
      %v4268 = vmul.f32 %v4248, %v4264
      %v4269 = vpack.c.bf16 %v4265, %v4265
      %v4270 = vpack.c.bf16 %v4266, %v4266
      %v4271 = vpack.c.bf16 %v4267, %v4267
      %v4272 = vpack.c.bf16 %v4268, %v4268
      %v4273 = vrot.slane %v152, 4
      %v4274 = vrot.slane %v153, 4
      %v4277 = vpack.i.b16 %v4274, %v4273
      %v4278 = vshrl.u32 %v4273, 16
      %v4279 = vshrl.u32 %v4274, 16
      %v4280 = vpack.i.b16 %v4279, %v4278
      %v4283 = vunpack.c.l.s4 1934713408
      %v4284 = vunpack.c.0.s8 %v4283
      %v4285 = vlaneseq
      %v4286 = vshrl.u32 %v4285, 7
      %v4287 = vsub.s32 %v4284, %v4286
      %v4288 = vrot.slane %v4277, %v4287
      %v4289 = vcombine.high %v4288, 0
      %v4292 = vunpack.c.l.s4 1934713408
      %v4293 = vunpack.c.0.s8 %v4292
      %v4294 = vlaneseq
      %v4295 = vshrl.u32 %v4294, 7
      %v4296 = vsub.s32 %v4293, %v4295
      %v4297 = vrot.slane %v4280, %v4296
      %v4298 = vcombine.high %v4297, 0
      %vm4299 = vcmask 15360
      %v4301 = vsel %vm4299, %v4269, 0
      %vm4303 = vcmask 1040384
      %v4305 = vsel %vm4303, %v4288, 0
      %4307 = vmatprep.subr.bf16.mxu0 0
      %4308 = vmatpush1.bf16.msra.mxu0 %v4305
      %4309 = vmatprep.subr.bf16.mxu0 0
      %4310 = vmatpush1.bf16.msra.mxu0 0
      %4311 = vmatprep.subr.bf16.mxu0 0
      %4312 = vmatpush1.bf16.msra.mxu0 0
      %4313 = vmatprep.subr.bf16.mxu0 0
      %4314 = vmatpush1.bf16.msra.mxu0 0
      %4315 = vmatprep.subr.bf16.mxu0 0
      %4316 = vmatpush1.bf16.msra.mxu0 0
      %4317 = vmatprep.subr.bf16.mxu0 0
      %4318 = vmatpush1.bf16.msra.mxu0 0
      %4319 = vmatprep.subr.bf16.mxu0 0
      %4320 = vmatpush1.bf16.msra.mxu0 0
      %4321 = vmatprep.subr.bf16.mxu0 0
      %4322 = vmatpush1.bf16.msra.mxu0 0
      %4323 = vmatprep.subr.bf16.mxu0 0
      %4324 = vmatpush1.bf16.msra.mxu0 0
      %4325 = vmatprep.subr.bf16.mxu0 0
      %4326 = vmatpush1.bf16.msra.mxu0 0
      %4327 = vmatprep.subr.bf16.mxu0 0
      %4328 = vmatpush1.bf16.msra.mxu0 0
      %4329 = vmatprep.subr.bf16.mxu0 0
      %4330 = vmatpush1.bf16.msra.mxu0 0
      %4331 = vmatprep.subr.bf16.mxu0 0
      %4332 = vmatpush1.bf16.msra.mxu0 0
      %4333 = vmatprep.subr.bf16.mxu0 0
      %4334 = vmatpush1.bf16.msra.mxu0 0
      %4335 = vmatprep.subr.bf16.mxu0 0
      %4336 = vmatpush1.bf16.msra.mxu0 0
      %4337 = vmatprep.subr.bf16.mxu0 0
      %4338 = vmatpush1.bf16.msra.mxu0 0
      %4339 = vmatprep.mubr.bf16.mxu0 0
      %4340 = vmatmul.mubr.bf16.gmra.mrb[0].mxu0 %v4301
      %v4341 = vpop.f32.mrb[0].mxu0
      %v4342 = vadd.f32 0.0, %v4341
      %v4343 = vpop.f32.mrb[0].mxu0
      %v4344 = vpop.f32.mrb[0].mxu0
      %v4345 = vpop.f32.mrb[0].mxu0
      %4346 = vdwg.mxu0
      %v4348 = vsel %vm4299, %v4270, 0
      %v4351 = vsel %vm4303, %v4297, 0
      %4353 = vmatprep.subr.bf16.mxu0 0
      %4354 = vmatpush1.bf16.msra.mxu0 %v4351
      %4355 = vmatprep.subr.bf16.mxu0 0
      %4356 = vmatpush1.bf16.msra.mxu0 0
      %4357 = vmatprep.subr.bf16.mxu0 0
      %4358 = vmatpush1.bf16.msra.mxu0 0
      %4359 = vmatprep.subr.bf16.mxu0 0
      %4360 = vmatpush1.bf16.msra.mxu0 0
      %4361 = vmatprep.subr.bf16.mxu0 0
      %4362 = vmatpush1.bf16.msra.mxu0 0
      %4363 = vmatprep.subr.bf16.mxu0 0
      %4364 = vmatpush1.bf16.msra.mxu0 0
      %4365 = vmatprep.subr.bf16.mxu0 0
      %4366 = vmatpush1.bf16.msra.mxu0 0
      %4367 = vmatprep.subr.bf16.mxu0 0
      %4368 = vmatpush1.bf16.msra.mxu0 0
      %4369 = vmatprep.subr.bf16.mxu0 0
      %4370 = vmatpush1.bf16.msra.mxu0 0
      %4371 = vmatprep.subr.bf16.mxu0 0
      %4372 = vmatpush1.bf16.msra.mxu0 0
      %4373 = vmatprep.subr.bf16.mxu0 0
      %4374 = vmatpush1.bf16.msra.mxu0 0
      %4375 = vmatprep.subr.bf16.mxu0 0
      %4376 = vmatpush1.bf16.msra.mxu0 0
      %4377 = vmatprep.subr.bf16.mxu0 0
      %4378 = vmatpush1.bf16.msra.mxu0 0
      %4379 = vmatprep.subr.bf16.mxu0 0
      %4380 = vmatpush1.bf16.msra.mxu0 0
      %4381 = vmatprep.subr.bf16.mxu0 0
      %4382 = vmatpush1.bf16.msra.mxu0 0
      %4383 = vmatprep.subr.bf16.mxu0 0
      %4384 = vmatpush1.bf16.msra.mxu0 0
      %4385 = vmatprep.mubr.bf16.mxu0 0
      %4386 = vmatmul.mubr.bf16.gmra.mrb[0].mxu0 %v4348
      %v4387 = vpop.f32.mrb[0].mxu0
      %v4388 = vadd.f32 0.0, %v4387
      %v4389 = vpop.f32.mrb[0].mxu0
      %v4390 = vpop.f32.mrb[0].mxu0
      %v4391 = vpop.f32.mrb[0].mxu0
      %4392 = vdwg.mxu0
      %v4394 = vsel %vm4299, %v4271, 0
      %v4397 = vsel %vm4303, %v4289, 0
      %4399 = vmatprep.subr.bf16.mxu0 0
      %4400 = vmatpush1.bf16.msra.mxu0 %v4397
      %4401 = vmatprep.subr.bf16.mxu0 0
      %4402 = vmatpush1.bf16.msra.mxu0 0
      %4403 = vmatprep.subr.bf16.mxu0 0
      %4404 = vmatpush1.bf16.msra.mxu0 0
      %4405 = vmatprep.subr.bf16.mxu0 0
      %4406 = vmatpush1.bf16.msra.mxu0 0
      %4407 = vmatprep.subr.bf16.mxu0 0
      %4408 = vmatpush1.bf16.msra.mxu0 0
      %4409 = vmatprep.subr.bf16.mxu0 0
      %4410 = vmatpush1.bf16.msra.mxu0 0
      %4411 = vmatprep.subr.bf16.mxu0 0
      %4412 = vmatpush1.bf16.msra.mxu0 0
      %4413 = vmatprep.subr.bf16.mxu0 0
      %4414 = vmatpush1.bf16.msra.mxu0 0
      %4415 = vmatprep.subr.bf16.mxu0 0
      %4416 = vmatpush1.bf16.msra.mxu0 0
      %4417 = vmatprep.subr.bf16.mxu0 0
      %4418 = vmatpush1.bf16.msra.mxu0 0
      %4419 = vmatprep.subr.bf16.mxu0 0
      %4420 = vmatpush1.bf16.msra.mxu0 0
      %4421 = vmatprep.subr.bf16.mxu0 0
      %4422 = vmatpush1.bf16.msra.mxu0 0
      %4423 = vmatprep.subr.bf16.mxu0 0
      %4424 = vmatpush1.bf16.msra.mxu0 0
      %4425 = vmatprep.subr.bf16.mxu0 0
      %4426 = vmatpush1.bf16.msra.mxu0 0
      %4427 = vmatprep.subr.bf16.mxu0 0
      %4428 = vmatpush1.bf16.msra.mxu0 0
      %4429 = vmatprep.subr.bf16.mxu0 0
      %4430 = vmatpush1.bf16.msra.mxu0 0
      %4431 = vmatprep.mubr.bf16.mxu0 0
      %4432 = vmatmul.mubr.bf16.gmra.mrb[0].mxu0 %v4394
      %v4433 = vpop.f32.mrb[0].mxu0
      %v4434 = vadd.f32 0.0, %v4433
      %v4435 = vpop.f32.mrb[0].mxu0
      %v4436 = vpop.f32.mrb[0].mxu0
      %v4437 = vpop.f32.mrb[0].mxu0
      %4438 = vdwg.mxu0
      %v4440 = vsel %vm4299, %v4272, 0
      %v4443 = vsel %vm4303, %v4298, 0
      %4445 = vmatprep.subr.bf16.mxu0 0
      %4446 = vmatpush1.bf16.msra.mxu0 %v4443
      %4447 = vmatprep.subr.bf16.mxu0 0
      %4448 = vmatpush1.bf16.msra.mxu0 0
      %4449 = vmatprep.subr.bf16.mxu0 0
      %4450 = vmatpush1.bf16.msra.mxu0 0
      %4451 = vmatprep.subr.bf16.mxu0 0
      %4452 = vmatpush1.bf16.msra.mxu0 0
      %4453 = vmatprep.subr.bf16.mxu0 0
      %4454 = vmatpush1.bf16.msra.mxu0 0
      %4455 = vmatprep.subr.bf16.mxu0 0
      %4456 = vmatpush1.bf16.msra.mxu0 0
      %4457 = vmatprep.subr.bf16.mxu0 0
      %4458 = vmatpush1.bf16.msra.mxu0 0
      %4459 = vmatprep.subr.bf16.mxu0 0
      %4460 = vmatpush1.bf16.msra.mxu0 0
      %4461 = vmatprep.subr.bf16.mxu0 0
      %4462 = vmatpush1.bf16.msra.mxu0 0
      %4463 = vmatprep.subr.bf16.mxu0 0
      %4464 = vmatpush1.bf16.msra.mxu0 0
      %4465 = vmatprep.subr.bf16.mxu0 0
      %4466 = vmatpush1.bf16.msra.mxu0 0
      %4467 = vmatprep.subr.bf16.mxu0 0
      %4468 = vmatpush1.bf16.msra.mxu0 0
      %4469 = vmatprep.subr.bf16.mxu0 0
      %4470 = vmatpush1.bf16.msra.mxu0 0
      %4471 = vmatprep.subr.bf16.mxu0 0
      %4472 = vmatpush1.bf16.msra.mxu0 0
      %4473 = vmatprep.subr.bf16.mxu0 0
      %4474 = vmatpush1.bf16.msra.mxu0 0
      %4475 = vmatprep.subr.bf16.mxu0 0
      %4476 = vmatpush1.bf16.msra.mxu0 0
      %4477 = vmatprep.mubr.bf16.mxu0 0
      %4478 = vmatmul.mubr.bf16.gmra.mrb[0].mxu0 %v4440
      %v4479 = vpop.f32.mrb[0].mxu0
      %v4480 = vadd.f32 0.0, %v4479
      %v4481 = vpop.f32.mrb[0].mxu0
      %v4482 = vpop.f32.mrb[0].mxu0
      %v4483 = vpop.f32.mrb[0].mxu0
      %4484 = vdwg.mxu0
      %v4485 = vcombine.low %v4342, %v4434
      %v4487 = vunpack.c.l.s4 1983009808
      %v4488 = vunpack.c.0.s8 %v4487
      %v4489 = vlaneseq
      %v4490 = vshrl.u32 %v4489, 7
      %v4491 = vsub.s32 %v4488, %v4490
      %v4492 = vrot.slane %v4485, %v4491
      %v4493 = vcombine.low %v4388, %v4480
      %v4495 = vunpack.c.l.s4 1983009808
      %v4496 = vunpack.c.0.s8 %v4495
      %v4497 = vlaneseq
      %v4498 = vshrl.u32 %v4497, 7
      %v4499 = vsub.s32 %v4496, %v4498
      %v4500 = vrot.slane %v4493, %v4499
      %v4501 = vcombine.low %v4492, %v4500
      %v4503 = vunpack.c.l.s4 1934713408
      %v4504 = vunpack.c.0.s8 %v4503
      %v4505 = vlaneseq
      %v4506 = vshrl.u32 %v4505, 7
      %v4507 = vsub.s32 %v4504, %v4506
      %v4508 = vrot.slane %v4501, %v4507
      %v4509 = vcombine.high %v4508, 0.0
      %v4510 = vpack.c.bf16 %v4508, %v4508
      %v4511 = vpack.c.bf16 %v4509, %v4509
      %4512 = vst [vmem:[%s150] sm:$0x3] %v4510
      %4513 = vst [vmem:[%s150 + $0x2] sm:$0x3] %v4511
      %p4514 = scmp.lt.s32.totalorder %s16, 1
      %s4515 = scalar_select %p4514, %s16, 1
      %p4516 = scmp.lt.s32.totalorder %s17, 0
      %s4517 = scalar_select %p4516, %s17, 0
      %s4518 = smul.addr %s4515, 2
      %s4519 = sadd.s32 %s4517, %s4518
      %s4520 = smul.addr %s4519, 2
      %s4521 = scalar_lea.vmem %s1, %s4520
      // Predicated region
      $region25: #{_lambda_.55} parent=23 // pred_check
        %p4522 = pneg %p72
      $region26: #{_lambda_.55} parent=23 // pred_check_branch
        %4524 = sbr.rel (%p4522) target = $region28
      $region27: #{_lambda_.55} parent=23 // pred_region
        _
      $region28: #{_lambda_.55} parent=23 // pred_fallthru
        _
    $region24: #{_lambda_.55} parent=5 // pred_fallthru
      _
    %p4525 = scmp.le.s32.totalorder 2, %s7
    // Predicated region
    $region29: #{_lambda_.55} parent=5 // pred_check
      %p4526 = pneg %p4525
    $region30: #{_lambda_.55} parent=5 // pred_check_branch
      %4528 = sbr.rel (%p4526) target = $region32
    $region31: #{_lambda_.55} parent=5 // pred_region
      %s4529 = ssub.s32 %s7, 2
      // Predicated region
      $region33: #{_lambda_.55} parent=31 // pred_check
        %p4530 = pneg %p78
      $region34: #{_lambda_.55} parent=31 // pred_check_branch
        %4532 = sbr.rel (%p4530) target = $region36
      $region35: #{_lambda_.55} parent=31 // pred_region
        %p4533 = scmp.lt.s32.totalorder %s18, 1
        %s4534 = scalar_select %p4533, %s18, 1
        %p4535 = scmp.lt.s32.totalorder %s19, 0
        %s4536 = scalar_select %p4535, %s19, 0
        %s4537 = smul.addr %s4534, 2
        %s4538 = sadd.s32 %s4536, %s4537
        %s4539 = smul.addr %s4538, 2
        %s4540 = scalar_lea.vmem %s1, %s4539
      $region36: #{_lambda_.55} parent=31 // pred_fallthru
        _
    $region32: #{_lambda_.55} parent=5 // pred_fallthru
      _
  $region6: #{_lambda_.55} parent=0 // loop_footer
    %s11 = sadd.s32 1, %s7
  $region7: #{_lambda_.55} parent=0 // loop_footer_branch
    %6 = sbr.rel target = $region3
  $region8: #{_lambda_.55} parent=0 // loop_exit
    _

</llo_original>
